<compile_context>
chip_gen: v6e
topology: v6e:2x2x1
jax: 0.10.0
libtpu: 0.0.40
codegen_flags: <defaults>
</compile_context>

<pallas_src>
import functools
import math

import jax
import jax.numpy as jnp
from jax import lax
from jax.experimental import pallas as pl
from jax.experimental.pallas import tpu as pltpu

BN_EPS = 1e-5
LANE = 128                       # lane-dense channel padding for activations
VMEM_LIMIT = 32 * 1024 * 1024    # explicit scoped-VMEM (covers v5e's 16 MiB default)


def _round_up(x, m):
    return (x + m - 1) // m * m


# --------------------------- Pallas kernels ---------------------------------

def _gemm_kernel(a_ref, b_ref, s_ref, o_ref, *, relu):
    acc = jnp.dot(a_ref[...], b_ref[...], preferred_element_type=jnp.float32)
    acc = acc + s_ref[...]
    if relu:
        acc = jnp.maximum(acc, 0.0)
    o_ref[...] = acc.astype(o_ref.dtype)


def _gemm_res_kernel(a_ref, b_ref, s_ref, r_ref, o_ref, *, relu):
    acc = jnp.dot(a_ref[...], b_ref[...], preferred_element_type=jnp.float32)
    acc = acc + s_ref[...] + r_ref[...].astype(jnp.float32)
    if relu:
        acc = jnp.maximum(acc, 0.0)
    o_ref[...] = acc.astype(o_ref.dtype)


def _gemm_split_relu_kernel(a_ref, b_ref, s_ref, o_ref, *, relu_cols):
    # Fused conv1 + downsample-1x1: ReLU only the first `relu_cols` lanes
    # (conv1 branch); the remaining lanes (identity branch) pass through.
    acc = jnp.dot(a_ref[...], b_ref[...], preferred_element_type=jnp.float32)
    acc = acc + s_ref[...]
    lane = lax.broadcasted_iota(jnp.int32, acc.shape, 1)
    acc = jnp.where(lane < relu_cols, jnp.maximum(acc, 0.0), acc)
    o_ref[...] = acc.astype(o_ref.dtype)


def _maxpool_kernel(ee_ref, eo_ref, oe_ref, oo_ref, o_ref):
    # 3x3 / stride-2 / pad-1 max-pool as a VPU maximum tree over the four
    # (even/odd row, even/odd col) parity planes of the (-inf padded) image.
    Ho, Wo = o_ref.shape[1], o_ref.shape[2]
    ee = ee_ref[...]
    eo = eo_ref[...]
    oe = oe_ref[...]
    oo = oo_ref[...]
    ce = jnp.maximum(jnp.maximum(ee[:, :, :Wo, :], eo[:, :, :Wo, :]),
                     ee[:, :, 1:Wo + 1, :])
    co = jnp.maximum(jnp.maximum(oe[:, :, :Wo, :], oo[:, :, :Wo, :]),
                     oe[:, :, 1:Wo + 1, :])
    out = jnp.maximum(jnp.maximum(ce[:, :Ho, :, :], co[:, :Ho, :, :]),
                      ce[:, 1:Ho + 1, :, :])
    o_ref[...] = out.astype(o_ref.dtype)


def _avgpool_fc_kernel(x_ref, w_ref, b_ref, o_ref):
    # Global average pool over the (flattened) spatial axis + FC, one kernel.
    pooled = jnp.mean(x_ref[...].astype(jnp.float32), axis=1)       # (Np, C)
    logits = jnp.dot(pooled.astype(jnp.bfloat16), w_ref[...],
                     preferred_element_type=jnp.float32) + b_ref[...]
    o_ref[...] = logits


# --------------------------- Pallas wrappers ---------------------------------

def _pick_row_tile(m):
    """Row tile TM (multiple of 16, bf16 sublanes) and padded M.

    Single grid block for M <= 1024 (single-TC chips gain nothing from
    splitting small GEMMs); TM=512 tiles only for large M (the stem)."""
    if m > 1024:
        return 512, _round_up(m, 512)
    tm = _round_up(max(m, 1), 16)
    return tm, tm


def gemm_bias_act(a, b, shift, *, relu=True, relu_cols=None, residual=None,
                  out_dtype=jnp.bfloat16):
    """out = epilogue( a @ b + shift (+ residual) ); bf16 MXU operands, f32 acc."""
    M, K = a.shape
    Kb, NP = b.shape
    assert K == Kb and K % LANE == 0 and NP % LANE == 0
    TM, Mp = _pick_row_tile(M)

    a = a.astype(jnp.bfloat16)
    if Mp != M:
        a = jnp.pad(a, ((0, Mp - M), (0, 0)))
    shift = shift.reshape(1, NP).astype(jnp.float32)

    in_specs = [
        pl.BlockSpec((TM, K), lambda i: (i, 0)),
        pl.BlockSpec((K, NP), lambda i: (0, 0)),
        pl.BlockSpec((1, NP), lambda i: (0, 0)),
    ]
    args = [a, b.astype(jnp.bfloat16), shift]
    if residual is not None:
        r = residual.astype(jnp.bfloat16)
        if Mp != M:
            r = jnp.pad(r, ((0, Mp - M), (0, 0)))
        in_specs.append(pl.BlockSpec((TM, NP), lambda i: (i, 0)))
        args.append(r)
        kernel = functools.partial(_gemm_res_kernel, relu=relu)
    elif relu_cols is not None:
        kernel = functools.partial(_gemm_split_relu_kernel, relu_cols=relu_cols)
    else:
        kernel = functools.partial(_gemm_kernel, relu=relu)

    out = pl.pallas_call(
        kernel,
        out_shape=jax.ShapeDtypeStruct((Mp, NP), out_dtype),
        grid=(Mp // TM,),
        in_specs=in_specs,
        out_specs=pl.BlockSpec((TM, NP), lambda i: (i, 0)),
        compiler_params=pltpu.CompilerParams(
            dimension_semantics=("parallel",),
            vmem_limit_bytes=VMEM_LIMIT),
    )(*args)
    return out if Mp == M else out[:M]


def _im2col_compact(x, cin, k, stride, pad, kp):
    """(N,H,W,C>=cin) -> (N,Ho,Wo,kp) patches over the REAL cin channels;
    the K padding (kp - k*k*cin zero lanes) is emitted in the same concat."""
    N, H, W, _ = x.shape
    Ho = (H + 2 * pad - k) // stride + 1
    Wo = (W + 2 * pad - k) // stride + 1
    xs = x[..., :cin]
    xp = jnp.pad(xs, ((0, 0), (pad, pad), (pad, pad), (0, 0)))
    cols = []
    for di in range(k):
        for dj in range(k):
            cols.append(xp[:, di:di + stride * Ho:stride,
                           dj:dj + stride * Wo:stride, :])
    K = k * k * cin
    if kp > K:
        cols.append(jnp.zeros((N, Ho, Wo, kp - K), x.dtype))
    return jnp.concatenate(cols, axis=-1), Ho, Wo


def conv_apply(x, spec, *, relu=True, relu_cols=None, residual=None):
    """Conv(+BN folded)+epilogue via compact-K im2col GEMM.
    x: (N,H,W,Cx) bf16 (lane-padded or raw); returns (N,Ho,Wo,NP) bf16."""
    N = x.shape[0]
    Kp, NP = spec["B"].shape
    a, Ho, Wo = _im2col_compact(x, spec["cin"], spec["k"],
                                spec["stride"], spec["pad"], Kp)
    M = N * Ho * Wo
    r = residual.reshape(M, LANE) if residual is not None else None
    y = gemm_bias_act(a.reshape(M, Kp), spec["B"], spec["shift"],
                      relu=relu, relu_cols=relu_cols, residual=r)
    return y.reshape(N, Ho, Wo, NP)


def maxpool_3x3_s2_p1(x):
    N, H, W, C = x.shape
    Ho = (H - 1) // 2 + 1
    Wo = (W - 1) // 2 + 1
    Hp, Wp = 2 * (Ho + 1), 2 * (Wo + 1)
    neg = jnp.asarray(-jnp.inf, x.dtype)
    xp = lax.pad(x, neg, ((0, 0, 0), (1, Hp - H - 1, 0), (1, Wp - W - 1, 0), (0, 0, 0)))
    ee = xp[:, 0::2, 0::2, :]
    eo = xp[:, 0::2, 1::2, :]
    oe = xp[:, 1::2, 0::2, :]
    oo = xp[:, 1::2, 1::2, :]
    Hh, Wh = Ho + 1, Wo + 1
    in_spec = pl.BlockSpec((N, Hh, Wh, C), lambda i: (0, 0, 0, 0))
    return pl.pallas_call(
        _maxpool_kernel,
        out_shape=jax.ShapeDtypeStruct((N, Ho, Wo, C), x.dtype),
        grid=(1,),
        in_specs=[in_spec] * 4,
        out_specs=pl.BlockSpec((N, Ho, Wo, C), lambda i: (0, 0, 0, 0)),
        compiler_params=pltpu.CompilerParams(vmem_limit_bytes=VMEM_LIMIT),
    )(ee, eo, oe, oo)


def avgpool_fc(x, w, b, num_classes):
    """Fused global average pool + FC (single pallas_call, single launch)."""
    N, H, W, C = x.shape
    xf = x.reshape(N, H * W, C)
    Np = _round_up(max(N, 8), 8)
    if Np != N:
        xf = jnp.pad(xf, ((0, Np - N), (0, 0), (0, 0)))
    NCp = w.shape[1]
    out = pl.pallas_call(
        _avgpool_fc_kernel,
        out_shape=jax.ShapeDtypeStruct((Np, NCp), jnp.float32),
        grid=(1,),
        in_specs=[pl.BlockSpec((Np, H * W, C), lambda i: (0, 0, 0)),
                  pl.BlockSpec((C, NCp), lambda i: (0, 0)),
                  pl.BlockSpec((1, NCp), lambda i: (0, 0))],
        out_specs=pl.BlockSpec((Np, NCp), lambda i: (0, 0)),
        compiler_params=pltpu.CompilerParams(vmem_limit_bytes=VMEM_LIMIT),
    )(xf, w, b)
    return out[:N, :num_classes]


# --------------------- config builder (mirrors PyTorch logic) ----------------

def _make_basic_block_cfg(inplanes, planes, width, stride, downsample):
    """Mirrors BasicBlock_flexi.__init__ channel-selection logic."""
    if downsample is not None and width is not None:
        c1_in = inplanes if width[0] is None else width[0]
        c1_out = width[1]
        c2_out = planes if width[2] is None else width[2]
    elif width is not None:
        c1_in, c1_out, c2_out = inplanes, width[1], inplanes
    else:
        c1_in, c1_out, c2_out = inplanes, planes, planes
    return dict(conv1=(c1_in, c1_out, stride),
                conv2=(c1_out, c2_out, 1),
                downsample=downsample)


def build_config(layers, width_list, num_classes=10):
    """Mirrors ResNet_flexi.__init__ / _make_layer with block=BasicBlock_flexi."""
    inplanes = 64
    if width_list[0] is not None:
        stem_out = width_list[0][0][0]
        inplanes = stem_out
    else:
        stem_out = 64
    cfg = dict(stem_out=stem_out, layers=[], num_classes=num_classes)
    planes_per_layer = (64, 128, 256, 512)
    for li in range(4):
        planes = planes_per_layer[li]
        wl = width_list[li]
        stride = 1 if li == 0 else 2
        nblocks = layers[li]
        downsample = None
        if stride != 1 or inplanes != planes:  # BasicBlock expansion == 1
            if wl is None:
                downsample = (inplanes, planes, stride)
            elif wl[0][0] is None:
                downsample = (inplanes, wl[0][-1], stride)
            else:
                downsample = (wl[0][0], wl[0][-1], stride)
        blocks = [_make_basic_block_cfg(inplanes, planes,
                                        None if wl is None else wl[0],
                                        stride, downsample)]
        if downsample is not None and wl is not None:
            inplanes = wl[0][-1]
        else:
            inplanes = planes
        for i in range(1, nblocks):
            w = None if wl is None else wl[i]
            blocks.append(_make_basic_block_cfg(inplanes, planes, w, 1, None))
        cfg["layers"].append(blocks)
    cfg["fc_in"] = inplanes
    return cfg


# --------------------------- parameter init ----------------------------------

class _KeyGen:
    def __init__(self, seed):
        self.key = jax.random.PRNGKey(seed)

    def __call__(self):
        self.key, sub = jax.random.split(self.key)
        return sub


def _init_conv(kg, cout, cin, k):
    fan_out = cout * k * k  # kaiming_normal_(mode='fan_out', relu)
    std = math.sqrt(2.0 / fan_out)
    return jax.random.normal(kg(), (cout, cin, k, k), jnp.float32) * std


def _init_bn(c):
    return dict(gamma=jnp.ones((c,), jnp.float32),
                beta=jnp.zeros((c,), jnp.float32),
                mean=jnp.zeros((c,), jnp.float32),
                var=jnp.ones((c,), jnp.float32))


def init_params(cfg, seed=0):
    kg = _KeyGen(seed)
    params = dict()
    params["conv1_w"] = _init_conv(kg, cfg["stem_out"], 3, 7)
    params["bn1"] = _init_bn(cfg["stem_out"])
    params["layers"] = []
    for blocks in cfg["layers"]:
        bl = []
        for b in blocks:
            c1_in, c1_out, _ = b["conv1"]
            c2_in, c2_out, _ = b["conv2"]
            p = dict(conv1_w=_init_conv(kg, c1_out, c1_in, 3), bn1=_init_bn(c1_out),
                     conv2_w=_init_conv(kg, c2_out, c2_in, 3), bn2=_init_bn(c2_out))
            if b["downsample"] is not None:
                d_in, d_out, _ = b["downsample"]
                p["down_w"] = _init_conv(kg, d_out, d_in, 1)
                p["down_bn"] = _init_bn(d_out)
            bl.append(p)
        params["layers"].append(bl)
    fc_in, nc = cfg["fc_in"], cfg["num_classes"]
    bound = 1.0 / math.sqrt(fc_in)
    params["fc_w"] = jax.random.uniform(kg(), (nc, fc_in), jnp.float32, -bound, bound)
    params["fc_b"] = jax.random.uniform(kg(), (nc,), jnp.float32, -bound, bound)
    return params


# ----------------- one-time weight preparation (hoisted) ---------------------

def _fold_bn(bn):
    scale = bn["gamma"] / jnp.sqrt(bn["var"] + BN_EPS)
    shift = bn["beta"] - bn["mean"] * scale
    return scale, shift


def _conv_bn_matrix(conv_w, bn):
    """(Cout,Cin,kh,kw)+BN -> (kh*kw*Cin, Cout) scale-folded f32, (Cout,) shift."""
    Cout, Cin, kh, kw = conv_w.shape
    scale, shift = _fold_bn(bn)
    w = jnp.transpose(conv_w, (2, 3, 1, 0)).reshape(kh * kw * Cin, Cout)
    return w * scale[None, :], shift


def _pad_nk(w, shift, kp, np_):
    K, Cout = w.shape
    b = jnp.pad(w, ((0, kp - K), (0, np_ - Cout))).astype(jnp.bfloat16)
    s = jnp.pad(shift, (0, np_ - Cout)).reshape(1, np_).astype(jnp.float32)
    return b, s


def _prep_plain(conv_w, bn, *, stride, pad):
    Cout, Cin, kh, kw = conv_w.shape
    assert Cout <= LANE
    w, s = _conv_bn_matrix(conv_w, bn)
    Kp = _round_up(w.shape[0], LANE)
    B, sh = _pad_nk(w, s, Kp, LANE)
    return dict(B=B, shift=sh, cin=Cin, k=kh, stride=stride, pad=pad)


def _prep_fused(conv_w, bn, down_w, down_bn, *, stride):
    """conv1 (3x3, pad 1, stride s) fused with downsample 1x1 (stride s):
    weights concatenated along N into (Kp, 256); downsample columns are
    nonzero only on the centre-tap rows of the contraction dim."""
    Cout1, Cin, kh, kw = conv_w.shape
    CoutD = down_w.shape[0]
    assert Cout1 <= LANE and CoutD <= LANE and down_w.shape[1] == Cin
    w1, s1 = _conv_bn_matrix(conv_w, bn)
    K = w1.shape[0]
    Kp = _round_up(K, LANE)
    scale_d, shift_d = _fold_bn(down_bn)
    wd_small = down_w[:, :, 0, 0].T * scale_d[None, :]          # (Cin, CoutD)
    center = (kh // 2) * kw + (kw // 2)
    wd = jnp.zeros((K, CoutD), jnp.float32)
    wd = wd.at[center * Cin:(center + 1) * Cin, :].set(wd_small)
    B1, sh1 = _pad_nk(w1, s1, Kp, LANE)
    Bd, shd = _pad_nk(wd, shift_d, Kp, LANE)
    return dict(B=jnp.concatenate([B1, Bd], axis=1),            # (Kp, 256)
                shift=jnp.concatenate([sh1, shd], axis=1),      # (1, 256)
                cin=Cin, k=kh, stride=stride, pad=1)


def prepare_params(params, cfg):
    """One-time: BN fold, transpose, compact-K pad, bf16 cast, downsample fuse."""
    prep = dict(num_classes=cfg["num_classes"])
    prep["stem"] = _prep_plain(params["conv1_w"], params["bn1"], stride=2, pad=3)
    prep["layers"] = []
    for blocks_cfg, blocks_p in zip(cfg["layers"], params["layers"]):
        blks = []
        for bcfg, bp in zip(blocks_cfg, blocks_p):
            c1_in, _, s1 = bcfg["conv1"]
            ds = bcfg["downsample"]
            fused = ds is not None and ds[0] == c1_in and ds[2] == s1
            blk = dict(fused=fused, down=None)
            if fused:
                blk["conv1"] = _prep_fused(bp["conv1_w"], bp["bn1"],
                                           bp["down_w"], bp["down_bn"], stride=s1)
            else:
                blk["conv1"] = _prep_plain(bp["conv1_w"], bp["bn1"], stride=s1, pad=1)
                if ds is not None:
                    blk["down"] = _prep_plain(bp["down_w"], bp["down_bn"],
                                              stride=ds[2], pad=0)
            blk["conv2"] = _prep_plain(bp["conv2_w"], bp["bn2"], stride=1, pad=1)
            blks.append(blk)
        prep["layers"].append(blks)
    fc_in, nc = cfg["fc_in"], cfg["num_classes"]
    assert fc_in <= LANE
    ncp = _round_up(nc, LANE)
    w = jnp.transpose(params["fc_w"])                           # (fc_in, nc)
    prep["fc_w"] = jnp.pad(w, ((0, LANE - fc_in), (0, ncp - nc))).astype(jnp.bfloat16)
    prep["fc_b"] = jnp.pad(params["fc_b"], (0, ncp - nc)).reshape(1, ncp).astype(jnp.float32)
    return prep


# ------------------------------ forward --------------------------------------

def resnet_flexi_forward(prep, x_nchw):
    x = jnp.transpose(x_nchw, (0, 2, 3, 1)).astype(jnp.bfloat16)   # NCHW -> NHWC

    # stem: conv7x7 s2 p3 + bn + relu, then maxpool 3x3 s2 p1
    x = conv_apply(x, prep["stem"], relu=True)                     # (N,H/2,W/2,128)
    x = maxpool_3x3_s2_p1(x)

    # residual layers (BasicBlock_flexi); activations stay lane-padded bf16
    for layer in prep["layers"]:
        for blk in layer:
            if blk["fused"]:
                # conv1 (ReLU'd) and downsample identity from one 256-wide GEMM
                y = conv_apply(x, blk["conv1"], relu_cols=LANE)
                out1, identity = y[..., :LANE], y[..., LANE:]
            else:
                identity = x
                out1 = conv_apply(x, blk["conv1"], relu=True)
                if blk["down"] is not None:
                    identity = conv_apply(x, blk["down"], relu=False)
            # conv2 + bn2 + residual add + ReLU fused in the GEMM epilogue
            x = conv_apply(out1, blk["conv2"], relu=True, residual=identity)

    # global average pool + FC fused in one kernel
    return avgpool_fc(x, prep["fc_w"], prep["fc_b"], prep["num_classes"])


# -------------------------------- main ----------------------------------------

if __name__ == "__main__":
    # Small flexi configuration (exercises the width_list branches of
    # BasicBlock_flexi and the flexi downsample paths).
    layers = [1, 1, 1, 1]
    width_list = [
        [[24, 16, 32]],        # layer1: stem=24 ch, block 24->16->32, 1x1 down 24->32
        [[None, 40, 48]],      # layer2: 32->40->48, stride 2, down 32->48
        [[None, 56, 64]],      # layer3: 48->56->64, stride 2, down 48->64
        [[None, 72, 80]],      # layer4: 64->72->80, stride 2, down 64->80
    ]
    cfg = build_config(layers, width_list, num_classes=10)
    params = init_params(cfg, seed=0)
    prep = prepare_params(params, cfg)   # one-time weight prep (hoisted)

    key = jax.random.PRNGKey(0)
    x = jax.random.normal(key, (2, 3, 64, 64), jnp.float32)  # NCHW, like PyTorch

    fwd = jax.jit(lambda inp: resnet_flexi_forward(prep, inp))
    out = jax.block_until_ready(fwd(x))

    assert out.shape == (2, cfg["num_classes"]), out.shape
    assert bool(jnp.all(jnp.isfinite(out)))
    print("KERNEL_OK")
</pallas_src>

<mosaic_0001>
module attributes {stable_mosaic.version = 11 : i64} {
  func.func @_gemm_kernel(%arg0: i32, %arg1: memref<512x256xbf16, #tpu.memory_space<vmem>>, %arg2: memref<256x128xbf16, #tpu.memory_space<vmem>>, %arg3: memref<1x128xf32, #tpu.memory_space<vmem>>, %arg4: memref<512x128xbf16, #tpu.memory_space<vmem>>) attributes {dimension_semantics = [#tpu.dimension_semantics<parallel>], iteration_bounds = array<i64: 4>, scalar_prefetch = 0 : i64, scratch_operands = 0 : i64, tpu.core_type = #tpu.core_type<tc>, window_params = [{transform_indices = @transform_0, window_bounds = array<i64: 512, 256>}, {pipeline_mode = #tpu.pipeline_mode<synchronous>, transform_indices = @transform_1, window_bounds = array<i64: 256, 128>}, {pipeline_mode = #tpu.pipeline_mode<synchronous>, transform_indices = @transform_2, window_bounds = array<i64: 1, 128>}, {transform_indices = @transform_3, window_bounds = array<i64: 512, 128>}]} {
    %c0 = arith.constant 0 : index
    %c0_0 = arith.constant 0 : index
    %0 = vector.load %arg1[%c0, %c0_0] : memref<512x256xbf16, #tpu.memory_space<vmem>>, vector<512x256xbf16>
    %c0_1 = arith.constant 0 : index
    %c0_2 = arith.constant 0 : index
    %1 = vector.load %arg2[%c0_1, %c0_2] : memref<256x128xbf16, #tpu.memory_space<vmem>>, vector<256x128xbf16>
    %cst = arith.constant dense<0.000000e+00> : vector<512x128xf32>
    %2 = tpu.matmul %0, %1, %cst {dimension_numbers = #tpu.dot_dimension_numbers<[1], [0], [0], [1], [0, 0, 1, 1], [], []>} : vector<512x256xbf16>, vector<256x128xbf16>, vector<512x128xf32> -> vector<512x128xf32>
    %c0_3 = arith.constant 0 : index
    %c0_4 = arith.constant 0 : index
    %3 = vector.load %arg3[%c0_3, %c0_4] : memref<1x128xf32, #tpu.memory_space<vmem>>, vector<1x128xf32>
    %4 = vector.broadcast %3 : vector<1x128xf32> to vector<512x128xf32>
    %5 = arith.addf %2, %4 : vector<512x128xf32>
    %cst_5 = arith.constant 0.000000e+00 : f32
    %6 = vector.broadcast %cst_5 : f32 to vector<512x128xf32>
    %7 = arith.maximumf %5, %6 : vector<512x128xf32>
    %8 = arith.truncf %7 : vector<512x128xf32> to vector<512x128xbf16>
    %c0_6 = arith.constant 0 : index
    %c0_7 = arith.constant 0 : index
    %9 = vector.load %arg4[%c0_6, %c0_7] : memref<512x128xbf16, #tpu.memory_space<vmem>>, vector<512x128xbf16>
    tpu.vector_store %arg4[%c0_6, %c0_7], %8 {strides = array<i32>} : memref<512x128xbf16, #tpu.memory_space<vmem>>, vector<512x128xbf16>,
    return
  }
  func.func @transform_0(%arg0: i32) -> (i32, i32) {
    %c0_i32 = arith.constant 0 : i32
    %c0_i32_0 = arith.constant 0 : i32
    return %arg0, %c0_i32 : i32, i32
  }
  func.func @transform_1(%arg0: i32) -> (i32, i32) {
    %c0_i32 = arith.constant 0 : i32
    %c0_i32_0 = arith.constant 0 : i32
    %c0_i32_1 = arith.constant 0 : i32
    return %c0_i32, %c0_i32_0 : i32, i32
  }
  func.func @transform_2(%arg0: i32) -> (i32, i32) {
    %c0_i32 = arith.constant 0 : i32
    %c0_i32_0 = arith.constant 0 : i32
    %c0_i32_1 = arith.constant 0 : i32
    return %c0_i32, %c0_i32_0 : i32, i32
  }
  func.func @transform_3(%arg0: i32) -> (i32, i32) {
    %c0_i32 = arith.constant 0 : i32
    %c0_i32_0 = arith.constant 0 : i32
    return %arg0, %c0_i32 : i32, i32
  }
}

module attributes {stable_mosaic.version = 11 : i64} {
  func.func @_maxpool_kernel(%arg0: i32, %arg1: memref<2x17x17x128xbf16, #tpu.memory_space<vmem>>, %arg2: memref<2x17x17x128xbf16, #tpu.memory_space<vmem>>, %arg3: memref<2x17x17x128xbf16, #tpu.memory_space<vmem>>, %arg4: memref<2x17x17x128xbf16, #tpu.memory_space<vmem>>, %arg5: memref<2x16x16x128xbf16, #tpu.memory_space<vmem>>) attributes {dimension_semantics = [#tpu.dimension_semantics<arbitrary>], iteration_bounds = array<i64: 1>, scalar_prefetch = 0 : i64, scratch_operands = 0 : i64, tpu.core_type = #tpu.core_type<tc>, window_params = [{pipeline_mode = #tpu.pipeline_mode<synchronous>, transform_indices = @transform_0, window_bounds = array<i64: 2, 17, 17, 128>}, {pipeline_mode = #tpu.pipeline_mode<synchronous>, transform_indices = @transform_1, window_bounds = array<i64: 2, 17, 17, 128>}, {pipeline_mode = #tpu.pipeline_mode<synchronous>, transform_indices = @transform_2, window_bounds = array<i64: 2, 17, 17, 128>}, {pipeline_mode = #tpu.pipeline_mode<synchronous>, transform_indices = @transform_3, window_bounds = array<i64: 2, 17, 17, 128>}, {pipeline_mode = #tpu.pipeline_mode<synchronous>, transform_indices = @transform_4, window_bounds = array<i64: 2, 16, 16, 128>}]} {
    %c0 = arith.constant 0 : index
    %c0_0 = arith.constant 0 : index
    %c0_1 = arith.constant 0 : index
    %c0_2 = arith.constant 0 : index
    %0 = vector.load %arg1[%c0, %c0_0, %c0_1, %c0_2] : memref<2x17x17x128xbf16, #tpu.memory_space<vmem>>, vector<2x17x17x128xbf16>
    %c0_3 = arith.constant 0 : index
    %c0_4 = arith.constant 0 : index
    %c0_5 = arith.constant 0 : index
    %c0_6 = arith.constant 0 : index
    %1 = vector.load %arg2[%c0_3, %c0_4, %c0_5, %c0_6] : memref<2x17x17x128xbf16, #tpu.memory_space<vmem>>, vector<2x17x17x128xbf16>
    %c0_7 = arith.constant 0 : index
    %c0_8 = arith.constant 0 : index
    %c0_9 = arith.constant 0 : index
    %c0_10 = arith.constant 0 : index
    %2 = vector.load %arg3[%c0_7, %c0_8, %c0_9, %c0_10] : memref<2x17x17x128xbf16, #tpu.memory_space<vmem>>, vector<2x17x17x128xbf16>
    %c0_11 = arith.constant 0 : index
    %c0_12 = arith.constant 0 : index
    %c0_13 = arith.constant 0 : index
    %c0_14 = arith.constant 0 : index
    %3 = vector.load %arg4[%c0_11, %c0_12, %c0_13, %c0_14] : memref<2x17x17x128xbf16, #tpu.memory_space<vmem>>, vector<2x17x17x128xbf16>
    %4 = vector.extract_strided_slice %0 {offsets = [0, 0, 0, 0], sizes = [2, 17, 16, 128], strides = [1, 1, 1, 1]} : vector<2x17x17x128xbf16> to vector<2x17x16x128xbf16>
    %5 = vector.extract_strided_slice %1 {offsets = [0, 0, 0, 0], sizes = [2, 17, 16, 128], strides = [1, 1, 1, 1]} : vector<2x17x17x128xbf16> to vector<2x17x16x128xbf16>
    %6 = arith.maximumf %4, %5 : vector<2x17x16x128xbf16>
    %7 = vector.extract_strided_slice %0 {offsets = [0, 0, 1, 0], sizes = [2, 17, 16, 128], strides = [1, 1, 1, 1]} : vector<2x17x17x128xbf16> to vector<2x17x16x128xbf16>
    %8 = arith.maximumf %6, %7 : vector<2x17x16x128xbf16>
    %9 = vector.extract_strided_slice %2 {offsets = [0, 0, 0, 0], sizes = [2, 17, 16, 128], strides = [1, 1, 1, 1]} : vector<2x17x17x128xbf16> to vector<2x17x16x128xbf16>
    %10 = vector.extract_strided_slice %3 {offsets = [0, 0, 0, 0], sizes = [2, 17, 16, 128], strides = [1, 1, 1, 1]} : vector<2x17x17x128xbf16> to vector<2x17x16x128xbf16>
    %11 = arith.maximumf %9, %10 : vector<2x17x16x128xbf16>
    %12 = vector.extract_strided_slice %2 {offsets = [0, 0, 1, 0], sizes = [2, 17, 16, 128], strides = [1, 1, 1, 1]} : vector<2x17x17x128xbf16> to vector<2x17x16x128xbf16>
    %13 = arith.maximumf %11, %12 : vector<2x17x16x128xbf16>
    %14 = vector.extract_strided_slice %8 {offsets = [0, 0, 0, 0], sizes = [2, 16, 16, 128], strides = [1, 1, 1, 1]} : vector<2x17x16x128xbf16> to vector<2x16x16x128xbf16>
    %15 = vector.extract_strided_slice %13 {offsets = [0, 0, 0, 0], sizes = [2, 16, 16, 128], strides = [1, 1, 1, 1]} : vector<2x17x16x128xbf16> to vector<2x16x16x128xbf16>
    %16 = arith.maximumf %14, %15 : vector<2x16x16x128xbf16>
    %17 = vector.extract_strided_slice %8 {offsets = [0, 1, 0, 0], sizes = [2, 16, 16, 128], strides = [1, 1, 1, 1]} : vector<2x17x16x128xbf16> to vector<2x16x16x128xbf16>
    %18 = arith.maximumf %16, %17 : vector<2x16x16x128xbf16>
    %c0_15 = arith.constant 0 : index
    %c0_16 = arith.constant 0 : index
    %c0_17 = arith.constant 0 : index
    %c0_18 = arith.constant 0 : index
    %19 = vector.load %arg5[%c0_15, %c0_16, %c0_17, %c0_18] : memref<2x16x16x128xbf16, #tpu.memory_space<vmem>>, vector<2x16x16x128xbf16>
    tpu.vector_store %arg5[%c0_15, %c0_16, %c0_17, %c0_18], %18 {strides = array<i32>} : memref<2x16x16x128xbf16, #tpu.memory_space<vmem>>, vector<2x16x16x128xbf16>,
    return
  }
  func.func @transform_0(%arg0: i32) -> (i32, i32, i32, i32) {
    %c0_i32 = arith.constant 0 : i32
    %c0_i32_0 = arith.constant 0 : i32
    %c0_i32_1 = arith.constant 0 : i32
    %c0_i32_2 = arith.constant 0 : i32
    %c0_i32_3 = arith.constant 0 : i32
    return %c0_i32, %c0_i32_0, %c0_i32_1, %c0_i32_2 : i32, i32, i32, i32
  }
  func.func @transform_1(%arg0: i32) -> (i32, i32, i32, i32) {
    %c0_i32 = arith.constant 0 : i32
    %c0_i32_0 = arith.constant 0 : i32
    %c0_i32_1 = arith.constant 0 : i32
    %c0_i32_2 = arith.constant 0 : i32
    %c0_i32_3 = arith.constant 0 : i32
    return %c0_i32, %c0_i32_0, %c0_i32_1, %c0_i32_2 : i32, i32, i32, i32
  }
  func.func @transform_2(%arg0: i32) -> (i32, i32, i32, i32) {
    %c0_i32 = arith.constant 0 : i32
    %c0_i32_0 = arith.constant 0 : i32
    %c0_i32_1 = arith.constant 0 : i32
    %c0_i32_2 = arith.constant 0 : i32
    %c0_i32_3 = arith.constant 0 : i32
    return %c0_i32, %c0_i32_0, %c0_i32_1, %c0_i32_2 : i32, i32, i32, i32
  }
  func.func @transform_3(%arg0: i32) -> (i32, i32, i32, i32) {
    %c0_i32 = arith.constant 0 : i32
    %c0_i32_0 = arith.constant 0 : i32
    %c0_i32_1 = arith.constant 0 : i32
    %c0_i32_2 = arith.constant 0 : i32
    %c0_i32_3 = arith.constant 0 : i32
    return %c0_i32, %c0_i32_0, %c0_i32_1, %c0_i32_2 : i32, i32, i32, i32
  }
  func.func @transform_4(%arg0: i32) -> (i32, i32, i32, i32) {
    %c0_i32 = arith.constant 0 : i32
    %c0_i32_0 = arith.constant 0 : i32
    %c0_i32_1 = arith.constant 0 : i32
    %c0_i32_2 = arith.constant 0 : i32
    %c0_i32_3 = arith.constant 0 : i32
    return %c0_i32, %c0_i32_0, %c0_i32_1, %c0_i32_2 : i32, i32, i32, i32
  }
}

module attributes {stable_mosaic.version = 11 : i64} {
  func.func @_gemm_split_relu_kernel(%arg0: i32, %arg1: memref<512x256xbf16, #tpu.memory_space<vmem>>, %arg2: memref<256x256xbf16, #tpu.memory_space<vmem>>, %arg3: memref<1x256xf32, #tpu.memory_space<vmem>>, %arg4: memref<512x256xbf16, #tpu.memory_space<vmem>>) attributes {dimension_semantics = [#tpu.dimension_semantics<parallel>], iteration_bounds = array<i64: 1>, scalar_prefetch = 0 : i64, scratch_operands = 0 : i64, tpu.core_type = #tpu.core_type<tc>, window_params = [{transform_indices = @transform_0, window_bounds = array<i64: 512, 256>}, {pipeline_mode = #tpu.pipeline_mode<synchronous>, transform_indices = @transform_1, window_bounds = array<i64: 256, 256>}, {pipeline_mode = #tpu.pipeline_mode<synchronous>, transform_indices = @transform_2, window_bounds = array<i64: 1, 256>}, {transform_indices = @transform_3, window_bounds = array<i64: 512, 256>}]} {
    %c0 = arith.constant 0 : index
    %c0_0 = arith.constant 0 : index
    %0 = vector.load %arg1[%c0, %c0_0] : memref<512x256xbf16, #tpu.memory_space<vmem>>, vector<512x256xbf16>
    %c0_1 = arith.constant 0 : index
    %c0_2 = arith.constant 0 : index
    %1 = vector.load %arg2[%c0_1, %c0_2] : memref<256x256xbf16, #tpu.memory_space<vmem>>, vector<256x256xbf16>
    %cst = arith.constant dense<0.000000e+00> : vector<512x256xf32>
    %2 = tpu.matmul %0, %1, %cst {dimension_numbers = #tpu.dot_dimension_numbers<[1], [0], [0], [1], [0, 0, 1, 1], [], []>} : vector<512x256xbf16>, vector<256x256xbf16>, vector<512x256xf32> -> vector<512x256xf32>
    %c0_3 = arith.constant 0 : index
    %c0_4 = arith.constant 0 : index
    %3 = vector.load %arg3[%c0_3, %c0_4] : memref<1x256xf32, #tpu.memory_space<vmem>>, vector<1x256xf32>
    %4 = vector.broadcast %3 : vector<1x256xf32> to vector<512x256xf32>
    %5 = arith.addf %2, %4 : vector<512x256xf32>
    %6 = tpu.iota {dimensions = array<i32: 1>} : vector<512x256xi32>
    %c128_i32 = arith.constant 128 : i32
    %7 = vector.broadcast %c128_i32 : i32 to vector<512x256xi32>
    %8 = arith.cmpi slt, %6, %7 : vector<512x256xi32>
    %cst_5 = arith.constant 0.000000e+00 : f32
    %9 = vector.broadcast %cst_5 : f32 to vector<512x256xf32>
    %10 = arith.maximumf %5, %9 : vector<512x256xf32>
    %11 = arith.select %8, %10, %5 : vector<512x256xi1>, vector<512x256xf32>
    %12 = arith.truncf %11 : vector<512x256xf32> to vector<512x256xbf16>
    %c0_6 = arith.constant 0 : index
    %c0_7 = arith.constant 0 : index
    %13 = vector.load %arg4[%c0_6, %c0_7] : memref<512x256xbf16, #tpu.memory_space<vmem>>, vector<512x256xbf16>
    tpu.vector_store %arg4[%c0_6, %c0_7], %12 {strides = array<i32>} : memref<512x256xbf16, #tpu.memory_space<vmem>>, vector<512x256xbf16>,
    return
  }
  func.func @transform_0(%arg0: i32) -> (i32, i32) {
    %c0_i32 = arith.constant 0 : i32
    %c0_i32_0 = arith.constant 0 : i32
    return %arg0, %c0_i32 : i32, i32
  }
  func.func @transform_1(%arg0: i32) -> (i32, i32) {
    %c0_i32 = arith.constant 0 : i32
    %c0_i32_0 = arith.constant 0 : i32
    %c0_i32_1 = arith.constant 0 : i32
    return %c0_i32, %c0_i32_0 : i32, i32
  }
  func.func @transform_2(%arg0: i32) -> (i32, i32) {
    %c0_i32 = arith.constant 0 : i32
    %c0_i32_0 = arith.constant 0 : i32
    %c0_i32_1 = arith.constant 0 : i32
    return %c0_i32, %c0_i32_0 : i32, i32
  }
  func.func @transform_3(%arg0: i32) -> (i32, i32) {
    %c0_i32 = arith.constant 0 : i32
    %c0_i32_0 = arith.constant 0 : i32
    return %arg0, %c0_i32 : i32, i32
  }
}

module attributes {stable_mosaic.version = 11 : i64} {
  func.func @_gemm_res_kernel(%arg0: i32, %arg1: memref<512x256xbf16, #tpu.memory_space<vmem>>, %arg2: memref<256x128xbf16, #tpu.memory_space<vmem>>, %arg3: memref<1x128xf32, #tpu.memory_space<vmem>>, %arg4: memref<512x128xbf16, #tpu.memory_space<vmem>>, %arg5: memref<512x128xbf16, #tpu.memory_space<vmem>>) attributes {dimension_semantics = [#tpu.dimension_semantics<parallel>], iteration_bounds = array<i64: 1>, scalar_prefetch = 0 : i64, scratch_operands = 0 : i64, tpu.core_type = #tpu.core_type<tc>, window_params = [{transform_indices = @transform_0, window_bounds = array<i64: 512, 256>}, {pipeline_mode = #tpu.pipeline_mode<synchronous>, transform_indices = @transform_1, window_bounds = array<i64: 256, 128>}, {pipeline_mode = #tpu.pipeline_mode<synchronous>, transform_indices = @transform_2, window_bounds = array<i64: 1, 128>}, {transform_indices = @transform_3, window_bounds = array<i64: 512, 128>}, {transform_indices = @transform_4, window_bounds = array<i64: 512, 128>}]} {
    %c0 = arith.constant 0 : index
    %c0_0 = arith.constant 0 : index
    %0 = vector.load %arg1[%c0, %c0_0] : memref<512x256xbf16, #tpu.memory_space<vmem>>, vector<512x256xbf16>
    %c0_1 = arith.constant 0 : index
    %c0_2 = arith.constant 0 : index
    %1 = vector.load %arg2[%c0_1, %c0_2] : memref<256x128xbf16, #tpu.memory_space<vmem>>, vector<256x128xbf16>
    %cst = arith.constant dense<0.000000e+00> : vector<512x128xf32>
    %2 = tpu.matmul %0, %1, %cst {dimension_numbers = #tpu.dot_dimension_numbers<[1], [0], [0], [1], [0, 0, 1, 1], [], []>} : vector<512x256xbf16>, vector<256x128xbf16>, vector<512x128xf32> -> vector<512x128xf32>
    %c0_3 = arith.constant 0 : index
    %c0_4 = arith.constant 0 : index
    %3 = vector.load %arg3[%c0_3, %c0_4] : memref<1x128xf32, #tpu.memory_space<vmem>>, vector<1x128xf32>
    %4 = vector.broadcast %3 : vector<1x128xf32> to vector<512x128xf32>
    %5 = arith.addf %2, %4 : vector<512x128xf32>
    %c0_5 = arith.constant 0 : index
    %c0_6 = arith.constant 0 : index
    %6 = vector.load %arg4[%c0_5, %c0_6] : memref<512x128xbf16, #tpu.memory_space<vmem>>, vector<512x128xbf16>
    %7 = arith.extf %6 : vector<512x128xbf16> to vector<512x128xf32>
    %8 = arith.addf %5, %7 : vector<512x128xf32>
    %cst_7 = arith.constant 0.000000e+00 : f32
    %9 = vector.broadcast %cst_7 : f32 to vector<512x128xf32>
    %10 = arith.maximumf %8, %9 : vector<512x128xf32>
    %11 = arith.truncf %10 : vector<512x128xf32> to vector<512x128xbf16>
    %c0_8 = arith.constant 0 : index
    %c0_9 = arith.constant 0 : index
    %12 = vector.load %arg5[%c0_8, %c0_9] : memref<512x128xbf16, #tpu.memory_space<vmem>>, vector<512x128xbf16>
    tpu.vector_store %arg5[%c0_8, %c0_9], %11 {strides = array<i32>} : memref<512x128xbf16, #tpu.memory_space<vmem>>, vector<512x128xbf16>,
    return
  }
  func.func @transform_0(%arg0: i32) -> (i32, i32) {
    %c0_i32 = arith.constant 0 : i32
    %c0_i32_0 = arith.constant 0 : i32
    return %arg0, %c0_i32 : i32, i32
  }
  func.func @transform_1(%arg0: i32) -> (i32, i32) {
    %c0_i32 = arith.constant 0 : i32
    %c0_i32_0 = arith.constant 0 : i32
    %c0_i32_1 = arith.constant 0 : i32
    return %c0_i32, %c0_i32_0 : i32, i32
  }
  func.func @transform_2(%arg0: i32) -> (i32, i32) {
    %c0_i32 = arith.constant 0 : i32
    %c0_i32_0 = arith.constant 0 : i32
    %c0_i32_1 = arith.constant 0 : i32
    return %c0_i32, %c0_i32_0 : i32, i32
  }
  func.func @transform_3(%arg0: i32) -> (i32, i32) {
    %c0_i32 = arith.constant 0 : i32
    %c0_i32_0 = arith.constant 0 : i32
    return %arg0, %c0_i32 : i32, i32
  }
  func.func @transform_4(%arg0: i32) -> (i32, i32) {
    %c0_i32 = arith.constant 0 : i32
    %c0_i32_0 = arith.constant 0 : i32
    return %arg0, %c0_i32 : i32, i32
  }
}

module attributes {stable_mosaic.version = 11 : i64} {
  func.func @_gemm_split_relu_kernel(%arg0: i32, %arg1: memref<128x384xbf16, #tpu.memory_space<vmem>>, %arg2: memref<384x256xbf16, #tpu.memory_space<vmem>>, %arg3: memref<1x256xf32, #tpu.memory_space<vmem>>, %arg4: memref<128x256xbf16, #tpu.memory_space<vmem>>) attributes {dimension_semantics = [#tpu.dimension_semantics<parallel>], iteration_bounds = array<i64: 1>, scalar_prefetch = 0 : i64, scratch_operands = 0 : i64, tpu.core_type = #tpu.core_type<tc>, window_params = [{transform_indices = @transform_0, window_bounds = array<i64: 128, 384>}, {pipeline_mode = #tpu.pipeline_mode<synchronous>, transform_indices = @transform_1, window_bounds = array<i64: 384, 256>}, {pipeline_mode = #tpu.pipeline_mode<synchronous>, transform_indices = @transform_2, window_bounds = array<i64: 1, 256>}, {transform_indices = @transform_3, window_bounds = array<i64: 128, 256>}]} {
    %c0 = arith.constant 0 : index
    %c0_0 = arith.constant 0 : index
    %0 = vector.load %arg1[%c0, %c0_0] : memref<128x384xbf16, #tpu.memory_space<vmem>>, vector<128x384xbf16>
    %c0_1 = arith.constant 0 : index
    %c0_2 = arith.constant 0 : index
    %1 = vector.load %arg2[%c0_1, %c0_2] : memref<384x256xbf16, #tpu.memory_space<vmem>>, vector<384x256xbf16>
    %cst = arith.constant dense<0.000000e+00> : vector<128x256xf32>
    %2 = tpu.matmul %0, %1, %cst {dimension_numbers = #tpu.dot_dimension_numbers<[1], [0], [0], [1], [0, 0, 1, 1], [], []>} : vector<128x384xbf16>, vector<384x256xbf16>, vector<128x256xf32> -> vector<128x256xf32>
    %c0_3 = arith.constant 0 : index
    %c0_4 = arith.constant 0 : index
    %3 = vector.load %arg3[%c0_3, %c0_4] : memref<1x256xf32, #tpu.memory_space<vmem>>, vector<1x256xf32>
    %4 = vector.broadcast %3 : vector<1x256xf32> to vector<128x256xf32>
    %5 = arith.addf %2, %4 : vector<128x256xf32>
    %6 = tpu.iota {dimensions = array<i32: 1>} : vector<128x256xi32>
    %c128_i32 = arith.constant 128 : i32
    %7 = vector.broadcast %c128_i32 : i32 to vector<128x256xi32>
    %8 = arith.cmpi slt, %6, %7 : vector<128x256xi32>
    %cst_5 = arith.constant 0.000000e+00 : f32
    %9 = vector.broadcast %cst_5 : f32 to vector<128x256xf32>
    %10 = arith.maximumf %5, %9 : vector<128x256xf32>
    %11 = arith.select %8, %10, %5 : vector<128x256xi1>, vector<128x256xf32>
    %12 = arith.truncf %11 : vector<128x256xf32> to vector<128x256xbf16>
    %c0_6 = arith.constant 0 : index
    %c0_7 = arith.constant 0 : index
    %13 = vector.load %arg4[%c0_6, %c0_7] : memref<128x256xbf16, #tpu.memory_space<vmem>>, vector<128x256xbf16>
    tpu.vector_store %arg4[%c0_6, %c0_7], %12 {strides = array<i32>} : memref<128x256xbf16, #tpu.memory_space<vmem>>, vector<128x256xbf16>,
    return
  }
  func.func @transform_0(%arg0: i32) -> (i32, i32) {
    %c0_i32 = arith.constant 0 : i32
    %c0_i32_0 = arith.constant 0 : i32
    return %arg0, %c0_i32 : i32, i32
  }
  func.func @transform_1(%arg0: i32) -> (i32, i32) {
    %c0_i32 = arith.constant 0 : i32
    %c0_i32_0 = arith.constant 0 : i32
    %c0_i32_1 = arith.constant 0 : i32
    return %c0_i32, %c0_i32_0 : i32, i32
  }
  func.func @transform_2(%arg0: i32) -> (i32, i32) {
    %c0_i32 = arith.constant 0 : i32
    %c0_i32_0 = arith.constant 0 : i32
    %c0_i32_1 = arith.constant 0 : i32
    return %c0_i32, %c0_i32_0 : i32, i32
  }
  func.func @transform_3(%arg0: i32) -> (i32, i32) {
    %c0_i32 = arith.constant 0 : i32
    %c0_i32_0 = arith.constant 0 : i32
    return %arg0, %c0_i32 : i32, i32
  }
}

module attributes {stable_mosaic.version = 11 : i64} {
  func.func @_gemm_res_kernel(%arg0: i32, %arg1: memref<128x384xbf16, #tpu.memory_space<vmem>>, %arg2: memref<384x128xbf16, #tpu.memory_space<vmem>>, %arg3: memref<1x128xf32, #tpu.memory_space<vmem>>, %arg4: memref<128x128xbf16, #tpu.memory_space<vmem>>, %arg5: memref<128x128xbf16, #tpu.memory_space<vmem>>) attributes {dimension_semantics = [#tpu.dimension_semantics<parallel>], iteration_bounds = array<i64: 1>, scalar_prefetch = 0 : i64, scratch_operands = 0 : i64, tpu.core_type = #tpu.core_type<tc>, window_params = [{transform_indices = @transform_0, window_bounds = array<i64: 128, 384>}, {pipeline_mode = #tpu.pipeline_mode<synchronous>, transform_indices = @transform_1, window_bounds = array<i64: 384, 128>}, {pipeline_mode = #tpu.pipeline_mode<synchronous>, transform_indices = @transform_2, window_bounds = array<i64: 1, 128>}, {transform_indices = @transform_3, window_bounds = array<i64: 128, 128>}, {transform_indices = @transform_4, window_bounds = array<i64: 128, 128>}]} {
    %c0 = arith.constant 0 : index
    %c0_0 = arith.constant 0 : index
    %0 = vector.load %arg1[%c0, %c0_0] : memref<128x384xbf16, #tpu.memory_space<vmem>>, vector<128x384xbf16>
    %c0_1 = arith.constant 0 : index
    %c0_2 = arith.constant 0 : index
    %1 = vector.load %arg2[%c0_1, %c0_2] : memref<384x128xbf16, #tpu.memory_space<vmem>>, vector<384x128xbf16>
    %cst = arith.constant dense<0.000000e+00> : vector<128x128xf32>
    %2 = tpu.matmul %0, %1, %cst {dimension_numbers = #tpu.dot_dimension_numbers<[1], [0], [0], [1], [0, 0, 1, 1], [], []>} : vector<128x384xbf16>, vector<384x128xbf16>, vector<128x128xf32> -> vector<128x128xf32>
    %c0_3 = arith.constant 0 : index
    %c0_4 = arith.constant 0 : index
    %3 = vector.load %arg3[%c0_3, %c0_4] : memref<1x128xf32, #tpu.memory_space<vmem>>, vector<1x128xf32>
    %4 = vector.broadcast %3 : vector<1x128xf32> to vector<128x128xf32>
    %5 = arith.addf %2, %4 : vector<128x128xf32>
    %c0_5 = arith.constant 0 : index
    %c0_6 = arith.constant 0 : index
    %6 = vector.load %arg4[%c0_5, %c0_6] : memref<128x128xbf16, #tpu.memory_space<vmem>>, vector<128x128xbf16>
    %7 = arith.extf %6 : vector<128x128xbf16> to vector<128x128xf32>
    %8 = arith.addf %5, %7 : vector<128x128xf32>
    %cst_7 = arith.constant 0.000000e+00 : f32
    %9 = vector.broadcast %cst_7 : f32 to vector<128x128xf32>
    %10 = arith.maximumf %8, %9 : vector<128x128xf32>
    %11 = arith.truncf %10 : vector<128x128xf32> to vector<128x128xbf16>
    %c0_8 = arith.constant 0 : index
    %c0_9 = arith.constant 0 : index
    %12 = vector.load %arg5[%c0_8, %c0_9] : memref<128x128xbf16, #tpu.memory_space<vmem>>, vector<128x128xbf16>
    tpu.vector_store %arg5[%c0_8, %c0_9], %11 {strides = array<i32>} : memref<128x128xbf16, #tpu.memory_space<vmem>>, vector<128x128xbf16>,
    return
  }
  func.func @transform_0(%arg0: i32) -> (i32, i32) {
    %c0_i32 = arith.constant 0 : i32
    %c0_i32_0 = arith.constant 0 : i32
    return %arg0, %c0_i32 : i32, i32
  }
  func.func @transform_1(%arg0: i32) -> (i32, i32) {
    %c0_i32 = arith.constant 0 : i32
    %c0_i32_0 = arith.constant 0 : i32
    %c0_i32_1 = arith.constant 0 : i32
    return %c0_i32, %c0_i32_0 : i32, i32
  }
  func.func @transform_2(%arg0: i32) -> (i32, i32) {
    %c0_i32 = arith.constant 0 : i32
    %c0_i32_0 = arith.constant 0 : i32
    %c0_i32_1 = arith.constant 0 : i32
    return %c0_i32, %c0_i32_0 : i32, i32
  }
  func.func @transform_3(%arg0: i32) -> (i32, i32) {
    %c0_i32 = arith.constant 0 : i32
    %c0_i32_0 = arith.constant 0 : i32
    return %arg0, %c0_i32 : i32, i32
  }
  func.func @transform_4(%arg0: i32) -> (i32, i32) {
    %c0_i32 = arith.constant 0 : i32
    %c0_i32_0 = arith.constant 0 : i32
    return %arg0, %c0_i32 : i32, i32
  }
}

module attributes {stable_mosaic.version = 11 : i64} {
  func.func @_gemm_split_relu_kernel(%arg0: i32, %arg1: memref<32x512xbf16, #tpu.memory_space<vmem>>, %arg2: memref<512x256xbf16, #tpu.memory_space<vmem>>, %arg3: memref<1x256xf32, #tpu.memory_space<vmem>>, %arg4: memref<32x256xbf16, #tpu.memory_space<vmem>>) attributes {dimension_semantics = [#tpu.dimension_semantics<parallel>], iteration_bounds = array<i64: 1>, scalar_prefetch = 0 : i64, scratch_operands = 0 : i64, tpu.core_type = #tpu.core_type<tc>, window_params = [{transform_indices = @transform_0, window_bounds = array<i64: 32, 512>}, {pipeline_mode = #tpu.pipeline_mode<synchronous>, transform_indices = @transform_1, window_bounds = array<i64: 512, 256>}, {pipeline_mode = #tpu.pipeline_mode<synchronous>, transform_indices = @transform_2, window_bounds = array<i64: 1, 256>}, {transform_indices = @transform_3, window_bounds = array<i64: 32, 256>}]} {
    %c0 = arith.constant 0 : index
    %c0_0 = arith.constant 0 : index
    %0 = vector.load %arg1[%c0, %c0_0] : memref<32x512xbf16, #tpu.memory_space<vmem>>, vector<32x512xbf16>
    %c0_1 = arith.constant 0 : index
    %c0_2 = arith.constant 0 : index
    %1 = vector.load %arg2[%c0_1, %c0_2] : memref<512x256xbf16, #tpu.memory_space<vmem>>, vector<512x256xbf16>
    %cst = arith.constant dense<0.000000e+00> : vector<32x256xf32>
    %2 = tpu.matmul %0, %1, %cst {dimension_numbers = #tpu.dot_dimension_numbers<[1], [0], [0], [1], [0, 0, 1, 1], [], []>} : vector<32x512xbf16>, vector<512x256xbf16>, vector<32x256xf32> -> vector<32x256xf32>
    %c0_3 = arith.constant 0 : index
    %c0_4 = arith.constant 0 : index
    %3 = vector.load %arg3[%c0_3, %c0_4] : memref<1x256xf32, #tpu.memory_space<vmem>>, vector<1x256xf32>
    %4 = vector.broadcast %3 : vector<1x256xf32> to vector<32x256xf32>
    %5 = arith.addf %2, %4 : vector<32x256xf32>
    %6 = tpu.iota {dimensions = array<i32: 1>} : vector<32x256xi32>
    %c128_i32 = arith.constant 128 : i32
    %7 = vector.broadcast %c128_i32 : i32 to vector<32x256xi32>
    %8 = arith.cmpi slt, %6, %7 : vector<32x256xi32>
    %cst_5 = arith.constant 0.000000e+00 : f32
    %9 = vector.broadcast %cst_5 : f32 to vector<32x256xf32>
    %10 = arith.maximumf %5, %9 : vector<32x256xf32>
    %11 = arith.select %8, %10, %5 : vector<32x256xi1>, vector<32x256xf32>
    %12 = arith.truncf %11 : vector<32x256xf32> to vector<32x256xbf16>
    %c0_6 = arith.constant 0 : index
    %c0_7 = arith.constant 0 : index
    %13 = vector.load %arg4[%c0_6, %c0_7] : memref<32x256xbf16, #tpu.memory_space<vmem>>, vector<32x256xbf16>
    tpu.vector_store %arg4[%c0_6, %c0_7], %12 {strides = array<i32>} : memref<32x256xbf16, #tpu.memory_space<vmem>>, vector<32x256xbf16>,
    return
  }
  func.func @transform_0(%arg0: i32) -> (i32, i32) {
    %c0_i32 = arith.constant 0 : i32
    %c0_i32_0 = arith.constant 0 : i32
    return %arg0, %c0_i32 : i32, i32
  }
  func.func @transform_1(%arg0: i32) -> (i32, i32) {
    %c0_i32 = arith.constant 0 : i32
    %c0_i32_0 = arith.constant 0 : i32
    %c0_i32_1 = arith.constant 0 : i32
    return %c0_i32, %c0_i32_0 : i32, i32
  }
  func.func @transform_2(%arg0: i32) -> (i32, i32) {
    %c0_i32 = arith.constant 0 : i32
    %c0_i32_0 = arith.constant 0 : i32
    %c0_i32_1 = arith.constant 0 : i32
    return %c0_i32, %c0_i32_0 : i32, i32
  }
  func.func @transform_3(%arg0: i32) -> (i32, i32) {
    %c0_i32 = arith.constant 0 : i32
    %c0_i32_0 = arith.constant 0 : i32
    return %arg0, %c0_i32 : i32, i32
  }
}

module attributes {stable_mosaic.version = 11 : i64} {
  func.func @_gemm_res_kernel(%arg0: i32, %arg1: memref<32x512xbf16, #tpu.memory_space<vmem>>, %arg2: memref<512x128xbf16, #tpu.memory_space<vmem>>, %arg3: memref<1x128xf32, #tpu.memory_space<vmem>>, %arg4: memref<32x128xbf16, #tpu.memory_space<vmem>>, %arg5: memref<32x128xbf16, #tpu.memory_space<vmem>>) attributes {dimension_semantics = [#tpu.dimension_semantics<parallel>], iteration_bounds = array<i64: 1>, scalar_prefetch = 0 : i64, scratch_operands = 0 : i64, tpu.core_type = #tpu.core_type<tc>, window_params = [{transform_indices = @transform_0, window_bounds = array<i64: 32, 512>}, {pipeline_mode = #tpu.pipeline_mode<synchronous>, transform_indices = @transform_1, window_bounds = array<i64: 512, 128>}, {pipeline_mode = #tpu.pipeline_mode<synchronous>, transform_indices = @transform_2, window_bounds = array<i64: 1, 128>}, {transform_indices = @transform_3, window_bounds = array<i64: 32, 128>}, {transform_indices = @transform_4, window_bounds = array<i64: 32, 128>}]} {
    %c0 = arith.constant 0 : index
    %c0_0 = arith.constant 0 : index
    %0 = vector.load %arg1[%c0, %c0_0] : memref<32x512xbf16, #tpu.memory_space<vmem>>, vector<32x512xbf16>
    %c0_1 = arith.constant 0 : index
    %c0_2 = arith.constant 0 : index
    %1 = vector.load %arg2[%c0_1, %c0_2] : memref<512x128xbf16, #tpu.memory_space<vmem>>, vector<512x128xbf16>
    %cst = arith.constant dense<0.000000e+00> : vector<32x128xf32>
    %2 = tpu.matmul %0, %1, %cst {dimension_numbers = #tpu.dot_dimension_numbers<[1], [0], [0], [1], [0, 0, 1, 1], [], []>} : vector<32x512xbf16>, vector<512x128xbf16>, vector<32x128xf32> -> vector<32x128xf32>
    %c0_3 = arith.constant 0 : index
    %c0_4 = arith.constant 0 : index
    %3 = vector.load %arg3[%c0_3, %c0_4] : memref<1x128xf32, #tpu.memory_space<vmem>>, vector<1x128xf32>
    %4 = vector.broadcast %3 : vector<1x128xf32> to vector<32x128xf32>
    %5 = arith.addf %2, %4 : vector<32x128xf32>
    %c0_5 = arith.constant 0 : index
    %c0_6 = arith.constant 0 : index
    %6 = vector.load %arg4[%c0_5, %c0_6] : memref<32x128xbf16, #tpu.memory_space<vmem>>, vector<32x128xbf16>
    %7 = arith.extf %6 : vector<32x128xbf16> to vector<32x128xf32>
    %8 = arith.addf %5, %7 : vector<32x128xf32>
    %cst_7 = arith.constant 0.000000e+00 : f32
    %9 = vector.broadcast %cst_7 : f32 to vector<32x128xf32>
    %10 = arith.maximumf %8, %9 : vector<32x128xf32>
    %11 = arith.truncf %10 : vector<32x128xf32> to vector<32x128xbf16>
    %c0_8 = arith.constant 0 : index
    %c0_9 = arith.constant 0 : index
    %12 = vector.load %arg5[%c0_8, %c0_9] : memref<32x128xbf16, #tpu.memory_space<vmem>>, vector<32x128xbf16>
    tpu.vector_store %arg5[%c0_8, %c0_9], %11 {strides = array<i32>} : memref<32x128xbf16, #tpu.memory_space<vmem>>, vector<32x128xbf16>,
    return
  }
  func.func @transform_0(%arg0: i32) -> (i32, i32) {
    %c0_i32 = arith.constant 0 : i32
    %c0_i32_0 = arith.constant 0 : i32
    return %arg0, %c0_i32 : i32, i32
  }
  func.func @transform_1(%arg0: i32) -> (i32, i32) {
    %c0_i32 = arith.constant 0 : i32
    %c0_i32_0 = arith.constant 0 : i32
    %c0_i32_1 = arith.constant 0 : i32
    return %c0_i32, %c0_i32_0 : i32, i32
  }
  func.func @transform_2(%arg0: i32) -> (i32, i32) {
    %c0_i32 = arith.constant 0 : i32
    %c0_i32_0 = arith.constant 0 : i32
    %c0_i32_1 = arith.constant 0 : i32
    return %c0_i32, %c0_i32_0 : i32, i32
  }
  func.func @transform_3(%arg0: i32) -> (i32, i32) {
    %c0_i32 = arith.constant 0 : i32
    %c0_i32_0 = arith.constant 0 : i32
    return %arg0, %c0_i32 : i32, i32
  }
  func.func @transform_4(%arg0: i32) -> (i32, i32) {
    %c0_i32 = arith.constant 0 : i32
    %c0_i32_0 = arith.constant 0 : i32
    return %arg0, %c0_i32 : i32, i32
  }
}

module attributes {stable_mosaic.version = 11 : i64} {
  func.func @_gemm_split_relu_kernel(%arg0: i32, %arg1: memref<16x640xbf16, #tpu.memory_space<vmem>>, %arg2: memref<640x256xbf16, #tpu.memory_space<vmem>>, %arg3: memref<1x256xf32, #tpu.memory_space<vmem>>, %arg4: memref<16x256xbf16, #tpu.memory_space<vmem>>) attributes {dimension_semantics = [#tpu.dimension_semantics<parallel>], iteration_bounds = array<i64: 1>, scalar_prefetch = 0 : i64, scratch_operands = 0 : i64, tpu.core_type = #tpu.core_type<tc>, window_params = [{transform_indices = @transform_0, window_bounds = array<i64: 16, 640>}, {pipeline_mode = #tpu.pipeline_mode<synchronous>, transform_indices = @transform_1, window_bounds = array<i64: 640, 256>}, {pipeline_mode = #tpu.pipeline_mode<synchronous>, transform_indices = @transform_2, window_bounds = array<i64: 1, 256>}, {transform_indices = @transform_3, window_bounds = array<i64: 16, 256>}]} {
    %c0 = arith.constant 0 : index
    %c0_0 = arith.constant 0 : index
    %0 = vector.load %arg1[%c0, %c0_0] : memref<16x640xbf16, #tpu.memory_space<vmem>>, vector<16x640xbf16>
    %c0_1 = arith.constant 0 : index
    %c0_2 = arith.constant 0 : index
    %1 = vector.load %arg2[%c0_1, %c0_2] : memref<640x256xbf16, #tpu.memory_space<vmem>>, vector<640x256xbf16>
    %cst = arith.constant dense<0.000000e+00> : vector<16x256xf32>
    %2 = tpu.matmul %0, %1, %cst {dimension_numbers = #tpu.dot_dimension_numbers<[1], [0], [0], [1], [0, 0, 1, 1], [], []>} : vector<16x640xbf16>, vector<640x256xbf16>, vector<16x256xf32> -> vector<16x256xf32>
    %c0_3 = arith.constant 0 : index
    %c0_4 = arith.constant 0 : index
    %3 = vector.load %arg3[%c0_3, %c0_4] : memref<1x256xf32, #tpu.memory_space<vmem>>, vector<1x256xf32>
    %4 = vector.broadcast %3 : vector<1x256xf32> to vector<16x256xf32>
    %5 = arith.addf %2, %4 : vector<16x256xf32>
    %6 = tpu.iota {dimensions = array<i32: 1>} : vector<16x256xi32>
    %c128_i32 = arith.constant 128 : i32
    %7 = vector.broadcast %c128_i32 : i32 to vector<16x256xi32>
    %8 = arith.cmpi slt, %6, %7 : vector<16x256xi32>
    %cst_5 = arith.constant 0.000000e+00 : f32
    %9 = vector.broadcast %cst_5 : f32 to vector<16x256xf32>
    %10 = arith.maximumf %5, %9 : vector<16x256xf32>
    %11 = arith.select %8, %10, %5 : vector<16x256xi1>, vector<16x256xf32>
    %12 = arith.truncf %11 : vector<16x256xf32> to vector<16x256xbf16>
    %c0_6 = arith.constant 0 : index
    %c0_7 = arith.constant 0 : index
    %13 = vector.load %arg4[%c0_6, %c0_7] : memref<16x256xbf16, #tpu.memory_space<vmem>>, vector<16x256xbf16>
    tpu.vector_store %arg4[%c0_6, %c0_7], %12 {strides = array<i32>} : memref<16x256xbf16, #tpu.memory_space<vmem>>, vector<16x256xbf16>,
    return
  }
  func.func @transform_0(%arg0: i32) -> (i32, i32) {
    %c0_i32 = arith.constant 0 : i32
    %c0_i32_0 = arith.constant 0 : i32
    return %arg0, %c0_i32 : i32, i32
  }
  func.func @transform_1(%arg0: i32) -> (i32, i32) {
    %c0_i32 = arith.constant 0 : i32
    %c0_i32_0 = arith.constant 0 : i32
    %c0_i32_1 = arith.constant 0 : i32
    return %c0_i32, %c0_i32_0 : i32, i32
  }
  func.func @transform_2(%arg0: i32) -> (i32, i32) {
    %c0_i32 = arith.constant 0 : i32
    %c0_i32_0 = arith.constant 0 : i32
    %c0_i32_1 = arith.constant 0 : i32
    return %c0_i32, %c0_i32_0 : i32, i32
  }
  func.func @transform_3(%arg0: i32) -> (i32, i32) {
    %c0_i32 = arith.constant 0 : i32
    %c0_i32_0 = arith.constant 0 : i32
    return %arg0, %c0_i32 : i32, i32
  }
}

module attributes {stable_mosaic.version = 11 : i64} {
  func.func @_gemm_res_kernel(%arg0: i32, %arg1: memref<16x768xbf16, #tpu.memory_space<vmem>>, %arg2: memref<768x128xbf16, #tpu.memory_space<vmem>>, %arg3: memref<1x128xf32, #tpu.memory_space<vmem>>, %arg4: memref<16x128xbf16, #tpu.memory_space<vmem>>, %arg5: memref<16x128xbf16, #tpu.memory_space<vmem>>) attributes {dimension_semantics = [#tpu.dimension_semantics<parallel>], iteration_bounds = array<i64: 1>, scalar_prefetch = 0 : i64, scratch_operands = 0 : i64, tpu.core_type = #tpu.core_type<tc>, window_params = [{transform_indices = @transform_0, window_bounds = array<i64: 16, 768>}, {pipeline_mode = #tpu.pipeline_mode<synchronous>, transform_indices = @transform_1, window_bounds = array<i64: 768, 128>}, {pipeline_mode = #tpu.pipeline_mode<synchronous>, transform_indices = @transform_2, window_bounds = array<i64: 1, 128>}, {transform_indices = @transform_3, window_bounds = array<i64: 16, 128>}, {transform_indices = @transform_4, window_bounds = array<i64: 16, 128>}]} {
    %c0 = arith.constant 0 : index
    %c0_0 = arith.constant 0 : index
    %0 = vector.load %arg1[%c0, %c0_0] : memref<16x768xbf16, #tpu.memory_space<vmem>>, vector<16x768xbf16>
    %c0_1 = arith.constant 0 : index
    %c0_2 = arith.constant 0 : index
    %1 = vector.load %arg2[%c0_1, %c0_2] : memref<768x128xbf16, #tpu.memory_space<vmem>>, vector<768x128xbf16>
    %cst = arith.constant dense<0.000000e+00> : vector<16x128xf32>
    %2 = tpu.matmul %0, %1, %cst {dimension_numbers = #tpu.dot_dimension_numbers<[1], [0], [0], [1], [0, 0, 1, 1], [], []>} : vector<16x768xbf16>, vector<768x128xbf16>, vector<16x128xf32> -> vector<16x128xf32>
    %c0_3 = arith.constant 0 : index
    %c0_4 = arith.constant 0 : index
    %3 = vector.load %arg3[%c0_3, %c0_4] : memref<1x128xf32, #tpu.memory_space<vmem>>, vector<1x128xf32>
    %4 = vector.broadcast %3 : vector<1x128xf32> to vector<16x128xf32>
    %5 = arith.addf %2, %4 : vector<16x128xf32>
    %c0_5 = arith.constant 0 : index
    %c0_6 = arith.constant 0 : index
    %6 = vector.load %arg4[%c0_5, %c0_6] : memref<16x128xbf16, #tpu.memory_space<vmem>>, vector<16x128xbf16>
    %7 = arith.extf %6 : vector<16x128xbf16> to vector<16x128xf32>
    %8 = arith.addf %5, %7 : vector<16x128xf32>
    %cst_7 = arith.constant 0.000000e+00 : f32
    %9 = vector.broadcast %cst_7 : f32 to vector<16x128xf32>
    %10 = arith.maximumf %8, %9 : vector<16x128xf32>
    %11 = arith.truncf %10 : vector<16x128xf32> to vector<16x128xbf16>
    %c0_8 = arith.constant 0 : index
    %c0_9 = arith.constant 0 : index
    %12 = vector.load %arg5[%c0_8, %c0_9] : memref<16x128xbf16, #tpu.memory_space<vmem>>, vector<16x128xbf16>
    tpu.vector_store %arg5[%c0_8, %c0_9], %11 {strides = array<i32>} : memref<16x128xbf16, #tpu.memory_space<vmem>>, vector<16x128xbf16>,
    return
  }
  func.func @transform_0(%arg0: i32) -> (i32, i32) {
    %c0_i32 = arith.constant 0 : i32
    %c0_i32_0 = arith.constant 0 : i32
    return %arg0, %c0_i32 : i32, i32
  }
  func.func @transform_1(%arg0: i32) -> (i32, i32) {
    %c0_i32 = arith.constant 0 : i32
    %c0_i32_0 = arith.constant 0 : i32
    %c0_i32_1 = arith.constant 0 : i32
    return %c0_i32, %c0_i32_0 : i32, i32
  }
  func.func @transform_2(%arg0: i32) -> (i32, i32) {
    %c0_i32 = arith.constant 0 : i32
    %c0_i32_0 = arith.constant 0 : i32
    %c0_i32_1 = arith.constant 0 : i32
    return %c0_i32, %c0_i32_0 : i32, i32
  }
  func.func @transform_3(%arg0: i32) -> (i32, i32) {
    %c0_i32 = arith.constant 0 : i32
    %c0_i32_0 = arith.constant 0 : i32
    return %arg0, %c0_i32 : i32, i32
  }
  func.func @transform_4(%arg0: i32) -> (i32, i32) {
    %c0_i32 = arith.constant 0 : i32
    %c0_i32_0 = arith.constant 0 : i32
    return %arg0, %c0_i32 : i32, i32
  }
}

module attributes {stable_mosaic.version = 11 : i64} {
  func.func @_avgpool_fc_kernel(%arg0: i32, %arg1: memref<8x4x128xbf16, #tpu.memory_space<vmem>>, %arg2: memref<128x128xbf16, #tpu.memory_space<vmem>>, %arg3: memref<1x128xf32, #tpu.memory_space<vmem>>, %arg4: memref<8x128xf32, #tpu.memory_space<vmem>>) attributes {dimension_semantics = [#tpu.dimension_semantics<arbitrary>], iteration_bounds = array<i64: 1>, scalar_prefetch = 0 : i64, scratch_operands = 0 : i64, tpu.core_type = #tpu.core_type<tc>, window_params = [{pipeline_mode = #tpu.pipeline_mode<synchronous>, transform_indices = @transform_0, window_bounds = array<i64: 8, 4, 128>}, {pipeline_mode = #tpu.pipeline_mode<synchronous>, transform_indices = @transform_1, window_bounds = array<i64: 128, 128>}, {pipeline_mode = #tpu.pipeline_mode<synchronous>, transform_indices = @transform_2, window_bounds = array<i64: 1, 128>}, {pipeline_mode = #tpu.pipeline_mode<synchronous>, transform_indices = @transform_3, window_bounds = array<i64: 8, 128>}]} {
    %c0 = arith.constant 0 : index
    %c0_0 = arith.constant 0 : index
    %c0_1 = arith.constant 0 : index
    %0 = vector.load %arg1[%c0, %c0_0, %c0_1] : memref<8x4x128xbf16, #tpu.memory_space<vmem>>, vector<8x4x128xbf16>
    %1 = arith.extf %0 : vector<8x4x128xbf16> to vector<8x4x128xf32>
    %cst = arith.constant dense<0.000000e+00> : vector<8x128xf32>
    %2 = vector.multi_reduction <add>, %1, %cst [1] : vector<8x4x128xf32> to vector<8x128xf32>
    %cst_2 = arith.constant 4.000000e+00 : f32
    %3 = vector.broadcast %cst_2 : f32 to vector<8x128xf32>
    %4 = arith.divf %2, %3 : vector<8x128xf32>
    %5 = arith.truncf %4 : vector<8x128xf32> to vector<8x128xbf16>
    %c0_3 = arith.constant 0 : index
    %c0_4 = arith.constant 0 : index
    %6 = vector.load %arg2[%c0_3, %c0_4] : memref<128x128xbf16, #tpu.memory_space<vmem>>, vector<128x128xbf16>
    %cst_5 = arith.constant dense<0.000000e+00> : vector<8x128xf32>
    %7 = tpu.matmul %5, %6, %cst_5 {dimension_numbers = #tpu.dot_dimension_numbers<[1], [0], [0], [1], [0, 0, 1, 1], [], []>} : vector<8x128xbf16>, vector<128x128xbf16>, vector<8x128xf32> -> vector<8x128xf32>
    %c0_6 = arith.constant 0 : index
    %c0_7 = arith.constant 0 : index
    %8 = vector.load %arg3[%c0_6, %c0_7] : memref<1x128xf32, #tpu.memory_space<vmem>>, vector<1x128xf32>
    %9 = vector.broadcast %8 : vector<1x128xf32> to vector<8x128xf32>
    %10 = arith.addf %7, %9 : vector<8x128xf32>
    %c0_8 = arith.constant 0 : index
    %c0_9 = arith.constant 0 : index
    %11 = vector.load %arg4[%c0_8, %c0_9] : memref<8x128xf32, #tpu.memory_space<vmem>>, vector<8x128xf32>
    tpu.vector_store %arg4[%c0_8, %c0_9], %10 {strides = array<i32>} : memref<8x128xf32, #tpu.memory_space<vmem>>, vector<8x128xf32>,
    return
  }
  func.func @transform_0(%arg0: i32) -> (i32, i32, i32) {
    %c0_i32 = arith.constant 0 : i32
    %c0_i32_0 = arith.constant 0 : i32
    %c0_i32_1 = arith.constant 0 : i32
    %c0_i32_2 = arith.constant 0 : i32
    return %c0_i32, %c0_i32_0, %c0_i32_1 : i32, i32, i32
  }
  func.func @transform_1(%arg0: i32) -> (i32, i32) {
    %c0_i32 = arith.constant 0 : i32
    %c0_i32_0 = arith.constant 0 : i32
    %c0_i32_1 = arith.constant 0 : i32
    return %c0_i32, %c0_i32_0 : i32, i32
  }
  func.func @transform_2(%arg0: i32) -> (i32, i32) {
    %c0_i32 = arith.constant 0 : i32
    %c0_i32_0 = arith.constant 0 : i32
    %c0_i32_1 = arith.constant 0 : i32
    return %c0_i32, %c0_i32_0 : i32, i32
  }
  func.func @transform_3(%arg0: i32) -> (i32, i32) {
    %c0_i32 = arith.constant 0 : i32
    %c0_i32_0 = arith.constant 0 : i32
    %c0_i32_1 = arith.constant 0 : i32
    return %c0_i32, %c0_i32_0 : i32, i32
  }
}

</mosaic_0001>

<llo_original>
// kernel: _lambda_.11
$region0: #{_lambda_.11}
  #allocation0 [shape = 'u32[]', space=smem, size = 0x4, offset = 0x4, fixed_abs, tag = 'smem constant byte address 0x4 - core index']
  #allocation1 [shape = 'u32[144,128]{1,0:T(1,128)}', space=vmem, size = 0x12000, scoped, tag = 'internal scratch']
  %s0 = inlined_call_operand.vmem [shape: bf16[2048,256], index: 0, kind: input, shape index: {}]
  %s1 = inlined_call_operand.vmem [shape: bf16[256,128], index: 1, kind: input, shape index: {}]
  %s2 = inlined_call_operand.vmem [shape: f32[1,128], index: 2, kind: input, shape index: {}]
  %s3 = inlined_call_operand.vmem [shape: bf16[2048,128], index: 3, kind: output, shape index: {}]
  %s4 = sld [smem:[#allocation0]]
  $region45: #{_lambda_.11} parent=0
    _
  %s6 = ssub.s32 1, %s4
  %s7 = scalar_select 0, %s6, %s4
  loop: start=0, step=1, limit=6
  $region2: #{_lambda_.11} parent=0 // loop_pre_header
    _
  $region3: #{_lambda_.11} parent=0 // loop_header
    %s9 = sphi 0, %s13
    %p10 = scmp.ge.s32.totalorder %s9, 6
    %s19 = sphi 0, %s21
    %s22 = sphi 0, %s19
    %s23 = sphi 0, %s22
    %s39 = sphi 0, %s23
    %s43 = sphi 0, %s43
    %s45 = sphi 0, %s43
    %s46 = sphi 0, %s45
    %s60 = sphi 0, %s46
    %s64 = sphi 0, %s64
    %s66 = sphi 0, %s64
    %s67 = sphi 0, %s66
    %s81 = sphi 0, %s67
    %s87 = sphi 0, %s89
    %s90 = sphi 0, %s87
    %s91 = sphi 0, %s90
    %s107 = sphi 0, %s91
  $region4: #{_lambda_.11} parent=0 // loop_header_branch
    %12 = sbr.rel (%p10) target = $region8
  $region5: #{_lambda_.11} parent=0 // loop_body
    %s14 = ssub.s32 %s9, 1
    %s15 = ssub.s32 %s9, 2
    %s16 = sadd.s32 %s9, 1
    %s17 = ssub.s32 %s9, %s16
    %p18 = scmp.eq.s32.totalorder %s17, 0
    %s20 = sadd.s32 %s19, 1
    %s21 = scalar_select %p18, %s19, %s20
    %p24 = pneg %p18
    %p25 = scmp.eq.s32.totalorder %s9, 3
    %p26 = por %p24, %p25
    %p27 = scmp.ne.s32.totalorder %s19, %s22
    %p28 = scmp.eq.s32.totalorder %s9, 0
    %p29 = por %p27, %p28
    %p30 = scmp.ne.s32.totalorder %s19, %s22
    %p31 = scmp.eq.s32.totalorder %s14, 3
    %p32 = por %p30, %p31
    %p33 = scmp.ne.s32.totalorder %s22, %s23
    %p34 = scmp.eq.s32.totalorder %s14, 0
    %p35 = por %p33, %p34
    %p36 = scmp.ne.s32.totalorder %s22, %s23
    %p37 = scmp.eq.s32.totalorder %s15, 3
    %p38 = por %p36, %p37
    %p40 = scmp.ne.s32.totalorder %s23, %s39
    %p41 = scmp.eq.s32.totalorder %s15, 0
    %p42 = por %p40, %p41
    %s44 = sadd.s32 %s43, 1
    %p47 = scmp.eq.s32.totalorder %s9, 3
    %p48 = scmp.ne.s32.totalorder %s43, %s45
    %p49 = scmp.eq.s32.totalorder %s9, 0
    %p50 = por %p48, %p49
    %p51 = scmp.ne.s32.totalorder %s43, %s45
    %p52 = scmp.eq.s32.totalorder %s14, 3
    %p53 = por %p51, %p52
    %p54 = scmp.ne.s32.totalorder %s45, %s46
    %p55 = scmp.eq.s32.totalorder %s14, 0
    %p56 = por %p54, %p55
    %p57 = scmp.ne.s32.totalorder %s45, %s46
    %p58 = scmp.eq.s32.totalorder %s15, 3
    %p59 = por %p57, %p58
    %p61 = scmp.ne.s32.totalorder %s46, %s60
    %p62 = scmp.eq.s32.totalorder %s15, 0
    %p63 = por %p61, %p62
    %s65 = sadd.s32 %s64, 1
    %p68 = scmp.eq.s32.totalorder %s9, 3
    %p69 = scmp.ne.s32.totalorder %s64, %s66
    %p70 = scmp.eq.s32.totalorder %s9, 0
    %p71 = por %p69, %p70
    %p72 = scmp.ne.s32.totalorder %s64, %s66
    %p73 = scmp.eq.s32.totalorder %s14, 3
    %p74 = por %p72, %p73
    %p75 = scmp.ne.s32.totalorder %s66, %s67
    %p76 = scmp.eq.s32.totalorder %s14, 0
    %p77 = por %p75, %p76
    %p78 = scmp.ne.s32.totalorder %s66, %s67
    %p79 = scmp.eq.s32.totalorder %s15, 3
    %p80 = por %p78, %p79
    %p82 = scmp.ne.s32.totalorder %s67, %s81
    %p83 = scmp.eq.s32.totalorder %s15, 0
    %p84 = por %p82, %p83
    %s85 = ssub.s32 %s9, %s16
    %p86 = scmp.eq.s32.totalorder %s85, 0
    %s88 = sadd.s32 %s87, 1
    %s89 = scalar_select %p86, %s87, %s88
    %p92 = pneg %p86
    %p93 = scmp.eq.s32.totalorder %s9, 3
    %p94 = por %p92, %p93
    %p95 = scmp.ne.s32.totalorder %s87, %s90
    %p96 = scmp.eq.s32.totalorder %s9, 0
    %p97 = por %p95, %p96
    %p98 = scmp.ne.s32.totalorder %s87, %s90
    %p99 = scmp.eq.s32.totalorder %s14, 3
    %p100 = por %p98, %p99
    %p101 = scmp.ne.s32.totalorder %s90, %s91
    %p102 = scmp.eq.s32.totalorder %s14, 0
    %p103 = por %p101, %p102
    %p104 = scmp.ne.s32.totalorder %s90, %s91
    %p105 = scmp.eq.s32.totalorder %s15, 3
    %p106 = por %p104, %p105
    %p108 = scmp.ne.s32.totalorder %s91, %s107
    %p109 = scmp.eq.s32.totalorder %s15, 0
    %p110 = por %p108, %p109
    %p111 = scmp.le.s32.totalorder 1, %s9
    %p112 = scmp.lt.s32.totalorder %s9, 5
    %p113 = pnand %p111, %p112
    %p114 = pneg %p113
    // Predicated region
    $region9: #{_lambda_.11} parent=5 // pred_check
      _
    $region10: #{_lambda_.11} parent=5 // pred_check_branch
      %116 = sbr.rel (%p113) target = $region12
    $region11: #{_lambda_.11} parent=5 // pred_region
      %s117 = ssub.s32 %s9, 1
      // Predicated region
      $region13: #{_lambda_.11} parent=11 // pred_check
        %p118 = pneg %p56
      $region14: #{_lambda_.11} parent=11 // pred_check_branch
        %120 = sbr.rel (%p118) target = $region16
      $region15: #{_lambda_.11} parent=11 // pred_region
        _
      $region16: #{_lambda_.11} parent=11 // pred_fallthru
        _
      // Predicated region
      $region17: #{_lambda_.11} parent=11 // pred_check
        %p121 = pneg %p77
      $region18: #{_lambda_.11} parent=11 // pred_check_branch
        %123 = sbr.rel (%p121) target = $region20
      $region19: #{_lambda_.11} parent=11 // pred_region
        _
      $region20: #{_lambda_.11} parent=11 // pred_fallthru
        _
    $region12: #{_lambda_.11} parent=5 // pred_fallthru
      _
    %p124 = scmp.lt.s32.totalorder %s9, 4
    // Predicated region
    $region21: #{_lambda_.11} parent=5 // pred_check
      %p125 = pneg %p124
    $region22: #{_lambda_.11} parent=5 // pred_check_branch
      %127 = sbr.rel (%p125) target = $region24
    $region23: #{_lambda_.11} parent=5 // pred_region
      // Predicated region
      $region25: #{_lambda_.11} parent=23 // pred_check
        %p128 = pneg %p29
      $region26: #{_lambda_.11} parent=23 // pred_check_branch
        %130 = sbr.rel (%p128) target = $region28
      $region27: #{_lambda_.11} parent=23 // pred_region
        %s131 = smul.u32 64, %s9
        %p132 = scmp.lt.s32.totalorder %s131, 255
        %s133 = scalar_select %p132, %s131, 255
        %s134 = smul.addr %s133, 2
        %s135 = smul.addr %s134, 4
        %s136 = scalar_lea.vmem %s0, %s135
        %s137 = smul.u32 64, %s9
      $region28: #{_lambda_.11} parent=23 // pred_fallthru
        _
    $region24: #{_lambda_.11} parent=5 // pred_fallthru
      _
    %p138 = scmp.le.s32.totalorder 1, %s9
    %p139 = scmp.lt.s32.totalorder %s9, 5
    %p140 = pnand %p138, %p139
    %p141 = pneg %p140
    // Predicated region
    $region29: #{_lambda_.11} parent=5 // pred_check
      _
    $region30: #{_lambda_.11} parent=5 // pred_check_branch
      %143 = sbr.rel (%p140) target = $region32
    $region31: #{_lambda_.11} parent=5 // pred_region
      %s144 = ssub.s32 %s9, 1
      %s145 = smul.u32 64, %s14
      %p146 = scmp.lt.s32.totalorder %s145, 255
      %s147 = scalar_select %p146, %s145, 255
      %s148 = smul.addr %s147, 2
      %s149 = smul.addr %s148, 4
      %s150 = scalar_lea.vmem %s0, %s149
      %p151 = pneg %p35
      %p152 = pneg %p32
      %p153 = pneg %p56
      %p154 = pneg %p53
      %p155 = pneg %p77
      %p156 = pneg %p74
      %p157 = pneg %p103
      %p158 = pneg %p100
      %s159 = smul.u32 64, %s14
      %p160 = scmp.lt.s32.totalorder %s159, 255
      %s161 = scalar_select %p160, %s159, 255
      %s162 = smul.addr %s161, 4
      %s163 = scalar_lea.vmem %s3, %s162
      %s164 = smul.u32 64, %s14
      %p165 = scmp.lt.s32.totalorder %s164, 255
      %s166 = scalar_select %p165, %s164, 255
      %s167 = smul.addr %s166, 2
      %s168 = smul.addr %s167, 4
      %s169 = scalar_lea.vmem %s0, %s168
      %s170 = smul.u32 64, %s14
      %s171 = smul.u32 64, %s14
      %p172 = scmp.lt.s32.totalorder %s171, 255
      %s173 = scalar_select %p172, %s171, 255
      %s174 = smul.addr %s173, 4
      %s175 = scalar_lea.vmem %s3, %s174
      %s176 = smul.u32 64, %s14
      %v178 = vld [vmem:[%s169] sm:$0xff]
      %v179 = vld [vmem:[%s169 + $0x8] sm:$0xff]
      %v180 = vld [vmem:[%s169 + $0x10] sm:$0xff]
      %v181 = vld [vmem:[%s169 + $0x18] sm:$0xff]
      %v182 = vld [vmem:[%s169 + $0x20] sm:$0xff]
      %v183 = vld [vmem:[%s169 + $0x28] sm:$0xff]
      %v184 = vld [vmem:[%s169 + $0x30] sm:$0xff]
      %v185 = vld [vmem:[%s169 + $0x38] sm:$0xff]
      %v186 = vld [vmem:[%s169 + $0x40] sm:$0xff]
      %v187 = vld [vmem:[%s169 + $0x48] sm:$0xff]
      %v188 = vld [vmem:[%s169 + $0x50] sm:$0xff]
      %v189 = vld [vmem:[%s169 + $0x58] sm:$0xff]
      %v190 = vld [vmem:[%s169 + $0x60] sm:$0xff]
      %v191 = vld [vmem:[%s169 + $0x68] sm:$0xff]
      %v192 = vld [vmem:[%s169 + $0x70] sm:$0xff]
      %v193 = vld [vmem:[%s169 + $0x78] sm:$0xff]
      %v194 = vld [vmem:[%s169 + $0x80] sm:$0xff]
      %v195 = vld [vmem:[%s169 + $0x88] sm:$0xff]
      %v196 = vld [vmem:[%s169 + $0x90] sm:$0xff]
      %v197 = vld [vmem:[%s169 + $0x98] sm:$0xff]
      %v198 = vld [vmem:[%s169 + $0xa0] sm:$0xff]
      %v199 = vld [vmem:[%s169 + $0xa8] sm:$0xff]
      %v200 = vld [vmem:[%s169 + $0xb0] sm:$0xff]
      %v201 = vld [vmem:[%s169 + $0xb8] sm:$0xff]
      %v202 = vld [vmem:[%s169 + $0xc0] sm:$0xff]
      %v203 = vld [vmem:[%s169 + $0xc8] sm:$0xff]
      %v204 = vld [vmem:[%s169 + $0xd0] sm:$0xff]
      %v205 = vld [vmem:[%s169 + $0xd8] sm:$0xff]
      %v206 = vld [vmem:[%s169 + $0xe0] sm:$0xff]
      %v207 = vld [vmem:[%s169 + $0xe8] sm:$0xff]
      %v208 = vld [vmem:[%s169 + $0xf0] sm:$0xff]
      %v209 = vld [vmem:[%s169 + $0xf8] sm:$0xff]
      %v210 = vld [vmem:[%s169 + $0x100] sm:$0xff]
      %v211 = vld [vmem:[%s169 + $0x108] sm:$0xff]
      %v212 = vld [vmem:[%s169 + $0x110] sm:$0xff]
      %v213 = vld [vmem:[%s169 + $0x118] sm:$0xff]
      %v214 = vld [vmem:[%s169 + $0x120] sm:$0xff]
      %v215 = vld [vmem:[%s169 + $0x128] sm:$0xff]
      %v216 = vld [vmem:[%s169 + $0x130] sm:$0xff]
      %v217 = vld [vmem:[%s169 + $0x138] sm:$0xff]
      %v218 = vld [vmem:[%s169 + $0x140] sm:$0xff]
      %v219 = vld [vmem:[%s169 + $0x148] sm:$0xff]
      %v220 = vld [vmem:[%s169 + $0x150] sm:$0xff]
      %v221 = vld [vmem:[%s169 + $0x158] sm:$0xff]
      %v222 = vld [vmem:[%s169 + $0x160] sm:$0xff]
      %v223 = vld [vmem:[%s169 + $0x168] sm:$0xff]
      %v224 = vld [vmem:[%s169 + $0x170] sm:$0xff]
      %v225 = vld [vmem:[%s169 + $0x178] sm:$0xff]
      %v226 = vld [vmem:[%s169 + $0x180] sm:$0xff]
      %v227 = vld [vmem:[%s169 + $0x188] sm:$0xff]
      %v228 = vld [vmem:[%s169 + $0x190] sm:$0xff]
      %v229 = vld [vmem:[%s169 + $0x198] sm:$0xff]
      %v230 = vld [vmem:[%s169 + $0x1a0] sm:$0xff]
      %v231 = vld [vmem:[%s169 + $0x1a8] sm:$0xff]
      %v232 = vld [vmem:[%s169 + $0x1b0] sm:$0xff]
      %v233 = vld [vmem:[%s169 + $0x1b8] sm:$0xff]
      %v234 = vld [vmem:[%s169 + $0x1c0] sm:$0xff]
      %v235 = vld [vmem:[%s169 + $0x1c8] sm:$0xff]
      %v236 = vld [vmem:[%s169 + $0x1d0] sm:$0xff]
      %v237 = vld [vmem:[%s169 + $0x1d8] sm:$0xff]
      %v238 = vld [vmem:[%s169 + $0x1e0] sm:$0xff]
      %v239 = vld [vmem:[%s169 + $0x1e8] sm:$0xff]
      %v240 = vld [vmem:[%s169 + $0x1f0] sm:$0xff]
      %v241 = vld [vmem:[%s169 + $0x1f8] sm:$0xff]
      %v242 = vld [vmem:[%s1] sm:$0xf]
      %v243 = vld [vmem:[%s1 + $0x4] sm:$0xf]
      %v244 = vld [vmem:[%s1 + $0x8] sm:$0xf]
      %v245 = vld [vmem:[%s1 + $0xc] sm:$0xf]
      %v246 = vld [vmem:[%s1 + $0x10] sm:$0xf]
      %v247 = vld [vmem:[%s1 + $0x14] sm:$0xf]
      %v248 = vld [vmem:[%s1 + $0x18] sm:$0xf]
      %v249 = vld [vmem:[%s1 + $0x1c] sm:$0xf]
      %v250 = vld [vmem:[%s1 + $0x20] sm:$0xf]
      %v251 = vld [vmem:[%s1 + $0x24] sm:$0xf]
      %v252 = vld [vmem:[%s1 + $0x28] sm:$0xf]
      %v253 = vld [vmem:[%s1 + $0x2c] sm:$0xf]
      %v254 = vld [vmem:[%s1 + $0x30] sm:$0xf]
      %v255 = vld [vmem:[%s1 + $0x34] sm:$0xf]
      %v256 = vld [vmem:[%s1 + $0x38] sm:$0xf]
      %v257 = vld [vmem:[%s1 + $0x3c] sm:$0xf]
      %v258 = vld [vmem:[%s1 + $0x40] sm:$0xf]
      %v259 = vld [vmem:[%s1 + $0x44] sm:$0xf]
      %v260 = vld [vmem:[%s1 + $0x48] sm:$0xf]
      %v261 = vld [vmem:[%s1 + $0x4c] sm:$0xf]
      %v262 = vld [vmem:[%s1 + $0x50] sm:$0xf]
      %v263 = vld [vmem:[%s1 + $0x54] sm:$0xf]
      %v264 = vld [vmem:[%s1 + $0x58] sm:$0xf]
      %v265 = vld [vmem:[%s1 + $0x5c] sm:$0xf]
      %v266 = vld [vmem:[%s1 + $0x60] sm:$0xf]
      %v267 = vld [vmem:[%s1 + $0x64] sm:$0xf]
      %v268 = vld [vmem:[%s1 + $0x68] sm:$0xf]
      %v269 = vld [vmem:[%s1 + $0x6c] sm:$0xf]
      %v270 = vld [vmem:[%s1 + $0x70] sm:$0xf]
      %v271 = vld [vmem:[%s1 + $0x74] sm:$0xf]
      %v272 = vld [vmem:[%s1 + $0x78] sm:$0xf]
      %v273 = vld [vmem:[%s1 + $0x7c] sm:$0xf]
      %v274 = vld [vmem:[%s2] sm:$0x1]
      %v276 = vlaneseq
      %v277 = vshrl.u32 %v276, 7
      %v278 = vsub.s32 0, %v277
      %v279 = vrot.slane %v274, %v278
      %v345 = vunpack.c.l.b16 %v178
      %v346 = vunpack.c.h.b16 %v178
      %v347 = vunpack.c.l.b16 %v179
      %v348 = vunpack.c.h.b16 %v179
      %v349 = vunpack.c.l.b16 %v180
      %v350 = vunpack.c.h.b16 %v180
      %v351 = vunpack.c.l.b16 %v181
      %v352 = vunpack.c.h.b16 %v181
      %v353 = vunpack.c.l.b16 %v182
      %v354 = vunpack.c.h.b16 %v182
      %v355 = vunpack.c.l.b16 %v183
      %v356 = vunpack.c.h.b16 %v183
      %v357 = vunpack.c.l.b16 %v184
      %v358 = vunpack.c.h.b16 %v184
      %v359 = vunpack.c.l.b16 %v185
      %v360 = vunpack.c.h.b16 %v185
      %v361 = vunpack.c.l.b16 %v186
      %v362 = vunpack.c.h.b16 %v186
      %v363 = vunpack.c.l.b16 %v187
      %v364 = vunpack.c.h.b16 %v187
      %v365 = vunpack.c.l.b16 %v188
      %v366 = vunpack.c.h.b16 %v188
      %v367 = vunpack.c.l.b16 %v189
      %v368 = vunpack.c.h.b16 %v189
      %v369 = vunpack.c.l.b16 %v190
      %v370 = vunpack.c.h.b16 %v190
      %v371 = vunpack.c.l.b16 %v191
      %v372 = vunpack.c.h.b16 %v191
      %v373 = vunpack.c.l.b16 %v192
      %v374 = vunpack.c.h.b16 %v192
      %v375 = vunpack.c.l.b16 %v193
      %v376 = vunpack.c.h.b16 %v193
      %v377 = vunpack.c.l.b16 %v194
      %v378 = vunpack.c.h.b16 %v194
      %v379 = vunpack.c.l.b16 %v195
      %v380 = vunpack.c.h.b16 %v195
      %v381 = vunpack.c.l.b16 %v196
      %v382 = vunpack.c.h.b16 %v196
      %v383 = vunpack.c.l.b16 %v197
      %v384 = vunpack.c.h.b16 %v197
      %v385 = vunpack.c.l.b16 %v198
      %v386 = vunpack.c.h.b16 %v198
      %v387 = vunpack.c.l.b16 %v199
      %v388 = vunpack.c.h.b16 %v199
      %v389 = vunpack.c.l.b16 %v200
      %v390 = vunpack.c.h.b16 %v200
      %v391 = vunpack.c.l.b16 %v201
      %v392 = vunpack.c.h.b16 %v201
      %v393 = vunpack.c.l.b16 %v202
      %v394 = vunpack.c.h.b16 %v202
      %v395 = vunpack.c.l.b16 %v203
      %v396 = vunpack.c.h.b16 %v203
      %v397 = vunpack.c.l.b16 %v204
      %v398 = vunpack.c.h.b16 %v204
      %v399 = vunpack.c.l.b16 %v205
      %v400 = vunpack.c.h.b16 %v205
      %v401 = vunpack.c.l.b16 %v206
      %v402 = vunpack.c.h.b16 %v206
      %v403 = vunpack.c.l.b16 %v207
      %v404 = vunpack.c.h.b16 %v207
      %v405 = vunpack.c.l.b16 %v208
      %v406 = vunpack.c.h.b16 %v208
      %v407 = vunpack.c.l.b16 %v209
      %v408 = vunpack.c.h.b16 %v209
      %v409 = vunpack.c.l.b16 %v210
      %v410 = vunpack.c.h.b16 %v210
      %v411 = vunpack.c.l.b16 %v211
      %v412 = vunpack.c.h.b16 %v211
      %v413 = vunpack.c.l.b16 %v212
      %v414 = vunpack.c.h.b16 %v212
      %v415 = vunpack.c.l.b16 %v213
      %v416 = vunpack.c.h.b16 %v213
      %v417 = vunpack.c.l.b16 %v214
      %v418 = vunpack.c.h.b16 %v214
      %v419 = vunpack.c.l.b16 %v215
      %v420 = vunpack.c.h.b16 %v215
      %v421 = vunpack.c.l.b16 %v216
      %v422 = vunpack.c.h.b16 %v216
      %v423 = vunpack.c.l.b16 %v217
      %v424 = vunpack.c.h.b16 %v217
      %v425 = vunpack.c.l.b16 %v218
      %v426 = vunpack.c.h.b16 %v218
      %v427 = vunpack.c.l.b16 %v219
      %v428 = vunpack.c.h.b16 %v219
      %v429 = vunpack.c.l.b16 %v220
      %v430 = vunpack.c.h.b16 %v220
      %v431 = vunpack.c.l.b16 %v221
      %v432 = vunpack.c.h.b16 %v221
      %v433 = vunpack.c.l.b16 %v222
      %v434 = vunpack.c.h.b16 %v222
      %v435 = vunpack.c.l.b16 %v223
      %v436 = vunpack.c.h.b16 %v223
      %v437 = vunpack.c.l.b16 %v224
      %v438 = vunpack.c.h.b16 %v224
      %v439 = vunpack.c.l.b16 %v225
      %v440 = vunpack.c.h.b16 %v225
      %v441 = vunpack.c.l.b16 %v226
      %v442 = vunpack.c.h.b16 %v226
      %v443 = vunpack.c.l.b16 %v227
      %v444 = vunpack.c.h.b16 %v227
      %v445 = vunpack.c.l.b16 %v228
      %v446 = vunpack.c.h.b16 %v228
      %v447 = vunpack.c.l.b16 %v229
      %v448 = vunpack.c.h.b16 %v229
      %v449 = vunpack.c.l.b16 %v230
      %v450 = vunpack.c.h.b16 %v230
      %v451 = vunpack.c.l.b16 %v231
      %v452 = vunpack.c.h.b16 %v231
      %v453 = vunpack.c.l.b16 %v232
      %v454 = vunpack.c.h.b16 %v232
      %v455 = vunpack.c.l.b16 %v233
      %v456 = vunpack.c.h.b16 %v233
      %v457 = vunpack.c.l.b16 %v234
      %v458 = vunpack.c.h.b16 %v234
      %v459 = vunpack.c.l.b16 %v235
      %v460 = vunpack.c.h.b16 %v235
      %v461 = vunpack.c.l.b16 %v236
      %v462 = vunpack.c.h.b16 %v236
      %v463 = vunpack.c.l.b16 %v237
      %v464 = vunpack.c.h.b16 %v237
      %v465 = vunpack.c.l.b16 %v238
      %v466 = vunpack.c.h.b16 %v238
      %v467 = vunpack.c.l.b16 %v239
      %v468 = vunpack.c.h.b16 %v239
      %v469 = vunpack.c.l.b16 %v240
      %v470 = vunpack.c.h.b16 %v240
      %v471 = vunpack.c.l.b16 %v241
      %v472 = vunpack.c.h.b16 %v241
      %v473 = vpack.c.b16 %v347, %v345
      %v474 = vpack.c.b16 %v348, %v346
      %v475 = vpack.c.b16 %v351, %v349
      %v476 = vpack.c.b16 %v352, %v350
      %v477 = vpack.c.b16 %v355, %v353
      %v478 = vpack.c.b16 %v356, %v354
      %v479 = vpack.c.b16 %v359, %v357
      %v480 = vpack.c.b16 %v360, %v358
      %v481 = vpack.c.b16 %v363, %v361
      %v482 = vpack.c.b16 %v364, %v362
      %v483 = vpack.c.b16 %v367, %v365
      %v484 = vpack.c.b16 %v368, %v366
      %v485 = vpack.c.b16 %v371, %v369
      %v486 = vpack.c.b16 %v372, %v370
      %v487 = vpack.c.b16 %v375, %v373
      %v488 = vpack.c.b16 %v376, %v374
      %v489 = vpack.c.b16 %v379, %v377
      %v490 = vpack.c.b16 %v380, %v378
      %v491 = vpack.c.b16 %v383, %v381
      %v492 = vpack.c.b16 %v384, %v382
      %v493 = vpack.c.b16 %v387, %v385
      %v494 = vpack.c.b16 %v388, %v386
      %v495 = vpack.c.b16 %v391, %v389
      %v496 = vpack.c.b16 %v392, %v390
      %v497 = vpack.c.b16 %v395, %v393
      %v498 = vpack.c.b16 %v396, %v394
      %v499 = vpack.c.b16 %v399, %v397
      %v500 = vpack.c.b16 %v400, %v398
      %v501 = vpack.c.b16 %v403, %v401
      %v502 = vpack.c.b16 %v404, %v402
      %v503 = vpack.c.b16 %v407, %v405
      %v504 = vpack.c.b16 %v408, %v406
      %v505 = vpack.c.b16 %v411, %v409
      %v506 = vpack.c.b16 %v412, %v410
      %v507 = vpack.c.b16 %v415, %v413
      %v508 = vpack.c.b16 %v416, %v414
      %v509 = vpack.c.b16 %v419, %v417
      %v510 = vpack.c.b16 %v420, %v418
      %v511 = vpack.c.b16 %v423, %v421
      %v512 = vpack.c.b16 %v424, %v422
      %v513 = vpack.c.b16 %v427, %v425
      %v514 = vpack.c.b16 %v428, %v426
      %v515 = vpack.c.b16 %v431, %v429
      %v516 = vpack.c.b16 %v432, %v430
      %v517 = vpack.c.b16 %v435, %v433
      %v518 = vpack.c.b16 %v436, %v434
      %v519 = vpack.c.b16 %v439, %v437
      %v520 = vpack.c.b16 %v440, %v438
      %v521 = vpack.c.b16 %v443, %v441
      %v522 = vpack.c.b16 %v444, %v442
      %v523 = vpack.c.b16 %v447, %v445
      %v524 = vpack.c.b16 %v448, %v446
      %v525 = vpack.c.b16 %v451, %v449
      %v526 = vpack.c.b16 %v452, %v450
      %v527 = vpack.c.b16 %v455, %v453
      %v528 = vpack.c.b16 %v456, %v454
      %v529 = vpack.c.b16 %v459, %v457
      %v530 = vpack.c.b16 %v460, %v458
      %v531 = vpack.c.b16 %v463, %v461
      %v532 = vpack.c.b16 %v464, %v462
      %v533 = vpack.c.b16 %v467, %v465
      %v534 = vpack.c.b16 %v468, %v466
      %v535 = vpack.c.b16 %v471, %v469
      %v536 = vpack.c.b16 %v472, %v470
      %v633 = vunpack.c.l.b16 %v242
      %v634 = vunpack.c.l.b16 %v243
      %v635 = vunpack.c.l.b16 %v244
      %v636 = vunpack.c.l.b16 %v245
      %v637 = vunpack.c.l.b16 %v246
      %v638 = vunpack.c.l.b16 %v247
      %v639 = vunpack.c.l.b16 %v248
      %v640 = vunpack.c.l.b16 %v249
      %v641 = vunpack.c.l.b16 %v250
      %v642 = vunpack.c.l.b16 %v251
      %v643 = vunpack.c.l.b16 %v252
      %v644 = vunpack.c.l.b16 %v253
      %v645 = vunpack.c.l.b16 %v254
      %v646 = vunpack.c.l.b16 %v255
      %v647 = vunpack.c.l.b16 %v256
      %v648 = vunpack.c.l.b16 %v257
      %v649 = vunpack.c.l.b16 %v258
      %v650 = vunpack.c.l.b16 %v259
      %v651 = vunpack.c.l.b16 %v260
      %v652 = vunpack.c.l.b16 %v261
      %v653 = vunpack.c.l.b16 %v262
      %v654 = vunpack.c.l.b16 %v263
      %v655 = vunpack.c.l.b16 %v264
      %v656 = vunpack.c.l.b16 %v265
      %v657 = vunpack.c.l.b16 %v266
      %v658 = vunpack.c.l.b16 %v267
      %v659 = vunpack.c.l.b16 %v268
      %v660 = vunpack.c.l.b16 %v269
      %v661 = vunpack.c.l.b16 %v270
      %v662 = vunpack.c.l.b16 %v271
      %v663 = vunpack.c.l.b16 %v272
      %v664 = vunpack.c.l.b16 %v273
      %v665 = vpack.c.b16 %v634, %v633
      %v666 = vpack.c.b16 %v636, %v635
      %v667 = vpack.c.b16 %v638, %v637
      %v668 = vpack.c.b16 %v640, %v639
      %v669 = vpack.c.b16 %v642, %v641
      %v670 = vpack.c.b16 %v644, %v643
      %v671 = vpack.c.b16 %v646, %v645
      %v672 = vpack.c.b16 %v648, %v647
      %v673 = vpack.c.b16 %v650, %v649
      %v674 = vpack.c.b16 %v652, %v651
      %v675 = vpack.c.b16 %v654, %v653
      %v676 = vpack.c.b16 %v656, %v655
      %v677 = vpack.c.b16 %v658, %v657
      %v678 = vpack.c.b16 %v660, %v659
      %v679 = vpack.c.b16 %v662, %v661
      %v680 = vpack.c.b16 %v664, %v663
      %697 = vmatprep.subr.bf16.mxu0 0
      %698 = vmatpush1.bf16.msra.mxu0 %v672
      %699 = vmatprep.subr.bf16.mxu0 0
      %700 = vmatpush1.bf16.msra.mxu0 %v671
      %701 = vmatprep.subr.bf16.mxu0 0
      %702 = vmatpush1.bf16.msra.mxu0 %v670
      %703 = vmatprep.subr.bf16.mxu0 0
      %704 = vmatpush1.bf16.msra.mxu0 %v669
      %705 = vmatprep.subr.bf16.mxu0 0
      %706 = vmatpush1.bf16.msra.mxu0 %v668
      %707 = vmatprep.subr.bf16.mxu0 0
      %708 = vmatpush1.bf16.msra.mxu0 %v667
      %709 = vmatprep.subr.bf16.mxu0 0
      %710 = vmatpush1.bf16.msra.mxu0 %v666
      %711 = vmatprep.subr.bf16.mxu0 0
      %712 = vmatpush1.bf16.msra.mxu0 %v665
      %713 = vmatprep.subr.bf16.mxu0 0
      %714 = vmatpush2.bf16.msra.mxu0 %v680
      %715 = vmatprep.subr.bf16.mxu0 0
      %716 = vmatpush2.bf16.msra.mxu0 %v679
      %717 = vmatprep.subr.bf16.mxu0 0
      %718 = vmatpush2.bf16.msra.mxu0 %v678
      %719 = vmatprep.subr.bf16.mxu0 0
      %720 = vmatpush2.bf16.msra.mxu0 %v677
      %721 = vmatprep.subr.bf16.mxu0 0
      %722 = vmatpush2.bf16.msra.mxu0 %v676
      %723 = vmatprep.subr.bf16.mxu0 0
      %724 = vmatpush2.bf16.msra.mxu0 %v675
      %725 = vmatprep.subr.bf16.mxu0 0
      %726 = vmatpush2.bf16.msra.mxu0 %v674
      %727 = vmatprep.subr.bf16.mxu0 0
      %728 = vmatpush2.bf16.msra.mxu0 %v673
      %729 = vmatprep.mubr.bf16.mxu0 %v474
      %730 = vmatmul.mubr.bf16.gmra.mxu0 %v473
      %v731 = vpop.f32.mrf.mxu0
      %v732 = vadd.f32 %v279, %v731
      %v733 = vpop.f32.mrf.mxu0
      %v734 = vpop.f32.mrf.mxu0
      %v735 = vadd.f32 %v279, %v734
      %v736 = vpop.f32.mrf.mxu0
      %737 = vmatprep.mubr.bf16.mxu0 %v476
      %738 = vmatmul.mubr.bf16.gmra.mxu0 %v475
      %v739 = vpop.f32.mrf.mxu0
      %v740 = vadd.f32 %v279, %v739
      %v741 = vpop.f32.mrf.mxu0
      %v742 = vpop.f32.mrf.mxu0
      %v743 = vadd.f32 %v279, %v742
      %v744 = vpop.f32.mrf.mxu0
      %745 = vmatprep.mubr.bf16.mxu0 %v478
      %746 = vmatmul.mubr.bf16.gmra.mxu0 %v477
      %v747 = vpop.f32.mrf.mxu0
      %v748 = vadd.f32 %v279, %v747
      %v749 = vpop.f32.mrf.mxu0
      %v750 = vpop.f32.mrf.mxu0
      %v751 = vadd.f32 %v279, %v750
      %v752 = vpop.f32.mrf.mxu0
      %753 = vmatprep.mubr.bf16.mxu0 %v480
      %754 = vmatmul.mubr.bf16.gmra.mxu0 %v479
      %v755 = vpop.f32.mrf.mxu0
      %v756 = vadd.f32 %v279, %v755
      %v757 = vpop.f32.mrf.mxu0
      %v758 = vpop.f32.mrf.mxu0
      %v759 = vadd.f32 %v279, %v758
      %v760 = vpop.f32.mrf.mxu0
      %761 = vmatprep.mubr.bf16.mxu0 %v482
      %762 = vmatmul.mubr.bf16.gmra.mxu0 %v481
      %v763 = vpop.f32.mrf.mxu0
      %v764 = vadd.f32 %v279, %v763
      %v765 = vpop.f32.mrf.mxu0
      %v766 = vpop.f32.mrf.mxu0
      %v767 = vadd.f32 %v279, %v766
      %v768 = vpop.f32.mrf.mxu0
      %769 = vmatprep.mubr.bf16.mxu0 %v484
      %770 = vmatmul.mubr.bf16.gmra.mxu0 %v483
      %v771 = vpop.f32.mrf.mxu0
      %v772 = vadd.f32 %v279, %v771
      %v773 = vpop.f32.mrf.mxu0
      %v774 = vpop.f32.mrf.mxu0
      %v775 = vadd.f32 %v279, %v774
      %v776 = vpop.f32.mrf.mxu0
      %777 = vmatprep.mubr.bf16.mxu0 %v486
      %778 = vmatmul.mubr.bf16.gmra.mxu0 %v485
      %v779 = vpop.f32.mrf.mxu0
      %v780 = vadd.f32 %v279, %v779
      %v781 = vpop.f32.mrf.mxu0
      %v782 = vpop.f32.mrf.mxu0
      %v783 = vadd.f32 %v279, %v782
      %v784 = vpop.f32.mrf.mxu0
      %785 = vmatprep.mubr.bf16.mxu0 %v488
      %786 = vmatmul.mubr.bf16.gmra.mxu0 %v487
      %v787 = vpop.f32.mrf.mxu0
      %v788 = vadd.f32 %v279, %v787
      %v789 = vpop.f32.mrf.mxu0
      %v790 = vpop.f32.mrf.mxu0
      %v791 = vadd.f32 %v279, %v790
      %v792 = vpop.f32.mrf.mxu0
      %793 = vmatprep.mubr.bf16.mxu0 %v490
      %794 = vmatmul.mubr.bf16.gmra.mxu0 %v489
      %v795 = vpop.f32.mrf.mxu0
      %v796 = vadd.f32 %v279, %v795
      %v797 = vpop.f32.mrf.mxu0
      %v798 = vpop.f32.mrf.mxu0
      %v799 = vadd.f32 %v279, %v798
      %v800 = vpop.f32.mrf.mxu0
      %801 = vmatprep.mubr.bf16.mxu0 %v492
      %802 = vmatmul.mubr.bf16.gmra.mxu0 %v491
      %v803 = vpop.f32.mrf.mxu0
      %v804 = vadd.f32 %v279, %v803
      %v805 = vpop.f32.mrf.mxu0
      %v806 = vpop.f32.mrf.mxu0
      %v807 = vadd.f32 %v279, %v806
      %v808 = vpop.f32.mrf.mxu0
      %809 = vmatprep.mubr.bf16.mxu0 %v494
      %810 = vmatmul.mubr.bf16.gmra.mxu0 %v493
      %v811 = vpop.f32.mrf.mxu0
      %v812 = vadd.f32 %v279, %v811
      %v813 = vpop.f32.mrf.mxu0
      %v814 = vpop.f32.mrf.mxu0
      %v815 = vadd.f32 %v279, %v814
      %v816 = vpop.f32.mrf.mxu0
      %817 = vmatprep.mubr.bf16.mxu0 %v496
      %818 = vmatmul.mubr.bf16.gmra.mxu0 %v495
      %v819 = vpop.f32.mrf.mxu0
      %v820 = vadd.f32 %v279, %v819
      %v821 = vpop.f32.mrf.mxu0
      %v822 = vpop.f32.mrf.mxu0
      %v823 = vadd.f32 %v279, %v822
      %v824 = vpop.f32.mrf.mxu0
      %825 = vmatprep.mubr.bf16.mxu0 %v498
      %826 = vmatmul.mubr.bf16.gmra.mxu0 %v497
      %v827 = vpop.f32.mrf.mxu0
      %v828 = vadd.f32 %v279, %v827
      %v829 = vpop.f32.mrf.mxu0
      %v830 = vpop.f32.mrf.mxu0
      %v831 = vadd.f32 %v279, %v830
      %v832 = vpop.f32.mrf.mxu0
      %833 = vmatprep.mubr.bf16.mxu0 %v500
      %834 = vmatmul.mubr.bf16.gmra.mxu0 %v499
      %v835 = vpop.f32.mrf.mxu0
      %v836 = vadd.f32 %v279, %v835
      %v837 = vpop.f32.mrf.mxu0
      %v838 = vpop.f32.mrf.mxu0
      %v839 = vadd.f32 %v279, %v838
      %v840 = vpop.f32.mrf.mxu0
      %841 = vmatprep.mubr.bf16.mxu0 %v502
      %842 = vmatmul.mubr.bf16.gmra.mxu0 %v501
      %v843 = vpop.f32.mrf.mxu0
      %v844 = vadd.f32 %v279, %v843
      %v845 = vpop.f32.mrf.mxu0
      %v846 = vpop.f32.mrf.mxu0
      %v847 = vadd.f32 %v279, %v846
      %v848 = vpop.f32.mrf.mxu0
      %849 = vmatprep.mubr.bf16.mxu0 %v504
      %850 = vmatmul.mubr.bf16.gmra.mxu0 %v503
      %v851 = vpop.f32.mrf.mxu0
      %v852 = vadd.f32 %v279, %v851
      %v853 = vpop.f32.mrf.mxu0
      %v854 = vpop.f32.mrf.mxu0
      %v855 = vadd.f32 %v279, %v854
      %v856 = vpop.f32.mrf.mxu0
      %857 = vmatprep.mubr.bf16.mxu0 %v506
      %858 = vmatmul.mubr.bf16.gmra.mxu0 %v505
      %v859 = vpop.f32.mrf.mxu0
      %v860 = vadd.f32 %v279, %v859
      %v861 = vpop.f32.mrf.mxu0
      %v862 = vpop.f32.mrf.mxu0
      %v863 = vadd.f32 %v279, %v862
      %v864 = vpop.f32.mrf.mxu0
      %865 = vmatprep.mubr.bf16.mxu0 %v508
      %866 = vmatmul.mubr.bf16.gmra.mxu0 %v507
      %v867 = vpop.f32.mrf.mxu0
      %v868 = vadd.f32 %v279, %v867
      %v869 = vpop.f32.mrf.mxu0
      %v870 = vpop.f32.mrf.mxu0
      %v871 = vadd.f32 %v279, %v870
      %v872 = vpop.f32.mrf.mxu0
      %873 = vmatprep.mubr.bf16.mxu0 %v510
      %874 = vmatmul.mubr.bf16.gmra.mxu0 %v509
      %v875 = vpop.f32.mrf.mxu0
      %v876 = vadd.f32 %v279, %v875
      %v877 = vpop.f32.mrf.mxu0
      %v878 = vpop.f32.mrf.mxu0
      %v879 = vadd.f32 %v279, %v878
      %v880 = vpop.f32.mrf.mxu0
      %881 = vmatprep.mubr.bf16.mxu0 %v512
      %882 = vmatmul.mubr.bf16.gmra.mxu0 %v511
      %v883 = vpop.f32.mrf.mxu0
      %v884 = vadd.f32 %v279, %v883
      %v885 = vpop.f32.mrf.mxu0
      %v886 = vpop.f32.mrf.mxu0
      %v887 = vadd.f32 %v279, %v886
      %v888 = vpop.f32.mrf.mxu0
      %889 = vmatprep.mubr.bf16.mxu0 %v514
      %890 = vmatmul.mubr.bf16.gmra.mxu0 %v513
      %v891 = vpop.f32.mrf.mxu0
      %v892 = vadd.f32 %v279, %v891
      %v893 = vpop.f32.mrf.mxu0
      %v894 = vpop.f32.mrf.mxu0
      %v895 = vadd.f32 %v279, %v894
      %v896 = vpop.f32.mrf.mxu0
      %897 = vmatprep.mubr.bf16.mxu0 %v516
      %898 = vmatmul.mubr.bf16.gmra.mxu0 %v515
      %v899 = vpop.f32.mrf.mxu0
      %v900 = vadd.f32 %v279, %v899
      %v901 = vpop.f32.mrf.mxu0
      %v902 = vpop.f32.mrf.mxu0
      %v903 = vadd.f32 %v279, %v902
      %v904 = vpop.f32.mrf.mxu0
      %905 = vmatprep.mubr.bf16.mxu0 %v518
      %906 = vmatmul.mubr.bf16.gmra.mxu0 %v517
      %v907 = vpop.f32.mrf.mxu0
      %v908 = vadd.f32 %v279, %v907
      %v909 = vpop.f32.mrf.mxu0
      %v910 = vpop.f32.mrf.mxu0
      %v911 = vadd.f32 %v279, %v910
      %v912 = vpop.f32.mrf.mxu0
      %913 = vmatprep.mubr.bf16.mxu0 %v520
      %914 = vmatmul.mubr.bf16.gmra.mxu0 %v519
      %v915 = vpop.f32.mrf.mxu0
      %v916 = vadd.f32 %v279, %v915
      %v917 = vpop.f32.mrf.mxu0
      %v918 = vpop.f32.mrf.mxu0
      %v919 = vadd.f32 %v279, %v918
      %v920 = vpop.f32.mrf.mxu0
      %921 = vmatprep.mubr.bf16.mxu0 %v522
      %922 = vmatmul.mubr.bf16.gmra.mxu0 %v521
      %v923 = vpop.f32.mrf.mxu0
      %v924 = vadd.f32 %v279, %v923
      %v925 = vpop.f32.mrf.mxu0
      %v926 = vpop.f32.mrf.mxu0
      %v927 = vadd.f32 %v279, %v926
      %v928 = vpop.f32.mrf.mxu0
      %929 = vmatprep.mubr.bf16.mxu0 %v524
      %930 = vmatmul.mubr.bf16.gmra.mxu0 %v523
      %v931 = vpop.f32.mrf.mxu0
      %v932 = vadd.f32 %v279, %v931
      %v933 = vpop.f32.mrf.mxu0
      %v934 = vpop.f32.mrf.mxu0
      %v935 = vadd.f32 %v279, %v934
      %v936 = vpop.f32.mrf.mxu0
      %937 = vmatprep.mubr.bf16.mxu0 %v526
      %938 = vmatmul.mubr.bf16.gmra.mxu0 %v525
      %v939 = vpop.f32.mrf.mxu0
      %v940 = vadd.f32 %v279, %v939
      %v941 = vpop.f32.mrf.mxu0
      %v942 = vpop.f32.mrf.mxu0
      %v943 = vadd.f32 %v279, %v942
      %v944 = vpop.f32.mrf.mxu0
      %945 = vmatprep.mubr.bf16.mxu0 %v528
      %946 = vmatmul.mubr.bf16.gmra.mxu0 %v527
      %v947 = vpop.f32.mrf.mxu0
      %v948 = vadd.f32 %v279, %v947
      %v949 = vpop.f32.mrf.mxu0
      %v950 = vpop.f32.mrf.mxu0
      %v951 = vadd.f32 %v279, %v950
      %v952 = vpop.f32.mrf.mxu0
      %953 = vmatprep.mubr.bf16.mxu0 %v530
      %954 = vmatmul.mubr.bf16.gmra.mxu0 %v529
      %v955 = vpop.f32.mrf.mxu0
      %v956 = vadd.f32 %v279, %v955
      %v957 = vpop.f32.mrf.mxu0
      %v958 = vpop.f32.mrf.mxu0
      %v959 = vadd.f32 %v279, %v958
      %v960 = vpop.f32.mrf.mxu0
      %961 = vmatprep.mubr.bf16.mxu0 %v532
      %962 = vmatmul.mubr.bf16.gmra.mxu0 %v531
      %v963 = vpop.f32.mrf.mxu0
      %v964 = vadd.f32 %v279, %v963
      %v965 = vpop.f32.mrf.mxu0
      %v966 = vpop.f32.mrf.mxu0
      %v967 = vadd.f32 %v279, %v966
      %v968 = vpop.f32.mrf.mxu0
      %969 = vmatprep.mubr.bf16.mxu0 %v534
      %970 = vmatmul.mubr.bf16.gmra.mxu0 %v533
      %v971 = vpop.f32.mrf.mxu0
      %v972 = vadd.f32 %v279, %v971
      %v973 = vpop.f32.mrf.mxu0
      %v974 = vpop.f32.mrf.mxu0
      %v975 = vadd.f32 %v279, %v974
      %v976 = vpop.f32.mrf.mxu0
      %977 = vmatprep.mubr.bf16.mxu0 %v536
      %978 = vmatmul.mubr.bf16.gmra.mxu0 %v535
      %v979 = vpop.f32.mrf.mxu0
      %v980 = vadd.f32 %v279, %v979
      %v981 = vpop.f32.mrf.mxu0
      %v982 = vpop.f32.mrf.mxu0
      %v983 = vadd.f32 %v279, %v982
      %v984 = vpop.f32.mrf.mxu0
      %985 = vdwg.mxu0
      %v986 = vmax.f32 %v732, 0.0
      %v987 = vmax.f32 %v735, 0.0
      %v988 = vmax.f32 %v740, 0.0
      %v989 = vmax.f32 %v743, 0.0
      %v990 = vmax.f32 %v748, 0.0
      %v991 = vmax.f32 %v751, 0.0
      %v992 = vmax.f32 %v756, 0.0
      %v993 = vmax.f32 %v759, 0.0
      %v994 = vmax.f32 %v764, 0.0
      %v995 = vmax.f32 %v767, 0.0
      %v996 = vmax.f32 %v772, 0.0
      %v997 = vmax.f32 %v775, 0.0
      %v998 = vmax.f32 %v780, 0.0
      %v999 = vmax.f32 %v783, 0.0
      %v1000 = vmax.f32 %v788, 0.0
      %v1001 = vmax.f32 %v791, 0.0
      %v1002 = vmax.f32 %v796, 0.0
      %v1003 = vmax.f32 %v799, 0.0
      %v1004 = vmax.f32 %v804, 0.0
      %v1005 = vmax.f32 %v807, 0.0
      %v1006 = vmax.f32 %v812, 0.0
      %v1007 = vmax.f32 %v815, 0.0
      %v1008 = vmax.f32 %v820, 0.0
      %v1009 = vmax.f32 %v823, 0.0
      %v1010 = vmax.f32 %v828, 0.0
      %v1011 = vmax.f32 %v831, 0.0
      %v1012 = vmax.f32 %v836, 0.0
      %v1013 = vmax.f32 %v839, 0.0
      %v1014 = vmax.f32 %v844, 0.0
      %v1015 = vmax.f32 %v847, 0.0
      %v1016 = vmax.f32 %v852, 0.0
      %v1017 = vmax.f32 %v855, 0.0
      %v1018 = vmax.f32 %v860, 0.0
      %v1019 = vmax.f32 %v863, 0.0
      %v1020 = vmax.f32 %v868, 0.0
      %v1021 = vmax.f32 %v871, 0.0
      %v1022 = vmax.f32 %v876, 0.0
      %v1023 = vmax.f32 %v879, 0.0
      %v1024 = vmax.f32 %v884, 0.0
      %v1025 = vmax.f32 %v887, 0.0
      %v1026 = vmax.f32 %v892, 0.0
      %v1027 = vmax.f32 %v895, 0.0
      %v1028 = vmax.f32 %v900, 0.0
      %v1029 = vmax.f32 %v903, 0.0
      %v1030 = vmax.f32 %v908, 0.0
      %v1031 = vmax.f32 %v911, 0.0
      %v1032 = vmax.f32 %v916, 0.0
      %v1033 = vmax.f32 %v919, 0.0
      %v1034 = vmax.f32 %v924, 0.0
      %v1035 = vmax.f32 %v927, 0.0
      %v1036 = vmax.f32 %v932, 0.0
      %v1037 = vmax.f32 %v935, 0.0
      %v1038 = vmax.f32 %v940, 0.0
      %v1039 = vmax.f32 %v943, 0.0
      %v1040 = vmax.f32 %v948, 0.0
      %v1041 = vmax.f32 %v951, 0.0
      %v1042 = vmax.f32 %v956, 0.0
      %v1043 = vmax.f32 %v959, 0.0
      %v1044 = vmax.f32 %v964, 0.0
      %v1045 = vmax.f32 %v967, 0.0
      %v1046 = vmax.f32 %v972, 0.0
      %v1047 = vmax.f32 %v975, 0.0
      %v1048 = vmax.f32 %v980, 0.0
      %v1049 = vmax.f32 %v983, 0.0
      %v1050 = vpack.c.bf16 %v987, %v986
      %v1051 = vpack.c.bf16 %v989, %v988
      %v1052 = vpack.c.bf16 %v991, %v990
      %v1053 = vpack.c.bf16 %v993, %v992
      %v1054 = vpack.c.bf16 %v995, %v994
      %v1055 = vpack.c.bf16 %v997, %v996
      %v1056 = vpack.c.bf16 %v999, %v998
      %v1057 = vpack.c.bf16 %v1001, %v1000
      %v1058 = vpack.c.bf16 %v1003, %v1002
      %v1059 = vpack.c.bf16 %v1005, %v1004
      %v1060 = vpack.c.bf16 %v1007, %v1006
      %v1061 = vpack.c.bf16 %v1009, %v1008
      %v1062 = vpack.c.bf16 %v1011, %v1010
      %v1063 = vpack.c.bf16 %v1013, %v1012
      %v1064 = vpack.c.bf16 %v1015, %v1014
      %v1065 = vpack.c.bf16 %v1017, %v1016
      %v1066 = vpack.c.bf16 %v1019, %v1018
      %v1067 = vpack.c.bf16 %v1021, %v1020
      %v1068 = vpack.c.bf16 %v1023, %v1022
      %v1069 = vpack.c.bf16 %v1025, %v1024
      %v1070 = vpack.c.bf16 %v1027, %v1026
      %v1071 = vpack.c.bf16 %v1029, %v1028
      %v1072 = vpack.c.bf16 %v1031, %v1030
      %v1073 = vpack.c.bf16 %v1033, %v1032
      %v1074 = vpack.c.bf16 %v1035, %v1034
      %v1075 = vpack.c.bf16 %v1037, %v1036
      %v1076 = vpack.c.bf16 %v1039, %v1038
      %v1077 = vpack.c.bf16 %v1041, %v1040
      %v1078 = vpack.c.bf16 %v1043, %v1042
      %v1079 = vpack.c.bf16 %v1045, %v1044
      %v1080 = vpack.c.bf16 %v1047, %v1046
      %v1081 = vpack.c.bf16 %v1049, %v1048
      %v1114 = vunpack.c.l.b16 %v1050
      %v1115 = vunpack.c.h.b16 %v1050
      %v1116 = vunpack.c.l.b16 %v1051
      %v1117 = vunpack.c.h.b16 %v1051
      %v1118 = vunpack.c.l.b16 %v1052
      %v1119 = vunpack.c.h.b16 %v1052
      %v1120 = vunpack.c.l.b16 %v1053
      %v1121 = vunpack.c.h.b16 %v1053
      %v1122 = vunpack.c.l.b16 %v1054
      %v1123 = vunpack.c.h.b16 %v1054
      %v1124 = vunpack.c.l.b16 %v1055
      %v1125 = vunpack.c.h.b16 %v1055
      %v1126 = vunpack.c.l.b16 %v1056
      %v1127 = vunpack.c.h.b16 %v1056
      %v1128 = vunpack.c.l.b16 %v1057
      %v1129 = vunpack.c.h.b16 %v1057
      %v1130 = vunpack.c.l.b16 %v1058
      %v1131 = vunpack.c.h.b16 %v1058
      %v1132 = vunpack.c.l.b16 %v1059
      %v1133 = vunpack.c.h.b16 %v1059
      %v1134 = vunpack.c.l.b16 %v1060
      %v1135 = vunpack.c.h.b16 %v1060
      %v1136 = vunpack.c.l.b16 %v1061
      %v1137 = vunpack.c.h.b16 %v1061
      %v1138 = vunpack.c.l.b16 %v1062
      %v1139 = vunpack.c.h.b16 %v1062
      %v1140 = vunpack.c.l.b16 %v1063
      %v1141 = vunpack.c.h.b16 %v1063
      %v1142 = vunpack.c.l.b16 %v1064
      %v1143 = vunpack.c.h.b16 %v1064
      %v1144 = vunpack.c.l.b16 %v1065
      %v1145 = vunpack.c.h.b16 %v1065
      %v1146 = vunpack.c.l.b16 %v1066
      %v1147 = vunpack.c.h.b16 %v1066
      %v1148 = vunpack.c.l.b16 %v1067
      %v1149 = vunpack.c.h.b16 %v1067
      %v1150 = vunpack.c.l.b16 %v1068
      %v1151 = vunpack.c.h.b16 %v1068
      %v1152 = vunpack.c.l.b16 %v1069
      %v1153 = vunpack.c.h.b16 %v1069
      %v1154 = vunpack.c.l.b16 %v1070
      %v1155 = vunpack.c.h.b16 %v1070
      %v1156 = vunpack.c.l.b16 %v1071
      %v1157 = vunpack.c.h.b16 %v1071
      %v1158 = vunpack.c.l.b16 %v1072
      %v1159 = vunpack.c.h.b16 %v1072
      %v1160 = vunpack.c.l.b16 %v1073
      %v1161 = vunpack.c.h.b16 %v1073
      %v1162 = vunpack.c.l.b16 %v1074
      %v1163 = vunpack.c.h.b16 %v1074
      %v1164 = vunpack.c.l.b16 %v1075
      %v1165 = vunpack.c.h.b16 %v1075
      %v1166 = vunpack.c.l.b16 %v1076
      %v1167 = vunpack.c.h.b16 %v1076
      %v1168 = vunpack.c.l.b16 %v1077
      %v1169 = vunpack.c.h.b16 %v1077
      %v1170 = vunpack.c.l.b16 %v1078
      %v1171 = vunpack.c.h.b16 %v1078
      %v1172 = vunpack.c.l.b16 %v1079
      %v1173 = vunpack.c.h.b16 %v1079
      %v1174 = vunpack.c.l.b16 %v1080
      %v1175 = vunpack.c.h.b16 %v1080
      %v1176 = vunpack.c.l.b16 %v1081
      %v1177 = vunpack.c.h.b16 %v1081
      %v1178 = vpack.c.b16 %v1114, %v1114
      %v1179 = vpack.c.b16 %v1115, %v1115
      %v1180 = vpack.c.b16 %v1116, %v1116
      %v1181 = vpack.c.b16 %v1117, %v1117
      %v1182 = vpack.c.b16 %v1118, %v1118
      %v1183 = vpack.c.b16 %v1119, %v1119
      %v1184 = vpack.c.b16 %v1120, %v1120
      %v1185 = vpack.c.b16 %v1121, %v1121
      %v1186 = vpack.c.b16 %v1122, %v1122
      %v1187 = vpack.c.b16 %v1123, %v1123
      %v1188 = vpack.c.b16 %v1124, %v1124
      %v1189 = vpack.c.b16 %v1125, %v1125
      %v1190 = vpack.c.b16 %v1126, %v1126
      %v1191 = vpack.c.b16 %v1127, %v1127
      %v1192 = vpack.c.b16 %v1128, %v1128
      %v1193 = vpack.c.b16 %v1129, %v1129
      %v1194 = vpack.c.b16 %v1130, %v1130
      %v1195 = vpack.c.b16 %v1131, %v1131
      %v1196 = vpack.c.b16 %v1132, %v1132
      %v1197 = vpack.c.b16 %v1133, %v1133
      %v1198 = vpack.c.b16 %v1134, %v1134
      %v1199 = vpack.c.b16 %v1135, %v1135
      %v1200 = vpack.c.b16 %v1136, %v1136
      %v1201 = vpack.c.b16 %v1137, %v1137
      %v1202 = vpack.c.b16 %v1138, %v1138
      %v1203 = vpack.c.b16 %v1139, %v1139
      %v1204 = vpack.c.b16 %v1140, %v1140
      %v1205 = vpack.c.b16 %v1141, %v1141
      %v1206 = vpack.c.b16 %v1142, %v1142
      %v1207 = vpack.c.b16 %v1143, %v1143
      %v1208 = vpack.c.b16 %v1144, %v1144
      %v1209 = vpack.c.b16 %v1145, %v1145
      %v1210 = vpack.c.b16 %v1146, %v1146
      %v1211 = vpack.c.b16 %v1147, %v1147
      %v1212 = vpack.c.b16 %v1148, %v1148
      %v1213 = vpack.c.b16 %v1149, %v1149
      %v1214 = vpack.c.b16 %v1150, %v1150
      %v1215 = vpack.c.b16 %v1151, %v1151
      %v1216 = vpack.c.b16 %v1152, %v1152
      %v1217 = vpack.c.b16 %v1153, %v1153
      %v1218 = vpack.c.b16 %v1154, %v1154
      %v1219 = vpack.c.b16 %v1155, %v1155
      %v1220 = vpack.c.b16 %v1156, %v1156
      %v1221 = vpack.c.b16 %v1157, %v1157
      %v1222 = vpack.c.b16 %v1158, %v1158
      %v1223 = vpack.c.b16 %v1159, %v1159
      %v1224 = vpack.c.b16 %v1160, %v1160
      %v1225 = vpack.c.b16 %v1161, %v1161
      %v1226 = vpack.c.b16 %v1162, %v1162
      %v1227 = vpack.c.b16 %v1163, %v1163
      %v1228 = vpack.c.b16 %v1164, %v1164
      %v1229 = vpack.c.b16 %v1165, %v1165
      %v1230 = vpack.c.b16 %v1166, %v1166
      %v1231 = vpack.c.b16 %v1167, %v1167
      %v1232 = vpack.c.b16 %v1168, %v1168
      %v1233 = vpack.c.b16 %v1169, %v1169
      %v1234 = vpack.c.b16 %v1170, %v1170
      %v1235 = vpack.c.b16 %v1171, %v1171
      %v1236 = vpack.c.b16 %v1172, %v1172
      %v1237 = vpack.c.b16 %v1173, %v1173
      %v1238 = vpack.c.b16 %v1174, %v1174
      %v1239 = vpack.c.b16 %v1175, %v1175
      %v1240 = vpack.c.b16 %v1176, %v1176
      %v1241 = vpack.c.b16 %v1177, %v1177
      %1306 = vst [vmem:[%s175] sm:$0xf] %v1178
      %1307 = vst [vmem:[%s175 + $0x4] sm:$0xf] %v1179
      %1308 = vst [vmem:[%s175 + $0x8] sm:$0xf] %v1180
      %1309 = vst [vmem:[%s175 + $0xc] sm:$0xf] %v1181
      %1310 = vst [vmem:[%s175 + $0x10] sm:$0xf] %v1182
      %1311 = vst [vmem:[%s175 + $0x14] sm:$0xf] %v1183
      %1312 = vst [vmem:[%s175 + $0x18] sm:$0xf] %v1184
      %1313 = vst [vmem:[%s175 + $0x1c] sm:$0xf] %v1185
      %1314 = vst [vmem:[%s175 + $0x20] sm:$0xf] %v1186
      %1315 = vst [vmem:[%s175 + $0x24] sm:$0xf] %v1187
      %1316 = vst [vmem:[%s175 + $0x28] sm:$0xf] %v1188
      %1317 = vst [vmem:[%s175 + $0x2c] sm:$0xf] %v1189
      %1318 = vst [vmem:[%s175 + $0x30] sm:$0xf] %v1190
      %1319 = vst [vmem:[%s175 + $0x34] sm:$0xf] %v1191
      %1320 = vst [vmem:[%s175 + $0x38] sm:$0xf] %v1192
      %1321 = vst [vmem:[%s175 + $0x3c] sm:$0xf] %v1193
      %1322 = vst [vmem:[%s175 + $0x40] sm:$0xf] %v1194
      %1323 = vst [vmem:[%s175 + $0x44] sm:$0xf] %v1195
      %1324 = vst [vmem:[%s175 + $0x48] sm:$0xf] %v1196
      %1325 = vst [vmem:[%s175 + $0x4c] sm:$0xf] %v1197
      %1326 = vst [vmem:[%s175 + $0x50] sm:$0xf] %v1198
      %1327 = vst [vmem:[%s175 + $0x54] sm:$0xf] %v1199
      %1328 = vst [vmem:[%s175 + $0x58] sm:$0xf] %v1200
      %1329 = vst [vmem:[%s175 + $0x5c] sm:$0xf] %v1201
      %1330 = vst [vmem:[%s175 + $0x60] sm:$0xf] %v1202
      %1331 = vst [vmem:[%s175 + $0x64] sm:$0xf] %v1203
      %1332 = vst [vmem:[%s175 + $0x68] sm:$0xf] %v1204
      %1333 = vst [vmem:[%s175 + $0x6c] sm:$0xf] %v1205
      %1334 = vst [vmem:[%s175 + $0x70] sm:$0xf] %v1206
      %1335 = vst [vmem:[%s175 + $0x74] sm:$0xf] %v1207
      %1336 = vst [vmem:[%s175 + $0x78] sm:$0xf] %v1208
      %1337 = vst [vmem:[%s175 + $0x7c] sm:$0xf] %v1209
      %1338 = vst [vmem:[%s175 + $0x80] sm:$0xf] %v1210
      %1339 = vst [vmem:[%s175 + $0x84] sm:$0xf] %v1211
      %1340 = vst [vmem:[%s175 + $0x88] sm:$0xf] %v1212
      %1341 = vst [vmem:[%s175 + $0x8c] sm:$0xf] %v1213
      %1342 = vst [vmem:[%s175 + $0x90] sm:$0xf] %v1214
      %1343 = vst [vmem:[%s175 + $0x94] sm:$0xf] %v1215
      %1344 = vst [vmem:[%s175 + $0x98] sm:$0xf] %v1216
      %1345 = vst [vmem:[%s175 + $0x9c] sm:$0xf] %v1217
      %1346 = vst [vmem:[%s175 + $0xa0] sm:$0xf] %v1218
      %1347 = vst [vmem:[%s175 + $0xa4] sm:$0xf] %v1219
      %1348 = vst [vmem:[%s175 + $0xa8] sm:$0xf] %v1220
      %1349 = vst [vmem:[%s175 + $0xac] sm:$0xf] %v1221
      %1350 = vst [vmem:[%s175 + $0xb0] sm:$0xf] %v1222
      %1351 = vst [vmem:[%s175 + $0xb4] sm:$0xf] %v1223
      %1352 = vst [vmem:[%s175 + $0xb8] sm:$0xf] %v1224
      %1353 = vst [vmem:[%s175 + $0xbc] sm:$0xf] %v1225
      %1354 = vst [vmem:[%s175 + $0xc0] sm:$0xf] %v1226
      %1355 = vst [vmem:[%s175 + $0xc4] sm:$0xf] %v1227
      %1356 = vst [vmem:[%s175 + $0xc8] sm:$0xf] %v1228
      %1357 = vst [vmem:[%s175 + $0xcc] sm:$0xf] %v1229
      %1358 = vst [vmem:[%s175 + $0xd0] sm:$0xf] %v1230
      %1359 = vst [vmem:[%s175 + $0xd4] sm:$0xf] %v1231
      %1360 = vst [vmem:[%s175 + $0xd8] sm:$0xf] %v1232
      %1361 = vst [vmem:[%s175 + $0xdc] sm:$0xf] %v1233
      %1362 = vst [vmem:[%s175 + $0xe0] sm:$0xf] %v1234
      %1363 = vst [vmem:[%s175 + $0xe4] sm:$0xf] %v1235
      %1364 = vst [vmem:[%s175 + $0xe8] sm:$0xf] %v1236
      %1365 = vst [vmem:[%s175 + $0xec] sm:$0xf] %v1237
      %1366 = vst [vmem:[%s175 + $0xf0] sm:$0xf] %v1238
      %1367 = vst [vmem:[%s175 + $0xf4] sm:$0xf] %v1239
      %1368 = vst [vmem:[%s175 + $0xf8] sm:$0xf] %v1240
      %1369 = vst [vmem:[%s175 + $0xfc] sm:$0xf] %v1241
      %s1370 = smul.u32 64, %s14
      %p1371 = scmp.lt.s32.totalorder %s1370, 255
      %s1372 = scalar_select %p1371, %s1370, 255
      %s1373 = smul.addr %s1372, 4
      %s1374 = scalar_lea.vmem %s3, %s1373
      // Predicated region
      $region33: #{_lambda_.11} parent=31 // pred_check
        %p1375 = pneg %p100
      $region34: #{_lambda_.11} parent=31 // pred_check_branch
        %1377 = sbr.rel (%p1375) target = $region36
      $region35: #{_lambda_.11} parent=31 // pred_region
        %s1378 = smul.u32 64, %s14
      $region36: #{_lambda_.11} parent=31 // pred_fallthru
        _
    $region32: #{_lambda_.11} parent=5 // pred_fallthru
      _
    %p1379 = scmp.le.s32.totalorder 2, %s9
    // Predicated region
    $region37: #{_lambda_.11} parent=5 // pred_check
      %p1380 = pneg %p1379
    $region38: #{_lambda_.11} parent=5 // pred_check_branch
      %1382 = sbr.rel (%p1380) target = $region40
    $region39: #{_lambda_.11} parent=5 // pred_region
      %s1383 = ssub.s32 %s9, 2
      // Predicated region
      $region41: #{_lambda_.11} parent=39 // pred_check
        %p1384 = pneg %p106
      $region42: #{_lambda_.11} parent=39 // pred_check_branch
        %1386 = sbr.rel (%p1384) target = $region44
      $region43: #{_lambda_.11} parent=39 // pred_region
        %s1387 = smul.u32 64, %s15
        %p1388 = scmp.lt.s32.totalorder %s1387, 255
        %s1389 = scalar_select %p1388, %s1387, 255
        %s1390 = smul.addr %s1389, 4
        %s1391 = scalar_lea.vmem %s3, %s1390
      $region44: #{_lambda_.11} parent=39 // pred_fallthru
        _
    $region40: #{_lambda_.11} parent=5 // pred_fallthru
      _
  $region6: #{_lambda_.11} parent=0 // loop_footer
    %s13 = sadd.s32 1, %s9
  $region7: #{_lambda_.11} parent=0 // loop_footer_branch
    %8 = sbr.rel target = $region3
  $region8: #{_lambda_.11} parent=0 // loop_exit
    _

// kernel: _lambda_.13
$region0: #{_lambda_.13}
  #allocation0 [shape = 'u32[]', space=smem, size = 0x4, offset = 0x4, fixed_abs, tag = 'smem constant byte address 0x4 - core index']
  #allocation1 [shape = 'u32[144,128]{1,0:T(1,128)}', space=vmem, size = 0x12000, scoped, tag = 'internal scratch']
  %s0 = inlined_call_operand.vmem [shape: bf16[512,256], index: 0, kind: input, shape index: {}]
  %s1 = inlined_call_operand.vmem [shape: bf16[256,256], index: 1, kind: input, shape index: {}]
  %s2 = inlined_call_operand.vmem [shape: f32[1,256], index: 2, kind: input, shape index: {}]
  %s3 = inlined_call_operand.vmem [shape: bf16[512,256], index: 3, kind: output, shape index: {}]
  %s4 = sld [smem:[#allocation0]]
  $region22: #{_lambda_.13} parent=0
    _
  %s6 = ssub.s32 1, %s4
  %s7 = scalar_select 0, %s6, %s4
  // Predicated region
  $region2: #{_lambda_.13} parent=0 // pred_check
    _
  $region3: #{_lambda_.13} parent=0 // pred_check_branch
    %9 = sbr.rel (0) target = $region5
  $region4: #{_lambda_.13} parent=0 // pred_region
    _
  $region5: #{_lambda_.13} parent=0 // pred_fallthru
    _
  // Predicated region
  $region6: #{_lambda_.13} parent=0 // pred_check
    _
  $region7: #{_lambda_.13} parent=0 // pred_check_branch
    %11 = sbr.rel (0) target = $region9
  $region8: #{_lambda_.13} parent=0 // pred_region
    _
  $region9: #{_lambda_.13} parent=0 // pred_fallthru
    _
  // Predicated region
  $region10: #{_lambda_.13} parent=0 // pred_check
    _
  $region11: #{_lambda_.13} parent=0 // pred_check_branch
    %13 = sbr.rel (0) target = $region13
  $region12: #{_lambda_.13} parent=0 // pred_region
    _
  $region13: #{_lambda_.13} parent=0 // pred_fallthru
    _
  %v14 = vld [vmem:[%s0] sm:$0xff]
  %v15 = vld [vmem:[%s0 + $0x8] sm:$0xff]
  %v16 = vld [vmem:[%s0 + $0x10] sm:$0xff]
  %v17 = vld [vmem:[%s0 + $0x18] sm:$0xff]
  %v18 = vld [vmem:[%s0 + $0x20] sm:$0xff]
  %v19 = vld [vmem:[%s0 + $0x28] sm:$0xff]
  %v20 = vld [vmem:[%s0 + $0x30] sm:$0xff]
  %v21 = vld [vmem:[%s0 + $0x38] sm:$0xff]
  %v22 = vld [vmem:[%s0 + $0x40] sm:$0xff]
  %v23 = vld [vmem:[%s0 + $0x48] sm:$0xff]
  %v24 = vld [vmem:[%s0 + $0x50] sm:$0xff]
  %v25 = vld [vmem:[%s0 + $0x58] sm:$0xff]
  %v26 = vld [vmem:[%s0 + $0x60] sm:$0xff]
  %v27 = vld [vmem:[%s0 + $0x68] sm:$0xff]
  %v28 = vld [vmem:[%s0 + $0x70] sm:$0xff]
  %v29 = vld [vmem:[%s0 + $0x78] sm:$0xff]
  %v30 = vld [vmem:[%s0 + $0x80] sm:$0xff]
  %v31 = vld [vmem:[%s0 + $0x88] sm:$0xff]
  %v32 = vld [vmem:[%s0 + $0x90] sm:$0xff]
  %v33 = vld [vmem:[%s0 + $0x98] sm:$0xff]
  %v34 = vld [vmem:[%s0 + $0xa0] sm:$0xff]
  %v35 = vld [vmem:[%s0 + $0xa8] sm:$0xff]
  %v36 = vld [vmem:[%s0 + $0xb0] sm:$0xff]
  %v37 = vld [vmem:[%s0 + $0xb8] sm:$0xff]
  %v38 = vld [vmem:[%s0 + $0xc0] sm:$0xff]
  %v39 = vld [vmem:[%s0 + $0xc8] sm:$0xff]
  %v40 = vld [vmem:[%s0 + $0xd0] sm:$0xff]
  %v41 = vld [vmem:[%s0 + $0xd8] sm:$0xff]
  %v42 = vld [vmem:[%s0 + $0xe0] sm:$0xff]
  %v43 = vld [vmem:[%s0 + $0xe8] sm:$0xff]
  %v44 = vld [vmem:[%s0 + $0xf0] sm:$0xff]
  %v45 = vld [vmem:[%s0 + $0xf8] sm:$0xff]
  %v46 = vld [vmem:[%s0 + $0x100] sm:$0xff]
  %v47 = vld [vmem:[%s0 + $0x108] sm:$0xff]
  %v48 = vld [vmem:[%s0 + $0x110] sm:$0xff]
  %v49 = vld [vmem:[%s0 + $0x118] sm:$0xff]
  %v50 = vld [vmem:[%s0 + $0x120] sm:$0xff]
  %v51 = vld [vmem:[%s0 + $0x128] sm:$0xff]
  %v52 = vld [vmem:[%s0 + $0x130] sm:$0xff]
  %v53 = vld [vmem:[%s0 + $0x138] sm:$0xff]
  %v54 = vld [vmem:[%s0 + $0x140] sm:$0xff]
  %v55 = vld [vmem:[%s0 + $0x148] sm:$0xff]
  %v56 = vld [vmem:[%s0 + $0x150] sm:$0xff]
  %v57 = vld [vmem:[%s0 + $0x158] sm:$0xff]
  %v58 = vld [vmem:[%s0 + $0x160] sm:$0xff]
  %v59 = vld [vmem:[%s0 + $0x168] sm:$0xff]
  %v60 = vld [vmem:[%s0 + $0x170] sm:$0xff]
  %v61 = vld [vmem:[%s0 + $0x178] sm:$0xff]
  %v62 = vld [vmem:[%s0 + $0x180] sm:$0xff]
  %v63 = vld [vmem:[%s0 + $0x188] sm:$0xff]
  %v64 = vld [vmem:[%s0 + $0x190] sm:$0xff]
  %v65 = vld [vmem:[%s0 + $0x198] sm:$0xff]
  %v66 = vld [vmem:[%s0 + $0x1a0] sm:$0xff]
  %v67 = vld [vmem:[%s0 + $0x1a8] sm:$0xff]
  %v68 = vld [vmem:[%s0 + $0x1b0] sm:$0xff]
  %v69 = vld [vmem:[%s0 + $0x1b8] sm:$0xff]
  %v70 = vld [vmem:[%s0 + $0x1c0] sm:$0xff]
  %v71 = vld [vmem:[%s0 + $0x1c8] sm:$0xff]
  %v72 = vld [vmem:[%s0 + $0x1d0] sm:$0xff]
  %v73 = vld [vmem:[%s0 + $0x1d8] sm:$0xff]
  %v74 = vld [vmem:[%s0 + $0x1e0] sm:$0xff]
  %v75 = vld [vmem:[%s0 + $0x1e8] sm:$0xff]
  %v76 = vld [vmem:[%s0 + $0x1f0] sm:$0xff]
  %v77 = vld [vmem:[%s0 + $0x1f8] sm:$0xff]
  %v78 = vld [vmem:[%s1] sm:$0xff]
  %v79 = vld [vmem:[%s1 + $0x8] sm:$0xff]
  %v80 = vld [vmem:[%s1 + $0x10] sm:$0xff]
  %v81 = vld [vmem:[%s1 + $0x18] sm:$0xff]
  %v82 = vld [vmem:[%s1 + $0x20] sm:$0xff]
  %v83 = vld [vmem:[%s1 + $0x28] sm:$0xff]
  %v84 = vld [vmem:[%s1 + $0x30] sm:$0xff]
  %v85 = vld [vmem:[%s1 + $0x38] sm:$0xff]
  %v86 = vld [vmem:[%s1 + $0x40] sm:$0xff]
  %v87 = vld [vmem:[%s1 + $0x48] sm:$0xff]
  %v88 = vld [vmem:[%s1 + $0x50] sm:$0xff]
  %v89 = vld [vmem:[%s1 + $0x58] sm:$0xff]
  %v90 = vld [vmem:[%s1 + $0x60] sm:$0xff]
  %v91 = vld [vmem:[%s1 + $0x68] sm:$0xff]
  %v92 = vld [vmem:[%s1 + $0x70] sm:$0xff]
  %v93 = vld [vmem:[%s1 + $0x78] sm:$0xff]
  %v94 = vld [vmem:[%s1 + $0x80] sm:$0xff]
  %v95 = vld [vmem:[%s1 + $0x88] sm:$0xff]
  %v96 = vld [vmem:[%s1 + $0x90] sm:$0xff]
  %v97 = vld [vmem:[%s1 + $0x98] sm:$0xff]
  %v98 = vld [vmem:[%s1 + $0xa0] sm:$0xff]
  %v99 = vld [vmem:[%s1 + $0xa8] sm:$0xff]
  %v100 = vld [vmem:[%s1 + $0xb0] sm:$0xff]
  %v101 = vld [vmem:[%s1 + $0xb8] sm:$0xff]
  %v102 = vld [vmem:[%s1 + $0xc0] sm:$0xff]
  %v103 = vld [vmem:[%s1 + $0xc8] sm:$0xff]
  %v104 = vld [vmem:[%s1 + $0xd0] sm:$0xff]
  %v105 = vld [vmem:[%s1 + $0xd8] sm:$0xff]
  %v106 = vld [vmem:[%s1 + $0xe0] sm:$0xff]
  %v107 = vld [vmem:[%s1 + $0xe8] sm:$0xff]
  %v108 = vld [vmem:[%s1 + $0xf0] sm:$0xff]
  %v109 = vld [vmem:[%s1 + $0xf8] sm:$0xff]
  %v110 = vld [vmem:[%s2] sm:$0x3]
  %v112 = vlaneseq
  %v113 = vshrl.u32 %v112, 7
  %v114 = vsub.s32 0, %v113
  %v115 = vrot.slane %v110, %v114
  %v116 = vlaneseq
  %v117 = vshrl.u32 %v116, 7
  %v118 = vsub.s32 1, %v117
  %v119 = vrot.slane %v110, %v118
  %v186 = vunpack.c.l.b16 %v14
  %v187 = vunpack.c.h.b16 %v14
  %v188 = vunpack.c.l.b16 %v15
  %v189 = vunpack.c.h.b16 %v15
  %v190 = vunpack.c.l.b16 %v16
  %v191 = vunpack.c.h.b16 %v16
  %v192 = vunpack.c.l.b16 %v17
  %v193 = vunpack.c.h.b16 %v17
  %v194 = vunpack.c.l.b16 %v18
  %v195 = vunpack.c.h.b16 %v18
  %v196 = vunpack.c.l.b16 %v19
  %v197 = vunpack.c.h.b16 %v19
  %v198 = vunpack.c.l.b16 %v20
  %v199 = vunpack.c.h.b16 %v20
  %v200 = vunpack.c.l.b16 %v21
  %v201 = vunpack.c.h.b16 %v21
  %v202 = vunpack.c.l.b16 %v22
  %v203 = vunpack.c.h.b16 %v22
  %v204 = vunpack.c.l.b16 %v23
  %v205 = vunpack.c.h.b16 %v23
  %v206 = vunpack.c.l.b16 %v24
  %v207 = vunpack.c.h.b16 %v24
  %v208 = vunpack.c.l.b16 %v25
  %v209 = vunpack.c.h.b16 %v25
  %v210 = vunpack.c.l.b16 %v26
  %v211 = vunpack.c.h.b16 %v26
  %v212 = vunpack.c.l.b16 %v27
  %v213 = vunpack.c.h.b16 %v27
  %v214 = vunpack.c.l.b16 %v28
  %v215 = vunpack.c.h.b16 %v28
  %v216 = vunpack.c.l.b16 %v29
  %v217 = vunpack.c.h.b16 %v29
  %v218 = vunpack.c.l.b16 %v30
  %v219 = vunpack.c.h.b16 %v30
  %v220 = vunpack.c.l.b16 %v31
  %v221 = vunpack.c.h.b16 %v31
  %v222 = vunpack.c.l.b16 %v32
  %v223 = vunpack.c.h.b16 %v32
  %v224 = vunpack.c.l.b16 %v33
  %v225 = vunpack.c.h.b16 %v33
  %v226 = vunpack.c.l.b16 %v34
  %v227 = vunpack.c.h.b16 %v34
  %v228 = vunpack.c.l.b16 %v35
  %v229 = vunpack.c.h.b16 %v35
  %v230 = vunpack.c.l.b16 %v36
  %v231 = vunpack.c.h.b16 %v36
  %v232 = vunpack.c.l.b16 %v37
  %v233 = vunpack.c.h.b16 %v37
  %v234 = vunpack.c.l.b16 %v38
  %v235 = vunpack.c.h.b16 %v38
  %v236 = vunpack.c.l.b16 %v39
  %v237 = vunpack.c.h.b16 %v39
  %v238 = vunpack.c.l.b16 %v40
  %v239 = vunpack.c.h.b16 %v40
  %v240 = vunpack.c.l.b16 %v41
  %v241 = vunpack.c.h.b16 %v41
  %v242 = vunpack.c.l.b16 %v42
  %v243 = vunpack.c.h.b16 %v42
  %v244 = vunpack.c.l.b16 %v43
  %v245 = vunpack.c.h.b16 %v43
  %v246 = vunpack.c.l.b16 %v44
  %v247 = vunpack.c.h.b16 %v44
  %v248 = vunpack.c.l.b16 %v45
  %v249 = vunpack.c.h.b16 %v45
  %v250 = vunpack.c.l.b16 %v46
  %v251 = vunpack.c.h.b16 %v46
  %v252 = vunpack.c.l.b16 %v47
  %v253 = vunpack.c.h.b16 %v47
  %v254 = vunpack.c.l.b16 %v48
  %v255 = vunpack.c.h.b16 %v48
  %v256 = vunpack.c.l.b16 %v49
  %v257 = vunpack.c.h.b16 %v49
  %v258 = vunpack.c.l.b16 %v50
  %v259 = vunpack.c.h.b16 %v50
  %v260 = vunpack.c.l.b16 %v51
  %v261 = vunpack.c.h.b16 %v51
  %v262 = vunpack.c.l.b16 %v52
  %v263 = vunpack.c.h.b16 %v52
  %v264 = vunpack.c.l.b16 %v53
  %v265 = vunpack.c.h.b16 %v53
  %v266 = vunpack.c.l.b16 %v54
  %v267 = vunpack.c.h.b16 %v54
  %v268 = vunpack.c.l.b16 %v55
  %v269 = vunpack.c.h.b16 %v55
  %v270 = vunpack.c.l.b16 %v56
  %v271 = vunpack.c.h.b16 %v56
  %v272 = vunpack.c.l.b16 %v57
  %v273 = vunpack.c.h.b16 %v57
  %v274 = vunpack.c.l.b16 %v58
  %v275 = vunpack.c.h.b16 %v58
  %v276 = vunpack.c.l.b16 %v59
  %v277 = vunpack.c.h.b16 %v59
  %v278 = vunpack.c.l.b16 %v60
  %v279 = vunpack.c.h.b16 %v60
  %v280 = vunpack.c.l.b16 %v61
  %v281 = vunpack.c.h.b16 %v61
  %v282 = vunpack.c.l.b16 %v62
  %v283 = vunpack.c.h.b16 %v62
  %v284 = vunpack.c.l.b16 %v63
  %v285 = vunpack.c.h.b16 %v63
  %v286 = vunpack.c.l.b16 %v64
  %v287 = vunpack.c.h.b16 %v64
  %v288 = vunpack.c.l.b16 %v65
  %v289 = vunpack.c.h.b16 %v65
  %v290 = vunpack.c.l.b16 %v66
  %v291 = vunpack.c.h.b16 %v66
  %v292 = vunpack.c.l.b16 %v67
  %v293 = vunpack.c.h.b16 %v67
  %v294 = vunpack.c.l.b16 %v68
  %v295 = vunpack.c.h.b16 %v68
  %v296 = vunpack.c.l.b16 %v69
  %v297 = vunpack.c.h.b16 %v69
  %v298 = vunpack.c.l.b16 %v70
  %v299 = vunpack.c.h.b16 %v70
  %v300 = vunpack.c.l.b16 %v71
  %v301 = vunpack.c.h.b16 %v71
  %v302 = vunpack.c.l.b16 %v72
  %v303 = vunpack.c.h.b16 %v72
  %v304 = vunpack.c.l.b16 %v73
  %v305 = vunpack.c.h.b16 %v73
  %v306 = vunpack.c.l.b16 %v74
  %v307 = vunpack.c.h.b16 %v74
  %v308 = vunpack.c.l.b16 %v75
  %v309 = vunpack.c.h.b16 %v75
  %v310 = vunpack.c.l.b16 %v76
  %v311 = vunpack.c.h.b16 %v76
  %v312 = vunpack.c.l.b16 %v77
  %v313 = vunpack.c.h.b16 %v77
  %v314 = vpack.c.b16 %v188, %v186
  %v315 = vpack.c.b16 %v189, %v187
  %v316 = vpack.c.b16 %v192, %v190
  %v317 = vpack.c.b16 %v193, %v191
  %v318 = vpack.c.b16 %v196, %v194
  %v319 = vpack.c.b16 %v197, %v195
  %v320 = vpack.c.b16 %v200, %v198
  %v321 = vpack.c.b16 %v201, %v199
  %v322 = vpack.c.b16 %v204, %v202
  %v323 = vpack.c.b16 %v205, %v203
  %v324 = vpack.c.b16 %v208, %v206
  %v325 = vpack.c.b16 %v209, %v207
  %v326 = vpack.c.b16 %v212, %v210
  %v327 = vpack.c.b16 %v213, %v211
  %v328 = vpack.c.b16 %v216, %v214
  %v329 = vpack.c.b16 %v217, %v215
  %v330 = vpack.c.b16 %v220, %v218
  %v331 = vpack.c.b16 %v221, %v219
  %v332 = vpack.c.b16 %v224, %v222
  %v333 = vpack.c.b16 %v225, %v223
  %v334 = vpack.c.b16 %v228, %v226
  %v335 = vpack.c.b16 %v229, %v227
  %v336 = vpack.c.b16 %v232, %v230
  %v337 = vpack.c.b16 %v233, %v231
  %v338 = vpack.c.b16 %v236, %v234
  %v339 = vpack.c.b16 %v237, %v235
  %v340 = vpack.c.b16 %v240, %v238
  %v341 = vpack.c.b16 %v241, %v239
  %v342 = vpack.c.b16 %v244, %v242
  %v343 = vpack.c.b16 %v245, %v243
  %v344 = vpack.c.b16 %v248, %v246
  %v345 = vpack.c.b16 %v249, %v247
  %v346 = vpack.c.b16 %v252, %v250
  %v347 = vpack.c.b16 %v253, %v251
  %v348 = vpack.c.b16 %v256, %v254
  %v349 = vpack.c.b16 %v257, %v255
  %v350 = vpack.c.b16 %v260, %v258
  %v351 = vpack.c.b16 %v261, %v259
  %v352 = vpack.c.b16 %v264, %v262
  %v353 = vpack.c.b16 %v265, %v263
  %v354 = vpack.c.b16 %v268, %v266
  %v355 = vpack.c.b16 %v269, %v267
  %v356 = vpack.c.b16 %v272, %v270
  %v357 = vpack.c.b16 %v273, %v271
  %v358 = vpack.c.b16 %v276, %v274
  %v359 = vpack.c.b16 %v277, %v275
  %v360 = vpack.c.b16 %v280, %v278
  %v361 = vpack.c.b16 %v281, %v279
  %v362 = vpack.c.b16 %v284, %v282
  %v363 = vpack.c.b16 %v285, %v283
  %v364 = vpack.c.b16 %v288, %v286
  %v365 = vpack.c.b16 %v289, %v287
  %v366 = vpack.c.b16 %v292, %v290
  %v367 = vpack.c.b16 %v293, %v291
  %v368 = vpack.c.b16 %v296, %v294
  %v369 = vpack.c.b16 %v297, %v295
  %v370 = vpack.c.b16 %v300, %v298
  %v371 = vpack.c.b16 %v301, %v299
  %v372 = vpack.c.b16 %v304, %v302
  %v373 = vpack.c.b16 %v305, %v303
  %v374 = vpack.c.b16 %v308, %v306
  %v375 = vpack.c.b16 %v309, %v307
  %v376 = vpack.c.b16 %v312, %v310
  %v377 = vpack.c.b16 %v313, %v311
  %v474 = vunpack.c.l.b16 %v78
  %v475 = vunpack.c.h.b16 %v78
  %v476 = vunpack.c.l.b16 %v79
  %v477 = vunpack.c.h.b16 %v79
  %v478 = vunpack.c.l.b16 %v80
  %v479 = vunpack.c.h.b16 %v80
  %v480 = vunpack.c.l.b16 %v81
  %v481 = vunpack.c.h.b16 %v81
  %v482 = vunpack.c.l.b16 %v82
  %v483 = vunpack.c.h.b16 %v82
  %v484 = vunpack.c.l.b16 %v83
  %v485 = vunpack.c.h.b16 %v83
  %v486 = vunpack.c.l.b16 %v84
  %v487 = vunpack.c.h.b16 %v84
  %v488 = vunpack.c.l.b16 %v85
  %v489 = vunpack.c.h.b16 %v85
  %v490 = vunpack.c.l.b16 %v86
  %v491 = vunpack.c.h.b16 %v86
  %v492 = vunpack.c.l.b16 %v87
  %v493 = vunpack.c.h.b16 %v87
  %v494 = vunpack.c.l.b16 %v88
  %v495 = vunpack.c.h.b16 %v88
  %v496 = vunpack.c.l.b16 %v89
  %v497 = vunpack.c.h.b16 %v89
  %v498 = vunpack.c.l.b16 %v90
  %v499 = vunpack.c.h.b16 %v90
  %v500 = vunpack.c.l.b16 %v91
  %v501 = vunpack.c.h.b16 %v91
  %v502 = vunpack.c.l.b16 %v92
  %v503 = vunpack.c.h.b16 %v92
  %v504 = vunpack.c.l.b16 %v93
  %v505 = vunpack.c.h.b16 %v93
  %v506 = vunpack.c.l.b16 %v94
  %v507 = vunpack.c.h.b16 %v94
  %v508 = vunpack.c.l.b16 %v95
  %v509 = vunpack.c.h.b16 %v95
  %v510 = vunpack.c.l.b16 %v96
  %v511 = vunpack.c.h.b16 %v96
  %v512 = vunpack.c.l.b16 %v97
  %v513 = vunpack.c.h.b16 %v97
  %v514 = vunpack.c.l.b16 %v98
  %v515 = vunpack.c.h.b16 %v98
  %v516 = vunpack.c.l.b16 %v99
  %v517 = vunpack.c.h.b16 %v99
  %v518 = vunpack.c.l.b16 %v100
  %v519 = vunpack.c.h.b16 %v100
  %v520 = vunpack.c.l.b16 %v101
  %v521 = vunpack.c.h.b16 %v101
  %v522 = vunpack.c.l.b16 %v102
  %v523 = vunpack.c.h.b16 %v102
  %v524 = vunpack.c.l.b16 %v103
  %v525 = vunpack.c.h.b16 %v103
  %v526 = vunpack.c.l.b16 %v104
  %v527 = vunpack.c.h.b16 %v104
  %v528 = vunpack.c.l.b16 %v105
  %v529 = vunpack.c.h.b16 %v105
  %v530 = vunpack.c.l.b16 %v106
  %v531 = vunpack.c.h.b16 %v106
  %v532 = vunpack.c.l.b16 %v107
  %v533 = vunpack.c.h.b16 %v107
  %v534 = vunpack.c.l.b16 %v108
  %v535 = vunpack.c.h.b16 %v108
  %v536 = vunpack.c.l.b16 %v109
  %v537 = vunpack.c.h.b16 %v109
  %v538 = vpack.c.b16 %v476, %v474
  %v539 = vpack.c.b16 %v477, %v475
  %v540 = vpack.c.b16 %v480, %v478
  %v541 = vpack.c.b16 %v481, %v479
  %v542 = vpack.c.b16 %v484, %v482
  %v543 = vpack.c.b16 %v485, %v483
  %v544 = vpack.c.b16 %v488, %v486
  %v545 = vpack.c.b16 %v489, %v487
  %v546 = vpack.c.b16 %v492, %v490
  %v547 = vpack.c.b16 %v493, %v491
  %v548 = vpack.c.b16 %v496, %v494
  %v549 = vpack.c.b16 %v497, %v495
  %v550 = vpack.c.b16 %v500, %v498
  %v551 = vpack.c.b16 %v501, %v499
  %v552 = vpack.c.b16 %v504, %v502
  %v553 = vpack.c.b16 %v505, %v503
  %v554 = vpack.c.b16 %v508, %v506
  %v555 = vpack.c.b16 %v509, %v507
  %v556 = vpack.c.b16 %v512, %v510
  %v557 = vpack.c.b16 %v513, %v511
  %v558 = vpack.c.b16 %v516, %v514
  %v559 = vpack.c.b16 %v517, %v515
  %v560 = vpack.c.b16 %v520, %v518
  %v561 = vpack.c.b16 %v521, %v519
  %v562 = vpack.c.b16 %v524, %v522
  %v563 = vpack.c.b16 %v525, %v523
  %v564 = vpack.c.b16 %v528, %v526
  %v565 = vpack.c.b16 %v529, %v527
  %v566 = vpack.c.b16 %v532, %v530
  %v567 = vpack.c.b16 %v533, %v531
  %v568 = vpack.c.b16 %v536, %v534
  %v569 = vpack.c.b16 %v537, %v535
  %602 = vmatprep.subr.bf16.mxu0 %v553
  %603 = vmatpush1.bf16.msra.mxu0 %v552
  %604 = vmatprep.subr.bf16.mxu0 %v551
  %605 = vmatpush1.bf16.msra.mxu0 %v550
  %606 = vmatprep.subr.bf16.mxu0 %v549
  %607 = vmatpush1.bf16.msra.mxu0 %v548
  %608 = vmatprep.subr.bf16.mxu0 %v547
  %609 = vmatpush1.bf16.msra.mxu0 %v546
  %610 = vmatprep.subr.bf16.mxu0 %v545
  %611 = vmatpush1.bf16.msra.mxu0 %v544
  %612 = vmatprep.subr.bf16.mxu0 %v543
  %613 = vmatpush1.bf16.msra.mxu0 %v542
  %614 = vmatprep.subr.bf16.mxu0 %v541
  %615 = vmatpush1.bf16.msra.mxu0 %v540
  %616 = vmatprep.subr.bf16.mxu0 %v539
  %617 = vmatpush1.bf16.msra.mxu0 %v538
  %618 = vmatprep.subr.bf16.mxu0 %v569
  %619 = vmatpush2.bf16.msra.mxu0 %v568
  %620 = vmatprep.subr.bf16.mxu0 %v567
  %621 = vmatpush2.bf16.msra.mxu0 %v566
  %622 = vmatprep.subr.bf16.mxu0 %v565
  %623 = vmatpush2.bf16.msra.mxu0 %v564
  %624 = vmatprep.subr.bf16.mxu0 %v563
  %625 = vmatpush2.bf16.msra.mxu0 %v562
  %626 = vmatprep.subr.bf16.mxu0 %v561
  %627 = vmatpush2.bf16.msra.mxu0 %v560
  %628 = vmatprep.subr.bf16.mxu0 %v559
  %629 = vmatpush2.bf16.msra.mxu0 %v558
  %630 = vmatprep.subr.bf16.mxu0 %v557
  %631 = vmatpush2.bf16.msra.mxu0 %v556
  %632 = vmatprep.subr.bf16.mxu0 %v555
  %633 = vmatpush2.bf16.msra.mxu0 %v554
  %634 = vmatprep.mubr.bf16.mxu0 %v315
  %635 = vmatmul.mubr.bf16.gmra.mxu0 %v314
  %v636 = vpop.f32.mrf.mxu0
  %v637 = vadd.f32 %v115, %v636
  %v638 = vpop.f32.mrf.mxu0
  %v639 = vadd.f32 %v119, %v638
  %v640 = vpop.f32.mrf.mxu0
  %v641 = vadd.f32 %v115, %v640
  %v642 = vpop.f32.mrf.mxu0
  %v643 = vadd.f32 %v119, %v642
  %644 = vmatprep.mubr.bf16.mxu0 %v317
  %645 = vmatmul.mubr.bf16.gmra.mxu0 %v316
  %v646 = vpop.f32.mrf.mxu0
  %v647 = vadd.f32 %v115, %v646
  %v648 = vpop.f32.mrf.mxu0
  %v649 = vadd.f32 %v119, %v648
  %v650 = vpop.f32.mrf.mxu0
  %v651 = vadd.f32 %v115, %v650
  %v652 = vpop.f32.mrf.mxu0
  %v653 = vadd.f32 %v119, %v652
  %654 = vmatprep.mubr.bf16.mxu0 %v319
  %655 = vmatmul.mubr.bf16.gmra.mxu0 %v318
  %v656 = vpop.f32.mrf.mxu0
  %v657 = vadd.f32 %v115, %v656
  %v658 = vpop.f32.mrf.mxu0
  %v659 = vadd.f32 %v119, %v658
  %v660 = vpop.f32.mrf.mxu0
  %v661 = vadd.f32 %v115, %v660
  %v662 = vpop.f32.mrf.mxu0
  %v663 = vadd.f32 %v119, %v662
  %664 = vmatprep.mubr.bf16.mxu0 %v321
  %665 = vmatmul.mubr.bf16.gmra.mxu0 %v320
  %v666 = vpop.f32.mrf.mxu0
  %v667 = vadd.f32 %v115, %v666
  %v668 = vpop.f32.mrf.mxu0
  %v669 = vadd.f32 %v119, %v668
  %v670 = vpop.f32.mrf.mxu0
  %v671 = vadd.f32 %v115, %v670
  %v672 = vpop.f32.mrf.mxu0
  %v673 = vadd.f32 %v119, %v672
  %674 = vmatprep.mubr.bf16.mxu0 %v323
  %675 = vmatmul.mubr.bf16.gmra.mxu0 %v322
  %v676 = vpop.f32.mrf.mxu0
  %v677 = vadd.f32 %v115, %v676
  %v678 = vpop.f32.mrf.mxu0
  %v679 = vadd.f32 %v119, %v678
  %v680 = vpop.f32.mrf.mxu0
  %v681 = vadd.f32 %v115, %v680
  %v682 = vpop.f32.mrf.mxu0
  %v683 = vadd.f32 %v119, %v682
  %684 = vmatprep.mubr.bf16.mxu0 %v325
  %685 = vmatmul.mubr.bf16.gmra.mxu0 %v324
  %v686 = vpop.f32.mrf.mxu0
  %v687 = vadd.f32 %v115, %v686
  %v688 = vpop.f32.mrf.mxu0
  %v689 = vadd.f32 %v119, %v688
  %v690 = vpop.f32.mrf.mxu0
  %v691 = vadd.f32 %v115, %v690
  %v692 = vpop.f32.mrf.mxu0
  %v693 = vadd.f32 %v119, %v692
  %694 = vmatprep.mubr.bf16.mxu0 %v327
  %695 = vmatmul.mubr.bf16.gmra.mxu0 %v326
  %v696 = vpop.f32.mrf.mxu0
  %v697 = vadd.f32 %v115, %v696
  %v698 = vpop.f32.mrf.mxu0
  %v699 = vadd.f32 %v119, %v698
  %v700 = vpop.f32.mrf.mxu0
  %v701 = vadd.f32 %v115, %v700
  %v702 = vpop.f32.mrf.mxu0
  %v703 = vadd.f32 %v119, %v702
  %704 = vmatprep.mubr.bf16.mxu0 %v329
  %705 = vmatmul.mubr.bf16.gmra.mxu0 %v328
  %v706 = vpop.f32.mrf.mxu0
  %v707 = vadd.f32 %v115, %v706
  %v708 = vpop.f32.mrf.mxu0
  %v709 = vadd.f32 %v119, %v708
  %v710 = vpop.f32.mrf.mxu0
  %v711 = vadd.f32 %v115, %v710
  %v712 = vpop.f32.mrf.mxu0
  %v713 = vadd.f32 %v119, %v712
  %714 = vmatprep.mubr.bf16.mxu0 %v331
  %715 = vmatmul.mubr.bf16.gmra.mxu0 %v330
  %v716 = vpop.f32.mrf.mxu0
  %v717 = vadd.f32 %v115, %v716
  %v718 = vpop.f32.mrf.mxu0
  %v719 = vadd.f32 %v119, %v718
  %v720 = vpop.f32.mrf.mxu0
  %v721 = vadd.f32 %v115, %v720
  %v722 = vpop.f32.mrf.mxu0
  %v723 = vadd.f32 %v119, %v722
  %724 = vmatprep.mubr.bf16.mxu0 %v333
  %725 = vmatmul.mubr.bf16.gmra.mxu0 %v332
  %v726 = vpop.f32.mrf.mxu0
  %v727 = vadd.f32 %v115, %v726
  %v728 = vpop.f32.mrf.mxu0
  %v729 = vadd.f32 %v119, %v728
  %v730 = vpop.f32.mrf.mxu0
  %v731 = vadd.f32 %v115, %v730
  %v732 = vpop.f32.mrf.mxu0
  %v733 = vadd.f32 %v119, %v732
  %734 = vmatprep.mubr.bf16.mxu0 %v335
  %735 = vmatmul.mubr.bf16.gmra.mxu0 %v334
  %v736 = vpop.f32.mrf.mxu0
  %v737 = vadd.f32 %v115, %v736
  %v738 = vpop.f32.mrf.mxu0
  %v739 = vadd.f32 %v119, %v738
  %v740 = vpop.f32.mrf.mxu0
  %v741 = vadd.f32 %v115, %v740
  %v742 = vpop.f32.mrf.mxu0
  %v743 = vadd.f32 %v119, %v742
  %744 = vmatprep.mubr.bf16.mxu0 %v337
  %745 = vmatmul.mubr.bf16.gmra.mxu0 %v336
  %v746 = vpop.f32.mrf.mxu0
  %v747 = vadd.f32 %v115, %v746
  %v748 = vpop.f32.mrf.mxu0
  %v749 = vadd.f32 %v119, %v748
  %v750 = vpop.f32.mrf.mxu0
  %v751 = vadd.f32 %v115, %v750
  %v752 = vpop.f32.mrf.mxu0
  %v753 = vadd.f32 %v119, %v752
  %754 = vmatprep.mubr.bf16.mxu0 %v339
  %755 = vmatmul.mubr.bf16.gmra.mxu0 %v338
  %v756 = vpop.f32.mrf.mxu0
  %v757 = vadd.f32 %v115, %v756
  %v758 = vpop.f32.mrf.mxu0
  %v759 = vadd.f32 %v119, %v758
  %v760 = vpop.f32.mrf.mxu0
  %v761 = vadd.f32 %v115, %v760
  %v762 = vpop.f32.mrf.mxu0
  %v763 = vadd.f32 %v119, %v762
  %764 = vmatprep.mubr.bf16.mxu0 %v341
  %765 = vmatmul.mubr.bf16.gmra.mxu0 %v340
  %v766 = vpop.f32.mrf.mxu0
  %v767 = vadd.f32 %v115, %v766
  %v768 = vpop.f32.mrf.mxu0
  %v769 = vadd.f32 %v119, %v768
  %v770 = vpop.f32.mrf.mxu0
  %v771 = vadd.f32 %v115, %v770
  %v772 = vpop.f32.mrf.mxu0
  %v773 = vadd.f32 %v119, %v772
  %774 = vmatprep.mubr.bf16.mxu0 %v343
  %775 = vmatmul.mubr.bf16.gmra.mxu0 %v342
  %v776 = vpop.f32.mrf.mxu0
  %v777 = vadd.f32 %v115, %v776
  %v778 = vpop.f32.mrf.mxu0
  %v779 = vadd.f32 %v119, %v778
  %v780 = vpop.f32.mrf.mxu0
  %v781 = vadd.f32 %v115, %v780
  %v782 = vpop.f32.mrf.mxu0
  %v783 = vadd.f32 %v119, %v782
  %784 = vmatprep.mubr.bf16.mxu0 %v345
  %785 = vmatmul.mubr.bf16.gmra.mxu0 %v344
  %v786 = vpop.f32.mrf.mxu0
  %v787 = vadd.f32 %v115, %v786
  %v788 = vpop.f32.mrf.mxu0
  %v789 = vadd.f32 %v119, %v788
  %v790 = vpop.f32.mrf.mxu0
  %v791 = vadd.f32 %v115, %v790
  %v792 = vpop.f32.mrf.mxu0
  %v793 = vadd.f32 %v119, %v792
  %794 = vmatprep.mubr.bf16.mxu0 %v347
  %795 = vmatmul.mubr.bf16.gmra.mxu0 %v346
  %v796 = vpop.f32.mrf.mxu0
  %v797 = vadd.f32 %v115, %v796
  %v798 = vpop.f32.mrf.mxu0
  %v799 = vadd.f32 %v119, %v798
  %v800 = vpop.f32.mrf.mxu0
  %v801 = vadd.f32 %v115, %v800
  %v802 = vpop.f32.mrf.mxu0
  %v803 = vadd.f32 %v119, %v802
  %804 = vmatprep.mubr.bf16.mxu0 %v349
  %805 = vmatmul.mubr.bf16.gmra.mxu0 %v348
  %v806 = vpop.f32.mrf.mxu0
  %v807 = vadd.f32 %v115, %v806
  %v808 = vpop.f32.mrf.mxu0
  %v809 = vadd.f32 %v119, %v808
  %v810 = vpop.f32.mrf.mxu0
  %v811 = vadd.f32 %v115, %v810
  %v812 = vpop.f32.mrf.mxu0
  %v813 = vadd.f32 %v119, %v812
  %814 = vmatprep.mubr.bf16.mxu0 %v351
  %815 = vmatmul.mubr.bf16.gmra.mxu0 %v350
  %v816 = vpop.f32.mrf.mxu0
  %v817 = vadd.f32 %v115, %v816
  %v818 = vpop.f32.mrf.mxu0
  %v819 = vadd.f32 %v119, %v818
  %v820 = vpop.f32.mrf.mxu0
  %v821 = vadd.f32 %v115, %v820
  %v822 = vpop.f32.mrf.mxu0
  %v823 = vadd.f32 %v119, %v822
  %824 = vmatprep.mubr.bf16.mxu0 %v353
  %825 = vmatmul.mubr.bf16.gmra.mxu0 %v352
  %v826 = vpop.f32.mrf.mxu0
  %v827 = vadd.f32 %v115, %v826
  %v828 = vpop.f32.mrf.mxu0
  %v829 = vadd.f32 %v119, %v828
  %v830 = vpop.f32.mrf.mxu0
  %v831 = vadd.f32 %v115, %v830
  %v832 = vpop.f32.mrf.mxu0
  %v833 = vadd.f32 %v119, %v832
  %834 = vmatprep.mubr.bf16.mxu0 %v355
  %835 = vmatmul.mubr.bf16.gmra.mxu0 %v354
  %v836 = vpop.f32.mrf.mxu0
  %v837 = vadd.f32 %v115, %v836
  %v838 = vpop.f32.mrf.mxu0
  %v839 = vadd.f32 %v119, %v838
  %v840 = vpop.f32.mrf.mxu0
  %v841 = vadd.f32 %v115, %v840
  %v842 = vpop.f32.mrf.mxu0
  %v843 = vadd.f32 %v119, %v842
  %844 = vmatprep.mubr.bf16.mxu0 %v357
  %845 = vmatmul.mubr.bf16.gmra.mxu0 %v356
  %v846 = vpop.f32.mrf.mxu0
  %v847 = vadd.f32 %v115, %v846
  %v848 = vpop.f32.mrf.mxu0
  %v849 = vadd.f32 %v119, %v848
  %v850 = vpop.f32.mrf.mxu0
  %v851 = vadd.f32 %v115, %v850
  %v852 = vpop.f32.mrf.mxu0
  %v853 = vadd.f32 %v119, %v852
  %854 = vmatprep.mubr.bf16.mxu0 %v359
  %855 = vmatmul.mubr.bf16.gmra.mxu0 %v358
  %v856 = vpop.f32.mrf.mxu0
  %v857 = vadd.f32 %v115, %v856
  %v858 = vpop.f32.mrf.mxu0
  %v859 = vadd.f32 %v119, %v858
  %v860 = vpop.f32.mrf.mxu0
  %v861 = vadd.f32 %v115, %v860
  %v862 = vpop.f32.mrf.mxu0
  %v863 = vadd.f32 %v119, %v862
  %864 = vmatprep.mubr.bf16.mxu0 %v361
  %865 = vmatmul.mubr.bf16.gmra.mxu0 %v360
  %v866 = vpop.f32.mrf.mxu0
  %v867 = vadd.f32 %v115, %v866
  %v868 = vpop.f32.mrf.mxu0
  %v869 = vadd.f32 %v119, %v868
  %v870 = vpop.f32.mrf.mxu0
  %v871 = vadd.f32 %v115, %v870
  %v872 = vpop.f32.mrf.mxu0
  %v873 = vadd.f32 %v119, %v872
  %874 = vmatprep.mubr.bf16.mxu0 %v363
  %875 = vmatmul.mubr.bf16.gmra.mxu0 %v362
  %v876 = vpop.f32.mrf.mxu0
  %v877 = vadd.f32 %v115, %v876
  %v878 = vpop.f32.mrf.mxu0
  %v879 = vadd.f32 %v119, %v878
  %v880 = vpop.f32.mrf.mxu0
  %v881 = vadd.f32 %v115, %v880
  %v882 = vpop.f32.mrf.mxu0
  %v883 = vadd.f32 %v119, %v882
  %884 = vmatprep.mubr.bf16.mxu0 %v365
  %885 = vmatmul.mubr.bf16.gmra.mxu0 %v364
  %v886 = vpop.f32.mrf.mxu0
  %v887 = vadd.f32 %v115, %v886
  %v888 = vpop.f32.mrf.mxu0
  %v889 = vadd.f32 %v119, %v888
  %v890 = vpop.f32.mrf.mxu0
  %v891 = vadd.f32 %v115, %v890
  %v892 = vpop.f32.mrf.mxu0
  %v893 = vadd.f32 %v119, %v892
  %894 = vmatprep.mubr.bf16.mxu0 %v367
  %895 = vmatmul.mubr.bf16.gmra.mxu0 %v366
  %v896 = vpop.f32.mrf.mxu0
  %v897 = vadd.f32 %v115, %v896
  %v898 = vpop.f32.mrf.mxu0
  %v899 = vadd.f32 %v119, %v898
  %v900 = vpop.f32.mrf.mxu0
  %v901 = vadd.f32 %v115, %v900
  %v902 = vpop.f32.mrf.mxu0
  %v903 = vadd.f32 %v119, %v902
  %904 = vmatprep.mubr.bf16.mxu0 %v369
  %905 = vmatmul.mubr.bf16.gmra.mxu0 %v368
  %v906 = vpop.f32.mrf.mxu0
  %v907 = vadd.f32 %v115, %v906
  %v908 = vpop.f32.mrf.mxu0
  %v909 = vadd.f32 %v119, %v908
  %v910 = vpop.f32.mrf.mxu0
  %v911 = vadd.f32 %v115, %v910
  %v912 = vpop.f32.mrf.mxu0
  %v913 = vadd.f32 %v119, %v912
  %914 = vmatprep.mubr.bf16.mxu0 %v371
  %915 = vmatmul.mubr.bf16.gmra.mxu0 %v370
  %v916 = vpop.f32.mrf.mxu0
  %v917 = vadd.f32 %v115, %v916
  %v918 = vpop.f32.mrf.mxu0
  %v919 = vadd.f32 %v119, %v918
  %v920 = vpop.f32.mrf.mxu0
  %v921 = vadd.f32 %v115, %v920
  %v922 = vpop.f32.mrf.mxu0
  %v923 = vadd.f32 %v119, %v922
  %924 = vmatprep.mubr.bf16.mxu0 %v373
  %925 = vmatmul.mubr.bf16.gmra.mxu0 %v372
  %v926 = vpop.f32.mrf.mxu0
  %v927 = vadd.f32 %v115, %v926
  %v928 = vpop.f32.mrf.mxu0
  %v929 = vadd.f32 %v119, %v928
  %v930 = vpop.f32.mrf.mxu0
  %v931 = vadd.f32 %v115, %v930
  %v932 = vpop.f32.mrf.mxu0
  %v933 = vadd.f32 %v119, %v932
  %934 = vmatprep.mubr.bf16.mxu0 %v375
  %935 = vmatmul.mubr.bf16.gmra.mxu0 %v374
  %v936 = vpop.f32.mrf.mxu0
  %v937 = vadd.f32 %v115, %v936
  %v938 = vpop.f32.mrf.mxu0
  %v939 = vadd.f32 %v119, %v938
  %v940 = vpop.f32.mrf.mxu0
  %v941 = vadd.f32 %v115, %v940
  %v942 = vpop.f32.mrf.mxu0
  %v943 = vadd.f32 %v119, %v942
  %944 = vmatprep.mubr.bf16.mxu0 %v377
  %945 = vmatmul.mubr.bf16.gmra.mxu0 %v376
  %v946 = vpop.f32.mrf.mxu0
  %v947 = vadd.f32 %v115, %v946
  %v948 = vpop.f32.mrf.mxu0
  %v949 = vadd.f32 %v119, %v948
  %v950 = vpop.f32.mrf.mxu0
  %v951 = vadd.f32 %v115, %v950
  %v952 = vpop.f32.mrf.mxu0
  %v953 = vadd.f32 %v119, %v952
  %954 = vdwg.mxu0
  %v955 = vlaneseq
  %v956 = vand.u32 %v955, 127
  %v957 = vadd.s32 %v956, 128
  %vm958 = vcmp.lt.s32.totalorder %v956, 128
  %vm959 = vcmp.lt.s32.totalorder %v957, 128
  %v960 = vmax.f32 %v637, 0.0
  %v961 = vmax.f32 %v639, 0.0
  %v962 = vmax.f32 %v641, 0.0
  %v963 = vmax.f32 %v643, 0.0
  %v964 = vmax.f32 %v647, 0.0
  %v965 = vmax.f32 %v649, 0.0
  %v966 = vmax.f32 %v651, 0.0
  %v967 = vmax.f32 %v653, 0.0
  %v968 = vmax.f32 %v657, 0.0
  %v969 = vmax.f32 %v659, 0.0
  %v970 = vmax.f32 %v661, 0.0
  %v971 = vmax.f32 %v663, 0.0
  %v972 = vmax.f32 %v667, 0.0
  %v973 = vmax.f32 %v669, 0.0
  %v974 = vmax.f32 %v671, 0.0
  %v975 = vmax.f32 %v673, 0.0
  %v976 = vmax.f32 %v677, 0.0
  %v977 = vmax.f32 %v679, 0.0
  %v978 = vmax.f32 %v681, 0.0
  %v979 = vmax.f32 %v683, 0.0
  %v980 = vmax.f32 %v687, 0.0
  %v981 = vmax.f32 %v689, 0.0
  %v982 = vmax.f32 %v691, 0.0
  %v983 = vmax.f32 %v693, 0.0
  %v984 = vmax.f32 %v697, 0.0
  %v985 = vmax.f32 %v699, 0.0
  %v986 = vmax.f32 %v701, 0.0
  %v987 = vmax.f32 %v703, 0.0
  %v988 = vmax.f32 %v707, 0.0
  %v989 = vmax.f32 %v709, 0.0
  %v990 = vmax.f32 %v711, 0.0
  %v991 = vmax.f32 %v713, 0.0
  %v992 = vmax.f32 %v717, 0.0
  %v993 = vmax.f32 %v719, 0.0
  %v994 = vmax.f32 %v721, 0.0
  %v995 = vmax.f32 %v723, 0.0
  %v996 = vmax.f32 %v727, 0.0
  %v997 = vmax.f32 %v729, 0.0
  %v998 = vmax.f32 %v731, 0.0
  %v999 = vmax.f32 %v733, 0.0
  %v1000 = vmax.f32 %v737, 0.0
  %v1001 = vmax.f32 %v739, 0.0
  %v1002 = vmax.f32 %v741, 0.0
  %v1003 = vmax.f32 %v743, 0.0
  %v1004 = vmax.f32 %v747, 0.0
  %v1005 = vmax.f32 %v749, 0.0
  %v1006 = vmax.f32 %v751, 0.0
  %v1007 = vmax.f32 %v753, 0.0
  %v1008 = vmax.f32 %v757, 0.0
  %v1009 = vmax.f32 %v759, 0.0
  %v1010 = vmax.f32 %v761, 0.0
  %v1011 = vmax.f32 %v763, 0.0
  %v1012 = vmax.f32 %v767, 0.0
  %v1013 = vmax.f32 %v769, 0.0
  %v1014 = vmax.f32 %v771, 0.0
  %v1015 = vmax.f32 %v773, 0.0
  %v1016 = vmax.f32 %v777, 0.0
  %v1017 = vmax.f32 %v779, 0.0
  %v1018 = vmax.f32 %v781, 0.0
  %v1019 = vmax.f32 %v783, 0.0
  %v1020 = vmax.f32 %v787, 0.0
  %v1021 = vmax.f32 %v789, 0.0
  %v1022 = vmax.f32 %v791, 0.0
  %v1023 = vmax.f32 %v793, 0.0
  %v1024 = vmax.f32 %v797, 0.0
  %v1025 = vmax.f32 %v799, 0.0
  %v1026 = vmax.f32 %v801, 0.0
  %v1027 = vmax.f32 %v803, 0.0
  %v1028 = vmax.f32 %v807, 0.0
  %v1029 = vmax.f32 %v809, 0.0
  %v1030 = vmax.f32 %v811, 0.0
  %v1031 = vmax.f32 %v813, 0.0
  %v1032 = vmax.f32 %v817, 0.0
  %v1033 = vmax.f32 %v819, 0.0
  %v1034 = vmax.f32 %v821, 0.0
  %v1035 = vmax.f32 %v823, 0.0
  %v1036 = vmax.f32 %v827, 0.0
  %v1037 = vmax.f32 %v829, 0.0
  %v1038 = vmax.f32 %v831, 0.0
  %v1039 = vmax.f32 %v833, 0.0
  %v1040 = vmax.f32 %v837, 0.0
  %v1041 = vmax.f32 %v839, 0.0
  %v1042 = vmax.f32 %v841, 0.0
  %v1043 = vmax.f32 %v843, 0.0
  %v1044 = vmax.f32 %v847, 0.0
  %v1045 = vmax.f32 %v849, 0.0
  %v1046 = vmax.f32 %v851, 0.0
  %v1047 = vmax.f32 %v853, 0.0
  %v1048 = vmax.f32 %v857, 0.0
  %v1049 = vmax.f32 %v859, 0.0
  %v1050 = vmax.f32 %v861, 0.0
  %v1051 = vmax.f32 %v863, 0.0
  %v1052 = vmax.f32 %v867, 0.0
  %v1053 = vmax.f32 %v869, 0.0
  %v1054 = vmax.f32 %v871, 0.0
  %v1055 = vmax.f32 %v873, 0.0
  %v1056 = vmax.f32 %v877, 0.0
  %v1057 = vmax.f32 %v879, 0.0
  %v1058 = vmax.f32 %v881, 0.0
  %v1059 = vmax.f32 %v883, 0.0
  %v1060 = vmax.f32 %v887, 0.0
  %v1061 = vmax.f32 %v889, 0.0
  %v1062 = vmax.f32 %v891, 0.0
  %v1063 = vmax.f32 %v893, 0.0
  %v1064 = vmax.f32 %v897, 0.0
  %v1065 = vmax.f32 %v899, 0.0
  %v1066 = vmax.f32 %v901, 0.0
  %v1067 = vmax.f32 %v903, 0.0
  %v1068 = vmax.f32 %v907, 0.0
  %v1069 = vmax.f32 %v909, 0.0
  %v1070 = vmax.f32 %v911, 0.0
  %v1071 = vmax.f32 %v913, 0.0
  %v1072 = vmax.f32 %v917, 0.0
  %v1073 = vmax.f32 %v919, 0.0
  %v1074 = vmax.f32 %v921, 0.0
  %v1075 = vmax.f32 %v923, 0.0
  %v1076 = vmax.f32 %v927, 0.0
  %v1077 = vmax.f32 %v929, 0.0
  %v1078 = vmax.f32 %v931, 0.0
  %v1079 = vmax.f32 %v933, 0.0
  %v1080 = vmax.f32 %v937, 0.0
  %v1081 = vmax.f32 %v939, 0.0
  %v1082 = vmax.f32 %v941, 0.0
  %v1083 = vmax.f32 %v943, 0.0
  %v1084 = vmax.f32 %v947, 0.0
  %v1085 = vmax.f32 %v949, 0.0
  %v1086 = vmax.f32 %v951, 0.0
  %v1087 = vmax.f32 %v953, 0.0
  %v1088 = vsel %vm958, %v960, %v637
  %v1089 = vsel %vm959, %v961, %v639
  %v1090 = vsel %vm958, %v962, %v641
  %v1091 = vsel %vm959, %v963, %v643
  %v1092 = vsel %vm958, %v964, %v647
  %v1093 = vsel %vm959, %v965, %v649
  %v1094 = vsel %vm958, %v966, %v651
  %v1095 = vsel %vm959, %v967, %v653
  %v1096 = vsel %vm958, %v968, %v657
  %v1097 = vsel %vm959, %v969, %v659
  %v1098 = vsel %vm958, %v970, %v661
  %v1099 = vsel %vm959, %v971, %v663
  %v1100 = vsel %vm958, %v972, %v667
  %v1101 = vsel %vm959, %v973, %v669
  %v1102 = vsel %vm958, %v974, %v671
  %v1103 = vsel %vm959, %v975, %v673
  %v1104 = vsel %vm958, %v976, %v677
  %v1105 = vsel %vm959, %v977, %v679
  %v1106 = vsel %vm958, %v978, %v681
  %v1107 = vsel %vm959, %v979, %v683
  %v1108 = vsel %vm958, %v980, %v687
  %v1109 = vsel %vm959, %v981, %v689
  %v1110 = vsel %vm958, %v982, %v691
  %v1111 = vsel %vm959, %v983, %v693
  %v1112 = vsel %vm958, %v984, %v697
  %v1113 = vsel %vm959, %v985, %v699
  %v1114 = vsel %vm958, %v986, %v701
  %v1115 = vsel %vm959, %v987, %v703
  %v1116 = vsel %vm958, %v988, %v707
  %v1117 = vsel %vm959, %v989, %v709
  %v1118 = vsel %vm958, %v990, %v711
  %v1119 = vsel %vm959, %v991, %v713
  %v1120 = vsel %vm958, %v992, %v717
  %v1121 = vsel %vm959, %v993, %v719
  %v1122 = vsel %vm958, %v994, %v721
  %v1123 = vsel %vm959, %v995, %v723
  %v1124 = vsel %vm958, %v996, %v727
  %v1125 = vsel %vm959, %v997, %v729
  %v1126 = vsel %vm958, %v998, %v731
  %v1127 = vsel %vm959, %v999, %v733
  %v1128 = vsel %vm958, %v1000, %v737
  %v1129 = vsel %vm959, %v1001, %v739
  %v1130 = vsel %vm958, %v1002, %v741
  %v1131 = vsel %vm959, %v1003, %v743
  %v1132 = vsel %vm958, %v1004, %v747
  %v1133 = vsel %vm959, %v1005, %v749
  %v1134 = vsel %vm958, %v1006, %v751
  %v1135 = vsel %vm959, %v1007, %v753
  %v1136 = vsel %vm958, %v1008, %v757
  %v1137 = vsel %vm959, %v1009, %v759
  %v1138 = vsel %vm958, %v1010, %v761
  %v1139 = vsel %vm959, %v1011, %v763
  %v1140 = vsel %vm958, %v1012, %v767
  %v1141 = vsel %vm959, %v1013, %v769
  %v1142 = vsel %vm958, %v1014, %v771
  %v1143 = vsel %vm959, %v1015, %v773
  %v1144 = vsel %vm958, %v1016, %v777
  %v1145 = vsel %vm959, %v1017, %v779
  %v1146 = vsel %vm958, %v1018, %v781
  %v1147 = vsel %vm959, %v1019, %v783
  %v1148 = vsel %vm958, %v1020, %v787
  %v1149 = vsel %vm959, %v1021, %v789
  %v1150 = vsel %vm958, %v1022, %v791
  %v1151 = vsel %vm959, %v1023, %v793
  %v1152 = vsel %vm958, %v1024, %v797
  %v1153 = vsel %vm959, %v1025, %v799
  %v1154 = vsel %vm958, %v1026, %v801
  %v1155 = vsel %vm959, %v1027, %v803
  %v1156 = vsel %vm958, %v1028, %v807
  %v1157 = vsel %vm959, %v1029, %v809
  %v1158 = vsel %vm958, %v1030, %v811
  %v1159 = vsel %vm959, %v1031, %v813
  %v1160 = vsel %vm958, %v1032, %v817
  %v1161 = vsel %vm959, %v1033, %v819
  %v1162 = vsel %vm958, %v1034, %v821
  %v1163 = vsel %vm959, %v1035, %v823
  %v1164 = vsel %vm958, %v1036, %v827
  %v1165 = vsel %vm959, %v1037, %v829
  %v1166 = vsel %vm958, %v1038, %v831
  %v1167 = vsel %vm959, %v1039, %v833
  %v1168 = vsel %vm958, %v1040, %v837
  %v1169 = vsel %vm959, %v1041, %v839
  %v1170 = vsel %vm958, %v1042, %v841
  %v1171 = vsel %vm959, %v1043, %v843
  %v1172 = vsel %vm958, %v1044, %v847
  %v1173 = vsel %vm959, %v1045, %v849
  %v1174 = vsel %vm958, %v1046, %v851
  %v1175 = vsel %vm959, %v1047, %v853
  %v1176 = vsel %vm958, %v1048, %v857
  %v1177 = vsel %vm959, %v1049, %v859
  %v1178 = vsel %vm958, %v1050, %v861
  %v1179 = vsel %vm959, %v1051, %v863
  %v1180 = vsel %vm958, %v1052, %v867
  %v1181 = vsel %vm959, %v1053, %v869
  %v1182 = vsel %vm958, %v1054, %v871
  %v1183 = vsel %vm959, %v1055, %v873
  %v1184 = vsel %vm958, %v1056, %v877
  %v1185 = vsel %vm959, %v1057, %v879
  %v1186 = vsel %vm958, %v1058, %v881
  %v1187 = vsel %vm959, %v1059, %v883
  %v1188 = vsel %vm958, %v1060, %v887
  %v1189 = vsel %vm959, %v1061, %v889
  %v1190 = vsel %vm958, %v1062, %v891
  %v1191 = vsel %vm959, %v1063, %v893
  %v1192 = vsel %vm958, %v1064, %v897
  %v1193 = vsel %vm959, %v1065, %v899
  %v1194 = vsel %vm958, %v1066, %v901
  %v1195 = vsel %vm959, %v1067, %v903
  %v1196 = vsel %vm958, %v1068, %v907
  %v1197 = vsel %vm959, %v1069, %v909
  %v1198 = vsel %vm958, %v1070, %v911
  %v1199 = vsel %vm959, %v1071, %v913
  %v1200 = vsel %vm958, %v1072, %v917
  %v1201 = vsel %vm959, %v1073, %v919
  %v1202 = vsel %vm958, %v1074, %v921
  %v1203 = vsel %vm959, %v1075, %v923
  %v1204 = vsel %vm958, %v1076, %v927
  %v1205 = vsel %vm959, %v1077, %v929
  %v1206 = vsel %vm958, %v1078, %v931
  %v1207 = vsel %vm959, %v1079, %v933
  %v1208 = vsel %vm958, %v1080, %v937
  %v1209 = vsel %vm959, %v1081, %v939
  %v1210 = vsel %vm958, %v1082, %v941
  %v1211 = vsel %vm959, %v1083, %v943
  %v1212 = vsel %vm958, %v1084, %v947
  %v1213 = vsel %vm959, %v1085, %v949
  %v1214 = vsel %vm958, %v1086, %v951
  %v1215 = vsel %vm959, %v1087, %v953
  %v1216 = vpack.c.bf16 %v1090, %v1088
  %v1217 = vpack.c.bf16 %v1091, %v1089
  %v1218 = vpack.c.bf16 %v1094, %v1092
  %v1219 = vpack.c.bf16 %v1095, %v1093
  %v1220 = vpack.c.bf16 %v1098, %v1096
  %v1221 = vpack.c.bf16 %v1099, %v1097
  %v1222 = vpack.c.bf16 %v1102, %v1100
  %v1223 = vpack.c.bf16 %v1103, %v1101
  %v1224 = vpack.c.bf16 %v1106, %v1104
  %v1225 = vpack.c.bf16 %v1107, %v1105
  %v1226 = vpack.c.bf16 %v1110, %v1108
  %v1227 = vpack.c.bf16 %v1111, %v1109
  %v1228 = vpack.c.bf16 %v1114, %v1112
  %v1229 = vpack.c.bf16 %v1115, %v1113
  %v1230 = vpack.c.bf16 %v1118, %v1116
  %v1231 = vpack.c.bf16 %v1119, %v1117
  %v1232 = vpack.c.bf16 %v1122, %v1120
  %v1233 = vpack.c.bf16 %v1123, %v1121
  %v1234 = vpack.c.bf16 %v1126, %v1124
  %v1235 = vpack.c.bf16 %v1127, %v1125
  %v1236 = vpack.c.bf16 %v1130, %v1128
  %v1237 = vpack.c.bf16 %v1131, %v1129
  %v1238 = vpack.c.bf16 %v1134, %v1132
  %v1239 = vpack.c.bf16 %v1135, %v1133
  %v1240 = vpack.c.bf16 %v1138, %v1136
  %v1241 = vpack.c.bf16 %v1139, %v1137
  %v1242 = vpack.c.bf16 %v1142, %v1140
  %v1243 = vpack.c.bf16 %v1143, %v1141
  %v1244 = vpack.c.bf16 %v1146, %v1144
  %v1245 = vpack.c.bf16 %v1147, %v1145
  %v1246 = vpack.c.bf16 %v1150, %v1148
  %v1247 = vpack.c.bf16 %v1151, %v1149
  %v1248 = vpack.c.bf16 %v1154, %v1152
  %v1249 = vpack.c.bf16 %v1155, %v1153
  %v1250 = vpack.c.bf16 %v1158, %v1156
  %v1251 = vpack.c.bf16 %v1159, %v1157
  %v1252 = vpack.c.bf16 %v1162, %v1160
  %v1253 = vpack.c.bf16 %v1163, %v1161
  %v1254 = vpack.c.bf16 %v1166, %v1164
  %v1255 = vpack.c.bf16 %v1167, %v1165
  %v1256 = vpack.c.bf16 %v1170, %v1168
  %v1257 = vpack.c.bf16 %v1171, %v1169
  %v1258 = vpack.c.bf16 %v1174, %v1172
  %v1259 = vpack.c.bf16 %v1175, %v1173
  %v1260 = vpack.c.bf16 %v1178, %v1176
  %v1261 = vpack.c.bf16 %v1179, %v1177
  %v1262 = vpack.c.bf16 %v1182, %v1180
  %v1263 = vpack.c.bf16 %v1183, %v1181
  %v1264 = vpack.c.bf16 %v1186, %v1184
  %v1265 = vpack.c.bf16 %v1187, %v1185
  %v1266 = vpack.c.bf16 %v1190, %v1188
  %v1267 = vpack.c.bf16 %v1191, %v1189
  %v1268 = vpack.c.bf16 %v1194, %v1192
  %v1269 = vpack.c.bf16 %v1195, %v1193
  %v1270 = vpack.c.bf16 %v1198, %v1196
  %v1271 = vpack.c.bf16 %v1199, %v1197
  %v1272 = vpack.c.bf16 %v1202, %v1200
  %v1273 = vpack.c.bf16 %v1203, %v1201
  %v1274 = vpack.c.bf16 %v1206, %v1204
  %v1275 = vpack.c.bf16 %v1207, %v1205
  %v1276 = vpack.c.bf16 %v1210, %v1208
  %v1277 = vpack.c.bf16 %v1211, %v1209
  %v1278 = vpack.c.bf16 %v1214, %v1212
  %v1279 = vpack.c.bf16 %v1215, %v1213
  %v1344 = vunpack.c.l.b16 %v1216
  %v1345 = vunpack.c.l.b16 %v1217
  %v1346 = vunpack.c.h.b16 %v1216
  %v1347 = vunpack.c.h.b16 %v1217
  %v1348 = vunpack.c.l.b16 %v1218
  %v1349 = vunpack.c.l.b16 %v1219
  %v1350 = vunpack.c.h.b16 %v1218
  %v1351 = vunpack.c.h.b16 %v1219
  %v1352 = vunpack.c.l.b16 %v1220
  %v1353 = vunpack.c.l.b16 %v1221
  %v1354 = vunpack.c.h.b16 %v1220
  %v1355 = vunpack.c.h.b16 %v1221
  %v1356 = vunpack.c.l.b16 %v1222
  %v1357 = vunpack.c.l.b16 %v1223
  %v1358 = vunpack.c.h.b16 %v1222
  %v1359 = vunpack.c.h.b16 %v1223
  %v1360 = vunpack.c.l.b16 %v1224
  %v1361 = vunpack.c.l.b16 %v1225
  %v1362 = vunpack.c.h.b16 %v1224
  %v1363 = vunpack.c.h.b16 %v1225
  %v1364 = vunpack.c.l.b16 %v1226
  %v1365 = vunpack.c.l.b16 %v1227
  %v1366 = vunpack.c.h.b16 %v1226
  %v1367 = vunpack.c.h.b16 %v1227
  %v1368 = vunpack.c.l.b16 %v1228
  %v1369 = vunpack.c.l.b16 %v1229
  %v1370 = vunpack.c.h.b16 %v1228
  %v1371 = vunpack.c.h.b16 %v1229
  %v1372 = vunpack.c.l.b16 %v1230
  %v1373 = vunpack.c.l.b16 %v1231
  %v1374 = vunpack.c.h.b16 %v1230
  %v1375 = vunpack.c.h.b16 %v1231
  %v1376 = vunpack.c.l.b16 %v1232
  %v1377 = vunpack.c.l.b16 %v1233
  %v1378 = vunpack.c.h.b16 %v1232
  %v1379 = vunpack.c.h.b16 %v1233
  %v1380 = vunpack.c.l.b16 %v1234
  %v1381 = vunpack.c.l.b16 %v1235
  %v1382 = vunpack.c.h.b16 %v1234
  %v1383 = vunpack.c.h.b16 %v1235
  %v1384 = vunpack.c.l.b16 %v1236
  %v1385 = vunpack.c.l.b16 %v1237
  %v1386 = vunpack.c.h.b16 %v1236
  %v1387 = vunpack.c.h.b16 %v1237
  %v1388 = vunpack.c.l.b16 %v1238
  %v1389 = vunpack.c.l.b16 %v1239
  %v1390 = vunpack.c.h.b16 %v1238
  %v1391 = vunpack.c.h.b16 %v1239
  %v1392 = vunpack.c.l.b16 %v1240
  %v1393 = vunpack.c.l.b16 %v1241
  %v1394 = vunpack.c.h.b16 %v1240
  %v1395 = vunpack.c.h.b16 %v1241
  %v1396 = vunpack.c.l.b16 %v1242
  %v1397 = vunpack.c.l.b16 %v1243
  %v1398 = vunpack.c.h.b16 %v1242
  %v1399 = vunpack.c.h.b16 %v1243
  %v1400 = vunpack.c.l.b16 %v1244
  %v1401 = vunpack.c.l.b16 %v1245
  %v1402 = vunpack.c.h.b16 %v1244
  %v1403 = vunpack.c.h.b16 %v1245
  %v1404 = vunpack.c.l.b16 %v1246
  %v1405 = vunpack.c.l.b16 %v1247
  %v1406 = vunpack.c.h.b16 %v1246
  %v1407 = vunpack.c.h.b16 %v1247
  %v1408 = vunpack.c.l.b16 %v1248
  %v1409 = vunpack.c.l.b16 %v1249
  %v1410 = vunpack.c.h.b16 %v1248
  %v1411 = vunpack.c.h.b16 %v1249
  %v1412 = vunpack.c.l.b16 %v1250
  %v1413 = vunpack.c.l.b16 %v1251
  %v1414 = vunpack.c.h.b16 %v1250
  %v1415 = vunpack.c.h.b16 %v1251
  %v1416 = vunpack.c.l.b16 %v1252
  %v1417 = vunpack.c.l.b16 %v1253
  %v1418 = vunpack.c.h.b16 %v1252
  %v1419 = vunpack.c.h.b16 %v1253
  %v1420 = vunpack.c.l.b16 %v1254
  %v1421 = vunpack.c.l.b16 %v1255
  %v1422 = vunpack.c.h.b16 %v1254
  %v1423 = vunpack.c.h.b16 %v1255
  %v1424 = vunpack.c.l.b16 %v1256
  %v1425 = vunpack.c.l.b16 %v1257
  %v1426 = vunpack.c.h.b16 %v1256
  %v1427 = vunpack.c.h.b16 %v1257
  %v1428 = vunpack.c.l.b16 %v1258
  %v1429 = vunpack.c.l.b16 %v1259
  %v1430 = vunpack.c.h.b16 %v1258
  %v1431 = vunpack.c.h.b16 %v1259
  %v1432 = vunpack.c.l.b16 %v1260
  %v1433 = vunpack.c.l.b16 %v1261
  %v1434 = vunpack.c.h.b16 %v1260
  %v1435 = vunpack.c.h.b16 %v1261
  %v1436 = vunpack.c.l.b16 %v1262
  %v1437 = vunpack.c.l.b16 %v1263
  %v1438 = vunpack.c.h.b16 %v1262
  %v1439 = vunpack.c.h.b16 %v1263
  %v1440 = vunpack.c.l.b16 %v1264
  %v1441 = vunpack.c.l.b16 %v1265
  %v1442 = vunpack.c.h.b16 %v1264
  %v1443 = vunpack.c.h.b16 %v1265
  %v1444 = vunpack.c.l.b16 %v1266
  %v1445 = vunpack.c.l.b16 %v1267
  %v1446 = vunpack.c.h.b16 %v1266
  %v1447 = vunpack.c.h.b16 %v1267
  %v1448 = vunpack.c.l.b16 %v1268
  %v1449 = vunpack.c.l.b16 %v1269
  %v1450 = vunpack.c.h.b16 %v1268
  %v1451 = vunpack.c.h.b16 %v1269
  %v1452 = vunpack.c.l.b16 %v1270
  %v1453 = vunpack.c.l.b16 %v1271
  %v1454 = vunpack.c.h.b16 %v1270
  %v1455 = vunpack.c.h.b16 %v1271
  %v1456 = vunpack.c.l.b16 %v1272
  %v1457 = vunpack.c.l.b16 %v1273
  %v1458 = vunpack.c.h.b16 %v1272
  %v1459 = vunpack.c.h.b16 %v1273
  %v1460 = vunpack.c.l.b16 %v1274
  %v1461 = vunpack.c.l.b16 %v1275
  %v1462 = vunpack.c.h.b16 %v1274
  %v1463 = vunpack.c.h.b16 %v1275
  %v1464 = vunpack.c.l.b16 %v1276
  %v1465 = vunpack.c.l.b16 %v1277
  %v1466 = vunpack.c.h.b16 %v1276
  %v1467 = vunpack.c.h.b16 %v1277
  %v1468 = vunpack.c.l.b16 %v1278
  %v1469 = vunpack.c.l.b16 %v1279
  %v1470 = vunpack.c.h.b16 %v1278
  %v1471 = vunpack.c.h.b16 %v1279
  %v1472 = vpack.c.b16 %v1345, %v1344
  %v1473 = vpack.c.b16 %v1347, %v1346
  %v1474 = vpack.c.b16 %v1349, %v1348
  %v1475 = vpack.c.b16 %v1351, %v1350
  %v1476 = vpack.c.b16 %v1353, %v1352
  %v1477 = vpack.c.b16 %v1355, %v1354
  %v1478 = vpack.c.b16 %v1357, %v1356
  %v1479 = vpack.c.b16 %v1359, %v1358
  %v1480 = vpack.c.b16 %v1361, %v1360
  %v1481 = vpack.c.b16 %v1363, %v1362
  %v1482 = vpack.c.b16 %v1365, %v1364
  %v1483 = vpack.c.b16 %v1367, %v1366
  %v1484 = vpack.c.b16 %v1369, %v1368
  %v1485 = vpack.c.b16 %v1371, %v1370
  %v1486 = vpack.c.b16 %v1373, %v1372
  %v1487 = vpack.c.b16 %v1375, %v1374
  %v1488 = vpack.c.b16 %v1377, %v1376
  %v1489 = vpack.c.b16 %v1379, %v1378
  %v1490 = vpack.c.b16 %v1381, %v1380
  %v1491 = vpack.c.b16 %v1383, %v1382
  %v1492 = vpack.c.b16 %v1385, %v1384
  %v1493 = vpack.c.b16 %v1387, %v1386
  %v1494 = vpack.c.b16 %v1389, %v1388
  %v1495 = vpack.c.b16 %v1391, %v1390
  %v1496 = vpack.c.b16 %v1393, %v1392
  %v1497 = vpack.c.b16 %v1395, %v1394
  %v1498 = vpack.c.b16 %v1397, %v1396
  %v1499 = vpack.c.b16 %v1399, %v1398
  %v1500 = vpack.c.b16 %v1401, %v1400
  %v1501 = vpack.c.b16 %v1403, %v1402
  %v1502 = vpack.c.b16 %v1405, %v1404
  %v1503 = vpack.c.b16 %v1407, %v1406
  %v1504 = vpack.c.b16 %v1409, %v1408
  %v1505 = vpack.c.b16 %v1411, %v1410
  %v1506 = vpack.c.b16 %v1413, %v1412
  %v1507 = vpack.c.b16 %v1415, %v1414
  %v1508 = vpack.c.b16 %v1417, %v1416
  %v1509 = vpack.c.b16 %v1419, %v1418
  %v1510 = vpack.c.b16 %v1421, %v1420
  %v1511 = vpack.c.b16 %v1423, %v1422
  %v1512 = vpack.c.b16 %v1425, %v1424
  %v1513 = vpack.c.b16 %v1427, %v1426
  %v1514 = vpack.c.b16 %v1429, %v1428
  %v1515 = vpack.c.b16 %v1431, %v1430
  %v1516 = vpack.c.b16 %v1433, %v1432
  %v1517 = vpack.c.b16 %v1435, %v1434
  %v1518 = vpack.c.b16 %v1437, %v1436
  %v1519 = vpack.c.b16 %v1439, %v1438
  %v1520 = vpack.c.b16 %v1441, %v1440
  %v1521 = vpack.c.b16 %v1443, %v1442
  %v1522 = vpack.c.b16 %v1445, %v1444
  %v1523 = vpack.c.b16 %v1447, %v1446
  %v1524 = vpack.c.b16 %v1449, %v1448
  %v1525 = vpack.c.b16 %v1451, %v1450
  %v1526 = vpack.c.b16 %v1453, %v1452
  %v1527 = vpack.c.b16 %v1455, %v1454
  %v1528 = vpack.c.b16 %v1457, %v1456
  %v1529 = vpack.c.b16 %v1459, %v1458
  %v1530 = vpack.c.b16 %v1461, %v1460
  %v1531 = vpack.c.b16 %v1463, %v1462
  %v1532 = vpack.c.b16 %v1465, %v1464
  %v1533 = vpack.c.b16 %v1467, %v1466
  %v1534 = vpack.c.b16 %v1469, %v1468
  %v1535 = vpack.c.b16 %v1471, %v1470
  %1600 = vst [vmem:[%s3] sm:$0xff] %v1472
  %1601 = vst [vmem:[%s3 + $0x8] sm:$0xff] %v1473
  %1602 = vst [vmem:[%s3 + $0x10] sm:$0xff] %v1474
  %1603 = vst [vmem:[%s3 + $0x18] sm:$0xff] %v1475
  %1604 = vst [vmem:[%s3 + $0x20] sm:$0xff] %v1476
  %1605 = vst [vmem:[%s3 + $0x28] sm:$0xff] %v1477
  %1606 = vst [vmem:[%s3 + $0x30] sm:$0xff] %v1478
  %1607 = vst [vmem:[%s3 + $0x38] sm:$0xff] %v1479
  %1608 = vst [vmem:[%s3 + $0x40] sm:$0xff] %v1480
  %1609 = vst [vmem:[%s3 + $0x48] sm:$0xff] %v1481
  %1610 = vst [vmem:[%s3 + $0x50] sm:$0xff] %v1482
  %1611 = vst [vmem:[%s3 + $0x58] sm:$0xff] %v1483
  %1612 = vst [vmem:[%s3 + $0x60] sm:$0xff] %v1484
  %1613 = vst [vmem:[%s3 + $0x68] sm:$0xff] %v1485
  %1614 = vst [vmem:[%s3 + $0x70] sm:$0xff] %v1486
  %1615 = vst [vmem:[%s3 + $0x78] sm:$0xff] %v1487
  %1616 = vst [vmem:[%s3 + $0x80] sm:$0xff] %v1488
  %1617 = vst [vmem:[%s3 + $0x88] sm:$0xff] %v1489
  %1618 = vst [vmem:[%s3 + $0x90] sm:$0xff] %v1490
  %1619 = vst [vmem:[%s3 + $0x98] sm:$0xff] %v1491
  %1620 = vst [vmem:[%s3 + $0xa0] sm:$0xff] %v1492
  %1621 = vst [vmem:[%s3 + $0xa8] sm:$0xff] %v1493
  %1622 = vst [vmem:[%s3 + $0xb0] sm:$0xff] %v1494
  %1623 = vst [vmem:[%s3 + $0xb8] sm:$0xff] %v1495
  %1624 = vst [vmem:[%s3 + $0xc0] sm:$0xff] %v1496
  %1625 = vst [vmem:[%s3 + $0xc8] sm:$0xff] %v1497
  %1626 = vst [vmem:[%s3 + $0xd0] sm:$0xff] %v1498
  %1627 = vst [vmem:[%s3 + $0xd8] sm:$0xff] %v1499
  %1628 = vst [vmem:[%s3 + $0xe0] sm:$0xff] %v1500
  %1629 = vst [vmem:[%s3 + $0xe8] sm:$0xff] %v1501
  %1630 = vst [vmem:[%s3 + $0xf0] sm:$0xff] %v1502
  %1631 = vst [vmem:[%s3 + $0xf8] sm:$0xff] %v1503
  %1632 = vst [vmem:[%s3 + $0x100] sm:$0xff] %v1504
  %1633 = vst [vmem:[%s3 + $0x108] sm:$0xff] %v1505
  %1634 = vst [vmem:[%s3 + $0x110] sm:$0xff] %v1506
  %1635 = vst [vmem:[%s3 + $0x118] sm:$0xff] %v1507
  %1636 = vst [vmem:[%s3 + $0x120] sm:$0xff] %v1508
  %1637 = vst [vmem:[%s3 + $0x128] sm:$0xff] %v1509
  %1638 = vst [vmem:[%s3 + $0x130] sm:$0xff] %v1510
  %1639 = vst [vmem:[%s3 + $0x138] sm:$0xff] %v1511
  %1640 = vst [vmem:[%s3 + $0x140] sm:$0xff] %v1512
  %1641 = vst [vmem:[%s3 + $0x148] sm:$0xff] %v1513
  %1642 = vst [vmem:[%s3 + $0x150] sm:$0xff] %v1514
  %1643 = vst [vmem:[%s3 + $0x158] sm:$0xff] %v1515
  %1644 = vst [vmem:[%s3 + $0x160] sm:$0xff] %v1516
  %1645 = vst [vmem:[%s3 + $0x168] sm:$0xff] %v1517
  %1646 = vst [vmem:[%s3 + $0x170] sm:$0xff] %v1518
  %1647 = vst [vmem:[%s3 + $0x178] sm:$0xff] %v1519
  %1648 = vst [vmem:[%s3 + $0x180] sm:$0xff] %v1520
  %1649 = vst [vmem:[%s3 + $0x188] sm:$0xff] %v1521
  %1650 = vst [vmem:[%s3 + $0x190] sm:$0xff] %v1522
  %1651 = vst [vmem:[%s3 + $0x198] sm:$0xff] %v1523
  %1652 = vst [vmem:[%s3 + $0x1a0] sm:$0xff] %v1524
  %1653 = vst [vmem:[%s3 + $0x1a8] sm:$0xff] %v1525
  %1654 = vst [vmem:[%s3 + $0x1b0] sm:$0xff] %v1526
  %1655 = vst [vmem:[%s3 + $0x1b8] sm:$0xff] %v1527
  %1656 = vst [vmem:[%s3 + $0x1c0] sm:$0xff] %v1528
  %1657 = vst [vmem:[%s3 + $0x1c8] sm:$0xff] %v1529
  %1658 = vst [vmem:[%s3 + $0x1d0] sm:$0xff] %v1530
  %1659 = vst [vmem:[%s3 + $0x1d8] sm:$0xff] %v1531
  %1660 = vst [vmem:[%s3 + $0x1e0] sm:$0xff] %v1532
  %1661 = vst [vmem:[%s3 + $0x1e8] sm:$0xff] %v1533
  %1662 = vst [vmem:[%s3 + $0x1f0] sm:$0xff] %v1534
  %1663 = vst [vmem:[%s3 + $0x1f8] sm:$0xff] %v1535
  // Predicated region
  $region14: #{_lambda_.13} parent=0 // pred_check
    _
  $region15: #{_lambda_.13} parent=0 // pred_check_branch
    %1665 = sbr.rel (0) target = $region17
  $region16: #{_lambda_.13} parent=0 // pred_region
    _
  $region17: #{_lambda_.13} parent=0 // pred_fallthru
    _
  // Predicated region
  $region18: #{_lambda_.13} parent=0 // pred_check
    _
  $region19: #{_lambda_.13} parent=0 // pred_check_branch
    %1667 = sbr.rel (0) target = $region21
  $region20: #{_lambda_.13} parent=0 // pred_region
    _
  $region21: #{_lambda_.13} parent=0 // pred_fallthru
    _

// kernel: _lambda_.12
$region0: #{_lambda_.12}
  #allocation0 [shape = 'u32[]', space=smem, size = 0x4, offset = 0x4, fixed_abs, tag = 'smem constant byte address 0x4 - core index']
  #allocation1 [shape = 'u32[144,128]{1,0:T(1,128)}', space=vmem, size = 0x12000, scoped, tag = 'internal scratch']
  %s0 = inlined_call_operand.vmem [shape: bf16[2,17,17,128], index: 0, kind: input, shape index: {}]
  %s1 = inlined_call_operand.vmem [shape: bf16[2,17,17,128], index: 1, kind: input, shape index: {}]
  %s2 = inlined_call_operand.vmem [shape: bf16[2,17,17,128], index: 2, kind: input, shape index: {}]
  %s3 = inlined_call_operand.vmem [shape: bf16[2,17,17,128], index: 3, kind: input, shape index: {}]
  %s4 = inlined_call_operand.vmem [shape: bf16[2,16,16,128], index: 4, kind: output, shape index: {}]
  %s5 = sld [smem:[#allocation0]]
  $region26: #{_lambda_.12} parent=0
    _
  %s7 = ssub.s32 1, %s5
  %s8 = scalar_select 0, %s7, %s5
  // Predicated region
  $region2: #{_lambda_.12} parent=0 // pred_check
    _
  $region3: #{_lambda_.12} parent=0 // pred_check_branch
    %10 = sbr.rel (0) target = $region5
  $region4: #{_lambda_.12} parent=0 // pred_region
    _
  $region5: #{_lambda_.12} parent=0 // pred_fallthru
    _
  // Predicated region
  $region6: #{_lambda_.12} parent=0 // pred_check
    _
  $region7: #{_lambda_.12} parent=0 // pred_check_branch
    %12 = sbr.rel (0) target = $region9
  $region8: #{_lambda_.12} parent=0 // pred_region
    _
  $region9: #{_lambda_.12} parent=0 // pred_fallthru
    _
  // Predicated region
  $region10: #{_lambda_.12} parent=0 // pred_check
    _
  $region11: #{_lambda_.12} parent=0 // pred_check_branch
    %14 = sbr.rel (0) target = $region13
  $region12: #{_lambda_.12} parent=0 // pred_region
    _
  $region13: #{_lambda_.12} parent=0 // pred_fallthru
    _
  // Predicated region
  $region14: #{_lambda_.12} parent=0 // pred_check
    _
  $region15: #{_lambda_.12} parent=0 // pred_check_branch
    %16 = sbr.rel (0) target = $region17
  $region16: #{_lambda_.12} parent=0 // pred_region
    _
  $region17: #{_lambda_.12} parent=0 // pred_fallthru
    _
  %v17 = vld [vmem:[%s0] sm:$0xf]
  %v18 = vld [vmem:[%s0 + $0x4] sm:$0xf]
  %v19 = vld [vmem:[%s0 + $0x8] sm:$0x1]
  %v20 = vld [vmem:[%s0 + $0xc] sm:$0xf]
  %v21 = vld [vmem:[%s0 + $0x10] sm:$0xf]
  %v22 = vld [vmem:[%s0 + $0x14] sm:$0x1]
  %v23 = vld [vmem:[%s0 + $0x18] sm:$0xf]
  %v24 = vld [vmem:[%s0 + $0x1c] sm:$0xf]
  %v25 = vld [vmem:[%s0 + $0x20] sm:$0x1]
  %v26 = vld [vmem:[%s0 + $0x24] sm:$0xf]
  %v27 = vld [vmem:[%s0 + $0x28] sm:$0xf]
  %v28 = vld [vmem:[%s0 + $0x2c] sm:$0x1]
  %v29 = vld [vmem:[%s0 + $0x30] sm:$0xf]
  %v30 = vld [vmem:[%s0 + $0x34] sm:$0xf]
  %v31 = vld [vmem:[%s0 + $0x38] sm:$0x1]
  %v32 = vld [vmem:[%s0 + $0x3c] sm:$0xf]
  %v33 = vld [vmem:[%s0 + $0x40] sm:$0xf]
  %v34 = vld [vmem:[%s0 + $0x44] sm:$0x1]
  %v35 = vld [vmem:[%s0 + $0x48] sm:$0xf]
  %v36 = vld [vmem:[%s0 + $0x4c] sm:$0xf]
  %v37 = vld [vmem:[%s0 + $0x50] sm:$0x1]
  %v38 = vld [vmem:[%s0 + $0x54] sm:$0xf]
  %v39 = vld [vmem:[%s0 + $0x58] sm:$0xf]
  %v40 = vld [vmem:[%s0 + $0x5c] sm:$0x1]
  %v41 = vld [vmem:[%s0 + $0x60] sm:$0xf]
  %v42 = vld [vmem:[%s0 + $0x64] sm:$0xf]
  %v43 = vld [vmem:[%s0 + $0x68] sm:$0x1]
  %v44 = vld [vmem:[%s0 + $0x6c] sm:$0xf]
  %v45 = vld [vmem:[%s0 + $0x70] sm:$0xf]
  %v46 = vld [vmem:[%s0 + $0x74] sm:$0x1]
  %v47 = vld [vmem:[%s0 + $0x78] sm:$0xf]
  %v48 = vld [vmem:[%s0 + $0x7c] sm:$0xf]
  %v49 = vld [vmem:[%s0 + $0x80] sm:$0x1]
  %v50 = vld [vmem:[%s0 + $0x84] sm:$0xf]
  %v51 = vld [vmem:[%s0 + $0x88] sm:$0xf]
  %v52 = vld [vmem:[%s0 + $0x8c] sm:$0x1]
  %v53 = vld [vmem:[%s0 + $0x90] sm:$0xf]
  %v54 = vld [vmem:[%s0 + $0x94] sm:$0xf]
  %v55 = vld [vmem:[%s0 + $0x98] sm:$0x1]
  %v56 = vld [vmem:[%s0 + $0x9c] sm:$0xf]
  %v57 = vld [vmem:[%s0 + $0xa0] sm:$0xf]
  %v58 = vld [vmem:[%s0 + $0xa4] sm:$0x1]
  %v59 = vld [vmem:[%s0 + $0xa8] sm:$0xf]
  %v60 = vld [vmem:[%s0 + $0xac] sm:$0xf]
  %v61 = vld [vmem:[%s0 + $0xb0] sm:$0x1]
  %v62 = vld [vmem:[%s0 + $0xb4] sm:$0xf]
  %v63 = vld [vmem:[%s0 + $0xb8] sm:$0xf]
  %v64 = vld [vmem:[%s0 + $0xbc] sm:$0x1]
  %v65 = vld [vmem:[%s0 + $0xc0] sm:$0xf]
  %v66 = vld [vmem:[%s0 + $0xc4] sm:$0xf]
  %v67 = vld [vmem:[%s0 + $0xc8] sm:$0x1]
  %v68 = vld [vmem:[%s0 + $0xcc] sm:$0xf]
  %v69 = vld [vmem:[%s0 + $0xd0] sm:$0xf]
  %v70 = vld [vmem:[%s0 + $0xd4] sm:$0x1]
  %v71 = vld [vmem:[%s0 + $0xd8] sm:$0xf]
  %v72 = vld [vmem:[%s0 + $0xdc] sm:$0xf]
  %v73 = vld [vmem:[%s0 + $0xe0] sm:$0x1]
  %v74 = vld [vmem:[%s0 + $0xe4] sm:$0xf]
  %v75 = vld [vmem:[%s0 + $0xe8] sm:$0xf]
  %v76 = vld [vmem:[%s0 + $0xec] sm:$0x1]
  %v77 = vld [vmem:[%s0 + $0xf0] sm:$0xf]
  %v78 = vld [vmem:[%s0 + $0xf4] sm:$0xf]
  %v79 = vld [vmem:[%s0 + $0xf8] sm:$0x1]
  %v80 = vld [vmem:[%s0 + $0xfc] sm:$0xf]
  %v81 = vld [vmem:[%s0 + $0x100] sm:$0xf]
  %v82 = vld [vmem:[%s0 + $0x104] sm:$0x1]
  %v83 = vld [vmem:[%s0 + $0x108] sm:$0xf]
  %v84 = vld [vmem:[%s0 + $0x10c] sm:$0xf]
  %v85 = vld [vmem:[%s0 + $0x110] sm:$0x1]
  %v86 = vld [vmem:[%s0 + $0x114] sm:$0xf]
  %v87 = vld [vmem:[%s0 + $0x118] sm:$0xf]
  %v88 = vld [vmem:[%s0 + $0x11c] sm:$0x1]
  %v89 = vld [vmem:[%s0 + $0x120] sm:$0xf]
  %v90 = vld [vmem:[%s0 + $0x124] sm:$0xf]
  %v91 = vld [vmem:[%s0 + $0x128] sm:$0x1]
  %v92 = vld [vmem:[%s0 + $0x12c] sm:$0xf]
  %v93 = vld [vmem:[%s0 + $0x130] sm:$0xf]
  %v94 = vld [vmem:[%s0 + $0x134] sm:$0x1]
  %v95 = vld [vmem:[%s0 + $0x138] sm:$0xf]
  %v96 = vld [vmem:[%s0 + $0x13c] sm:$0xf]
  %v97 = vld [vmem:[%s0 + $0x140] sm:$0x1]
  %v98 = vld [vmem:[%s0 + $0x144] sm:$0xf]
  %v99 = vld [vmem:[%s0 + $0x148] sm:$0xf]
  %v100 = vld [vmem:[%s0 + $0x14c] sm:$0x1]
  %v101 = vld [vmem:[%s0 + $0x150] sm:$0xf]
  %v102 = vld [vmem:[%s0 + $0x154] sm:$0xf]
  %v103 = vld [vmem:[%s0 + $0x158] sm:$0x1]
  %v104 = vld [vmem:[%s0 + $0x15c] sm:$0xf]
  %v105 = vld [vmem:[%s0 + $0x160] sm:$0xf]
  %v106 = vld [vmem:[%s0 + $0x164] sm:$0x1]
  %v107 = vld [vmem:[%s0 + $0x168] sm:$0xf]
  %v108 = vld [vmem:[%s0 + $0x16c] sm:$0xf]
  %v109 = vld [vmem:[%s0 + $0x170] sm:$0x1]
  %v110 = vld [vmem:[%s0 + $0x174] sm:$0xf]
  %v111 = vld [vmem:[%s0 + $0x178] sm:$0xf]
  %v112 = vld [vmem:[%s0 + $0x17c] sm:$0x1]
  %v113 = vld [vmem:[%s0 + $0x180] sm:$0xf]
  %v114 = vld [vmem:[%s0 + $0x184] sm:$0xf]
  %v115 = vld [vmem:[%s0 + $0x188] sm:$0x1]
  %v116 = vld [vmem:[%s0 + $0x18c] sm:$0xf]
  %v117 = vld [vmem:[%s0 + $0x190] sm:$0xf]
  %v118 = vld [vmem:[%s0 + $0x194] sm:$0x1]
  %v119 = vld [vmem:[%s1] sm:$0xf]
  %v120 = vld [vmem:[%s1 + $0x4] sm:$0xf]
  %v121 = vld [vmem:[%s1 + $0xc] sm:$0xf]
  %v122 = vld [vmem:[%s1 + $0x10] sm:$0xf]
  %v123 = vld [vmem:[%s1 + $0x18] sm:$0xf]
  %v124 = vld [vmem:[%s1 + $0x1c] sm:$0xf]
  %v125 = vld [vmem:[%s1 + $0x24] sm:$0xf]
  %v126 = vld [vmem:[%s1 + $0x28] sm:$0xf]
  %v127 = vld [vmem:[%s1 + $0x30] sm:$0xf]
  %v128 = vld [vmem:[%s1 + $0x34] sm:$0xf]
  %v129 = vld [vmem:[%s1 + $0x3c] sm:$0xf]
  %v130 = vld [vmem:[%s1 + $0x40] sm:$0xf]
  %v131 = vld [vmem:[%s1 + $0x48] sm:$0xf]
  %v132 = vld [vmem:[%s1 + $0x4c] sm:$0xf]
  %v133 = vld [vmem:[%s1 + $0x54] sm:$0xf]
  %v134 = vld [vmem:[%s1 + $0x58] sm:$0xf]
  %v135 = vld [vmem:[%s1 + $0x60] sm:$0xf]
  %v136 = vld [vmem:[%s1 + $0x64] sm:$0xf]
  %v137 = vld [vmem:[%s1 + $0x6c] sm:$0xf]
  %v138 = vld [vmem:[%s1 + $0x70] sm:$0xf]
  %v139 = vld [vmem:[%s1 + $0x78] sm:$0xf]
  %v140 = vld [vmem:[%s1 + $0x7c] sm:$0xf]
  %v141 = vld [vmem:[%s1 + $0x84] sm:$0xf]
  %v142 = vld [vmem:[%s1 + $0x88] sm:$0xf]
  %v143 = vld [vmem:[%s1 + $0x90] sm:$0xf]
  %v144 = vld [vmem:[%s1 + $0x94] sm:$0xf]
  %v145 = vld [vmem:[%s1 + $0x9c] sm:$0xf]
  %v146 = vld [vmem:[%s1 + $0xa0] sm:$0xf]
  %v147 = vld [vmem:[%s1 + $0xa8] sm:$0xf]
  %v148 = vld [vmem:[%s1 + $0xac] sm:$0xf]
  %v149 = vld [vmem:[%s1 + $0xb4] sm:$0xf]
  %v150 = vld [vmem:[%s1 + $0xb8] sm:$0xf]
  %v151 = vld [vmem:[%s1 + $0xc0] sm:$0xf]
  %v152 = vld [vmem:[%s1 + $0xc4] sm:$0xf]
  %v153 = vld [vmem:[%s1 + $0xcc] sm:$0xf]
  %v154 = vld [vmem:[%s1 + $0xd0] sm:$0xf]
  %v155 = vld [vmem:[%s1 + $0xd8] sm:$0xf]
  %v156 = vld [vmem:[%s1 + $0xdc] sm:$0xf]
  %v157 = vld [vmem:[%s1 + $0xe4] sm:$0xf]
  %v158 = vld [vmem:[%s1 + $0xe8] sm:$0xf]
  %v159 = vld [vmem:[%s1 + $0xf0] sm:$0xf]
  %v160 = vld [vmem:[%s1 + $0xf4] sm:$0xf]
  %v161 = vld [vmem:[%s1 + $0xfc] sm:$0xf]
  %v162 = vld [vmem:[%s1 + $0x100] sm:$0xf]
  %v163 = vld [vmem:[%s1 + $0x108] sm:$0xf]
  %v164 = vld [vmem:[%s1 + $0x10c] sm:$0xf]
  %v165 = vld [vmem:[%s1 + $0x114] sm:$0xf]
  %v166 = vld [vmem:[%s1 + $0x118] sm:$0xf]
  %v167 = vld [vmem:[%s1 + $0x120] sm:$0xf]
  %v168 = vld [vmem:[%s1 + $0x124] sm:$0xf]
  %v169 = vld [vmem:[%s1 + $0x12c] sm:$0xf]
  %v170 = vld [vmem:[%s1 + $0x130] sm:$0xf]
  %v171 = vld [vmem:[%s1 + $0x138] sm:$0xf]
  %v172 = vld [vmem:[%s1 + $0x13c] sm:$0xf]
  %v173 = vld [vmem:[%s1 + $0x144] sm:$0xf]
  %v174 = vld [vmem:[%s1 + $0x148] sm:$0xf]
  %v175 = vld [vmem:[%s1 + $0x150] sm:$0xf]
  %v176 = vld [vmem:[%s1 + $0x154] sm:$0xf]
  %v177 = vld [vmem:[%s1 + $0x15c] sm:$0xf]
  %v178 = vld [vmem:[%s1 + $0x160] sm:$0xf]
  %v179 = vld [vmem:[%s1 + $0x168] sm:$0xf]
  %v180 = vld [vmem:[%s1 + $0x16c] sm:$0xf]
  %v181 = vld [vmem:[%s1 + $0x174] sm:$0xf]
  %v182 = vld [vmem:[%s1 + $0x178] sm:$0xf]
  %v183 = vld [vmem:[%s1 + $0x180] sm:$0xf]
  %v184 = vld [vmem:[%s1 + $0x184] sm:$0xf]
  %v185 = vld [vmem:[%s1 + $0x18c] sm:$0xf]
  %v186 = vld [vmem:[%s1 + $0x190] sm:$0xf]
  %v187 = vld [vmem:[%s2] sm:$0xf]
  %v188 = vld [vmem:[%s2 + $0x4] sm:$0xf]
  %v189 = vld [vmem:[%s2 + $0x8] sm:$0x1]
  %v190 = vld [vmem:[%s2 + $0xc] sm:$0xf]
  %v191 = vld [vmem:[%s2 + $0x10] sm:$0xf]
  %v192 = vld [vmem:[%s2 + $0x14] sm:$0x1]
  %v193 = vld [vmem:[%s2 + $0x18] sm:$0xf]
  %v194 = vld [vmem:[%s2 + $0x1c] sm:$0xf]
  %v195 = vld [vmem:[%s2 + $0x20] sm:$0x1]
  %v196 = vld [vmem:[%s2 + $0x24] sm:$0xf]
  %v197 = vld [vmem:[%s2 + $0x28] sm:$0xf]
  %v198 = vld [vmem:[%s2 + $0x2c] sm:$0x1]
  %v199 = vld [vmem:[%s2 + $0x30] sm:$0xf]
  %v200 = vld [vmem:[%s2 + $0x34] sm:$0xf]
  %v201 = vld [vmem:[%s2 + $0x38] sm:$0x1]
  %v202 = vld [vmem:[%s2 + $0x3c] sm:$0xf]
  %v203 = vld [vmem:[%s2 + $0x40] sm:$0xf]
  %v204 = vld [vmem:[%s2 + $0x44] sm:$0x1]
  %v205 = vld [vmem:[%s2 + $0x48] sm:$0xf]
  %v206 = vld [vmem:[%s2 + $0x4c] sm:$0xf]
  %v207 = vld [vmem:[%s2 + $0x50] sm:$0x1]
  %v208 = vld [vmem:[%s2 + $0x54] sm:$0xf]
  %v209 = vld [vmem:[%s2 + $0x58] sm:$0xf]
  %v210 = vld [vmem:[%s2 + $0x5c] sm:$0x1]
  %v211 = vld [vmem:[%s2 + $0x60] sm:$0xf]
  %v212 = vld [vmem:[%s2 + $0x64] sm:$0xf]
  %v213 = vld [vmem:[%s2 + $0x68] sm:$0x1]
  %v214 = vld [vmem:[%s2 + $0x6c] sm:$0xf]
  %v215 = vld [vmem:[%s2 + $0x70] sm:$0xf]
  %v216 = vld [vmem:[%s2 + $0x74] sm:$0x1]
  %v217 = vld [vmem:[%s2 + $0x78] sm:$0xf]
  %v218 = vld [vmem:[%s2 + $0x7c] sm:$0xf]
  %v219 = vld [vmem:[%s2 + $0x80] sm:$0x1]
  %v220 = vld [vmem:[%s2 + $0x84] sm:$0xf]
  %v221 = vld [vmem:[%s2 + $0x88] sm:$0xf]
  %v222 = vld [vmem:[%s2 + $0x8c] sm:$0x1]
  %v223 = vld [vmem:[%s2 + $0x90] sm:$0xf]
  %v224 = vld [vmem:[%s2 + $0x94] sm:$0xf]
  %v225 = vld [vmem:[%s2 + $0x98] sm:$0x1]
  %v226 = vld [vmem:[%s2 + $0x9c] sm:$0xf]
  %v227 = vld [vmem:[%s2 + $0xa0] sm:$0xf]
  %v228 = vld [vmem:[%s2 + $0xa4] sm:$0x1]
  %v229 = vld [vmem:[%s2 + $0xa8] sm:$0xf]
  %v230 = vld [vmem:[%s2 + $0xac] sm:$0xf]
  %v231 = vld [vmem:[%s2 + $0xb0] sm:$0x1]
  %v232 = vld [vmem:[%s2 + $0xb4] sm:$0xf]
  %v233 = vld [vmem:[%s2 + $0xb8] sm:$0xf]
  %v234 = vld [vmem:[%s2 + $0xbc] sm:$0x1]
  %v235 = vld [vmem:[%s2 + $0xcc] sm:$0xf]
  %v236 = vld [vmem:[%s2 + $0xd0] sm:$0xf]
  %v237 = vld [vmem:[%s2 + $0xd4] sm:$0x1]
  %v238 = vld [vmem:[%s2 + $0xd8] sm:$0xf]
  %v239 = vld [vmem:[%s2 + $0xdc] sm:$0xf]
  %v240 = vld [vmem:[%s2 + $0xe0] sm:$0x1]
  %v241 = vld [vmem:[%s2 + $0xe4] sm:$0xf]
  %v242 = vld [vmem:[%s2 + $0xe8] sm:$0xf]
  %v243 = vld [vmem:[%s2 + $0xec] sm:$0x1]
  %v244 = vld [vmem:[%s2 + $0xf0] sm:$0xf]
  %v245 = vld [vmem:[%s2 + $0xf4] sm:$0xf]
  %v246 = vld [vmem:[%s2 + $0xf8] sm:$0x1]
  %v247 = vld [vmem:[%s2 + $0xfc] sm:$0xf]
  %v248 = vld [vmem:[%s2 + $0x100] sm:$0xf]
  %v249 = vld [vmem:[%s2 + $0x104] sm:$0x1]
  %v250 = vld [vmem:[%s2 + $0x108] sm:$0xf]
  %v251 = vld [vmem:[%s2 + $0x10c] sm:$0xf]
  %v252 = vld [vmem:[%s2 + $0x110] sm:$0x1]
  %v253 = vld [vmem:[%s2 + $0x114] sm:$0xf]
  %v254 = vld [vmem:[%s2 + $0x118] sm:$0xf]
  %v255 = vld [vmem:[%s2 + $0x11c] sm:$0x1]
  %v256 = vld [vmem:[%s2 + $0x120] sm:$0xf]
  %v257 = vld [vmem:[%s2 + $0x124] sm:$0xf]
  %v258 = vld [vmem:[%s2 + $0x128] sm:$0x1]
  %v259 = vld [vmem:[%s2 + $0x12c] sm:$0xf]
  %v260 = vld [vmem:[%s2 + $0x130] sm:$0xf]
  %v261 = vld [vmem:[%s2 + $0x134] sm:$0x1]
  %v262 = vld [vmem:[%s2 + $0x138] sm:$0xf]
  %v263 = vld [vmem:[%s2 + $0x13c] sm:$0xf]
  %v264 = vld [vmem:[%s2 + $0x140] sm:$0x1]
  %v265 = vld [vmem:[%s2 + $0x144] sm:$0xf]
  %v266 = vld [vmem:[%s2 + $0x148] sm:$0xf]
  %v267 = vld [vmem:[%s2 + $0x14c] sm:$0x1]
  %v268 = vld [vmem:[%s2 + $0x150] sm:$0xf]
  %v269 = vld [vmem:[%s2 + $0x154] sm:$0xf]
  %v270 = vld [vmem:[%s2 + $0x158] sm:$0x1]
  %v271 = vld [vmem:[%s2 + $0x15c] sm:$0xf]
  %v272 = vld [vmem:[%s2 + $0x160] sm:$0xf]
  %v273 = vld [vmem:[%s2 + $0x164] sm:$0x1]
  %v274 = vld [vmem:[%s2 + $0x168] sm:$0xf]
  %v275 = vld [vmem:[%s2 + $0x16c] sm:$0xf]
  %v276 = vld [vmem:[%s2 + $0x170] sm:$0x1]
  %v277 = vld [vmem:[%s2 + $0x174] sm:$0xf]
  %v278 = vld [vmem:[%s2 + $0x178] sm:$0xf]
  %v279 = vld [vmem:[%s2 + $0x17c] sm:$0x1]
  %v280 = vld [vmem:[%s2 + $0x180] sm:$0xf]
  %v281 = vld [vmem:[%s2 + $0x184] sm:$0xf]
  %v282 = vld [vmem:[%s2 + $0x188] sm:$0x1]
  %v283 = vld [vmem:[%s3] sm:$0xf]
  %v284 = vld [vmem:[%s3 + $0x4] sm:$0xf]
  %v285 = vld [vmem:[%s3 + $0xc] sm:$0xf]
  %v286 = vld [vmem:[%s3 + $0x10] sm:$0xf]
  %v287 = vld [vmem:[%s3 + $0x18] sm:$0xf]
  %v288 = vld [vmem:[%s3 + $0x1c] sm:$0xf]
  %v289 = vld [vmem:[%s3 + $0x24] sm:$0xf]
  %v290 = vld [vmem:[%s3 + $0x28] sm:$0xf]
  %v291 = vld [vmem:[%s3 + $0x30] sm:$0xf]
  %v292 = vld [vmem:[%s3 + $0x34] sm:$0xf]
  %v293 = vld [vmem:[%s3 + $0x3c] sm:$0xf]
  %v294 = vld [vmem:[%s3 + $0x40] sm:$0xf]
  %v295 = vld [vmem:[%s3 + $0x48] sm:$0xf]
  %v296 = vld [vmem:[%s3 + $0x4c] sm:$0xf]
  %v297 = vld [vmem:[%s3 + $0x54] sm:$0xf]
  %v298 = vld [vmem:[%s3 + $0x58] sm:$0xf]
  %v299 = vld [vmem:[%s3 + $0x60] sm:$0xf]
  %v300 = vld [vmem:[%s3 + $0x64] sm:$0xf]
  %v301 = vld [vmem:[%s3 + $0x6c] sm:$0xf]
  %v302 = vld [vmem:[%s3 + $0x70] sm:$0xf]
  %v303 = vld [vmem:[%s3 + $0x78] sm:$0xf]
  %v304 = vld [vmem:[%s3 + $0x7c] sm:$0xf]
  %v305 = vld [vmem:[%s3 + $0x84] sm:$0xf]
  %v306 = vld [vmem:[%s3 + $0x88] sm:$0xf]
  %v307 = vld [vmem:[%s3 + $0x90] sm:$0xf]
  %v308 = vld [vmem:[%s3 + $0x94] sm:$0xf]
  %v309 = vld [vmem:[%s3 + $0x9c] sm:$0xf]
  %v310 = vld [vmem:[%s3 + $0xa0] sm:$0xf]
  %v311 = vld [vmem:[%s3 + $0xa8] sm:$0xf]
  %v312 = vld [vmem:[%s3 + $0xac] sm:$0xf]
  %v313 = vld [vmem:[%s3 + $0xb4] sm:$0xf]
  %v314 = vld [vmem:[%s3 + $0xb8] sm:$0xf]
  %v315 = vld [vmem:[%s3 + $0xcc] sm:$0xf]
  %v316 = vld [vmem:[%s3 + $0xd0] sm:$0xf]
  %v317 = vld [vmem:[%s3 + $0xd8] sm:$0xf]
  %v318 = vld [vmem:[%s3 + $0xdc] sm:$0xf]
  %v319 = vld [vmem:[%s3 + $0xe4] sm:$0xf]
  %v320 = vld [vmem:[%s3 + $0xe8] sm:$0xf]
  %v321 = vld [vmem:[%s3 + $0xf0] sm:$0xf]
  %v322 = vld [vmem:[%s3 + $0xf4] sm:$0xf]
  %v323 = vld [vmem:[%s3 + $0xfc] sm:$0xf]
  %v324 = vld [vmem:[%s3 + $0x100] sm:$0xf]
  %v325 = vld [vmem:[%s3 + $0x108] sm:$0xf]
  %v326 = vld [vmem:[%s3 + $0x10c] sm:$0xf]
  %v327 = vld [vmem:[%s3 + $0x114] sm:$0xf]
  %v328 = vld [vmem:[%s3 + $0x118] sm:$0xf]
  %v329 = vld [vmem:[%s3 + $0x120] sm:$0xf]
  %v330 = vld [vmem:[%s3 + $0x124] sm:$0xf]
  %v331 = vld [vmem:[%s3 + $0x12c] sm:$0xf]
  %v332 = vld [vmem:[%s3 + $0x130] sm:$0xf]
  %v333 = vld [vmem:[%s3 + $0x138] sm:$0xf]
  %v334 = vld [vmem:[%s3 + $0x13c] sm:$0xf]
  %v335 = vld [vmem:[%s3 + $0x144] sm:$0xf]
  %v336 = vld [vmem:[%s3 + $0x148] sm:$0xf]
  %v337 = vld [vmem:[%s3 + $0x150] sm:$0xf]
  %v338 = vld [vmem:[%s3 + $0x154] sm:$0xf]
  %v339 = vld [vmem:[%s3 + $0x15c] sm:$0xf]
  %v340 = vld [vmem:[%s3 + $0x160] sm:$0xf]
  %v341 = vld [vmem:[%s3 + $0x168] sm:$0xf]
  %v342 = vld [vmem:[%s3 + $0x16c] sm:$0xf]
  %v343 = vld [vmem:[%s3 + $0x174] sm:$0xf]
  %v344 = vld [vmem:[%s3 + $0x178] sm:$0xf]
  %v345 = vld [vmem:[%s3 + $0x180] sm:$0xf]
  %v346 = vld [vmem:[%s3 + $0x184] sm:$0xf]
  %v347 = vmax.bf16 %v17, %v119
  %v348 = vmax.bf16 %v18, %v120
  %v349 = vmax.bf16 %v20, %v121
  %v350 = vmax.bf16 %v21, %v122
  %v351 = vmax.bf16 %v23, %v123
  %v352 = vmax.bf16 %v24, %v124
  %v353 = vmax.bf16 %v26, %v125
  %v354 = vmax.bf16 %v27, %v126
  %v355 = vmax.bf16 %v29, %v127
  %v356 = vmax.bf16 %v30, %v128
  %v357 = vmax.bf16 %v32, %v129
  %v358 = vmax.bf16 %v33, %v130
  %v359 = vmax.bf16 %v35, %v131
  %v360 = vmax.bf16 %v36, %v132
  %v361 = vmax.bf16 %v38, %v133
  %v362 = vmax.bf16 %v39, %v134
  %v363 = vmax.bf16 %v41, %v135
  %v364 = vmax.bf16 %v42, %v136
  %v365 = vmax.bf16 %v44, %v137
  %v366 = vmax.bf16 %v45, %v138
  %v367 = vmax.bf16 %v47, %v139
  %v368 = vmax.bf16 %v48, %v140
  %v369 = vmax.bf16 %v50, %v141
  %v370 = vmax.bf16 %v51, %v142
  %v371 = vmax.bf16 %v53, %v143
  %v372 = vmax.bf16 %v54, %v144
  %v373 = vmax.bf16 %v56, %v145
  %v374 = vmax.bf16 %v57, %v146
  %v375 = vmax.bf16 %v59, %v147
  %v376 = vmax.bf16 %v60, %v148
  %v377 = vmax.bf16 %v62, %v149
  %v378 = vmax.bf16 %v63, %v150
  %v379 = vmax.bf16 %v65, %v151
  %v380 = vmax.bf16 %v66, %v152
  %v381 = vmax.bf16 %v68, %v153
  %v382 = vmax.bf16 %v69, %v154
  %v383 = vmax.bf16 %v71, %v155
  %v384 = vmax.bf16 %v72, %v156
  %v385 = vmax.bf16 %v74, %v157
  %v386 = vmax.bf16 %v75, %v158
  %v387 = vmax.bf16 %v77, %v159
  %v388 = vmax.bf16 %v78, %v160
  %v389 = vmax.bf16 %v80, %v161
  %v390 = vmax.bf16 %v81, %v162
  %v391 = vmax.bf16 %v83, %v163
  %v392 = vmax.bf16 %v84, %v164
  %v393 = vmax.bf16 %v86, %v165
  %v394 = vmax.bf16 %v87, %v166
  %v395 = vmax.bf16 %v89, %v167
  %v396 = vmax.bf16 %v90, %v168
  %v397 = vmax.bf16 %v92, %v169
  %v398 = vmax.bf16 %v93, %v170
  %v399 = vmax.bf16 %v95, %v171
  %v400 = vmax.bf16 %v96, %v172
  %v401 = vmax.bf16 %v98, %v173
  %v402 = vmax.bf16 %v99, %v174
  %v403 = vmax.bf16 %v101, %v175
  %v404 = vmax.bf16 %v102, %v176
  %v405 = vmax.bf16 %v104, %v177
  %v406 = vmax.bf16 %v105, %v178
  %v407 = vmax.bf16 %v107, %v179
  %v408 = vmax.bf16 %v108, %v180
  %v409 = vmax.bf16 %v110, %v181
  %v410 = vmax.bf16 %v111, %v182
  %v411 = vmax.bf16 %v113, %v183
  %v412 = vmax.bf16 %v114, %v184
  %v413 = vmax.bf16 %v116, %v185
  %v414 = vmax.bf16 %v117, %v186
  %vm415 = vsmask.f32 3328
  %vm416 = vsmask.f32 7440
  %vm417 = vmor %vm415, %vm416
  %v419 = vshrl.u32 %v17, 16
  %v421 = vrot.slane %v419, 4
  %v422 = vshll.u32 %v17, 16
  %v424 = vrot.slane %v422, 5
  %v425 = vor.u32 %v421, %v424
  %v426 = vrot.slane %v425, 4
  %v428 = vshll.u32 %v18, 16
  %v430 = vrot.slane %v428, 5
  %v431 = vsel %vm417, %v426, %v430
  %v432 = vshrl.u32 %v18, 16
  %v434 = vrot.slane %v432, 4
  %v435 = vor.u32 %v434, %v430
  %v436 = vrot.slane %v435, 4
  %v438 = vshll.u32 %v19, 16
  %v440 = vrot.slane %v438, 5
  %v441 = vsel %vm417, %v436, %v440
  %v443 = vshrl.u32 %v20, 16
  %v445 = vrot.slane %v443, 4
  %v446 = vshll.u32 %v20, 16
  %v448 = vrot.slane %v446, 5
  %v449 = vor.u32 %v445, %v448
  %v450 = vrot.slane %v449, 4
  %v452 = vshll.u32 %v21, 16
  %v454 = vrot.slane %v452, 5
  %v455 = vsel %vm417, %v450, %v454
  %v456 = vshrl.u32 %v21, 16
  %v458 = vrot.slane %v456, 4
  %v459 = vor.u32 %v458, %v454
  %v460 = vrot.slane %v459, 4
  %v462 = vshll.u32 %v22, 16
  %v464 = vrot.slane %v462, 5
  %v465 = vsel %vm417, %v460, %v464
  %v467 = vshrl.u32 %v23, 16
  %v469 = vrot.slane %v467, 4
  %v470 = vshll.u32 %v23, 16
  %v472 = vrot.slane %v470, 5
  %v473 = vor.u32 %v469, %v472
  %v474 = vrot.slane %v473, 4
  %v476 = vshll.u32 %v24, 16
  %v478 = vrot.slane %v476, 5
  %v479 = vsel %vm417, %v474, %v478
  %v480 = vshrl.u32 %v24, 16
  %v482 = vrot.slane %v480, 4
  %v483 = vor.u32 %v482, %v478
  %v484 = vrot.slane %v483, 4
  %v486 = vshll.u32 %v25, 16
  %v488 = vrot.slane %v486, 5
  %v489 = vsel %vm417, %v484, %v488
  %v491 = vshrl.u32 %v26, 16
  %v493 = vrot.slane %v491, 4
  %v494 = vshll.u32 %v26, 16
  %v496 = vrot.slane %v494, 5
  %v497 = vor.u32 %v493, %v496
  %v498 = vrot.slane %v497, 4
  %v500 = vshll.u32 %v27, 16
  %v502 = vrot.slane %v500, 5
  %v503 = vsel %vm417, %v498, %v502
  %v504 = vshrl.u32 %v27, 16
  %v506 = vrot.slane %v504, 4
  %v507 = vor.u32 %v506, %v502
  %v508 = vrot.slane %v507, 4
  %v510 = vshll.u32 %v28, 16
  %v512 = vrot.slane %v510, 5
  %v513 = vsel %vm417, %v508, %v512
  %v515 = vshrl.u32 %v29, 16
  %v517 = vrot.slane %v515, 4
  %v518 = vshll.u32 %v29, 16
  %v520 = vrot.slane %v518, 5
  %v521 = vor.u32 %v517, %v520
  %v522 = vrot.slane %v521, 4
  %v524 = vshll.u32 %v30, 16
  %v526 = vrot.slane %v524, 5
  %v527 = vsel %vm417, %v522, %v526
  %v528 = vshrl.u32 %v30, 16
  %v530 = vrot.slane %v528, 4
  %v531 = vor.u32 %v530, %v526
  %v532 = vrot.slane %v531, 4
  %v534 = vshll.u32 %v31, 16
  %v536 = vrot.slane %v534, 5
  %v537 = vsel %vm417, %v532, %v536
  %v539 = vshrl.u32 %v32, 16
  %v541 = vrot.slane %v539, 4
  %v542 = vshll.u32 %v32, 16
  %v544 = vrot.slane %v542, 5
  %v545 = vor.u32 %v541, %v544
  %v546 = vrot.slane %v545, 4
  %v548 = vshll.u32 %v33, 16
  %v550 = vrot.slane %v548, 5
  %v551 = vsel %vm417, %v546, %v550
  %v552 = vshrl.u32 %v33, 16
  %v554 = vrot.slane %v552, 4
  %v555 = vor.u32 %v554, %v550
  %v556 = vrot.slane %v555, 4
  %v558 = vshll.u32 %v34, 16
  %v560 = vrot.slane %v558, 5
  %v561 = vsel %vm417, %v556, %v560
  %v563 = vshrl.u32 %v35, 16
  %v565 = vrot.slane %v563, 4
  %v566 = vshll.u32 %v35, 16
  %v568 = vrot.slane %v566, 5
  %v569 = vor.u32 %v565, %v568
  %v570 = vrot.slane %v569, 4
  %v572 = vshll.u32 %v36, 16
  %v574 = vrot.slane %v572, 5
  %v575 = vsel %vm417, %v570, %v574
  %v576 = vshrl.u32 %v36, 16
  %v578 = vrot.slane %v576, 4
  %v579 = vor.u32 %v578, %v574
  %v580 = vrot.slane %v579, 4
  %v582 = vshll.u32 %v37, 16
  %v584 = vrot.slane %v582, 5
  %v585 = vsel %vm417, %v580, %v584
  %v587 = vshrl.u32 %v38, 16
  %v589 = vrot.slane %v587, 4
  %v590 = vshll.u32 %v38, 16
  %v592 = vrot.slane %v590, 5
  %v593 = vor.u32 %v589, %v592
  %v594 = vrot.slane %v593, 4
  %v596 = vshll.u32 %v39, 16
  %v598 = vrot.slane %v596, 5
  %v599 = vsel %vm417, %v594, %v598
  %v600 = vshrl.u32 %v39, 16
  %v602 = vrot.slane %v600, 4
  %v603 = vor.u32 %v602, %v598
  %v604 = vrot.slane %v603, 4
  %v606 = vshll.u32 %v40, 16
  %v608 = vrot.slane %v606, 5
  %v609 = vsel %vm417, %v604, %v608
  %v611 = vshrl.u32 %v41, 16
  %v613 = vrot.slane %v611, 4
  %v614 = vshll.u32 %v41, 16
  %v616 = vrot.slane %v614, 5
  %v617 = vor.u32 %v613, %v616
  %v618 = vrot.slane %v617, 4
  %v620 = vshll.u32 %v42, 16
  %v622 = vrot.slane %v620, 5
  %v623 = vsel %vm417, %v618, %v622
  %v624 = vshrl.u32 %v42, 16
  %v626 = vrot.slane %v624, 4
  %v627 = vor.u32 %v626, %v622
  %v628 = vrot.slane %v627, 4
  %v630 = vshll.u32 %v43, 16
  %v632 = vrot.slane %v630, 5
  %v633 = vsel %vm417, %v628, %v632
  %v635 = vshrl.u32 %v44, 16
  %v637 = vrot.slane %v635, 4
  %v638 = vshll.u32 %v44, 16
  %v640 = vrot.slane %v638, 5
  %v641 = vor.u32 %v637, %v640
  %v642 = vrot.slane %v641, 4
  %v644 = vshll.u32 %v45, 16
  %v646 = vrot.slane %v644, 5
  %v647 = vsel %vm417, %v642, %v646
  %v648 = vshrl.u32 %v45, 16
  %v650 = vrot.slane %v648, 4
  %v651 = vor.u32 %v650, %v646
  %v652 = vrot.slane %v651, 4
  %v654 = vshll.u32 %v46, 16
  %v656 = vrot.slane %v654, 5
  %v657 = vsel %vm417, %v652, %v656
  %v659 = vshrl.u32 %v47, 16
  %v661 = vrot.slane %v659, 4
  %v662 = vshll.u32 %v47, 16
  %v664 = vrot.slane %v662, 5
  %v665 = vor.u32 %v661, %v664
  %v666 = vrot.slane %v665, 4
  %v668 = vshll.u32 %v48, 16
  %v670 = vrot.slane %v668, 5
  %v671 = vsel %vm417, %v666, %v670
  %v672 = vshrl.u32 %v48, 16
  %v674 = vrot.slane %v672, 4
  %v675 = vor.u32 %v674, %v670
  %v676 = vrot.slane %v675, 4
  %v678 = vshll.u32 %v49, 16
  %v680 = vrot.slane %v678, 5
  %v681 = vsel %vm417, %v676, %v680
  %v683 = vshrl.u32 %v50, 16
  %v685 = vrot.slane %v683, 4
  %v686 = vshll.u32 %v50, 16
  %v688 = vrot.slane %v686, 5
  %v689 = vor.u32 %v685, %v688
  %v690 = vrot.slane %v689, 4
  %v692 = vshll.u32 %v51, 16
  %v694 = vrot.slane %v692, 5
  %v695 = vsel %vm417, %v690, %v694
  %v696 = vshrl.u32 %v51, 16
  %v698 = vrot.slane %v696, 4
  %v699 = vor.u32 %v698, %v694
  %v700 = vrot.slane %v699, 4
  %v702 = vshll.u32 %v52, 16
  %v704 = vrot.slane %v702, 5
  %v705 = vsel %vm417, %v700, %v704
  %v707 = vshrl.u32 %v53, 16
  %v709 = vrot.slane %v707, 4
  %v710 = vshll.u32 %v53, 16
  %v712 = vrot.slane %v710, 5
  %v713 = vor.u32 %v709, %v712
  %v714 = vrot.slane %v713, 4
  %v716 = vshll.u32 %v54, 16
  %v718 = vrot.slane %v716, 5
  %v719 = vsel %vm417, %v714, %v718
  %v720 = vshrl.u32 %v54, 16
  %v722 = vrot.slane %v720, 4
  %v723 = vor.u32 %v722, %v718
  %v724 = vrot.slane %v723, 4
  %v726 = vshll.u32 %v55, 16
  %v728 = vrot.slane %v726, 5
  %v729 = vsel %vm417, %v724, %v728
  %v731 = vshrl.u32 %v56, 16
  %v733 = vrot.slane %v731, 4
  %v734 = vshll.u32 %v56, 16
  %v736 = vrot.slane %v734, 5
  %v737 = vor.u32 %v733, %v736
  %v738 = vrot.slane %v737, 4
  %v740 = vshll.u32 %v57, 16
  %v742 = vrot.slane %v740, 5
  %v743 = vsel %vm417, %v738, %v742
  %v744 = vshrl.u32 %v57, 16
  %v746 = vrot.slane %v744, 4
  %v747 = vor.u32 %v746, %v742
  %v748 = vrot.slane %v747, 4
  %v750 = vshll.u32 %v58, 16
  %v752 = vrot.slane %v750, 5
  %v753 = vsel %vm417, %v748, %v752
  %v755 = vshrl.u32 %v59, 16
  %v757 = vrot.slane %v755, 4
  %v758 = vshll.u32 %v59, 16
  %v760 = vrot.slane %v758, 5
  %v761 = vor.u32 %v757, %v760
  %v762 = vrot.slane %v761, 4
  %v764 = vshll.u32 %v60, 16
  %v766 = vrot.slane %v764, 5
  %v767 = vsel %vm417, %v762, %v766
  %v768 = vshrl.u32 %v60, 16
  %v770 = vrot.slane %v768, 4
  %v771 = vor.u32 %v770, %v766
  %v772 = vrot.slane %v771, 4
  %v774 = vshll.u32 %v61, 16
  %v776 = vrot.slane %v774, 5
  %v777 = vsel %vm417, %v772, %v776
  %v779 = vshrl.u32 %v62, 16
  %v781 = vrot.slane %v779, 4
  %v782 = vshll.u32 %v62, 16
  %v784 = vrot.slane %v782, 5
  %v785 = vor.u32 %v781, %v784
  %v786 = vrot.slane %v785, 4
  %v788 = vshll.u32 %v63, 16
  %v790 = vrot.slane %v788, 5
  %v791 = vsel %vm417, %v786, %v790
  %v792 = vshrl.u32 %v63, 16
  %v794 = vrot.slane %v792, 4
  %v795 = vor.u32 %v794, %v790
  %v796 = vrot.slane %v795, 4
  %v798 = vshll.u32 %v64, 16
  %v800 = vrot.slane %v798, 5
  %v801 = vsel %vm417, %v796, %v800
  %v803 = vshrl.u32 %v65, 16
  %v805 = vrot.slane %v803, 4
  %v806 = vshll.u32 %v65, 16
  %v808 = vrot.slane %v806, 5
  %v809 = vor.u32 %v805, %v808
  %v810 = vrot.slane %v809, 4
  %v812 = vshll.u32 %v66, 16
  %v814 = vrot.slane %v812, 5
  %v815 = vsel %vm417, %v810, %v814
  %v816 = vshrl.u32 %v66, 16
  %v818 = vrot.slane %v816, 4
  %v819 = vor.u32 %v818, %v814
  %v820 = vrot.slane %v819, 4
  %v822 = vshll.u32 %v67, 16
  %v824 = vrot.slane %v822, 5
  %v825 = vsel %vm417, %v820, %v824
  %v827 = vshrl.u32 %v68, 16
  %v829 = vrot.slane %v827, 4
  %v830 = vshll.u32 %v68, 16
  %v832 = vrot.slane %v830, 5
  %v833 = vor.u32 %v829, %v832
  %v834 = vrot.slane %v833, 4
  %v836 = vshll.u32 %v69, 16
  %v838 = vrot.slane %v836, 5
  %v839 = vsel %vm417, %v834, %v838
  %v840 = vshrl.u32 %v69, 16
  %v842 = vrot.slane %v840, 4
  %v843 = vor.u32 %v842, %v838
  %v844 = vrot.slane %v843, 4
  %v846 = vshll.u32 %v70, 16
  %v848 = vrot.slane %v846, 5
  %v849 = vsel %vm417, %v844, %v848
  %v851 = vshrl.u32 %v71, 16
  %v853 = vrot.slane %v851, 4
  %v854 = vshll.u32 %v71, 16
  %v856 = vrot.slane %v854, 5
  %v857 = vor.u32 %v853, %v856
  %v858 = vrot.slane %v857, 4
  %v860 = vshll.u32 %v72, 16
  %v862 = vrot.slane %v860, 5
  %v863 = vsel %vm417, %v858, %v862
  %v864 = vshrl.u32 %v72, 16
  %v866 = vrot.slane %v864, 4
  %v867 = vor.u32 %v866, %v862
  %v868 = vrot.slane %v867, 4
  %v870 = vshll.u32 %v73, 16
  %v872 = vrot.slane %v870, 5
  %v873 = vsel %vm417, %v868, %v872
  %v875 = vshrl.u32 %v74, 16
  %v877 = vrot.slane %v875, 4
  %v878 = vshll.u32 %v74, 16
  %v880 = vrot.slane %v878, 5
  %v881 = vor.u32 %v877, %v880
  %v882 = vrot.slane %v881, 4
  %v884 = vshll.u32 %v75, 16
  %v886 = vrot.slane %v884, 5
  %v887 = vsel %vm417, %v882, %v886
  %v888 = vshrl.u32 %v75, 16
  %v890 = vrot.slane %v888, 4
  %v891 = vor.u32 %v890, %v886
  %v892 = vrot.slane %v891, 4
  %v894 = vshll.u32 %v76, 16
  %v896 = vrot.slane %v894, 5
  %v897 = vsel %vm417, %v892, %v896
  %v899 = vshrl.u32 %v77, 16
  %v901 = vrot.slane %v899, 4
  %v902 = vshll.u32 %v77, 16
  %v904 = vrot.slane %v902, 5
  %v905 = vor.u32 %v901, %v904
  %v906 = vrot.slane %v905, 4
  %v908 = vshll.u32 %v78, 16
  %v910 = vrot.slane %v908, 5
  %v911 = vsel %vm417, %v906, %v910
  %v912 = vshrl.u32 %v78, 16
  %v914 = vrot.slane %v912, 4
  %v915 = vor.u32 %v914, %v910
  %v916 = vrot.slane %v915, 4
  %v918 = vshll.u32 %v79, 16
  %v920 = vrot.slane %v918, 5
  %v921 = vsel %vm417, %v916, %v920
  %v923 = vshrl.u32 %v80, 16
  %v925 = vrot.slane %v923, 4
  %v926 = vshll.u32 %v80, 16
  %v928 = vrot.slane %v926, 5
  %v929 = vor.u32 %v925, %v928
  %v930 = vrot.slane %v929, 4
  %v932 = vshll.u32 %v81, 16
  %v934 = vrot.slane %v932, 5
  %v935 = vsel %vm417, %v930, %v934
  %v936 = vshrl.u32 %v81, 16
  %v938 = vrot.slane %v936, 4
  %v939 = vor.u32 %v938, %v934
  %v940 = vrot.slane %v939, 4
  %v942 = vshll.u32 %v82, 16
  %v944 = vrot.slane %v942, 5
  %v945 = vsel %vm417, %v940, %v944
  %v947 = vshrl.u32 %v83, 16
  %v949 = vrot.slane %v947, 4
  %v950 = vshll.u32 %v83, 16
  %v952 = vrot.slane %v950, 5
  %v953 = vor.u32 %v949, %v952
  %v954 = vrot.slane %v953, 4
  %v956 = vshll.u32 %v84, 16
  %v958 = vrot.slane %v956, 5
  %v959 = vsel %vm417, %v954, %v958
  %v960 = vshrl.u32 %v84, 16
  %v962 = vrot.slane %v960, 4
  %v963 = vor.u32 %v962, %v958
  %v964 = vrot.slane %v963, 4
  %v966 = vshll.u32 %v85, 16
  %v968 = vrot.slane %v966, 5
  %v969 = vsel %vm417, %v964, %v968
  %v971 = vshrl.u32 %v86, 16
  %v973 = vrot.slane %v971, 4
  %v974 = vshll.u32 %v86, 16
  %v976 = vrot.slane %v974, 5
  %v977 = vor.u32 %v973, %v976
  %v978 = vrot.slane %v977, 4
  %v980 = vshll.u32 %v87, 16
  %v982 = vrot.slane %v980, 5
  %v983 = vsel %vm417, %v978, %v982
  %v984 = vshrl.u32 %v87, 16
  %v986 = vrot.slane %v984, 4
  %v987 = vor.u32 %v986, %v982
  %v988 = vrot.slane %v987, 4
  %v990 = vshll.u32 %v88, 16
  %v992 = vrot.slane %v990, 5
  %v993 = vsel %vm417, %v988, %v992
  %v995 = vshrl.u32 %v89, 16
  %v997 = vrot.slane %v995, 4
  %v998 = vshll.u32 %v89, 16
  %v1000 = vrot.slane %v998, 5
  %v1001 = vor.u32 %v997, %v1000
  %v1002 = vrot.slane %v1001, 4
  %v1004 = vshll.u32 %v90, 16
  %v1006 = vrot.slane %v1004, 5
  %v1007 = vsel %vm417, %v1002, %v1006
  %v1008 = vshrl.u32 %v90, 16
  %v1010 = vrot.slane %v1008, 4
  %v1011 = vor.u32 %v1010, %v1006
  %v1012 = vrot.slane %v1011, 4
  %v1014 = vshll.u32 %v91, 16
  %v1016 = vrot.slane %v1014, 5
  %v1017 = vsel %vm417, %v1012, %v1016
  %v1019 = vshrl.u32 %v92, 16
  %v1021 = vrot.slane %v1019, 4
  %v1022 = vshll.u32 %v92, 16
  %v1024 = vrot.slane %v1022, 5
  %v1025 = vor.u32 %v1021, %v1024
  %v1026 = vrot.slane %v1025, 4
  %v1028 = vshll.u32 %v93, 16
  %v1030 = vrot.slane %v1028, 5
  %v1031 = vsel %vm417, %v1026, %v1030
  %v1032 = vshrl.u32 %v93, 16
  %v1034 = vrot.slane %v1032, 4
  %v1035 = vor.u32 %v1034, %v1030
  %v1036 = vrot.slane %v1035, 4
  %v1038 = vshll.u32 %v94, 16
  %v1040 = vrot.slane %v1038, 5
  %v1041 = vsel %vm417, %v1036, %v1040
  %v1043 = vshrl.u32 %v95, 16
  %v1045 = vrot.slane %v1043, 4
  %v1046 = vshll.u32 %v95, 16
  %v1048 = vrot.slane %v1046, 5
  %v1049 = vor.u32 %v1045, %v1048
  %v1050 = vrot.slane %v1049, 4
  %v1052 = vshll.u32 %v96, 16
  %v1054 = vrot.slane %v1052, 5
  %v1055 = vsel %vm417, %v1050, %v1054
  %v1056 = vshrl.u32 %v96, 16
  %v1058 = vrot.slane %v1056, 4
  %v1059 = vor.u32 %v1058, %v1054
  %v1060 = vrot.slane %v1059, 4
  %v1062 = vshll.u32 %v97, 16
  %v1064 = vrot.slane %v1062, 5
  %v1065 = vsel %vm417, %v1060, %v1064
  %v1067 = vshrl.u32 %v98, 16
  %v1069 = vrot.slane %v1067, 4
  %v1070 = vshll.u32 %v98, 16
  %v1072 = vrot.slane %v1070, 5
  %v1073 = vor.u32 %v1069, %v1072
  %v1074 = vrot.slane %v1073, 4
  %v1076 = vshll.u32 %v99, 16
  %v1078 = vrot.slane %v1076, 5
  %v1079 = vsel %vm417, %v1074, %v1078
  %v1080 = vshrl.u32 %v99, 16
  %v1082 = vrot.slane %v1080, 4
  %v1083 = vor.u32 %v1082, %v1078
  %v1084 = vrot.slane %v1083, 4
  %v1086 = vshll.u32 %v100, 16
  %v1088 = vrot.slane %v1086, 5
  %v1089 = vsel %vm417, %v1084, %v1088
  %v1091 = vshrl.u32 %v101, 16
  %v1093 = vrot.slane %v1091, 4
  %v1094 = vshll.u32 %v101, 16
  %v1096 = vrot.slane %v1094, 5
  %v1097 = vor.u32 %v1093, %v1096
  %v1098 = vrot.slane %v1097, 4
  %v1100 = vshll.u32 %v102, 16
  %v1102 = vrot.slane %v1100, 5
  %v1103 = vsel %vm417, %v1098, %v1102
  %v1104 = vshrl.u32 %v102, 16
  %v1106 = vrot.slane %v1104, 4
  %v1107 = vor.u32 %v1106, %v1102
  %v1108 = vrot.slane %v1107, 4
  %v1110 = vshll.u32 %v103, 16
  %v1112 = vrot.slane %v1110, 5
  %v1113 = vsel %vm417, %v1108, %v1112
  %v1115 = vshrl.u32 %v104, 16
  %v1117 = vrot.slane %v1115, 4
  %v1118 = vshll.u32 %v104, 16
  %v1120 = vrot.slane %v1118, 5
  %v1121 = vor.u32 %v1117, %v1120
  %v1122 = vrot.slane %v1121, 4
  %v1124 = vshll.u32 %v105, 16
  %v1126 = vrot.slane %v1124, 5
  %v1127 = vsel %vm417, %v1122, %v1126
  %v1128 = vshrl.u32 %v105, 16
  %v1130 = vrot.slane %v1128, 4
  %v1131 = vor.u32 %v1130, %v1126
  %v1132 = vrot.slane %v1131, 4
  %v1134 = vshll.u32 %v106, 16
  %v1136 = vrot.slane %v1134, 5
  %v1137 = vsel %vm417, %v1132, %v1136
  %v1139 = vshrl.u32 %v107, 16
  %v1141 = vrot.slane %v1139, 4
  %v1142 = vshll.u32 %v107, 16
  %v1144 = vrot.slane %v1142, 5
  %v1145 = vor.u32 %v1141, %v1144
  %v1146 = vrot.slane %v1145, 4
  %v1148 = vshll.u32 %v108, 16
  %v1150 = vrot.slane %v1148, 5
  %v1151 = vsel %vm417, %v1146, %v1150
  %v1152 = vshrl.u32 %v108, 16
  %v1154 = vrot.slane %v1152, 4
  %v1155 = vor.u32 %v1154, %v1150
  %v1156 = vrot.slane %v1155, 4
  %v1158 = vshll.u32 %v109, 16
  %v1160 = vrot.slane %v1158, 5
  %v1161 = vsel %vm417, %v1156, %v1160
  %v1163 = vshrl.u32 %v110, 16
  %v1165 = vrot.slane %v1163, 4
  %v1166 = vshll.u32 %v110, 16
  %v1168 = vrot.slane %v1166, 5
  %v1169 = vor.u32 %v1165, %v1168
  %v1170 = vrot.slane %v1169, 4
  %v1172 = vshll.u32 %v111, 16
  %v1174 = vrot.slane %v1172, 5
  %v1175 = vsel %vm417, %v1170, %v1174
  %v1176 = vshrl.u32 %v111, 16
  %v1178 = vrot.slane %v1176, 4
  %v1179 = vor.u32 %v1178, %v1174
  %v1180 = vrot.slane %v1179, 4
  %v1182 = vshll.u32 %v112, 16
  %v1184 = vrot.slane %v1182, 5
  %v1185 = vsel %vm417, %v1180, %v1184
  %v1187 = vshrl.u32 %v113, 16
  %v1189 = vrot.slane %v1187, 4
  %v1190 = vshll.u32 %v113, 16
  %v1192 = vrot.slane %v1190, 5
  %v1193 = vor.u32 %v1189, %v1192
  %v1194 = vrot.slane %v1193, 4
  %v1196 = vshll.u32 %v114, 16
  %v1198 = vrot.slane %v1196, 5
  %v1199 = vsel %vm417, %v1194, %v1198
  %v1200 = vshrl.u32 %v114, 16
  %v1202 = vrot.slane %v1200, 4
  %v1203 = vor.u32 %v1202, %v1198
  %v1204 = vrot.slane %v1203, 4
  %v1206 = vshll.u32 %v115, 16
  %v1208 = vrot.slane %v1206, 5
  %v1209 = vsel %vm417, %v1204, %v1208
  %v1211 = vshrl.u32 %v116, 16
  %v1213 = vrot.slane %v1211, 4
  %v1214 = vshll.u32 %v116, 16
  %v1216 = vrot.slane %v1214, 5
  %v1217 = vor.u32 %v1213, %v1216
  %v1218 = vrot.slane %v1217, 4
  %v1220 = vshll.u32 %v117, 16
  %v1222 = vrot.slane %v1220, 5
  %v1223 = vsel %vm417, %v1218, %v1222
  %v1224 = vshrl.u32 %v117, 16
  %v1226 = vrot.slane %v1224, 4
  %v1227 = vor.u32 %v1226, %v1222
  %v1228 = vrot.slane %v1227, 4
  %v1230 = vshll.u32 %v118, 16
  %v1232 = vrot.slane %v1230, 5
  %v1233 = vsel %vm417, %v1228, %v1232
  %v1302 = vmax.bf16 %v347, %v431
  %v1303 = vmax.bf16 %v348, %v441
  %v1304 = vmax.bf16 %v349, %v455
  %v1305 = vmax.bf16 %v350, %v465
  %v1306 = vmax.bf16 %v351, %v479
  %v1307 = vmax.bf16 %v352, %v489
  %v1308 = vmax.bf16 %v353, %v503
  %v1309 = vmax.bf16 %v354, %v513
  %v1310 = vmax.bf16 %v355, %v527
  %v1311 = vmax.bf16 %v356, %v537
  %v1312 = vmax.bf16 %v357, %v551
  %v1313 = vmax.bf16 %v358, %v561
  %v1314 = vmax.bf16 %v359, %v575
  %v1315 = vmax.bf16 %v360, %v585
  %v1316 = vmax.bf16 %v361, %v599
  %v1317 = vmax.bf16 %v362, %v609
  %v1318 = vmax.bf16 %v363, %v623
  %v1319 = vmax.bf16 %v364, %v633
  %v1320 = vmax.bf16 %v365, %v647
  %v1321 = vmax.bf16 %v366, %v657
  %v1322 = vmax.bf16 %v367, %v671
  %v1323 = vmax.bf16 %v368, %v681
  %v1324 = vmax.bf16 %v369, %v695
  %v1325 = vmax.bf16 %v370, %v705
  %v1326 = vmax.bf16 %v371, %v719
  %v1327 = vmax.bf16 %v372, %v729
  %v1328 = vmax.bf16 %v373, %v743
  %v1329 = vmax.bf16 %v374, %v753
  %v1330 = vmax.bf16 %v375, %v767
  %v1331 = vmax.bf16 %v376, %v777
  %v1332 = vmax.bf16 %v377, %v791
  %v1333 = vmax.bf16 %v378, %v801
  %v1334 = vmax.bf16 %v379, %v815
  %v1335 = vmax.bf16 %v380, %v825
  %v1336 = vmax.bf16 %v381, %v839
  %v1337 = vmax.bf16 %v382, %v849
  %v1338 = vmax.bf16 %v383, %v863
  %v1339 = vmax.bf16 %v384, %v873
  %v1340 = vmax.bf16 %v385, %v887
  %v1341 = vmax.bf16 %v386, %v897
  %v1342 = vmax.bf16 %v387, %v911
  %v1343 = vmax.bf16 %v388, %v921
  %v1344 = vmax.bf16 %v389, %v935
  %v1345 = vmax.bf16 %v390, %v945
  %v1346 = vmax.bf16 %v391, %v959
  %v1347 = vmax.bf16 %v392, %v969
  %v1348 = vmax.bf16 %v393, %v983
  %v1349 = vmax.bf16 %v394, %v993
  %v1350 = vmax.bf16 %v395, %v1007
  %v1351 = vmax.bf16 %v396, %v1017
  %v1352 = vmax.bf16 %v397, %v1031
  %v1353 = vmax.bf16 %v398, %v1041
  %v1354 = vmax.bf16 %v399, %v1055
  %v1355 = vmax.bf16 %v400, %v1065
  %v1356 = vmax.bf16 %v401, %v1079
  %v1357 = vmax.bf16 %v402, %v1089
  %v1358 = vmax.bf16 %v403, %v1103
  %v1359 = vmax.bf16 %v404, %v1113
  %v1360 = vmax.bf16 %v405, %v1127
  %v1361 = vmax.bf16 %v406, %v1137
  %v1362 = vmax.bf16 %v407, %v1151
  %v1363 = vmax.bf16 %v408, %v1161
  %v1364 = vmax.bf16 %v409, %v1175
  %v1365 = vmax.bf16 %v410, %v1185
  %v1366 = vmax.bf16 %v411, %v1199
  %v1367 = vmax.bf16 %v412, %v1209
  %v1368 = vmax.bf16 %v413, %v1223
  %v1369 = vmax.bf16 %v414, %v1233
  %v1370 = vmax.bf16 %v187, %v283
  %v1371 = vmax.bf16 %v188, %v284
  %v1372 = vmax.bf16 %v190, %v285
  %v1373 = vmax.bf16 %v191, %v286
  %v1374 = vmax.bf16 %v193, %v287
  %v1375 = vmax.bf16 %v194, %v288
  %v1376 = vmax.bf16 %v196, %v289
  %v1377 = vmax.bf16 %v197, %v290
  %v1378 = vmax.bf16 %v199, %v291
  %v1379 = vmax.bf16 %v200, %v292
  %v1380 = vmax.bf16 %v202, %v293
  %v1381 = vmax.bf16 %v203, %v294
  %v1382 = vmax.bf16 %v205, %v295
  %v1383 = vmax.bf16 %v206, %v296
  %v1384 = vmax.bf16 %v208, %v297
  %v1385 = vmax.bf16 %v209, %v298
  %v1386 = vmax.bf16 %v211, %v299
  %v1387 = vmax.bf16 %v212, %v300
  %v1388 = vmax.bf16 %v214, %v301
  %v1389 = vmax.bf16 %v215, %v302
  %v1390 = vmax.bf16 %v217, %v303
  %v1391 = vmax.bf16 %v218, %v304
  %v1392 = vmax.bf16 %v220, %v305
  %v1393 = vmax.bf16 %v221, %v306
  %v1394 = vmax.bf16 %v223, %v307
  %v1395 = vmax.bf16 %v224, %v308
  %v1396 = vmax.bf16 %v226, %v309
  %v1397 = vmax.bf16 %v227, %v310
  %v1398 = vmax.bf16 %v229, %v311
  %v1399 = vmax.bf16 %v230, %v312
  %v1400 = vmax.bf16 %v232, %v313
  %v1401 = vmax.bf16 %v233, %v314
  %v1402 = vmax.bf16 %v235, %v315
  %v1403 = vmax.bf16 %v236, %v316
  %v1404 = vmax.bf16 %v238, %v317
  %v1405 = vmax.bf16 %v239, %v318
  %v1406 = vmax.bf16 %v241, %v319
  %v1407 = vmax.bf16 %v242, %v320
  %v1408 = vmax.bf16 %v244, %v321
  %v1409 = vmax.bf16 %v245, %v322
  %v1410 = vmax.bf16 %v247, %v323
  %v1411 = vmax.bf16 %v248, %v324
  %v1412 = vmax.bf16 %v250, %v325
  %v1413 = vmax.bf16 %v251, %v326
  %v1414 = vmax.bf16 %v253, %v327
  %v1415 = vmax.bf16 %v254, %v328
  %v1416 = vmax.bf16 %v256, %v329
  %v1417 = vmax.bf16 %v257, %v330
  %v1418 = vmax.bf16 %v259, %v331
  %v1419 = vmax.bf16 %v260, %v332
  %v1420 = vmax.bf16 %v262, %v333
  %v1421 = vmax.bf16 %v263, %v334
  %v1422 = vmax.bf16 %v265, %v335
  %v1423 = vmax.bf16 %v266, %v336
  %v1424 = vmax.bf16 %v268, %v337
  %v1425 = vmax.bf16 %v269, %v338
  %v1426 = vmax.bf16 %v271, %v339
  %v1427 = vmax.bf16 %v272, %v340
  %v1428 = vmax.bf16 %v274, %v341
  %v1429 = vmax.bf16 %v275, %v342
  %v1430 = vmax.bf16 %v277, %v343
  %v1431 = vmax.bf16 %v278, %v344
  %v1432 = vmax.bf16 %v280, %v345
  %v1433 = vmax.bf16 %v281, %v346
  %v1435 = vshrl.u32 %v187, 16
  %v1437 = vrot.slane %v1435, 4
  %v1438 = vshll.u32 %v187, 16
  %v1440 = vrot.slane %v1438, 5
  %v1441 = vor.u32 %v1437, %v1440
  %v1442 = vrot.slane %v1441, 4
  %v1444 = vshll.u32 %v188, 16
  %v1446 = vrot.slane %v1444, 5
  %v1447 = vsel %vm417, %v1442, %v1446
  %v1448 = vshrl.u32 %v188, 16
  %v1450 = vrot.slane %v1448, 4
  %v1451 = vor.u32 %v1450, %v1446
  %v1452 = vrot.slane %v1451, 4
  %v1454 = vshll.u32 %v189, 16
  %v1456 = vrot.slane %v1454, 5
  %v1457 = vsel %vm417, %v1452, %v1456
  %v1459 = vshrl.u32 %v190, 16
  %v1461 = vrot.slane %v1459, 4
  %v1462 = vshll.u32 %v190, 16
  %v1464 = vrot.slane %v1462, 5
  %v1465 = vor.u32 %v1461, %v1464
  %v1466 = vrot.slane %v1465, 4
  %v1468 = vshll.u32 %v191, 16
  %v1470 = vrot.slane %v1468, 5
  %v1471 = vsel %vm417, %v1466, %v1470
  %v1472 = vshrl.u32 %v191, 16
  %v1474 = vrot.slane %v1472, 4
  %v1475 = vor.u32 %v1474, %v1470
  %v1476 = vrot.slane %v1475, 4
  %v1478 = vshll.u32 %v192, 16
  %v1480 = vrot.slane %v1478, 5
  %v1481 = vsel %vm417, %v1476, %v1480
  %v1483 = vshrl.u32 %v193, 16
  %v1485 = vrot.slane %v1483, 4
  %v1486 = vshll.u32 %v193, 16
  %v1488 = vrot.slane %v1486, 5
  %v1489 = vor.u32 %v1485, %v1488
  %v1490 = vrot.slane %v1489, 4
  %v1492 = vshll.u32 %v194, 16
  %v1494 = vrot.slane %v1492, 5
  %v1495 = vsel %vm417, %v1490, %v1494
  %v1496 = vshrl.u32 %v194, 16
  %v1498 = vrot.slane %v1496, 4
  %v1499 = vor.u32 %v1498, %v1494
  %v1500 = vrot.slane %v1499, 4
  %v1502 = vshll.u32 %v195, 16
  %v1504 = vrot.slane %v1502, 5
  %v1505 = vsel %vm417, %v1500, %v1504
  %v1507 = vshrl.u32 %v196, 16
  %v1509 = vrot.slane %v1507, 4
  %v1510 = vshll.u32 %v196, 16
  %v1512 = vrot.slane %v1510, 5
  %v1513 = vor.u32 %v1509, %v1512
  %v1514 = vrot.slane %v1513, 4
  %v1516 = vshll.u32 %v197, 16
  %v1518 = vrot.slane %v1516, 5
  %v1519 = vsel %vm417, %v1514, %v1518
  %v1520 = vshrl.u32 %v197, 16
  %v1522 = vrot.slane %v1520, 4
  %v1523 = vor.u32 %v1522, %v1518
  %v1524 = vrot.slane %v1523, 4
  %v1526 = vshll.u32 %v198, 16
  %v1528 = vrot.slane %v1526, 5
  %v1529 = vsel %vm417, %v1524, %v1528
  %v1531 = vshrl.u32 %v199, 16
  %v1533 = vrot.slane %v1531, 4
  %v1534 = vshll.u32 %v199, 16
  %v1536 = vrot.slane %v1534, 5
  %v1537 = vor.u32 %v1533, %v1536
  %v1538 = vrot.slane %v1537, 4
  %v1540 = vshll.u32 %v200, 16
  %v1542 = vrot.slane %v1540, 5
  %v1543 = vsel %vm417, %v1538, %v1542
  %v1544 = vshrl.u32 %v200, 16
  %v1546 = vrot.slane %v1544, 4
  %v1547 = vor.u32 %v1546, %v1542
  %v1548 = vrot.slane %v1547, 4
  %v1550 = vshll.u32 %v201, 16
  %v1552 = vrot.slane %v1550, 5
  %v1553 = vsel %vm417, %v1548, %v1552
  %v1555 = vshrl.u32 %v202, 16
  %v1557 = vrot.slane %v1555, 4
  %v1558 = vshll.u32 %v202, 16
  %v1560 = vrot.slane %v1558, 5
  %v1561 = vor.u32 %v1557, %v1560
  %v1562 = vrot.slane %v1561, 4
  %v1564 = vshll.u32 %v203, 16
  %v1566 = vrot.slane %v1564, 5
  %v1567 = vsel %vm417, %v1562, %v1566
  %v1568 = vshrl.u32 %v203, 16
  %v1570 = vrot.slane %v1568, 4
  %v1571 = vor.u32 %v1570, %v1566
  %v1572 = vrot.slane %v1571, 4
  %v1574 = vshll.u32 %v204, 16
  %v1576 = vrot.slane %v1574, 5
  %v1577 = vsel %vm417, %v1572, %v1576
  %v1579 = vshrl.u32 %v205, 16
  %v1581 = vrot.slane %v1579, 4
  %v1582 = vshll.u32 %v205, 16
  %v1584 = vrot.slane %v1582, 5
  %v1585 = vor.u32 %v1581, %v1584
  %v1586 = vrot.slane %v1585, 4
  %v1588 = vshll.u32 %v206, 16
  %v1590 = vrot.slane %v1588, 5
  %v1591 = vsel %vm417, %v1586, %v1590
  %v1592 = vshrl.u32 %v206, 16
  %v1594 = vrot.slane %v1592, 4
  %v1595 = vor.u32 %v1594, %v1590
  %v1596 = vrot.slane %v1595, 4
  %v1598 = vshll.u32 %v207, 16
  %v1600 = vrot.slane %v1598, 5
  %v1601 = vsel %vm417, %v1596, %v1600
  %v1603 = vshrl.u32 %v208, 16
  %v1605 = vrot.slane %v1603, 4
  %v1606 = vshll.u32 %v208, 16
  %v1608 = vrot.slane %v1606, 5
  %v1609 = vor.u32 %v1605, %v1608
  %v1610 = vrot.slane %v1609, 4
  %v1612 = vshll.u32 %v209, 16
  %v1614 = vrot.slane %v1612, 5
  %v1615 = vsel %vm417, %v1610, %v1614
  %v1616 = vshrl.u32 %v209, 16
  %v1618 = vrot.slane %v1616, 4
  %v1619 = vor.u32 %v1618, %v1614
  %v1620 = vrot.slane %v1619, 4
  %v1622 = vshll.u32 %v210, 16
  %v1624 = vrot.slane %v1622, 5
  %v1625 = vsel %vm417, %v1620, %v1624
  %v1627 = vshrl.u32 %v211, 16
  %v1629 = vrot.slane %v1627, 4
  %v1630 = vshll.u32 %v211, 16
  %v1632 = vrot.slane %v1630, 5
  %v1633 = vor.u32 %v1629, %v1632
  %v1634 = vrot.slane %v1633, 4
  %v1636 = vshll.u32 %v212, 16
  %v1638 = vrot.slane %v1636, 5
  %v1639 = vsel %vm417, %v1634, %v1638
  %v1640 = vshrl.u32 %v212, 16
  %v1642 = vrot.slane %v1640, 4
  %v1643 = vor.u32 %v1642, %v1638
  %v1644 = vrot.slane %v1643, 4
  %v1646 = vshll.u32 %v213, 16
  %v1648 = vrot.slane %v1646, 5
  %v1649 = vsel %vm417, %v1644, %v1648
  %v1651 = vshrl.u32 %v214, 16
  %v1653 = vrot.slane %v1651, 4
  %v1654 = vshll.u32 %v214, 16
  %v1656 = vrot.slane %v1654, 5
  %v1657 = vor.u32 %v1653, %v1656
  %v1658 = vrot.slane %v1657, 4
  %v1660 = vshll.u32 %v215, 16
  %v1662 = vrot.slane %v1660, 5
  %v1663 = vsel %vm417, %v1658, %v1662
  %v1664 = vshrl.u32 %v215, 16
  %v1666 = vrot.slane %v1664, 4
  %v1667 = vor.u32 %v1666, %v1662
  %v1668 = vrot.slane %v1667, 4
  %v1670 = vshll.u32 %v216, 16
  %v1672 = vrot.slane %v1670, 5
  %v1673 = vsel %vm417, %v1668, %v1672
  %v1675 = vshrl.u32 %v217, 16
  %v1677 = vrot.slane %v1675, 4
  %v1678 = vshll.u32 %v217, 16
  %v1680 = vrot.slane %v1678, 5
  %v1681 = vor.u32 %v1677, %v1680
  %v1682 = vrot.slane %v1681, 4
  %v1684 = vshll.u32 %v218, 16
  %v1686 = vrot.slane %v1684, 5
  %v1687 = vsel %vm417, %v1682, %v1686
  %v1688 = vshrl.u32 %v218, 16
  %v1690 = vrot.slane %v1688, 4
  %v1691 = vor.u32 %v1690, %v1686
  %v1692 = vrot.slane %v1691, 4
  %v1694 = vshll.u32 %v219, 16
  %v1696 = vrot.slane %v1694, 5
  %v1697 = vsel %vm417, %v1692, %v1696
  %v1699 = vshrl.u32 %v220, 16
  %v1701 = vrot.slane %v1699, 4
  %v1702 = vshll.u32 %v220, 16
  %v1704 = vrot.slane %v1702, 5
  %v1705 = vor.u32 %v1701, %v1704
  %v1706 = vrot.slane %v1705, 4
  %v1708 = vshll.u32 %v221, 16
  %v1710 = vrot.slane %v1708, 5
  %v1711 = vsel %vm417, %v1706, %v1710
  %v1712 = vshrl.u32 %v221, 16
  %v1714 = vrot.slane %v1712, 4
  %v1715 = vor.u32 %v1714, %v1710
  %v1716 = vrot.slane %v1715, 4
  %v1718 = vshll.u32 %v222, 16
  %v1720 = vrot.slane %v1718, 5
  %v1721 = vsel %vm417, %v1716, %v1720
  %v1723 = vshrl.u32 %v223, 16
  %v1725 = vrot.slane %v1723, 4
  %v1726 = vshll.u32 %v223, 16
  %v1728 = vrot.slane %v1726, 5
  %v1729 = vor.u32 %v1725, %v1728
  %v1730 = vrot.slane %v1729, 4
  %v1732 = vshll.u32 %v224, 16
  %v1734 = vrot.slane %v1732, 5
  %v1735 = vsel %vm417, %v1730, %v1734
  %v1736 = vshrl.u32 %v224, 16
  %v1738 = vrot.slane %v1736, 4
  %v1739 = vor.u32 %v1738, %v1734
  %v1740 = vrot.slane %v1739, 4
  %v1742 = vshll.u32 %v225, 16
  %v1744 = vrot.slane %v1742, 5
  %v1745 = vsel %vm417, %v1740, %v1744
  %v1747 = vshrl.u32 %v226, 16
  %v1749 = vrot.slane %v1747, 4
  %v1750 = vshll.u32 %v226, 16
  %v1752 = vrot.slane %v1750, 5
  %v1753 = vor.u32 %v1749, %v1752
  %v1754 = vrot.slane %v1753, 4
  %v1756 = vshll.u32 %v227, 16
  %v1758 = vrot.slane %v1756, 5
  %v1759 = vsel %vm417, %v1754, %v1758
  %v1760 = vshrl.u32 %v227, 16
  %v1762 = vrot.slane %v1760, 4
  %v1763 = vor.u32 %v1762, %v1758
  %v1764 = vrot.slane %v1763, 4
  %v1766 = vshll.u32 %v228, 16
  %v1768 = vrot.slane %v1766, 5
  %v1769 = vsel %vm417, %v1764, %v1768
  %v1771 = vshrl.u32 %v229, 16
  %v1773 = vrot.slane %v1771, 4
  %v1774 = vshll.u32 %v229, 16
  %v1776 = vrot.slane %v1774, 5
  %v1777 = vor.u32 %v1773, %v1776
  %v1778 = vrot.slane %v1777, 4
  %v1780 = vshll.u32 %v230, 16
  %v1782 = vrot.slane %v1780, 5
  %v1783 = vsel %vm417, %v1778, %v1782
  %v1784 = vshrl.u32 %v230, 16
  %v1786 = vrot.slane %v1784, 4
  %v1787 = vor.u32 %v1786, %v1782
  %v1788 = vrot.slane %v1787, 4
  %v1790 = vshll.u32 %v231, 16
  %v1792 = vrot.slane %v1790, 5
  %v1793 = vsel %vm417, %v1788, %v1792
  %v1795 = vshrl.u32 %v232, 16
  %v1797 = vrot.slane %v1795, 4
  %v1798 = vshll.u32 %v232, 16
  %v1800 = vrot.slane %v1798, 5
  %v1801 = vor.u32 %v1797, %v1800
  %v1802 = vrot.slane %v1801, 4
  %v1804 = vshll.u32 %v233, 16
  %v1806 = vrot.slane %v1804, 5
  %v1807 = vsel %vm417, %v1802, %v1806
  %v1808 = vshrl.u32 %v233, 16
  %v1810 = vrot.slane %v1808, 4
  %v1811 = vor.u32 %v1810, %v1806
  %v1812 = vrot.slane %v1811, 4
  %v1814 = vshll.u32 %v234, 16
  %v1816 = vrot.slane %v1814, 5
  %v1817 = vsel %vm417, %v1812, %v1816
  %v1819 = vshrl.u32 %v235, 16
  %v1821 = vrot.slane %v1819, 4
  %v1822 = vshll.u32 %v235, 16
  %v1824 = vrot.slane %v1822, 5
  %v1825 = vor.u32 %v1821, %v1824
  %v1826 = vrot.slane %v1825, 4
  %v1828 = vshll.u32 %v236, 16
  %v1830 = vrot.slane %v1828, 5
  %v1831 = vsel %vm417, %v1826, %v1830
  %v1832 = vshrl.u32 %v236, 16
  %v1834 = vrot.slane %v1832, 4
  %v1835 = vor.u32 %v1834, %v1830
  %v1836 = vrot.slane %v1835, 4
  %v1838 = vshll.u32 %v237, 16
  %v1840 = vrot.slane %v1838, 5
  %v1841 = vsel %vm417, %v1836, %v1840
  %v1843 = vshrl.u32 %v238, 16
  %v1845 = vrot.slane %v1843, 4
  %v1846 = vshll.u32 %v238, 16
  %v1848 = vrot.slane %v1846, 5
  %v1849 = vor.u32 %v1845, %v1848
  %v1850 = vrot.slane %v1849, 4
  %v1852 = vshll.u32 %v239, 16
  %v1854 = vrot.slane %v1852, 5
  %v1855 = vsel %vm417, %v1850, %v1854
  %v1856 = vshrl.u32 %v239, 16
  %v1858 = vrot.slane %v1856, 4
  %v1859 = vor.u32 %v1858, %v1854
  %v1860 = vrot.slane %v1859, 4
  %v1862 = vshll.u32 %v240, 16
  %v1864 = vrot.slane %v1862, 5
  %v1865 = vsel %vm417, %v1860, %v1864
  %v1867 = vshrl.u32 %v241, 16
  %v1869 = vrot.slane %v1867, 4
  %v1870 = vshll.u32 %v241, 16
  %v1872 = vrot.slane %v1870, 5
  %v1873 = vor.u32 %v1869, %v1872
  %v1874 = vrot.slane %v1873, 4
  %v1876 = vshll.u32 %v242, 16
  %v1878 = vrot.slane %v1876, 5
  %v1879 = vsel %vm417, %v1874, %v1878
  %v1880 = vshrl.u32 %v242, 16
  %v1882 = vrot.slane %v1880, 4
  %v1883 = vor.u32 %v1882, %v1878
  %v1884 = vrot.slane %v1883, 4
  %v1886 = vshll.u32 %v243, 16
  %v1888 = vrot.slane %v1886, 5
  %v1889 = vsel %vm417, %v1884, %v1888
  %v1891 = vshrl.u32 %v244, 16
  %v1893 = vrot.slane %v1891, 4
  %v1894 = vshll.u32 %v244, 16
  %v1896 = vrot.slane %v1894, 5
  %v1897 = vor.u32 %v1893, %v1896
  %v1898 = vrot.slane %v1897, 4
  %v1900 = vshll.u32 %v245, 16
  %v1902 = vrot.slane %v1900, 5
  %v1903 = vsel %vm417, %v1898, %v1902
  %v1904 = vshrl.u32 %v245, 16
  %v1906 = vrot.slane %v1904, 4
  %v1907 = vor.u32 %v1906, %v1902
  %v1908 = vrot.slane %v1907, 4
  %v1910 = vshll.u32 %v246, 16
  %v1912 = vrot.slane %v1910, 5
  %v1913 = vsel %vm417, %v1908, %v1912
  %v1915 = vshrl.u32 %v247, 16
  %v1917 = vrot.slane %v1915, 4
  %v1918 = vshll.u32 %v247, 16
  %v1920 = vrot.slane %v1918, 5
  %v1921 = vor.u32 %v1917, %v1920
  %v1922 = vrot.slane %v1921, 4
  %v1924 = vshll.u32 %v248, 16
  %v1926 = vrot.slane %v1924, 5
  %v1927 = vsel %vm417, %v1922, %v1926
  %v1928 = vshrl.u32 %v248, 16
  %v1930 = vrot.slane %v1928, 4
  %v1931 = vor.u32 %v1930, %v1926
  %v1932 = vrot.slane %v1931, 4
  %v1934 = vshll.u32 %v249, 16
  %v1936 = vrot.slane %v1934, 5
  %v1937 = vsel %vm417, %v1932, %v1936
  %v1939 = vshrl.u32 %v250, 16
  %v1941 = vrot.slane %v1939, 4
  %v1942 = vshll.u32 %v250, 16
  %v1944 = vrot.slane %v1942, 5
  %v1945 = vor.u32 %v1941, %v1944
  %v1946 = vrot.slane %v1945, 4
  %v1948 = vshll.u32 %v251, 16
  %v1950 = vrot.slane %v1948, 5
  %v1951 = vsel %vm417, %v1946, %v1950
  %v1952 = vshrl.u32 %v251, 16
  %v1954 = vrot.slane %v1952, 4
  %v1955 = vor.u32 %v1954, %v1950
  %v1956 = vrot.slane %v1955, 4
  %v1958 = vshll.u32 %v252, 16
  %v1960 = vrot.slane %v1958, 5
  %v1961 = vsel %vm417, %v1956, %v1960
  %v1963 = vshrl.u32 %v253, 16
  %v1965 = vrot.slane %v1963, 4
  %v1966 = vshll.u32 %v253, 16
  %v1968 = vrot.slane %v1966, 5
  %v1969 = vor.u32 %v1965, %v1968
  %v1970 = vrot.slane %v1969, 4
  %v1972 = vshll.u32 %v254, 16
  %v1974 = vrot.slane %v1972, 5
  %v1975 = vsel %vm417, %v1970, %v1974
  %v1976 = vshrl.u32 %v254, 16
  %v1978 = vrot.slane %v1976, 4
  %v1979 = vor.u32 %v1978, %v1974
  %v1980 = vrot.slane %v1979, 4
  %v1982 = vshll.u32 %v255, 16
  %v1984 = vrot.slane %v1982, 5
  %v1985 = vsel %vm417, %v1980, %v1984
  %v1987 = vshrl.u32 %v256, 16
  %v1989 = vrot.slane %v1987, 4
  %v1990 = vshll.u32 %v256, 16
  %v1992 = vrot.slane %v1990, 5
  %v1993 = vor.u32 %v1989, %v1992
  %v1994 = vrot.slane %v1993, 4
  %v1996 = vshll.u32 %v257, 16
  %v1998 = vrot.slane %v1996, 5
  %v1999 = vsel %vm417, %v1994, %v1998
  %v2000 = vshrl.u32 %v257, 16
  %v2002 = vrot.slane %v2000, 4
  %v2003 = vor.u32 %v2002, %v1998
  %v2004 = vrot.slane %v2003, 4
  %v2006 = vshll.u32 %v258, 16
  %v2008 = vrot.slane %v2006, 5
  %v2009 = vsel %vm417, %v2004, %v2008
  %v2011 = vshrl.u32 %v259, 16
  %v2013 = vrot.slane %v2011, 4
  %v2014 = vshll.u32 %v259, 16
  %v2016 = vrot.slane %v2014, 5
  %v2017 = vor.u32 %v2013, %v2016
  %v2018 = vrot.slane %v2017, 4
  %v2020 = vshll.u32 %v260, 16
  %v2022 = vrot.slane %v2020, 5
  %v2023 = vsel %vm417, %v2018, %v2022
  %v2024 = vshrl.u32 %v260, 16
  %v2026 = vrot.slane %v2024, 4
  %v2027 = vor.u32 %v2026, %v2022
  %v2028 = vrot.slane %v2027, 4
  %v2030 = vshll.u32 %v261, 16
  %v2032 = vrot.slane %v2030, 5
  %v2033 = vsel %vm417, %v2028, %v2032
  %v2035 = vshrl.u32 %v262, 16
  %v2037 = vrot.slane %v2035, 4
  %v2038 = vshll.u32 %v262, 16
  %v2040 = vrot.slane %v2038, 5
  %v2041 = vor.u32 %v2037, %v2040
  %v2042 = vrot.slane %v2041, 4
  %v2044 = vshll.u32 %v263, 16
  %v2046 = vrot.slane %v2044, 5
  %v2047 = vsel %vm417, %v2042, %v2046
  %v2048 = vshrl.u32 %v263, 16
  %v2050 = vrot.slane %v2048, 4
  %v2051 = vor.u32 %v2050, %v2046
  %v2052 = vrot.slane %v2051, 4
  %v2054 = vshll.u32 %v264, 16
  %v2056 = vrot.slane %v2054, 5
  %v2057 = vsel %vm417, %v2052, %v2056
  %v2059 = vshrl.u32 %v265, 16
  %v2061 = vrot.slane %v2059, 4
  %v2062 = vshll.u32 %v265, 16
  %v2064 = vrot.slane %v2062, 5
  %v2065 = vor.u32 %v2061, %v2064
  %v2066 = vrot.slane %v2065, 4
  %v2068 = vshll.u32 %v266, 16
  %v2070 = vrot.slane %v2068, 5
  %v2071 = vsel %vm417, %v2066, %v2070
  %v2072 = vshrl.u32 %v266, 16
  %v2074 = vrot.slane %v2072, 4
  %v2075 = vor.u32 %v2074, %v2070
  %v2076 = vrot.slane %v2075, 4
  %v2078 = vshll.u32 %v267, 16
  %v2080 = vrot.slane %v2078, 5
  %v2081 = vsel %vm417, %v2076, %v2080
  %v2083 = vshrl.u32 %v268, 16
  %v2085 = vrot.slane %v2083, 4
  %v2086 = vshll.u32 %v268, 16
  %v2088 = vrot.slane %v2086, 5
  %v2089 = vor.u32 %v2085, %v2088
  %v2090 = vrot.slane %v2089, 4
  %v2092 = vshll.u32 %v269, 16
  %v2094 = vrot.slane %v2092, 5
  %v2095 = vsel %vm417, %v2090, %v2094
  %v2096 = vshrl.u32 %v269, 16
  %v2098 = vrot.slane %v2096, 4
  %v2099 = vor.u32 %v2098, %v2094
  %v2100 = vrot.slane %v2099, 4
  %v2102 = vshll.u32 %v270, 16
  %v2104 = vrot.slane %v2102, 5
  %v2105 = vsel %vm417, %v2100, %v2104
  %v2107 = vshrl.u32 %v271, 16
  %v2109 = vrot.slane %v2107, 4
  %v2110 = vshll.u32 %v271, 16
  %v2112 = vrot.slane %v2110, 5
  %v2113 = vor.u32 %v2109, %v2112
  %v2114 = vrot.slane %v2113, 4
  %v2116 = vshll.u32 %v272, 16
  %v2118 = vrot.slane %v2116, 5
  %v2119 = vsel %vm417, %v2114, %v2118
  %v2120 = vshrl.u32 %v272, 16
  %v2122 = vrot.slane %v2120, 4
  %v2123 = vor.u32 %v2122, %v2118
  %v2124 = vrot.slane %v2123, 4
  %v2126 = vshll.u32 %v273, 16
  %v2128 = vrot.slane %v2126, 5
  %v2129 = vsel %vm417, %v2124, %v2128
  %v2131 = vshrl.u32 %v274, 16
  %v2133 = vrot.slane %v2131, 4
  %v2134 = vshll.u32 %v274, 16
  %v2136 = vrot.slane %v2134, 5
  %v2137 = vor.u32 %v2133, %v2136
  %v2138 = vrot.slane %v2137, 4
  %v2140 = vshll.u32 %v275, 16
  %v2142 = vrot.slane %v2140, 5
  %v2143 = vsel %vm417, %v2138, %v2142
  %v2144 = vshrl.u32 %v275, 16
  %v2146 = vrot.slane %v2144, 4
  %v2147 = vor.u32 %v2146, %v2142
  %v2148 = vrot.slane %v2147, 4
  %v2150 = vshll.u32 %v276, 16
  %v2152 = vrot.slane %v2150, 5
  %v2153 = vsel %vm417, %v2148, %v2152
  %v2155 = vshrl.u32 %v277, 16
  %v2157 = vrot.slane %v2155, 4
  %v2158 = vshll.u32 %v277, 16
  %v2160 = vrot.slane %v2158, 5
  %v2161 = vor.u32 %v2157, %v2160
  %v2162 = vrot.slane %v2161, 4
  %v2164 = vshll.u32 %v278, 16
  %v2166 = vrot.slane %v2164, 5
  %v2167 = vsel %vm417, %v2162, %v2166
  %v2168 = vshrl.u32 %v278, 16
  %v2170 = vrot.slane %v2168, 4
  %v2171 = vor.u32 %v2170, %v2166
  %v2172 = vrot.slane %v2171, 4
  %v2174 = vshll.u32 %v279, 16
  %v2176 = vrot.slane %v2174, 5
  %v2177 = vsel %vm417, %v2172, %v2176
  %v2179 = vshrl.u32 %v280, 16
  %v2181 = vrot.slane %v2179, 4
  %v2182 = vshll.u32 %v280, 16
  %v2184 = vrot.slane %v2182, 5
  %v2185 = vor.u32 %v2181, %v2184
  %v2186 = vrot.slane %v2185, 4
  %v2188 = vshll.u32 %v281, 16
  %v2190 = vrot.slane %v2188, 5
  %v2191 = vsel %vm417, %v2186, %v2190
  %v2192 = vshrl.u32 %v281, 16
  %v2194 = vrot.slane %v2192, 4
  %v2195 = vor.u32 %v2194, %v2190
  %v2196 = vrot.slane %v2195, 4
  %v2198 = vshll.u32 %v282, 16
  %v2200 = vrot.slane %v2198, 5
  %v2201 = vsel %vm417, %v2196, %v2200
  %v2266 = vmax.bf16 %v1370, %v1447
  %v2267 = vmax.bf16 %v1371, %v1457
  %v2268 = vmax.bf16 %v1372, %v1471
  %v2269 = vmax.bf16 %v1373, %v1481
  %v2270 = vmax.bf16 %v1374, %v1495
  %v2271 = vmax.bf16 %v1375, %v1505
  %v2272 = vmax.bf16 %v1376, %v1519
  %v2273 = vmax.bf16 %v1377, %v1529
  %v2274 = vmax.bf16 %v1378, %v1543
  %v2275 = vmax.bf16 %v1379, %v1553
  %v2276 = vmax.bf16 %v1380, %v1567
  %v2277 = vmax.bf16 %v1381, %v1577
  %v2278 = vmax.bf16 %v1382, %v1591
  %v2279 = vmax.bf16 %v1383, %v1601
  %v2280 = vmax.bf16 %v1384, %v1615
  %v2281 = vmax.bf16 %v1385, %v1625
  %v2282 = vmax.bf16 %v1386, %v1639
  %v2283 = vmax.bf16 %v1387, %v1649
  %v2284 = vmax.bf16 %v1388, %v1663
  %v2285 = vmax.bf16 %v1389, %v1673
  %v2286 = vmax.bf16 %v1390, %v1687
  %v2287 = vmax.bf16 %v1391, %v1697
  %v2288 = vmax.bf16 %v1392, %v1711
  %v2289 = vmax.bf16 %v1393, %v1721
  %v2290 = vmax.bf16 %v1394, %v1735
  %v2291 = vmax.bf16 %v1395, %v1745
  %v2292 = vmax.bf16 %v1396, %v1759
  %v2293 = vmax.bf16 %v1397, %v1769
  %v2294 = vmax.bf16 %v1398, %v1783
  %v2295 = vmax.bf16 %v1399, %v1793
  %v2296 = vmax.bf16 %v1400, %v1807
  %v2297 = vmax.bf16 %v1401, %v1817
  %v2298 = vmax.bf16 %v1402, %v1831
  %v2299 = vmax.bf16 %v1403, %v1841
  %v2300 = vmax.bf16 %v1404, %v1855
  %v2301 = vmax.bf16 %v1405, %v1865
  %v2302 = vmax.bf16 %v1406, %v1879
  %v2303 = vmax.bf16 %v1407, %v1889
  %v2304 = vmax.bf16 %v1408, %v1903
  %v2305 = vmax.bf16 %v1409, %v1913
  %v2306 = vmax.bf16 %v1410, %v1927
  %v2307 = vmax.bf16 %v1411, %v1937
  %v2308 = vmax.bf16 %v1412, %v1951
  %v2309 = vmax.bf16 %v1413, %v1961
  %v2310 = vmax.bf16 %v1414, %v1975
  %v2311 = vmax.bf16 %v1415, %v1985
  %v2312 = vmax.bf16 %v1416, %v1999
  %v2313 = vmax.bf16 %v1417, %v2009
  %v2314 = vmax.bf16 %v1418, %v2023
  %v2315 = vmax.bf16 %v1419, %v2033
  %v2316 = vmax.bf16 %v1420, %v2047
  %v2317 = vmax.bf16 %v1421, %v2057
  %v2318 = vmax.bf16 %v1422, %v2071
  %v2319 = vmax.bf16 %v1423, %v2081
  %v2320 = vmax.bf16 %v1424, %v2095
  %v2321 = vmax.bf16 %v1425, %v2105
  %v2322 = vmax.bf16 %v1426, %v2119
  %v2323 = vmax.bf16 %v1427, %v2129
  %v2324 = vmax.bf16 %v1428, %v2143
  %v2325 = vmax.bf16 %v1429, %v2153
  %v2326 = vmax.bf16 %v1430, %v2167
  %v2327 = vmax.bf16 %v1431, %v2177
  %v2328 = vmax.bf16 %v1432, %v2191
  %v2329 = vmax.bf16 %v1433, %v2201
  %v2330 = vmax.bf16 %v1302, %v2266
  %v2331 = vmax.bf16 %v1303, %v2267
  %v2332 = vmax.bf16 %v1304, %v2268
  %v2333 = vmax.bf16 %v1305, %v2269
  %v2334 = vmax.bf16 %v1306, %v2270
  %v2335 = vmax.bf16 %v1307, %v2271
  %v2336 = vmax.bf16 %v1308, %v2272
  %v2337 = vmax.bf16 %v1309, %v2273
  %v2338 = vmax.bf16 %v1310, %v2274
  %v2339 = vmax.bf16 %v1311, %v2275
  %v2340 = vmax.bf16 %v1312, %v2276
  %v2341 = vmax.bf16 %v1313, %v2277
  %v2342 = vmax.bf16 %v1314, %v2278
  %v2343 = vmax.bf16 %v1315, %v2279
  %v2344 = vmax.bf16 %v1316, %v2280
  %v2345 = vmax.bf16 %v1317, %v2281
  %v2346 = vmax.bf16 %v1318, %v2282
  %v2347 = vmax.bf16 %v1319, %v2283
  %v2348 = vmax.bf16 %v1320, %v2284
  %v2349 = vmax.bf16 %v1321, %v2285
  %v2350 = vmax.bf16 %v1322, %v2286
  %v2351 = vmax.bf16 %v1323, %v2287
  %v2352 = vmax.bf16 %v1324, %v2288
  %v2353 = vmax.bf16 %v1325, %v2289
  %v2354 = vmax.bf16 %v1326, %v2290
  %v2355 = vmax.bf16 %v1327, %v2291
  %v2356 = vmax.bf16 %v1328, %v2292
  %v2357 = vmax.bf16 %v1329, %v2293
  %v2358 = vmax.bf16 %v1330, %v2294
  %v2359 = vmax.bf16 %v1331, %v2295
  %v2360 = vmax.bf16 %v1332, %v2296
  %v2361 = vmax.bf16 %v1333, %v2297
  %v2362 = vmax.bf16 %v1336, %v2298
  %v2363 = vmax.bf16 %v1337, %v2299
  %v2364 = vmax.bf16 %v1338, %v2300
  %v2365 = vmax.bf16 %v1339, %v2301
  %v2366 = vmax.bf16 %v1340, %v2302
  %v2367 = vmax.bf16 %v1341, %v2303
  %v2368 = vmax.bf16 %v1342, %v2304
  %v2369 = vmax.bf16 %v1343, %v2305
  %v2370 = vmax.bf16 %v1344, %v2306
  %v2371 = vmax.bf16 %v1345, %v2307
  %v2372 = vmax.bf16 %v1346, %v2308
  %v2373 = vmax.bf16 %v1347, %v2309
  %v2374 = vmax.bf16 %v1348, %v2310
  %v2375 = vmax.bf16 %v1349, %v2311
  %v2376 = vmax.bf16 %v1350, %v2312
  %v2377 = vmax.bf16 %v1351, %v2313
  %v2378 = vmax.bf16 %v1352, %v2314
  %v2379 = vmax.bf16 %v1353, %v2315
  %v2380 = vmax.bf16 %v1354, %v2316
  %v2381 = vmax.bf16 %v1355, %v2317
  %v2382 = vmax.bf16 %v1356, %v2318
  %v2383 = vmax.bf16 %v1357, %v2319
  %v2384 = vmax.bf16 %v1358, %v2320
  %v2385 = vmax.bf16 %v1359, %v2321
  %v2386 = vmax.bf16 %v1360, %v2322
  %v2387 = vmax.bf16 %v1361, %v2323
  %v2388 = vmax.bf16 %v1362, %v2324
  %v2389 = vmax.bf16 %v1363, %v2325
  %v2390 = vmax.bf16 %v1364, %v2326
  %v2391 = vmax.bf16 %v1365, %v2327
  %v2392 = vmax.bf16 %v1366, %v2328
  %v2393 = vmax.bf16 %v1367, %v2329
  %v2394 = vmax.bf16 %v2330, %v1304
  %v2395 = vmax.bf16 %v2331, %v1305
  %v2396 = vmax.bf16 %v2332, %v1306
  %v2397 = vmax.bf16 %v2333, %v1307
  %v2398 = vmax.bf16 %v2334, %v1308
  %v2399 = vmax.bf16 %v2335, %v1309
  %v2400 = vmax.bf16 %v2336, %v1310
  %v2401 = vmax.bf16 %v2337, %v1311
  %v2402 = vmax.bf16 %v2338, %v1312
  %v2403 = vmax.bf16 %v2339, %v1313
  %v2404 = vmax.bf16 %v2340, %v1314
  %v2405 = vmax.bf16 %v2341, %v1315
  %v2406 = vmax.bf16 %v2342, %v1316
  %v2407 = vmax.bf16 %v2343, %v1317
  %v2408 = vmax.bf16 %v2344, %v1318
  %v2409 = vmax.bf16 %v2345, %v1319
  %v2410 = vmax.bf16 %v2346, %v1320
  %v2411 = vmax.bf16 %v2347, %v1321
  %v2412 = vmax.bf16 %v2348, %v1322
  %v2413 = vmax.bf16 %v2349, %v1323
  %v2414 = vmax.bf16 %v2350, %v1324
  %v2415 = vmax.bf16 %v2351, %v1325
  %v2416 = vmax.bf16 %v2352, %v1326
  %v2417 = vmax.bf16 %v2353, %v1327
  %v2418 = vmax.bf16 %v2354, %v1328
  %v2419 = vmax.bf16 %v2355, %v1329
  %v2420 = vmax.bf16 %v2356, %v1330
  %v2421 = vmax.bf16 %v2357, %v1331
  %v2422 = vmax.bf16 %v2358, %v1332
  %v2423 = vmax.bf16 %v2359, %v1333
  %v2424 = vmax.bf16 %v2360, %v1334
  %v2425 = vmax.bf16 %v2361, %v1335
  %v2426 = vmax.bf16 %v2362, %v1338
  %v2427 = vmax.bf16 %v2363, %v1339
  %v2428 = vmax.bf16 %v2364, %v1340
  %v2429 = vmax.bf16 %v2365, %v1341
  %v2430 = vmax.bf16 %v2366, %v1342
  %v2431 = vmax.bf16 %v2367, %v1343
  %v2432 = vmax.bf16 %v2368, %v1344
  %v2433 = vmax.bf16 %v2369, %v1345
  %v2434 = vmax.bf16 %v2370, %v1346
  %v2435 = vmax.bf16 %v2371, %v1347
  %v2436 = vmax.bf16 %v2372, %v1348
  %v2437 = vmax.bf16 %v2373, %v1349
  %v2438 = vmax.bf16 %v2374, %v1350
  %v2439 = vmax.bf16 %v2375, %v1351
  %v2440 = vmax.bf16 %v2376, %v1352
  %v2441 = vmax.bf16 %v2377, %v1353
  %v2442 = vmax.bf16 %v2378, %v1354
  %v2443 = vmax.bf16 %v2379, %v1355
  %v2444 = vmax.bf16 %v2380, %v1356
  %v2445 = vmax.bf16 %v2381, %v1357
  %v2446 = vmax.bf16 %v2382, %v1358
  %v2447 = vmax.bf16 %v2383, %v1359
  %v2448 = vmax.bf16 %v2384, %v1360
  %v2449 = vmax.bf16 %v2385, %v1361
  %v2450 = vmax.bf16 %v2386, %v1362
  %v2451 = vmax.bf16 %v2387, %v1363
  %v2452 = vmax.bf16 %v2388, %v1364
  %v2453 = vmax.bf16 %v2389, %v1365
  %v2454 = vmax.bf16 %v2390, %v1366
  %v2455 = vmax.bf16 %v2391, %v1367
  %v2456 = vmax.bf16 %v2392, %v1368
  %v2457 = vmax.bf16 %v2393, %v1369
  %2458 = vst [vmem:[%s4] sm:$0xf] %v2394
  %2459 = vst [vmem:[%s4 + $0x4] sm:$0xf] %v2395
  %2460 = vst [vmem:[%s4 + $0x8] sm:$0xf] %v2396
  %2461 = vst [vmem:[%s4 + $0xc] sm:$0xf] %v2397
  %2462 = vst [vmem:[%s4 + $0x10] sm:$0xf] %v2398
  %2463 = vst [vmem:[%s4 + $0x14] sm:$0xf] %v2399
  %2464 = vst [vmem:[%s4 + $0x18] sm:$0xf] %v2400
  %2465 = vst [vmem:[%s4 + $0x1c] sm:$0xf] %v2401
  %2466 = vst [vmem:[%s4 + $0x20] sm:$0xf] %v2402
  %2467 = vst [vmem:[%s4 + $0x24] sm:$0xf] %v2403
  %2468 = vst [vmem:[%s4 + $0x28] sm:$0xf] %v2404
  %2469 = vst [vmem:[%s4 + $0x2c] sm:$0xf] %v2405
  %2470 = vst [vmem:[%s4 + $0x30] sm:$0xf] %v2406
  %2471 = vst [vmem:[%s4 + $0x34] sm:$0xf] %v2407
  %2472 = vst [vmem:[%s4 + $0x38] sm:$0xf] %v2408
  %2473 = vst [vmem:[%s4 + $0x3c] sm:$0xf] %v2409
  %2474 = vst [vmem:[%s4 + $0x40] sm:$0xf] %v2410
  %2475 = vst [vmem:[%s4 + $0x44] sm:$0xf] %v2411
  %2476 = vst [vmem:[%s4 + $0x48] sm:$0xf] %v2412
  %2477 = vst [vmem:[%s4 + $0x4c] sm:$0xf] %v2413
  %2478 = vst [vmem:[%s4 + $0x50] sm:$0xf] %v2414
  %2479 = vst [vmem:[%s4 + $0x54] sm:$0xf] %v2415
  %2480 = vst [vmem:[%s4 + $0x58] sm:$0xf] %v2416
  %2481 = vst [vmem:[%s4 + $0x5c] sm:$0xf] %v2417
  %2482 = vst [vmem:[%s4 + $0x60] sm:$0xf] %v2418
  %2483 = vst [vmem:[%s4 + $0x64] sm:$0xf] %v2419
  %2484 = vst [vmem:[%s4 + $0x68] sm:$0xf] %v2420
  %2485 = vst [vmem:[%s4 + $0x6c] sm:$0xf] %v2421
  %2486 = vst [vmem:[%s4 + $0x70] sm:$0xf] %v2422
  %2487 = vst [vmem:[%s4 + $0x74] sm:$0xf] %v2423
  %2488 = vst [vmem:[%s4 + $0x78] sm:$0xf] %v2424
  %2489 = vst [vmem:[%s4 + $0x7c] sm:$0xf] %v2425
  %2490 = vst [vmem:[%s4 + $0x80] sm:$0xf] %v2426
  %2491 = vst [vmem:[%s4 + $0x84] sm:$0xf] %v2427
  %2492 = vst [vmem:[%s4 + $0x88] sm:$0xf] %v2428
  %2493 = vst [vmem:[%s4 + $0x8c] sm:$0xf] %v2429
  %2494 = vst [vmem:[%s4 + $0x90] sm:$0xf] %v2430
  %2495 = vst [vmem:[%s4 + $0x94] sm:$0xf] %v2431
  %2496 = vst [vmem:[%s4 + $0x98] sm:$0xf] %v2432
  %2497 = vst [vmem:[%s4 + $0x9c] sm:$0xf] %v2433
  %2498 = vst [vmem:[%s4 + $0xa0] sm:$0xf] %v2434
  %2499 = vst [vmem:[%s4 + $0xa4] sm:$0xf] %v2435
  %2500 = vst [vmem:[%s4 + $0xa8] sm:$0xf] %v2436
  %2501 = vst [vmem:[%s4 + $0xac] sm:$0xf] %v2437
  %2502 = vst [vmem:[%s4 + $0xb0] sm:$0xf] %v2438
  %2503 = vst [vmem:[%s4 + $0xb4] sm:$0xf] %v2439
  %2504 = vst [vmem:[%s4 + $0xb8] sm:$0xf] %v2440
  %2505 = vst [vmem:[%s4 + $0xbc] sm:$0xf] %v2441
  %2506 = vst [vmem:[%s4 + $0xc0] sm:$0xf] %v2442
  %2507 = vst [vmem:[%s4 + $0xc4] sm:$0xf] %v2443
  %2508 = vst [vmem:[%s4 + $0xc8] sm:$0xf] %v2444
  %2509 = vst [vmem:[%s4 + $0xcc] sm:$0xf] %v2445
  %2510 = vst [vmem:[%s4 + $0xd0] sm:$0xf] %v2446
  %2511 = vst [vmem:[%s4 + $0xd4] sm:$0xf] %v2447
  %2512 = vst [vmem:[%s4 + $0xd8] sm:$0xf] %v2448
  %2513 = vst [vmem:[%s4 + $0xdc] sm:$0xf] %v2449
  %2514 = vst [vmem:[%s4 + $0xe0] sm:$0xf] %v2450
  %2515 = vst [vmem:[%s4 + $0xe4] sm:$0xf] %v2451
  %2516 = vst [vmem:[%s4 + $0xe8] sm:$0xf] %v2452
  %2517 = vst [vmem:[%s4 + $0xec] sm:$0xf] %v2453
  %2518 = vst [vmem:[%s4 + $0xf0] sm:$0xf] %v2454
  %2519 = vst [vmem:[%s4 + $0xf4] sm:$0xf] %v2455
  %2520 = vst [vmem:[%s4 + $0xf8] sm:$0xf] %v2456
  %2521 = vst [vmem:[%s4 + $0xfc] sm:$0xf] %v2457
  // Predicated region
  $region18: #{_lambda_.12} parent=0 // pred_check
    _
  $region19: #{_lambda_.12} parent=0 // pred_check_branch
    %2523 = sbr.rel (0) target = $region21
  $region20: #{_lambda_.12} parent=0 // pred_region
    _
  $region21: #{_lambda_.12} parent=0 // pred_fallthru
    _
  // Predicated region
  $region22: #{_lambda_.12} parent=0 // pred_check
    _
  $region23: #{_lambda_.12} parent=0 // pred_check_branch
    %2525 = sbr.rel (0) target = $region25
  $region24: #{_lambda_.12} parent=0 // pred_region
    _
  $region25: #{_lambda_.12} parent=0 // pred_fallthru
    _

// kernel: _lambda_.14
$region0: #{_lambda_.14}
  #allocation0 [shape = 'u32[]', space=smem, size = 0x4, offset = 0x4, fixed_abs, tag = 'smem constant byte address 0x4 - core index']
  #allocation1 [shape = 'u32[144,128]{1,0:T(1,128)}', space=vmem, size = 0x12000, scoped, tag = 'internal scratch']
  %s0 = inlined_call_operand.vmem [shape: bf16[512,256], index: 0, kind: input, shape index: {}]
  %s1 = inlined_call_operand.vmem [shape: bf16[256,128], index: 1, kind: input, shape index: {}]
  %s2 = inlined_call_operand.vmem [shape: f32[1,128], index: 2, kind: input, shape index: {}]
  %s3 = inlined_call_operand.vmem [shape: bf16[512,128], index: 3, kind: input, shape index: {}]
  %s4 = inlined_call_operand.vmem [shape: bf16[512,128], index: 4, kind: output, shape index: {}]
  %s5 = sld [smem:[#allocation0]]
  $region26: #{_lambda_.14} parent=0
    _
  %s7 = ssub.s32 1, %s5
  %s8 = scalar_select 0, %s7, %s5
  // Predicated region
  $region2: #{_lambda_.14} parent=0 // pred_check
    _
  $region3: #{_lambda_.14} parent=0 // pred_check_branch
    %10 = sbr.rel (0) target = $region5
  $region4: #{_lambda_.14} parent=0 // pred_region
    _
  $region5: #{_lambda_.14} parent=0 // pred_fallthru
    _
  // Predicated region
  $region6: #{_lambda_.14} parent=0 // pred_check
    _
  $region7: #{_lambda_.14} parent=0 // pred_check_branch
    %12 = sbr.rel (0) target = $region9
  $region8: #{_lambda_.14} parent=0 // pred_region
    _
  $region9: #{_lambda_.14} parent=0 // pred_fallthru
    _
  // Predicated region
  $region10: #{_lambda_.14} parent=0 // pred_check
    _
  $region11: #{_lambda_.14} parent=0 // pred_check_branch
    %14 = sbr.rel (0) target = $region13
  $region12: #{_lambda_.14} parent=0 // pred_region
    _
  $region13: #{_lambda_.14} parent=0 // pred_fallthru
    _
  // Predicated region
  $region14: #{_lambda_.14} parent=0 // pred_check
    _
  $region15: #{_lambda_.14} parent=0 // pred_check_branch
    %16 = sbr.rel (0) target = $region17
  $region16: #{_lambda_.14} parent=0 // pred_region
    _
  $region17: #{_lambda_.14} parent=0 // pred_fallthru
    _
  %v18 = vld [vmem:[%s0] sm:$0xff]
  %v19 = vld [vmem:[%s0 + $0x8] sm:$0xff]
  %v20 = vld [vmem:[%s0 + $0x10] sm:$0xff]
  %v21 = vld [vmem:[%s0 + $0x18] sm:$0xff]
  %v22 = vld [vmem:[%s0 + $0x20] sm:$0xff]
  %v23 = vld [vmem:[%s0 + $0x28] sm:$0xff]
  %v24 = vld [vmem:[%s0 + $0x30] sm:$0xff]
  %v25 = vld [vmem:[%s0 + $0x38] sm:$0xff]
  %v26 = vld [vmem:[%s0 + $0x40] sm:$0xff]
  %v27 = vld [vmem:[%s0 + $0x48] sm:$0xff]
  %v28 = vld [vmem:[%s0 + $0x50] sm:$0xff]
  %v29 = vld [vmem:[%s0 + $0x58] sm:$0xff]
  %v30 = vld [vmem:[%s0 + $0x60] sm:$0xff]
  %v31 = vld [vmem:[%s0 + $0x68] sm:$0xff]
  %v32 = vld [vmem:[%s0 + $0x70] sm:$0xff]
  %v33 = vld [vmem:[%s0 + $0x78] sm:$0xff]
  %v34 = vld [vmem:[%s0 + $0x80] sm:$0xff]
  %v35 = vld [vmem:[%s0 + $0x88] sm:$0xff]
  %v36 = vld [vmem:[%s0 + $0x90] sm:$0xff]
  %v37 = vld [vmem:[%s0 + $0x98] sm:$0xff]
  %v38 = vld [vmem:[%s0 + $0xa0] sm:$0xff]
  %v39 = vld [vmem:[%s0 + $0xa8] sm:$0xff]
  %v40 = vld [vmem:[%s0 + $0xb0] sm:$0xff]
  %v41 = vld [vmem:[%s0 + $0xb8] sm:$0xff]
  %v42 = vld [vmem:[%s0 + $0xc0] sm:$0xff]
  %v43 = vld [vmem:[%s0 + $0xc8] sm:$0xff]
  %v44 = vld [vmem:[%s0 + $0xd0] sm:$0xff]
  %v45 = vld [vmem:[%s0 + $0xd8] sm:$0xff]
  %v46 = vld [vmem:[%s0 + $0xe0] sm:$0xff]
  %v47 = vld [vmem:[%s0 + $0xe8] sm:$0xff]
  %v48 = vld [vmem:[%s0 + $0xf0] sm:$0xff]
  %v49 = vld [vmem:[%s0 + $0xf8] sm:$0xff]
  %v50 = vld [vmem:[%s0 + $0x100] sm:$0xff]
  %v51 = vld [vmem:[%s0 + $0x108] sm:$0xff]
  %v52 = vld [vmem:[%s0 + $0x110] sm:$0xff]
  %v53 = vld [vmem:[%s0 + $0x118] sm:$0xff]
  %v54 = vld [vmem:[%s0 + $0x120] sm:$0xff]
  %v55 = vld [vmem:[%s0 + $0x128] sm:$0xff]
  %v56 = vld [vmem:[%s0 + $0x130] sm:$0xff]
  %v57 = vld [vmem:[%s0 + $0x138] sm:$0xff]
  %v58 = vld [vmem:[%s0 + $0x140] sm:$0xff]
  %v59 = vld [vmem:[%s0 + $0x148] sm:$0xff]
  %v60 = vld [vmem:[%s0 + $0x150] sm:$0xff]
  %v61 = vld [vmem:[%s0 + $0x158] sm:$0xff]
  %v62 = vld [vmem:[%s0 + $0x160] sm:$0xff]
  %v63 = vld [vmem:[%s0 + $0x168] sm:$0xff]
  %v64 = vld [vmem:[%s0 + $0x170] sm:$0xff]
  %v65 = vld [vmem:[%s0 + $0x178] sm:$0xff]
  %v66 = vld [vmem:[%s0 + $0x180] sm:$0xff]
  %v67 = vld [vmem:[%s0 + $0x188] sm:$0xff]
  %v68 = vld [vmem:[%s0 + $0x190] sm:$0xff]
  %v69 = vld [vmem:[%s0 + $0x198] sm:$0xff]
  %v70 = vld [vmem:[%s0 + $0x1a0] sm:$0xff]
  %v71 = vld [vmem:[%s0 + $0x1a8] sm:$0xff]
  %v72 = vld [vmem:[%s0 + $0x1b0] sm:$0xff]
  %v73 = vld [vmem:[%s0 + $0x1b8] sm:$0xff]
  %v74 = vld [vmem:[%s0 + $0x1c0] sm:$0xff]
  %v75 = vld [vmem:[%s0 + $0x1c8] sm:$0xff]
  %v76 = vld [vmem:[%s0 + $0x1d0] sm:$0xff]
  %v77 = vld [vmem:[%s0 + $0x1d8] sm:$0xff]
  %v78 = vld [vmem:[%s0 + $0x1e0] sm:$0xff]
  %v79 = vld [vmem:[%s0 + $0x1e8] sm:$0xff]
  %v80 = vld [vmem:[%s0 + $0x1f0] sm:$0xff]
  %v81 = vld [vmem:[%s0 + $0x1f8] sm:$0xff]
  %v82 = vld [vmem:[%s1] sm:$0xf]
  %v83 = vld [vmem:[%s1 + $0x4] sm:$0xf]
  %v84 = vld [vmem:[%s1 + $0x8] sm:$0xf]
  %v85 = vld [vmem:[%s1 + $0xc] sm:$0xf]
  %v86 = vld [vmem:[%s1 + $0x10] sm:$0xf]
  %v87 = vld [vmem:[%s1 + $0x14] sm:$0xf]
  %v88 = vld [vmem:[%s1 + $0x18] sm:$0xf]
  %v89 = vld [vmem:[%s1 + $0x1c] sm:$0xf]
  %v90 = vld [vmem:[%s1 + $0x20] sm:$0xf]
  %v91 = vld [vmem:[%s1 + $0x24] sm:$0xf]
  %v92 = vld [vmem:[%s1 + $0x28] sm:$0xf]
  %v93 = vld [vmem:[%s1 + $0x2c] sm:$0xf]
  %v94 = vld [vmem:[%s1 + $0x30] sm:$0xf]
  %v95 = vld [vmem:[%s1 + $0x34] sm:$0xf]
  %v96 = vld [vmem:[%s1 + $0x38] sm:$0xf]
  %v97 = vld [vmem:[%s1 + $0x3c] sm:$0xf]
  %v98 = vld [vmem:[%s1 + $0x40] sm:$0xf]
  %v99 = vld [vmem:[%s1 + $0x44] sm:$0xf]
  %v100 = vld [vmem:[%s1 + $0x48] sm:$0xf]
  %v101 = vld [vmem:[%s1 + $0x4c] sm:$0xf]
  %v102 = vld [vmem:[%s1 + $0x50] sm:$0xf]
  %v103 = vld [vmem:[%s1 + $0x54] sm:$0xf]
  %v104 = vld [vmem:[%s1 + $0x58] sm:$0xf]
  %v105 = vld [vmem:[%s1 + $0x5c] sm:$0xf]
  %v106 = vld [vmem:[%s1 + $0x60] sm:$0xf]
  %v107 = vld [vmem:[%s1 + $0x64] sm:$0xf]
  %v108 = vld [vmem:[%s1 + $0x68] sm:$0xf]
  %v109 = vld [vmem:[%s1 + $0x6c] sm:$0xf]
  %v110 = vld [vmem:[%s1 + $0x70] sm:$0xf]
  %v111 = vld [vmem:[%s1 + $0x74] sm:$0xf]
  %v112 = vld [vmem:[%s1 + $0x78] sm:$0xf]
  %v113 = vld [vmem:[%s1 + $0x7c] sm:$0xf]
  %v114 = vld [vmem:[%s2] sm:$0x1]
  %v116 = vlaneseq
  %v117 = vshrl.u32 %v116, 7
  %v118 = vsub.s32 0, %v117
  %v119 = vrot.slane %v114, %v118
  %v185 = vunpack.c.l.b16 %v18
  %v186 = vunpack.c.h.b16 %v18
  %v187 = vunpack.c.l.b16 %v19
  %v188 = vunpack.c.h.b16 %v19
  %v189 = vunpack.c.l.b16 %v20
  %v190 = vunpack.c.h.b16 %v20
  %v191 = vunpack.c.l.b16 %v21
  %v192 = vunpack.c.h.b16 %v21
  %v193 = vunpack.c.l.b16 %v22
  %v194 = vunpack.c.h.b16 %v22
  %v195 = vunpack.c.l.b16 %v23
  %v196 = vunpack.c.h.b16 %v23
  %v197 = vunpack.c.l.b16 %v24
  %v198 = vunpack.c.h.b16 %v24
  %v199 = vunpack.c.l.b16 %v25
  %v200 = vunpack.c.h.b16 %v25
  %v201 = vunpack.c.l.b16 %v26
  %v202 = vunpack.c.h.b16 %v26
  %v203 = vunpack.c.l.b16 %v27
  %v204 = vunpack.c.h.b16 %v27
  %v205 = vunpack.c.l.b16 %v28
  %v206 = vunpack.c.h.b16 %v28
  %v207 = vunpack.c.l.b16 %v29
  %v208 = vunpack.c.h.b16 %v29
  %v209 = vunpack.c.l.b16 %v30
  %v210 = vunpack.c.h.b16 %v30
  %v211 = vunpack.c.l.b16 %v31
  %v212 = vunpack.c.h.b16 %v31
  %v213 = vunpack.c.l.b16 %v32
  %v214 = vunpack.c.h.b16 %v32
  %v215 = vunpack.c.l.b16 %v33
  %v216 = vunpack.c.h.b16 %v33
  %v217 = vunpack.c.l.b16 %v34
  %v218 = vunpack.c.h.b16 %v34
  %v219 = vunpack.c.l.b16 %v35
  %v220 = vunpack.c.h.b16 %v35
  %v221 = vunpack.c.l.b16 %v36
  %v222 = vunpack.c.h.b16 %v36
  %v223 = vunpack.c.l.b16 %v37
  %v224 = vunpack.c.h.b16 %v37
  %v225 = vunpack.c.l.b16 %v38
  %v226 = vunpack.c.h.b16 %v38
  %v227 = vunpack.c.l.b16 %v39
  %v228 = vunpack.c.h.b16 %v39
  %v229 = vunpack.c.l.b16 %v40
  %v230 = vunpack.c.h.b16 %v40
  %v231 = vunpack.c.l.b16 %v41
  %v232 = vunpack.c.h.b16 %v41
  %v233 = vunpack.c.l.b16 %v42
  %v234 = vunpack.c.h.b16 %v42
  %v235 = vunpack.c.l.b16 %v43
  %v236 = vunpack.c.h.b16 %v43
  %v237 = vunpack.c.l.b16 %v44
  %v238 = vunpack.c.h.b16 %v44
  %v239 = vunpack.c.l.b16 %v45
  %v240 = vunpack.c.h.b16 %v45
  %v241 = vunpack.c.l.b16 %v46
  %v242 = vunpack.c.h.b16 %v46
  %v243 = vunpack.c.l.b16 %v47
  %v244 = vunpack.c.h.b16 %v47
  %v245 = vunpack.c.l.b16 %v48
  %v246 = vunpack.c.h.b16 %v48
  %v247 = vunpack.c.l.b16 %v49
  %v248 = vunpack.c.h.b16 %v49
  %v249 = vunpack.c.l.b16 %v50
  %v250 = vunpack.c.h.b16 %v50
  %v251 = vunpack.c.l.b16 %v51
  %v252 = vunpack.c.h.b16 %v51
  %v253 = vunpack.c.l.b16 %v52
  %v254 = vunpack.c.h.b16 %v52
  %v255 = vunpack.c.l.b16 %v53
  %v256 = vunpack.c.h.b16 %v53
  %v257 = vunpack.c.l.b16 %v54
  %v258 = vunpack.c.h.b16 %v54
  %v259 = vunpack.c.l.b16 %v55
  %v260 = vunpack.c.h.b16 %v55
  %v261 = vunpack.c.l.b16 %v56
  %v262 = vunpack.c.h.b16 %v56
  %v263 = vunpack.c.l.b16 %v57
  %v264 = vunpack.c.h.b16 %v57
  %v265 = vunpack.c.l.b16 %v58
  %v266 = vunpack.c.h.b16 %v58
  %v267 = vunpack.c.l.b16 %v59
  %v268 = vunpack.c.h.b16 %v59
  %v269 = vunpack.c.l.b16 %v60
  %v270 = vunpack.c.h.b16 %v60
  %v271 = vunpack.c.l.b16 %v61
  %v272 = vunpack.c.h.b16 %v61
  %v273 = vunpack.c.l.b16 %v62
  %v274 = vunpack.c.h.b16 %v62
  %v275 = vunpack.c.l.b16 %v63
  %v276 = vunpack.c.h.b16 %v63
  %v277 = vunpack.c.l.b16 %v64
  %v278 = vunpack.c.h.b16 %v64
  %v279 = vunpack.c.l.b16 %v65
  %v280 = vunpack.c.h.b16 %v65
  %v281 = vunpack.c.l.b16 %v66
  %v282 = vunpack.c.h.b16 %v66
  %v283 = vunpack.c.l.b16 %v67
  %v284 = vunpack.c.h.b16 %v67
  %v285 = vunpack.c.l.b16 %v68
  %v286 = vunpack.c.h.b16 %v68
  %v287 = vunpack.c.l.b16 %v69
  %v288 = vunpack.c.h.b16 %v69
  %v289 = vunpack.c.l.b16 %v70
  %v290 = vunpack.c.h.b16 %v70
  %v291 = vunpack.c.l.b16 %v71
  %v292 = vunpack.c.h.b16 %v71
  %v293 = vunpack.c.l.b16 %v72
  %v294 = vunpack.c.h.b16 %v72
  %v295 = vunpack.c.l.b16 %v73
  %v296 = vunpack.c.h.b16 %v73
  %v297 = vunpack.c.l.b16 %v74
  %v298 = vunpack.c.h.b16 %v74
  %v299 = vunpack.c.l.b16 %v75
  %v300 = vunpack.c.h.b16 %v75
  %v301 = vunpack.c.l.b16 %v76
  %v302 = vunpack.c.h.b16 %v76
  %v303 = vunpack.c.l.b16 %v77
  %v304 = vunpack.c.h.b16 %v77
  %v305 = vunpack.c.l.b16 %v78
  %v306 = vunpack.c.h.b16 %v78
  %v307 = vunpack.c.l.b16 %v79
  %v308 = vunpack.c.h.b16 %v79
  %v309 = vunpack.c.l.b16 %v80
  %v310 = vunpack.c.h.b16 %v80
  %v311 = vunpack.c.l.b16 %v81
  %v312 = vunpack.c.h.b16 %v81
  %v313 = vpack.c.b16 %v187, %v185
  %v314 = vpack.c.b16 %v188, %v186
  %v315 = vpack.c.b16 %v191, %v189
  %v316 = vpack.c.b16 %v192, %v190
  %v317 = vpack.c.b16 %v195, %v193
  %v318 = vpack.c.b16 %v196, %v194
  %v319 = vpack.c.b16 %v199, %v197
  %v320 = vpack.c.b16 %v200, %v198
  %v321 = vpack.c.b16 %v203, %v201
  %v322 = vpack.c.b16 %v204, %v202
  %v323 = vpack.c.b16 %v207, %v205
  %v324 = vpack.c.b16 %v208, %v206
  %v325 = vpack.c.b16 %v211, %v209
  %v326 = vpack.c.b16 %v212, %v210
  %v327 = vpack.c.b16 %v215, %v213
  %v328 = vpack.c.b16 %v216, %v214
  %v329 = vpack.c.b16 %v219, %v217
  %v330 = vpack.c.b16 %v220, %v218
  %v331 = vpack.c.b16 %v223, %v221
  %v332 = vpack.c.b16 %v224, %v222
  %v333 = vpack.c.b16 %v227, %v225
  %v334 = vpack.c.b16 %v228, %v226
  %v335 = vpack.c.b16 %v231, %v229
  %v336 = vpack.c.b16 %v232, %v230
  %v337 = vpack.c.b16 %v235, %v233
  %v338 = vpack.c.b16 %v236, %v234
  %v339 = vpack.c.b16 %v239, %v237
  %v340 = vpack.c.b16 %v240, %v238
  %v341 = vpack.c.b16 %v243, %v241
  %v342 = vpack.c.b16 %v244, %v242
  %v343 = vpack.c.b16 %v247, %v245
  %v344 = vpack.c.b16 %v248, %v246
  %v345 = vpack.c.b16 %v251, %v249
  %v346 = vpack.c.b16 %v252, %v250
  %v347 = vpack.c.b16 %v255, %v253
  %v348 = vpack.c.b16 %v256, %v254
  %v349 = vpack.c.b16 %v259, %v257
  %v350 = vpack.c.b16 %v260, %v258
  %v351 = vpack.c.b16 %v263, %v261
  %v352 = vpack.c.b16 %v264, %v262
  %v353 = vpack.c.b16 %v267, %v265
  %v354 = vpack.c.b16 %v268, %v266
  %v355 = vpack.c.b16 %v271, %v269
  %v356 = vpack.c.b16 %v272, %v270
  %v357 = vpack.c.b16 %v275, %v273
  %v358 = vpack.c.b16 %v276, %v274
  %v359 = vpack.c.b16 %v279, %v277
  %v360 = vpack.c.b16 %v280, %v278
  %v361 = vpack.c.b16 %v283, %v281
  %v362 = vpack.c.b16 %v284, %v282
  %v363 = vpack.c.b16 %v287, %v285
  %v364 = vpack.c.b16 %v288, %v286
  %v365 = vpack.c.b16 %v291, %v289
  %v366 = vpack.c.b16 %v292, %v290
  %v367 = vpack.c.b16 %v295, %v293
  %v368 = vpack.c.b16 %v296, %v294
  %v369 = vpack.c.b16 %v299, %v297
  %v370 = vpack.c.b16 %v300, %v298
  %v371 = vpack.c.b16 %v303, %v301
  %v372 = vpack.c.b16 %v304, %v302
  %v373 = vpack.c.b16 %v307, %v305
  %v374 = vpack.c.b16 %v308, %v306
  %v375 = vpack.c.b16 %v311, %v309
  %v376 = vpack.c.b16 %v312, %v310
  %v473 = vunpack.c.l.b16 %v82
  %v474 = vunpack.c.l.b16 %v83
  %v475 = vunpack.c.l.b16 %v84
  %v476 = vunpack.c.l.b16 %v85
  %v477 = vunpack.c.l.b16 %v86
  %v478 = vunpack.c.l.b16 %v87
  %v479 = vunpack.c.l.b16 %v88
  %v480 = vunpack.c.l.b16 %v89
  %v481 = vunpack.c.l.b16 %v90
  %v482 = vunpack.c.l.b16 %v91
  %v483 = vunpack.c.l.b16 %v92
  %v484 = vunpack.c.l.b16 %v93
  %v485 = vunpack.c.l.b16 %v94
  %v486 = vunpack.c.l.b16 %v95
  %v487 = vunpack.c.l.b16 %v96
  %v488 = vunpack.c.l.b16 %v97
  %v489 = vunpack.c.l.b16 %v98
  %v490 = vunpack.c.l.b16 %v99
  %v491 = vunpack.c.l.b16 %v100
  %v492 = vunpack.c.l.b16 %v101
  %v493 = vunpack.c.l.b16 %v102
  %v494 = vunpack.c.l.b16 %v103
  %v495 = vunpack.c.l.b16 %v104
  %v496 = vunpack.c.l.b16 %v105
  %v497 = vunpack.c.l.b16 %v106
  %v498 = vunpack.c.l.b16 %v107
  %v499 = vunpack.c.l.b16 %v108
  %v500 = vunpack.c.l.b16 %v109
  %v501 = vunpack.c.l.b16 %v110
  %v502 = vunpack.c.l.b16 %v111
  %v503 = vunpack.c.l.b16 %v112
  %v504 = vunpack.c.l.b16 %v113
  %v505 = vpack.c.b16 %v474, %v473
  %v506 = vpack.c.b16 %v476, %v475
  %v507 = vpack.c.b16 %v478, %v477
  %v508 = vpack.c.b16 %v480, %v479
  %v509 = vpack.c.b16 %v482, %v481
  %v510 = vpack.c.b16 %v484, %v483
  %v511 = vpack.c.b16 %v486, %v485
  %v512 = vpack.c.b16 %v488, %v487
  %v513 = vpack.c.b16 %v490, %v489
  %v514 = vpack.c.b16 %v492, %v491
  %v515 = vpack.c.b16 %v494, %v493
  %v516 = vpack.c.b16 %v496, %v495
  %v517 = vpack.c.b16 %v498, %v497
  %v518 = vpack.c.b16 %v500, %v499
  %v519 = vpack.c.b16 %v502, %v501
  %v520 = vpack.c.b16 %v504, %v503
  %537 = vmatprep.subr.bf16.mxu0 0
  %538 = vmatpush1.bf16.msra.mxu0 %v512
  %539 = vmatprep.subr.bf16.mxu0 0
  %540 = vmatpush1.bf16.msra.mxu0 %v511
  %541 = vmatprep.subr.bf16.mxu0 0
  %542 = vmatpush1.bf16.msra.mxu0 %v510
  %543 = vmatprep.subr.bf16.mxu0 0
  %544 = vmatpush1.bf16.msra.mxu0 %v509
  %545 = vmatprep.subr.bf16.mxu0 0
  %546 = vmatpush1.bf16.msra.mxu0 %v508
  %547 = vmatprep.subr.bf16.mxu0 0
  %548 = vmatpush1.bf16.msra.mxu0 %v507
  %549 = vmatprep.subr.bf16.mxu0 0
  %550 = vmatpush1.bf16.msra.mxu0 %v506
  %551 = vmatprep.subr.bf16.mxu0 0
  %552 = vmatpush1.bf16.msra.mxu0 %v505
  %553 = vmatprep.subr.bf16.mxu0 0
  %554 = vmatpush2.bf16.msra.mxu0 %v520
  %555 = vmatprep.subr.bf16.mxu0 0
  %556 = vmatpush2.bf16.msra.mxu0 %v519
  %557 = vmatprep.subr.bf16.mxu0 0
  %558 = vmatpush2.bf16.msra.mxu0 %v518
  %559 = vmatprep.subr.bf16.mxu0 0
  %560 = vmatpush2.bf16.msra.mxu0 %v517
  %561 = vmatprep.subr.bf16.mxu0 0
  %562 = vmatpush2.bf16.msra.mxu0 %v516
  %563 = vmatprep.subr.bf16.mxu0 0
  %564 = vmatpush2.bf16.msra.mxu0 %v515
  %565 = vmatprep.subr.bf16.mxu0 0
  %566 = vmatpush2.bf16.msra.mxu0 %v514
  %567 = vmatprep.subr.bf16.mxu0 0
  %568 = vmatpush2.bf16.msra.mxu0 %v513
  %569 = vmatprep.mubr.bf16.mxu0 %v314
  %570 = vmatmul.mubr.bf16.gmra.mxu0 %v313
  %v571 = vpop.f32.mrf.mxu0
  %v572 = vadd.f32 %v119, %v571
  %v573 = vpop.f32.mrf.mxu0
  %v574 = vpop.f32.mrf.mxu0
  %v575 = vadd.f32 %v119, %v574
  %v576 = vpop.f32.mrf.mxu0
  %577 = vmatprep.mubr.bf16.mxu0 %v316
  %578 = vmatmul.mubr.bf16.gmra.mxu0 %v315
  %v579 = vpop.f32.mrf.mxu0
  %v580 = vadd.f32 %v119, %v579
  %v581 = vpop.f32.mrf.mxu0
  %v582 = vpop.f32.mrf.mxu0
  %v583 = vadd.f32 %v119, %v582
  %v584 = vpop.f32.mrf.mxu0
  %585 = vmatprep.mubr.bf16.mxu0 %v318
  %586 = vmatmul.mubr.bf16.gmra.mxu0 %v317
  %v587 = vpop.f32.mrf.mxu0
  %v588 = vadd.f32 %v119, %v587
  %v589 = vpop.f32.mrf.mxu0
  %v590 = vpop.f32.mrf.mxu0
  %v591 = vadd.f32 %v119, %v590
  %v592 = vpop.f32.mrf.mxu0
  %593 = vmatprep.mubr.bf16.mxu0 %v320
  %594 = vmatmul.mubr.bf16.gmra.mxu0 %v319
  %v595 = vpop.f32.mrf.mxu0
  %v596 = vadd.f32 %v119, %v595
  %v597 = vpop.f32.mrf.mxu0
  %v598 = vpop.f32.mrf.mxu0
  %v599 = vadd.f32 %v119, %v598
  %v600 = vpop.f32.mrf.mxu0
  %601 = vmatprep.mubr.bf16.mxu0 %v322
  %602 = vmatmul.mubr.bf16.gmra.mxu0 %v321
  %v603 = vpop.f32.mrf.mxu0
  %v604 = vadd.f32 %v119, %v603
  %v605 = vpop.f32.mrf.mxu0
  %v606 = vpop.f32.mrf.mxu0
  %v607 = vadd.f32 %v119, %v606
  %v608 = vpop.f32.mrf.mxu0
  %609 = vmatprep.mubr.bf16.mxu0 %v324
  %610 = vmatmul.mubr.bf16.gmra.mxu0 %v323
  %v611 = vpop.f32.mrf.mxu0
  %v612 = vadd.f32 %v119, %v611
  %v613 = vpop.f32.mrf.mxu0
  %v614 = vpop.f32.mrf.mxu0
  %v615 = vadd.f32 %v119, %v614
  %v616 = vpop.f32.mrf.mxu0
  %617 = vmatprep.mubr.bf16.mxu0 %v326
  %618 = vmatmul.mubr.bf16.gmra.mxu0 %v325
  %v619 = vpop.f32.mrf.mxu0
  %v620 = vadd.f32 %v119, %v619
  %v621 = vpop.f32.mrf.mxu0
  %v622 = vpop.f32.mrf.mxu0
  %v623 = vadd.f32 %v119, %v622
  %v624 = vpop.f32.mrf.mxu0
  %625 = vmatprep.mubr.bf16.mxu0 %v328
  %626 = vmatmul.mubr.bf16.gmra.mxu0 %v327
  %v627 = vpop.f32.mrf.mxu0
  %v628 = vadd.f32 %v119, %v627
  %v629 = vpop.f32.mrf.mxu0
  %v630 = vpop.f32.mrf.mxu0
  %v631 = vadd.f32 %v119, %v630
  %v632 = vpop.f32.mrf.mxu0
  %633 = vmatprep.mubr.bf16.mxu0 %v330
  %634 = vmatmul.mubr.bf16.gmra.mxu0 %v329
  %v635 = vpop.f32.mrf.mxu0
  %v636 = vadd.f32 %v119, %v635
  %v637 = vpop.f32.mrf.mxu0
  %v638 = vpop.f32.mrf.mxu0
  %v639 = vadd.f32 %v119, %v638
  %v640 = vpop.f32.mrf.mxu0
  %641 = vmatprep.mubr.bf16.mxu0 %v332
  %642 = vmatmul.mubr.bf16.gmra.mxu0 %v331
  %v643 = vpop.f32.mrf.mxu0
  %v644 = vadd.f32 %v119, %v643
  %v645 = vpop.f32.mrf.mxu0
  %v646 = vpop.f32.mrf.mxu0
  %v647 = vadd.f32 %v119, %v646
  %v648 = vpop.f32.mrf.mxu0
  %649 = vmatprep.mubr.bf16.mxu0 %v334
  %650 = vmatmul.mubr.bf16.gmra.mxu0 %v333
  %v651 = vpop.f32.mrf.mxu0
  %v652 = vadd.f32 %v119, %v651
  %v653 = vpop.f32.mrf.mxu0
  %v654 = vpop.f32.mrf.mxu0
  %v655 = vadd.f32 %v119, %v654
  %v656 = vpop.f32.mrf.mxu0
  %657 = vmatprep.mubr.bf16.mxu0 %v336
  %658 = vmatmul.mubr.bf16.gmra.mxu0 %v335
  %v659 = vpop.f32.mrf.mxu0
  %v660 = vadd.f32 %v119, %v659
  %v661 = vpop.f32.mrf.mxu0
  %v662 = vpop.f32.mrf.mxu0
  %v663 = vadd.f32 %v119, %v662
  %v664 = vpop.f32.mrf.mxu0
  %665 = vmatprep.mubr.bf16.mxu0 %v338
  %666 = vmatmul.mubr.bf16.gmra.mxu0 %v337
  %v667 = vpop.f32.mrf.mxu0
  %v668 = vadd.f32 %v119, %v667
  %v669 = vpop.f32.mrf.mxu0
  %v670 = vpop.f32.mrf.mxu0
  %v671 = vadd.f32 %v119, %v670
  %v672 = vpop.f32.mrf.mxu0
  %673 = vmatprep.mubr.bf16.mxu0 %v340
  %674 = vmatmul.mubr.bf16.gmra.mxu0 %v339
  %v675 = vpop.f32.mrf.mxu0
  %v676 = vadd.f32 %v119, %v675
  %v677 = vpop.f32.mrf.mxu0
  %v678 = vpop.f32.mrf.mxu0
  %v679 = vadd.f32 %v119, %v678
  %v680 = vpop.f32.mrf.mxu0
  %681 = vmatprep.mubr.bf16.mxu0 %v342
  %682 = vmatmul.mubr.bf16.gmra.mxu0 %v341
  %v683 = vpop.f32.mrf.mxu0
  %v684 = vadd.f32 %v119, %v683
  %v685 = vpop.f32.mrf.mxu0
  %v686 = vpop.f32.mrf.mxu0
  %v687 = vadd.f32 %v119, %v686
  %v688 = vpop.f32.mrf.mxu0
  %689 = vmatprep.mubr.bf16.mxu0 %v344
  %690 = vmatmul.mubr.bf16.gmra.mxu0 %v343
  %v691 = vpop.f32.mrf.mxu0
  %v692 = vadd.f32 %v119, %v691
  %v693 = vpop.f32.mrf.mxu0
  %v694 = vpop.f32.mrf.mxu0
  %v695 = vadd.f32 %v119, %v694
  %v696 = vpop.f32.mrf.mxu0
  %697 = vmatprep.mubr.bf16.mxu0 %v346
  %698 = vmatmul.mubr.bf16.gmra.mxu0 %v345
  %v699 = vpop.f32.mrf.mxu0
  %v700 = vadd.f32 %v119, %v699
  %v701 = vpop.f32.mrf.mxu0
  %v702 = vpop.f32.mrf.mxu0
  %v703 = vadd.f32 %v119, %v702
  %v704 = vpop.f32.mrf.mxu0
  %705 = vmatprep.mubr.bf16.mxu0 %v348
  %706 = vmatmul.mubr.bf16.gmra.mxu0 %v347
  %v707 = vpop.f32.mrf.mxu0
  %v708 = vadd.f32 %v119, %v707
  %v709 = vpop.f32.mrf.mxu0
  %v710 = vpop.f32.mrf.mxu0
  %v711 = vadd.f32 %v119, %v710
  %v712 = vpop.f32.mrf.mxu0
  %713 = vmatprep.mubr.bf16.mxu0 %v350
  %714 = vmatmul.mubr.bf16.gmra.mxu0 %v349
  %v715 = vpop.f32.mrf.mxu0
  %v716 = vadd.f32 %v119, %v715
  %v717 = vpop.f32.mrf.mxu0
  %v718 = vpop.f32.mrf.mxu0
  %v719 = vadd.f32 %v119, %v718
  %v720 = vpop.f32.mrf.mxu0
  %721 = vmatprep.mubr.bf16.mxu0 %v352
  %722 = vmatmul.mubr.bf16.gmra.mxu0 %v351
  %v723 = vpop.f32.mrf.mxu0
  %v724 = vadd.f32 %v119, %v723
  %v725 = vpop.f32.mrf.mxu0
  %v726 = vpop.f32.mrf.mxu0
  %v727 = vadd.f32 %v119, %v726
  %v728 = vpop.f32.mrf.mxu0
  %729 = vmatprep.mubr.bf16.mxu0 %v354
  %730 = vmatmul.mubr.bf16.gmra.mxu0 %v353
  %v731 = vpop.f32.mrf.mxu0
  %v732 = vadd.f32 %v119, %v731
  %v733 = vpop.f32.mrf.mxu0
  %v734 = vpop.f32.mrf.mxu0
  %v735 = vadd.f32 %v119, %v734
  %v736 = vpop.f32.mrf.mxu0
  %737 = vmatprep.mubr.bf16.mxu0 %v356
  %738 = vmatmul.mubr.bf16.gmra.mxu0 %v355
  %v739 = vpop.f32.mrf.mxu0
  %v740 = vadd.f32 %v119, %v739
  %v741 = vpop.f32.mrf.mxu0
  %v742 = vpop.f32.mrf.mxu0
  %v743 = vadd.f32 %v119, %v742
  %v744 = vpop.f32.mrf.mxu0
  %745 = vmatprep.mubr.bf16.mxu0 %v358
  %746 = vmatmul.mubr.bf16.gmra.mxu0 %v357
  %v747 = vpop.f32.mrf.mxu0
  %v748 = vadd.f32 %v119, %v747
  %v749 = vpop.f32.mrf.mxu0
  %v750 = vpop.f32.mrf.mxu0
  %v751 = vadd.f32 %v119, %v750
  %v752 = vpop.f32.mrf.mxu0
  %753 = vmatprep.mubr.bf16.mxu0 %v360
  %754 = vmatmul.mubr.bf16.gmra.mxu0 %v359
  %v755 = vpop.f32.mrf.mxu0
  %v756 = vadd.f32 %v119, %v755
  %v757 = vpop.f32.mrf.mxu0
  %v758 = vpop.f32.mrf.mxu0
  %v759 = vadd.f32 %v119, %v758
  %v760 = vpop.f32.mrf.mxu0
  %761 = vmatprep.mubr.bf16.mxu0 %v362
  %762 = vmatmul.mubr.bf16.gmra.mxu0 %v361
  %v763 = vpop.f32.mrf.mxu0
  %v764 = vadd.f32 %v119, %v763
  %v765 = vpop.f32.mrf.mxu0
  %v766 = vpop.f32.mrf.mxu0
  %v767 = vadd.f32 %v119, %v766
  %v768 = vpop.f32.mrf.mxu0
  %769 = vmatprep.mubr.bf16.mxu0 %v364
  %770 = vmatmul.mubr.bf16.gmra.mxu0 %v363
  %v771 = vpop.f32.mrf.mxu0
  %v772 = vadd.f32 %v119, %v771
  %v773 = vpop.f32.mrf.mxu0
  %v774 = vpop.f32.mrf.mxu0
  %v775 = vadd.f32 %v119, %v774
  %v776 = vpop.f32.mrf.mxu0
  %777 = vmatprep.mubr.bf16.mxu0 %v366
  %778 = vmatmul.mubr.bf16.gmra.mxu0 %v365
  %v779 = vpop.f32.mrf.mxu0
  %v780 = vadd.f32 %v119, %v779
  %v781 = vpop.f32.mrf.mxu0
  %v782 = vpop.f32.mrf.mxu0
  %v783 = vadd.f32 %v119, %v782
  %v784 = vpop.f32.mrf.mxu0
  %785 = vmatprep.mubr.bf16.mxu0 %v368
  %786 = vmatmul.mubr.bf16.gmra.mxu0 %v367
  %v787 = vpop.f32.mrf.mxu0
  %v788 = vadd.f32 %v119, %v787
  %v789 = vpop.f32.mrf.mxu0
  %v790 = vpop.f32.mrf.mxu0
  %v791 = vadd.f32 %v119, %v790
  %v792 = vpop.f32.mrf.mxu0
  %793 = vmatprep.mubr.bf16.mxu0 %v370
  %794 = vmatmul.mubr.bf16.gmra.mxu0 %v369
  %v795 = vpop.f32.mrf.mxu0
  %v796 = vadd.f32 %v119, %v795
  %v797 = vpop.f32.mrf.mxu0
  %v798 = vpop.f32.mrf.mxu0
  %v799 = vadd.f32 %v119, %v798
  %v800 = vpop.f32.mrf.mxu0
  %801 = vmatprep.mubr.bf16.mxu0 %v372
  %802 = vmatmul.mubr.bf16.gmra.mxu0 %v371
  %v803 = vpop.f32.mrf.mxu0
  %v804 = vadd.f32 %v119, %v803
  %v805 = vpop.f32.mrf.mxu0
  %v806 = vpop.f32.mrf.mxu0
  %v807 = vadd.f32 %v119, %v806
  %v808 = vpop.f32.mrf.mxu0
  %809 = vmatprep.mubr.bf16.mxu0 %v374
  %810 = vmatmul.mubr.bf16.gmra.mxu0 %v373
  %v811 = vpop.f32.mrf.mxu0
  %v812 = vadd.f32 %v119, %v811
  %v813 = vpop.f32.mrf.mxu0
  %v814 = vpop.f32.mrf.mxu0
  %v815 = vadd.f32 %v119, %v814
  %v816 = vpop.f32.mrf.mxu0
  %817 = vmatprep.mubr.bf16.mxu0 %v376
  %818 = vmatmul.mubr.bf16.gmra.mxu0 %v375
  %v819 = vpop.f32.mrf.mxu0
  %v820 = vadd.f32 %v119, %v819
  %v821 = vpop.f32.mrf.mxu0
  %v822 = vpop.f32.mrf.mxu0
  %v823 = vadd.f32 %v119, %v822
  %v824 = vpop.f32.mrf.mxu0
  %825 = vdwg.mxu0
  %v826 = vld [vmem:[%s3] sm:$0xf]
  %v827 = vld [vmem:[%s3 + $0x4] sm:$0xf]
  %v828 = vld [vmem:[%s3 + $0x8] sm:$0xf]
  %v829 = vld [vmem:[%s3 + $0xc] sm:$0xf]
  %v830 = vld [vmem:[%s3 + $0x10] sm:$0xf]
  %v831 = vld [vmem:[%s3 + $0x14] sm:$0xf]
  %v832 = vld [vmem:[%s3 + $0x18] sm:$0xf]
  %v833 = vld [vmem:[%s3 + $0x1c] sm:$0xf]
  %v834 = vld [vmem:[%s3 + $0x20] sm:$0xf]
  %v835 = vld [vmem:[%s3 + $0x24] sm:$0xf]
  %v836 = vld [vmem:[%s3 + $0x28] sm:$0xf]
  %v837 = vld [vmem:[%s3 + $0x2c] sm:$0xf]
  %v838 = vld [vmem:[%s3 + $0x30] sm:$0xf]
  %v839 = vld [vmem:[%s3 + $0x34] sm:$0xf]
  %v840 = vld [vmem:[%s3 + $0x38] sm:$0xf]
  %v841 = vld [vmem:[%s3 + $0x3c] sm:$0xf]
  %v842 = vld [vmem:[%s3 + $0x40] sm:$0xf]
  %v843 = vld [vmem:[%s3 + $0x44] sm:$0xf]
  %v844 = vld [vmem:[%s3 + $0x48] sm:$0xf]
  %v845 = vld [vmem:[%s3 + $0x4c] sm:$0xf]
  %v846 = vld [vmem:[%s3 + $0x50] sm:$0xf]
  %v847 = vld [vmem:[%s3 + $0x54] sm:$0xf]
  %v848 = vld [vmem:[%s3 + $0x58] sm:$0xf]
  %v849 = vld [vmem:[%s3 + $0x5c] sm:$0xf]
  %v850 = vld [vmem:[%s3 + $0x60] sm:$0xf]
  %v851 = vld [vmem:[%s3 + $0x64] sm:$0xf]
  %v852 = vld [vmem:[%s3 + $0x68] sm:$0xf]
  %v853 = vld [vmem:[%s3 + $0x6c] sm:$0xf]
  %v854 = vld [vmem:[%s3 + $0x70] sm:$0xf]
  %v855 = vld [vmem:[%s3 + $0x74] sm:$0xf]
  %v856 = vld [vmem:[%s3 + $0x78] sm:$0xf]
  %v857 = vld [vmem:[%s3 + $0x7c] sm:$0xf]
  %v858 = vld [vmem:[%s3 + $0x80] sm:$0xf]
  %v859 = vld [vmem:[%s3 + $0x84] sm:$0xf]
  %v860 = vld [vmem:[%s3 + $0x88] sm:$0xf]
  %v861 = vld [vmem:[%s3 + $0x8c] sm:$0xf]
  %v862 = vld [vmem:[%s3 + $0x90] sm:$0xf]
  %v863 = vld [vmem:[%s3 + $0x94] sm:$0xf]
  %v864 = vld [vmem:[%s3 + $0x98] sm:$0xf]
  %v865 = vld [vmem:[%s3 + $0x9c] sm:$0xf]
  %v866 = vld [vmem:[%s3 + $0xa0] sm:$0xf]
  %v867 = vld [vmem:[%s3 + $0xa4] sm:$0xf]
  %v868 = vld [vmem:[%s3 + $0xa8] sm:$0xf]
  %v869 = vld [vmem:[%s3 + $0xac] sm:$0xf]
  %v870 = vld [vmem:[%s3 + $0xb0] sm:$0xf]
  %v871 = vld [vmem:[%s3 + $0xb4] sm:$0xf]
  %v872 = vld [vmem:[%s3 + $0xb8] sm:$0xf]
  %v873 = vld [vmem:[%s3 + $0xbc] sm:$0xf]
  %v874 = vld [vmem:[%s3 + $0xc0] sm:$0xf]
  %v875 = vld [vmem:[%s3 + $0xc4] sm:$0xf]
  %v876 = vld [vmem:[%s3 + $0xc8] sm:$0xf]
  %v877 = vld [vmem:[%s3 + $0xcc] sm:$0xf]
  %v878 = vld [vmem:[%s3 + $0xd0] sm:$0xf]
  %v879 = vld [vmem:[%s3 + $0xd4] sm:$0xf]
  %v880 = vld [vmem:[%s3 + $0xd8] sm:$0xf]
  %v881 = vld [vmem:[%s3 + $0xdc] sm:$0xf]
  %v882 = vld [vmem:[%s3 + $0xe0] sm:$0xf]
  %v883 = vld [vmem:[%s3 + $0xe4] sm:$0xf]
  %v884 = vld [vmem:[%s3 + $0xe8] sm:$0xf]
  %v885 = vld [vmem:[%s3 + $0xec] sm:$0xf]
  %v886 = vld [vmem:[%s3 + $0xf0] sm:$0xf]
  %v887 = vld [vmem:[%s3 + $0xf4] sm:$0xf]
  %v888 = vld [vmem:[%s3 + $0xf8] sm:$0xf]
  %v889 = vld [vmem:[%s3 + $0xfc] sm:$0xf]
  %v890 = vunpack.c.l.bf16 %v826
  %v891 = vunpack.c.l.bf16 %v827
  %v892 = vunpack.c.l.bf16 %v828
  %v893 = vunpack.c.l.bf16 %v829
  %v894 = vunpack.c.l.bf16 %v830
  %v895 = vunpack.c.l.bf16 %v831
  %v896 = vunpack.c.l.bf16 %v832
  %v897 = vunpack.c.l.bf16 %v833
  %v898 = vunpack.c.l.bf16 %v834
  %v899 = vunpack.c.l.bf16 %v835
  %v900 = vunpack.c.l.bf16 %v836
  %v901 = vunpack.c.l.bf16 %v837
  %v902 = vunpack.c.l.bf16 %v838
  %v903 = vunpack.c.l.bf16 %v839
  %v904 = vunpack.c.l.bf16 %v840
  %v905 = vunpack.c.l.bf16 %v841
  %v906 = vunpack.c.l.bf16 %v842
  %v907 = vunpack.c.l.bf16 %v843
  %v908 = vunpack.c.l.bf16 %v844
  %v909 = vunpack.c.l.bf16 %v845
  %v910 = vunpack.c.l.bf16 %v846
  %v911 = vunpack.c.l.bf16 %v847
  %v912 = vunpack.c.l.bf16 %v848
  %v913 = vunpack.c.l.bf16 %v849
  %v914 = vunpack.c.l.bf16 %v850
  %v915 = vunpack.c.l.bf16 %v851
  %v916 = vunpack.c.l.bf16 %v852
  %v917 = vunpack.c.l.bf16 %v853
  %v918 = vunpack.c.l.bf16 %v854
  %v919 = vunpack.c.l.bf16 %v855
  %v920 = vunpack.c.l.bf16 %v856
  %v921 = vunpack.c.l.bf16 %v857
  %v922 = vunpack.c.l.bf16 %v858
  %v923 = vunpack.c.l.bf16 %v859
  %v924 = vunpack.c.l.bf16 %v860
  %v925 = vunpack.c.l.bf16 %v861
  %v926 = vunpack.c.l.bf16 %v862
  %v927 = vunpack.c.l.bf16 %v863
  %v928 = vunpack.c.l.bf16 %v864
  %v929 = vunpack.c.l.bf16 %v865
  %v930 = vunpack.c.l.bf16 %v866
  %v931 = vunpack.c.l.bf16 %v867
  %v932 = vunpack.c.l.bf16 %v868
  %v933 = vunpack.c.l.bf16 %v869
  %v934 = vunpack.c.l.bf16 %v870
  %v935 = vunpack.c.l.bf16 %v871
  %v936 = vunpack.c.l.bf16 %v872
  %v937 = vunpack.c.l.bf16 %v873
  %v938 = vunpack.c.l.bf16 %v874
  %v939 = vunpack.c.l.bf16 %v875
  %v940 = vunpack.c.l.bf16 %v876
  %v941 = vunpack.c.l.bf16 %v877
  %v942 = vunpack.c.l.bf16 %v878
  %v943 = vunpack.c.l.bf16 %v879
  %v944 = vunpack.c.l.bf16 %v880
  %v945 = vunpack.c.l.bf16 %v881
  %v946 = vunpack.c.l.bf16 %v882
  %v947 = vunpack.c.l.bf16 %v883
  %v948 = vunpack.c.l.bf16 %v884
  %v949 = vunpack.c.l.bf16 %v885
  %v950 = vunpack.c.l.bf16 %v886
  %v951 = vunpack.c.l.bf16 %v887
  %v952 = vunpack.c.l.bf16 %v888
  %v953 = vunpack.c.l.bf16 %v889
  %v954 = vadd.f32 %v572, %v890
  %v955 = vadd.f32 %v575, %v891
  %v956 = vadd.f32 %v580, %v892
  %v957 = vadd.f32 %v583, %v893
  %v958 = vadd.f32 %v588, %v894
  %v959 = vadd.f32 %v591, %v895
  %v960 = vadd.f32 %v596, %v896
  %v961 = vadd.f32 %v599, %v897
  %v962 = vadd.f32 %v604, %v898
  %v963 = vadd.f32 %v607, %v899
  %v964 = vadd.f32 %v612, %v900
  %v965 = vadd.f32 %v615, %v901
  %v966 = vadd.f32 %v620, %v902
  %v967 = vadd.f32 %v623, %v903
  %v968 = vadd.f32 %v628, %v904
  %v969 = vadd.f32 %v631, %v905
  %v970 = vadd.f32 %v636, %v906
  %v971 = vadd.f32 %v639, %v907
  %v972 = vadd.f32 %v644, %v908
  %v973 = vadd.f32 %v647, %v909
  %v974 = vadd.f32 %v652, %v910
  %v975 = vadd.f32 %v655, %v911
  %v976 = vadd.f32 %v660, %v912
  %v977 = vadd.f32 %v663, %v913
  %v978 = vadd.f32 %v668, %v914
  %v979 = vadd.f32 %v671, %v915
  %v980 = vadd.f32 %v676, %v916
  %v981 = vadd.f32 %v679, %v917
  %v982 = vadd.f32 %v684, %v918
  %v983 = vadd.f32 %v687, %v919
  %v984 = vadd.f32 %v692, %v920
  %v985 = vadd.f32 %v695, %v921
  %v986 = vadd.f32 %v700, %v922
  %v987 = vadd.f32 %v703, %v923
  %v988 = vadd.f32 %v708, %v924
  %v989 = vadd.f32 %v711, %v925
  %v990 = vadd.f32 %v716, %v926
  %v991 = vadd.f32 %v719, %v927
  %v992 = vadd.f32 %v724, %v928
  %v993 = vadd.f32 %v727, %v929
  %v994 = vadd.f32 %v732, %v930
  %v995 = vadd.f32 %v735, %v931
  %v996 = vadd.f32 %v740, %v932
  %v997 = vadd.f32 %v743, %v933
  %v998 = vadd.f32 %v748, %v934
  %v999 = vadd.f32 %v751, %v935
  %v1000 = vadd.f32 %v756, %v936
  %v1001 = vadd.f32 %v759, %v937
  %v1002 = vadd.f32 %v764, %v938
  %v1003 = vadd.f32 %v767, %v939
  %v1004 = vadd.f32 %v772, %v940
  %v1005 = vadd.f32 %v775, %v941
  %v1006 = vadd.f32 %v780, %v942
  %v1007 = vadd.f32 %v783, %v943
  %v1008 = vadd.f32 %v788, %v944
  %v1009 = vadd.f32 %v791, %v945
  %v1010 = vadd.f32 %v796, %v946
  %v1011 = vadd.f32 %v799, %v947
  %v1012 = vadd.f32 %v804, %v948
  %v1013 = vadd.f32 %v807, %v949
  %v1014 = vadd.f32 %v812, %v950
  %v1015 = vadd.f32 %v815, %v951
  %v1016 = vadd.f32 %v820, %v952
  %v1017 = vadd.f32 %v823, %v953
  %v1018 = vmax.f32 %v954, 0.0
  %v1019 = vmax.f32 %v955, 0.0
  %v1020 = vmax.f32 %v956, 0.0
  %v1021 = vmax.f32 %v957, 0.0
  %v1022 = vmax.f32 %v958, 0.0
  %v1023 = vmax.f32 %v959, 0.0
  %v1024 = vmax.f32 %v960, 0.0
  %v1025 = vmax.f32 %v961, 0.0
  %v1026 = vmax.f32 %v962, 0.0
  %v1027 = vmax.f32 %v963, 0.0
  %v1028 = vmax.f32 %v964, 0.0
  %v1029 = vmax.f32 %v965, 0.0
  %v1030 = vmax.f32 %v966, 0.0
  %v1031 = vmax.f32 %v967, 0.0
  %v1032 = vmax.f32 %v968, 0.0
  %v1033 = vmax.f32 %v969, 0.0
  %v1034 = vmax.f32 %v970, 0.0
  %v1035 = vmax.f32 %v971, 0.0
  %v1036 = vmax.f32 %v972, 0.0
  %v1037 = vmax.f32 %v973, 0.0
  %v1038 = vmax.f32 %v974, 0.0
  %v1039 = vmax.f32 %v975, 0.0
  %v1040 = vmax.f32 %v976, 0.0
  %v1041 = vmax.f32 %v977, 0.0
  %v1042 = vmax.f32 %v978, 0.0
  %v1043 = vmax.f32 %v979, 0.0
  %v1044 = vmax.f32 %v980, 0.0
  %v1045 = vmax.f32 %v981, 0.0
  %v1046 = vmax.f32 %v982, 0.0
  %v1047 = vmax.f32 %v983, 0.0
  %v1048 = vmax.f32 %v984, 0.0
  %v1049 = vmax.f32 %v985, 0.0
  %v1050 = vmax.f32 %v986, 0.0
  %v1051 = vmax.f32 %v987, 0.0
  %v1052 = vmax.f32 %v988, 0.0
  %v1053 = vmax.f32 %v989, 0.0
  %v1054 = vmax.f32 %v990, 0.0
  %v1055 = vmax.f32 %v991, 0.0
  %v1056 = vmax.f32 %v992, 0.0
  %v1057 = vmax.f32 %v993, 0.0
  %v1058 = vmax.f32 %v994, 0.0
  %v1059 = vmax.f32 %v995, 0.0
  %v1060 = vmax.f32 %v996, 0.0
  %v1061 = vmax.f32 %v997, 0.0
  %v1062 = vmax.f32 %v998, 0.0
  %v1063 = vmax.f32 %v999, 0.0
  %v1064 = vmax.f32 %v1000, 0.0
  %v1065 = vmax.f32 %v1001, 0.0
  %v1066 = vmax.f32 %v1002, 0.0
  %v1067 = vmax.f32 %v1003, 0.0
  %v1068 = vmax.f32 %v1004, 0.0
  %v1069 = vmax.f32 %v1005, 0.0
  %v1070 = vmax.f32 %v1006, 0.0
  %v1071 = vmax.f32 %v1007, 0.0
  %v1072 = vmax.f32 %v1008, 0.0
  %v1073 = vmax.f32 %v1009, 0.0
  %v1074 = vmax.f32 %v1010, 0.0
  %v1075 = vmax.f32 %v1011, 0.0
  %v1076 = vmax.f32 %v1012, 0.0
  %v1077 = vmax.f32 %v1013, 0.0
  %v1078 = vmax.f32 %v1014, 0.0
  %v1079 = vmax.f32 %v1015, 0.0
  %v1080 = vmax.f32 %v1016, 0.0
  %v1081 = vmax.f32 %v1017, 0.0
  %v1082 = vpack.c.bf16 %v1019, %v1018
  %v1083 = vpack.c.bf16 %v1021, %v1020
  %v1084 = vpack.c.bf16 %v1023, %v1022
  %v1085 = vpack.c.bf16 %v1025, %v1024
  %v1086 = vpack.c.bf16 %v1027, %v1026
  %v1087 = vpack.c.bf16 %v1029, %v1028
  %v1088 = vpack.c.bf16 %v1031, %v1030
  %v1089 = vpack.c.bf16 %v1033, %v1032
  %v1090 = vpack.c.bf16 %v1035, %v1034
  %v1091 = vpack.c.bf16 %v1037, %v1036
  %v1092 = vpack.c.bf16 %v1039, %v1038
  %v1093 = vpack.c.bf16 %v1041, %v1040
  %v1094 = vpack.c.bf16 %v1043, %v1042
  %v1095 = vpack.c.bf16 %v1045, %v1044
  %v1096 = vpack.c.bf16 %v1047, %v1046
  %v1097 = vpack.c.bf16 %v1049, %v1048
  %v1098 = vpack.c.bf16 %v1051, %v1050
  %v1099 = vpack.c.bf16 %v1053, %v1052
  %v1100 = vpack.c.bf16 %v1055, %v1054
  %v1101 = vpack.c.bf16 %v1057, %v1056
  %v1102 = vpack.c.bf16 %v1059, %v1058
  %v1103 = vpack.c.bf16 %v1061, %v1060
  %v1104 = vpack.c.bf16 %v1063, %v1062
  %v1105 = vpack.c.bf16 %v1065, %v1064
  %v1106 = vpack.c.bf16 %v1067, %v1066
  %v1107 = vpack.c.bf16 %v1069, %v1068
  %v1108 = vpack.c.bf16 %v1071, %v1070
  %v1109 = vpack.c.bf16 %v1073, %v1072
  %v1110 = vpack.c.bf16 %v1075, %v1074
  %v1111 = vpack.c.bf16 %v1077, %v1076
  %v1112 = vpack.c.bf16 %v1079, %v1078
  %v1113 = vpack.c.bf16 %v1081, %v1080
  %v1146 = vunpack.c.l.b16 %v1082
  %v1147 = vunpack.c.h.b16 %v1082
  %v1148 = vunpack.c.l.b16 %v1083
  %v1149 = vunpack.c.h.b16 %v1083
  %v1150 = vunpack.c.l.b16 %v1084
  %v1151 = vunpack.c.h.b16 %v1084
  %v1152 = vunpack.c.l.b16 %v1085
  %v1153 = vunpack.c.h.b16 %v1085
  %v1154 = vunpack.c.l.b16 %v1086
  %v1155 = vunpack.c.h.b16 %v1086
  %v1156 = vunpack.c.l.b16 %v1087
  %v1157 = vunpack.c.h.b16 %v1087
  %v1158 = vunpack.c.l.b16 %v1088
  %v1159 = vunpack.c.h.b16 %v1088
  %v1160 = vunpack.c.l.b16 %v1089
  %v1161 = vunpack.c.h.b16 %v1089
  %v1162 = vunpack.c.l.b16 %v1090
  %v1163 = vunpack.c.h.b16 %v1090
  %v1164 = vunpack.c.l.b16 %v1091
  %v1165 = vunpack.c.h.b16 %v1091
  %v1166 = vunpack.c.l.b16 %v1092
  %v1167 = vunpack.c.h.b16 %v1092
  %v1168 = vunpack.c.l.b16 %v1093
  %v1169 = vunpack.c.h.b16 %v1093
  %v1170 = vunpack.c.l.b16 %v1094
  %v1171 = vunpack.c.h.b16 %v1094
  %v1172 = vunpack.c.l.b16 %v1095
  %v1173 = vunpack.c.h.b16 %v1095
  %v1174 = vunpack.c.l.b16 %v1096
  %v1175 = vunpack.c.h.b16 %v1096
  %v1176 = vunpack.c.l.b16 %v1097
  %v1177 = vunpack.c.h.b16 %v1097
  %v1178 = vunpack.c.l.b16 %v1098
  %v1179 = vunpack.c.h.b16 %v1098
  %v1180 = vunpack.c.l.b16 %v1099
  %v1181 = vunpack.c.h.b16 %v1099
  %v1182 = vunpack.c.l.b16 %v1100
  %v1183 = vunpack.c.h.b16 %v1100
  %v1184 = vunpack.c.l.b16 %v1101
  %v1185 = vunpack.c.h.b16 %v1101
  %v1186 = vunpack.c.l.b16 %v1102
  %v1187 = vunpack.c.h.b16 %v1102
  %v1188 = vunpack.c.l.b16 %v1103
  %v1189 = vunpack.c.h.b16 %v1103
  %v1190 = vunpack.c.l.b16 %v1104
  %v1191 = vunpack.c.h.b16 %v1104
  %v1192 = vunpack.c.l.b16 %v1105
  %v1193 = vunpack.c.h.b16 %v1105
  %v1194 = vunpack.c.l.b16 %v1106
  %v1195 = vunpack.c.h.b16 %v1106
  %v1196 = vunpack.c.l.b16 %v1107
  %v1197 = vunpack.c.h.b16 %v1107
  %v1198 = vunpack.c.l.b16 %v1108
  %v1199 = vunpack.c.h.b16 %v1108
  %v1200 = vunpack.c.l.b16 %v1109
  %v1201 = vunpack.c.h.b16 %v1109
  %v1202 = vunpack.c.l.b16 %v1110
  %v1203 = vunpack.c.h.b16 %v1110
  %v1204 = vunpack.c.l.b16 %v1111
  %v1205 = vunpack.c.h.b16 %v1111
  %v1206 = vunpack.c.l.b16 %v1112
  %v1207 = vunpack.c.h.b16 %v1112
  %v1208 = vunpack.c.l.b16 %v1113
  %v1209 = vunpack.c.h.b16 %v1113
  %v1210 = vpack.c.b16 %v1146, %v1146
  %v1211 = vpack.c.b16 %v1147, %v1147
  %v1212 = vpack.c.b16 %v1148, %v1148
  %v1213 = vpack.c.b16 %v1149, %v1149
  %v1214 = vpack.c.b16 %v1150, %v1150
  %v1215 = vpack.c.b16 %v1151, %v1151
  %v1216 = vpack.c.b16 %v1152, %v1152
  %v1217 = vpack.c.b16 %v1153, %v1153
  %v1218 = vpack.c.b16 %v1154, %v1154
  %v1219 = vpack.c.b16 %v1155, %v1155
  %v1220 = vpack.c.b16 %v1156, %v1156
  %v1221 = vpack.c.b16 %v1157, %v1157
  %v1222 = vpack.c.b16 %v1158, %v1158
  %v1223 = vpack.c.b16 %v1159, %v1159
  %v1224 = vpack.c.b16 %v1160, %v1160
  %v1225 = vpack.c.b16 %v1161, %v1161
  %v1226 = vpack.c.b16 %v1162, %v1162
  %v1227 = vpack.c.b16 %v1163, %v1163
  %v1228 = vpack.c.b16 %v1164, %v1164
  %v1229 = vpack.c.b16 %v1165, %v1165
  %v1230 = vpack.c.b16 %v1166, %v1166
  %v1231 = vpack.c.b16 %v1167, %v1167
  %v1232 = vpack.c.b16 %v1168, %v1168
  %v1233 = vpack.c.b16 %v1169, %v1169
  %v1234 = vpack.c.b16 %v1170, %v1170
  %v1235 = vpack.c.b16 %v1171, %v1171
  %v1236 = vpack.c.b16 %v1172, %v1172
  %v1237 = vpack.c.b16 %v1173, %v1173
  %v1238 = vpack.c.b16 %v1174, %v1174
  %v1239 = vpack.c.b16 %v1175, %v1175
  %v1240 = vpack.c.b16 %v1176, %v1176
  %v1241 = vpack.c.b16 %v1177, %v1177
  %v1242 = vpack.c.b16 %v1178, %v1178
  %v1243 = vpack.c.b16 %v1179, %v1179
  %v1244 = vpack.c.b16 %v1180, %v1180
  %v1245 = vpack.c.b16 %v1181, %v1181
  %v1246 = vpack.c.b16 %v1182, %v1182
  %v1247 = vpack.c.b16 %v1183, %v1183
  %v1248 = vpack.c.b16 %v1184, %v1184
  %v1249 = vpack.c.b16 %v1185, %v1185
  %v1250 = vpack.c.b16 %v1186, %v1186
  %v1251 = vpack.c.b16 %v1187, %v1187
  %v1252 = vpack.c.b16 %v1188, %v1188
  %v1253 = vpack.c.b16 %v1189, %v1189
  %v1254 = vpack.c.b16 %v1190, %v1190
  %v1255 = vpack.c.b16 %v1191, %v1191
  %v1256 = vpack.c.b16 %v1192, %v1192
  %v1257 = vpack.c.b16 %v1193, %v1193
  %v1258 = vpack.c.b16 %v1194, %v1194
  %v1259 = vpack.c.b16 %v1195, %v1195
  %v1260 = vpack.c.b16 %v1196, %v1196
  %v1261 = vpack.c.b16 %v1197, %v1197
  %v1262 = vpack.c.b16 %v1198, %v1198
  %v1263 = vpack.c.b16 %v1199, %v1199
  %v1264 = vpack.c.b16 %v1200, %v1200
  %v1265 = vpack.c.b16 %v1201, %v1201
  %v1266 = vpack.c.b16 %v1202, %v1202
  %v1267 = vpack.c.b16 %v1203, %v1203
  %v1268 = vpack.c.b16 %v1204, %v1204
  %v1269 = vpack.c.b16 %v1205, %v1205
  %v1270 = vpack.c.b16 %v1206, %v1206
  %v1271 = vpack.c.b16 %v1207, %v1207
  %v1272 = vpack.c.b16 %v1208, %v1208
  %v1273 = vpack.c.b16 %v1209, %v1209
  %1338 = vst [vmem:[%s4] sm:$0xf] %v1210
  %1339 = vst [vmem:[%s4 + $0x4] sm:$0xf] %v1211
  %1340 = vst [vmem:[%s4 + $0x8] sm:$0xf] %v1212
  %1341 = vst [vmem:[%s4 + $0xc] sm:$0xf] %v1213
  %1342 = vst [vmem:[%s4 + $0x10] sm:$0xf] %v1214
  %1343 = vst [vmem:[%s4 + $0x14] sm:$0xf] %v1215
  %1344 = vst [vmem:[%s4 + $0x18] sm:$0xf] %v1216
  %1345 = vst [vmem:[%s4 + $0x1c] sm:$0xf] %v1217
  %1346 = vst [vmem:[%s4 + $0x20] sm:$0xf] %v1218
  %1347 = vst [vmem:[%s4 + $0x24] sm:$0xf] %v1219
  %1348 = vst [vmem:[%s4 + $0x28] sm:$0xf] %v1220
  %1349 = vst [vmem:[%s4 + $0x2c] sm:$0xf] %v1221
  %1350 = vst [vmem:[%s4 + $0x30] sm:$0xf] %v1222
  %1351 = vst [vmem:[%s4 + $0x34] sm:$0xf] %v1223
  %1352 = vst [vmem:[%s4 + $0x38] sm:$0xf] %v1224
  %1353 = vst [vmem:[%s4 + $0x3c] sm:$0xf] %v1225
  %1354 = vst [vmem:[%s4 + $0x40] sm:$0xf] %v1226
  %1355 = vst [vmem:[%s4 + $0x44] sm:$0xf] %v1227
  %1356 = vst [vmem:[%s4 + $0x48] sm:$0xf] %v1228
  %1357 = vst [vmem:[%s4 + $0x4c] sm:$0xf] %v1229
  %1358 = vst [vmem:[%s4 + $0x50] sm:$0xf] %v1230
  %1359 = vst [vmem:[%s4 + $0x54] sm:$0xf] %v1231
  %1360 = vst [vmem:[%s4 + $0x58] sm:$0xf] %v1232
  %1361 = vst [vmem:[%s4 + $0x5c] sm:$0xf] %v1233
  %1362 = vst [vmem:[%s4 + $0x60] sm:$0xf] %v1234
  %1363 = vst [vmem:[%s4 + $0x64] sm:$0xf] %v1235
  %1364 = vst [vmem:[%s4 + $0x68] sm:$0xf] %v1236
  %1365 = vst [vmem:[%s4 + $0x6c] sm:$0xf] %v1237
  %1366 = vst [vmem:[%s4 + $0x70] sm:$0xf] %v1238
  %1367 = vst [vmem:[%s4 + $0x74] sm:$0xf] %v1239
  %1368 = vst [vmem:[%s4 + $0x78] sm:$0xf] %v1240
  %1369 = vst [vmem:[%s4 + $0x7c] sm:$0xf] %v1241
  %1370 = vst [vmem:[%s4 + $0x80] sm:$0xf] %v1242
  %1371 = vst [vmem:[%s4 + $0x84] sm:$0xf] %v1243
  %1372 = vst [vmem:[%s4 + $0x88] sm:$0xf] %v1244
  %1373 = vst [vmem:[%s4 + $0x8c] sm:$0xf] %v1245
  %1374 = vst [vmem:[%s4 + $0x90] sm:$0xf] %v1246
  %1375 = vst [vmem:[%s4 + $0x94] sm:$0xf] %v1247
  %1376 = vst [vmem:[%s4 + $0x98] sm:$0xf] %v1248
  %1377 = vst [vmem:[%s4 + $0x9c] sm:$0xf] %v1249
  %1378 = vst [vmem:[%s4 + $0xa0] sm:$0xf] %v1250
  %1379 = vst [vmem:[%s4 + $0xa4] sm:$0xf] %v1251
  %1380 = vst [vmem:[%s4 + $0xa8] sm:$0xf] %v1252
  %1381 = vst [vmem:[%s4 + $0xac] sm:$0xf] %v1253
  %1382 = vst [vmem:[%s4 + $0xb0] sm:$0xf] %v1254
  %1383 = vst [vmem:[%s4 + $0xb4] sm:$0xf] %v1255
  %1384 = vst [vmem:[%s4 + $0xb8] sm:$0xf] %v1256
  %1385 = vst [vmem:[%s4 + $0xbc] sm:$0xf] %v1257
  %1386 = vst [vmem:[%s4 + $0xc0] sm:$0xf] %v1258
  %1387 = vst [vmem:[%s4 + $0xc4] sm:$0xf] %v1259
  %1388 = vst [vmem:[%s4 + $0xc8] sm:$0xf] %v1260
  %1389 = vst [vmem:[%s4 + $0xcc] sm:$0xf] %v1261
  %1390 = vst [vmem:[%s4 + $0xd0] sm:$0xf] %v1262
  %1391 = vst [vmem:[%s4 + $0xd4] sm:$0xf] %v1263
  %1392 = vst [vmem:[%s4 + $0xd8] sm:$0xf] %v1264
  %1393 = vst [vmem:[%s4 + $0xdc] sm:$0xf] %v1265
  %1394 = vst [vmem:[%s4 + $0xe0] sm:$0xf] %v1266
  %1395 = vst [vmem:[%s4 + $0xe4] sm:$0xf] %v1267
  %1396 = vst [vmem:[%s4 + $0xe8] sm:$0xf] %v1268
  %1397 = vst [vmem:[%s4 + $0xec] sm:$0xf] %v1269
  %1398 = vst [vmem:[%s4 + $0xf0] sm:$0xf] %v1270
  %1399 = vst [vmem:[%s4 + $0xf4] sm:$0xf] %v1271
  %1400 = vst [vmem:[%s4 + $0xf8] sm:$0xf] %v1272
  %1401 = vst [vmem:[%s4 + $0xfc] sm:$0xf] %v1273
  // Predicated region
  $region18: #{_lambda_.14} parent=0 // pred_check
    _
  $region19: #{_lambda_.14} parent=0 // pred_check_branch
    %1403 = sbr.rel (0) target = $region21
  $region20: #{_lambda_.14} parent=0 // pred_region
    _
  $region21: #{_lambda_.14} parent=0 // pred_fallthru
    _
  // Predicated region
  $region22: #{_lambda_.14} parent=0 // pred_check
    _
  $region23: #{_lambda_.14} parent=0 // pred_check_branch
    %1405 = sbr.rel (0) target = $region25
  $region24: #{_lambda_.14} parent=0 // pred_region
    _
  $region25: #{_lambda_.14} parent=0 // pred_fallthru
    _

// kernel: _lambda_.15
$region0: #{_lambda_.15}
  #allocation0 [shape = 'u32[]', space=smem, size = 0x4, offset = 0x4, fixed_abs, tag = 'smem constant byte address 0x4 - core index']
  #allocation1 [shape = 'u32[144,128]{1,0:T(1,128)}', space=vmem, size = 0x12000, scoped, tag = 'internal scratch']
  %s0 = inlined_call_operand.vmem [shape: bf16[128,384], index: 0, kind: input, shape index: {}]
  %s1 = inlined_call_operand.vmem [shape: bf16[384,256], index: 1, kind: input, shape index: {}]
  %s2 = inlined_call_operand.vmem [shape: f32[1,256], index: 2, kind: input, shape index: {}]
  %s3 = inlined_call_operand.vmem [shape: bf16[128,256], index: 3, kind: output, shape index: {}]
  %s4 = sld [smem:[#allocation0]]
  $region22: #{_lambda_.15} parent=0
    _
  %s6 = ssub.s32 1, %s4
  %s7 = scalar_select 0, %s6, %s4
  // Predicated region
  $region2: #{_lambda_.15} parent=0 // pred_check
    _
  $region3: #{_lambda_.15} parent=0 // pred_check_branch
    %9 = sbr.rel (0) target = $region5
  $region4: #{_lambda_.15} parent=0 // pred_region
    _
  $region5: #{_lambda_.15} parent=0 // pred_fallthru
    _
  // Predicated region
  $region6: #{_lambda_.15} parent=0 // pred_check
    _
  $region7: #{_lambda_.15} parent=0 // pred_check_branch
    %11 = sbr.rel (0) target = $region9
  $region8: #{_lambda_.15} parent=0 // pred_region
    _
  $region9: #{_lambda_.15} parent=0 // pred_fallthru
    _
  // Predicated region
  $region10: #{_lambda_.15} parent=0 // pred_check
    _
  $region11: #{_lambda_.15} parent=0 // pred_check_branch
    %13 = sbr.rel (0) target = $region13
  $region12: #{_lambda_.15} parent=0 // pred_region
    _
  $region13: #{_lambda_.15} parent=0 // pred_fallthru
    _
  %v15 = vld [vmem:[%s0] sm:$0xff]
  %v16 = vld [vmem:[%s0 + $0x8] sm:$0xf]
  %v17 = vld [vmem:[%s0 + $0xc] sm:$0xff]
  %v18 = vld [vmem:[%s0 + $0x14] sm:$0xf]
  %v19 = vld [vmem:[%s0 + $0x18] sm:$0xff]
  %v20 = vld [vmem:[%s0 + $0x20] sm:$0xf]
  %v21 = vld [vmem:[%s0 + $0x24] sm:$0xff]
  %v22 = vld [vmem:[%s0 + $0x2c] sm:$0xf]
  %v23 = vld [vmem:[%s0 + $0x30] sm:$0xff]
  %v24 = vld [vmem:[%s0 + $0x38] sm:$0xf]
  %v25 = vld [vmem:[%s0 + $0x3c] sm:$0xff]
  %v26 = vld [vmem:[%s0 + $0x44] sm:$0xf]
  %v27 = vld [vmem:[%s0 + $0x48] sm:$0xff]
  %v28 = vld [vmem:[%s0 + $0x50] sm:$0xf]
  %v29 = vld [vmem:[%s0 + $0x54] sm:$0xff]
  %v30 = vld [vmem:[%s0 + $0x5c] sm:$0xf]
  %v31 = vld [vmem:[%s0 + $0x60] sm:$0xff]
  %v32 = vld [vmem:[%s0 + $0x68] sm:$0xf]
  %v33 = vld [vmem:[%s0 + $0x6c] sm:$0xff]
  %v34 = vld [vmem:[%s0 + $0x74] sm:$0xf]
  %v35 = vld [vmem:[%s0 + $0x78] sm:$0xff]
  %v36 = vld [vmem:[%s0 + $0x80] sm:$0xf]
  %v37 = vld [vmem:[%s0 + $0x84] sm:$0xff]
  %v38 = vld [vmem:[%s0 + $0x8c] sm:$0xf]
  %v39 = vld [vmem:[%s0 + $0x90] sm:$0xff]
  %v40 = vld [vmem:[%s0 + $0x98] sm:$0xf]
  %v41 = vld [vmem:[%s0 + $0x9c] sm:$0xff]
  %v42 = vld [vmem:[%s0 + $0xa4] sm:$0xf]
  %v43 = vld [vmem:[%s0 + $0xa8] sm:$0xff]
  %v44 = vld [vmem:[%s0 + $0xb0] sm:$0xf]
  %v45 = vld [vmem:[%s0 + $0xb4] sm:$0xff]
  %v46 = vld [vmem:[%s0 + $0xbc] sm:$0xf]
  %v47 = vld [vmem:[%s1] sm:$0xff]
  %v48 = vld [vmem:[%s1 + $0x8] sm:$0xff]
  %v49 = vld [vmem:[%s1 + $0x10] sm:$0xff]
  %v50 = vld [vmem:[%s1 + $0x18] sm:$0xff]
  %v51 = vld [vmem:[%s1 + $0x20] sm:$0xff]
  %v52 = vld [vmem:[%s1 + $0x28] sm:$0xff]
  %v53 = vld [vmem:[%s1 + $0x30] sm:$0xff]
  %v54 = vld [vmem:[%s1 + $0x38] sm:$0xff]
  %v55 = vld [vmem:[%s1 + $0x40] sm:$0xff]
  %v56 = vld [vmem:[%s1 + $0x48] sm:$0xff]
  %v57 = vld [vmem:[%s1 + $0x50] sm:$0xff]
  %v58 = vld [vmem:[%s1 + $0x58] sm:$0xff]
  %v59 = vld [vmem:[%s1 + $0x60] sm:$0xff]
  %v60 = vld [vmem:[%s1 + $0x68] sm:$0xff]
  %v61 = vld [vmem:[%s1 + $0x70] sm:$0xff]
  %v62 = vld [vmem:[%s1 + $0x78] sm:$0xff]
  %v63 = vld [vmem:[%s1 + $0x80] sm:$0xff]
  %v64 = vld [vmem:[%s1 + $0x88] sm:$0xff]
  %v65 = vld [vmem:[%s1 + $0x90] sm:$0xff]
  %v66 = vld [vmem:[%s1 + $0x98] sm:$0xff]
  %v67 = vld [vmem:[%s1 + $0xa0] sm:$0xff]
  %v68 = vld [vmem:[%s1 + $0xa8] sm:$0xff]
  %v69 = vld [vmem:[%s1 + $0xb0] sm:$0xff]
  %v70 = vld [vmem:[%s1 + $0xb8] sm:$0xff]
  %v71 = vld [vmem:[%s1 + $0xc0] sm:$0xff]
  %v72 = vld [vmem:[%s1 + $0xc8] sm:$0xff]
  %v73 = vld [vmem:[%s1 + $0xd0] sm:$0xff]
  %v74 = vld [vmem:[%s1 + $0xd8] sm:$0xff]
  %v75 = vld [vmem:[%s1 + $0xe0] sm:$0xff]
  %v76 = vld [vmem:[%s1 + $0xe8] sm:$0xff]
  %v77 = vld [vmem:[%s1 + $0xf0] sm:$0xff]
  %v78 = vld [vmem:[%s1 + $0xf8] sm:$0xff]
  %v79 = vld [vmem:[%s1 + $0x100] sm:$0xff]
  %v80 = vld [vmem:[%s1 + $0x108] sm:$0xff]
  %v81 = vld [vmem:[%s1 + $0x110] sm:$0xff]
  %v82 = vld [vmem:[%s1 + $0x118] sm:$0xff]
  %v83 = vld [vmem:[%s1 + $0x120] sm:$0xff]
  %v84 = vld [vmem:[%s1 + $0x128] sm:$0xff]
  %v85 = vld [vmem:[%s1 + $0x130] sm:$0xff]
  %v86 = vld [vmem:[%s1 + $0x138] sm:$0xff]
  %v87 = vld [vmem:[%s1 + $0x140] sm:$0xff]
  %v88 = vld [vmem:[%s1 + $0x148] sm:$0xff]
  %v89 = vld [vmem:[%s1 + $0x150] sm:$0xff]
  %v90 = vld [vmem:[%s1 + $0x158] sm:$0xff]
  %v91 = vld [vmem:[%s1 + $0x160] sm:$0xff]
  %v92 = vld [vmem:[%s1 + $0x168] sm:$0xff]
  %v93 = vld [vmem:[%s1 + $0x170] sm:$0xff]
  %v94 = vld [vmem:[%s1 + $0x178] sm:$0xff]
  %v95 = vld [vmem:[%s2] sm:$0x3]
  %v97 = vlaneseq
  %v98 = vshrl.u32 %v97, 7
  %v99 = vsub.s32 0, %v98
  %v100 = vrot.slane %v95, %v99
  %v101 = vlaneseq
  %v102 = vshrl.u32 %v101, 7
  %v103 = vsub.s32 1, %v102
  %v104 = vrot.slane %v95, %v103
  %v139 = vunpack.c.l.b16 %v15
  %v140 = vunpack.c.h.b16 %v15
  %v141 = vunpack.c.l.b16 %v16
  %v142 = vunpack.c.l.b16 %v17
  %v143 = vunpack.c.h.b16 %v17
  %v144 = vunpack.c.l.b16 %v18
  %v145 = vunpack.c.l.b16 %v19
  %v146 = vunpack.c.h.b16 %v19
  %v147 = vunpack.c.l.b16 %v20
  %v148 = vunpack.c.l.b16 %v21
  %v149 = vunpack.c.h.b16 %v21
  %v150 = vunpack.c.l.b16 %v22
  %v151 = vunpack.c.l.b16 %v23
  %v152 = vunpack.c.h.b16 %v23
  %v153 = vunpack.c.l.b16 %v24
  %v154 = vunpack.c.l.b16 %v25
  %v155 = vunpack.c.h.b16 %v25
  %v156 = vunpack.c.l.b16 %v26
  %v157 = vunpack.c.l.b16 %v27
  %v158 = vunpack.c.h.b16 %v27
  %v159 = vunpack.c.l.b16 %v28
  %v160 = vunpack.c.l.b16 %v29
  %v161 = vunpack.c.h.b16 %v29
  %v162 = vunpack.c.l.b16 %v30
  %v163 = vunpack.c.l.b16 %v31
  %v164 = vunpack.c.h.b16 %v31
  %v165 = vunpack.c.l.b16 %v32
  %v166 = vunpack.c.l.b16 %v33
  %v167 = vunpack.c.h.b16 %v33
  %v168 = vunpack.c.l.b16 %v34
  %v169 = vunpack.c.l.b16 %v35
  %v170 = vunpack.c.h.b16 %v35
  %v171 = vunpack.c.l.b16 %v36
  %v172 = vunpack.c.l.b16 %v37
  %v173 = vunpack.c.h.b16 %v37
  %v174 = vunpack.c.l.b16 %v38
  %v175 = vunpack.c.l.b16 %v39
  %v176 = vunpack.c.h.b16 %v39
  %v177 = vunpack.c.l.b16 %v40
  %v178 = vunpack.c.l.b16 %v41
  %v179 = vunpack.c.h.b16 %v41
  %v180 = vunpack.c.l.b16 %v42
  %v181 = vunpack.c.l.b16 %v43
  %v182 = vunpack.c.h.b16 %v43
  %v183 = vunpack.c.l.b16 %v44
  %v184 = vunpack.c.l.b16 %v45
  %v185 = vunpack.c.h.b16 %v45
  %v186 = vunpack.c.l.b16 %v46
  %v187 = vpack.c.b16 %v142, %v139
  %v188 = vpack.c.b16 %v143, %v140
  %v189 = vpack.c.b16 %v144, %v141
  %v190 = vpack.c.b16 %v148, %v145
  %v191 = vpack.c.b16 %v149, %v146
  %v192 = vpack.c.b16 %v150, %v147
  %v193 = vpack.c.b16 %v154, %v151
  %v194 = vpack.c.b16 %v155, %v152
  %v195 = vpack.c.b16 %v156, %v153
  %v196 = vpack.c.b16 %v160, %v157
  %v197 = vpack.c.b16 %v161, %v158
  %v198 = vpack.c.b16 %v162, %v159
  %v199 = vpack.c.b16 %v166, %v163
  %v200 = vpack.c.b16 %v167, %v164
  %v201 = vpack.c.b16 %v168, %v165
  %v202 = vpack.c.b16 %v172, %v169
  %v203 = vpack.c.b16 %v173, %v170
  %v204 = vpack.c.b16 %v174, %v171
  %v205 = vpack.c.b16 %v178, %v175
  %v206 = vpack.c.b16 %v179, %v176
  %v207 = vpack.c.b16 %v180, %v177
  %v208 = vpack.c.b16 %v184, %v181
  %v209 = vpack.c.b16 %v185, %v182
  %v210 = vpack.c.b16 %v186, %v183
  %v283 = vunpack.c.l.b16 %v47
  %v284 = vunpack.c.h.b16 %v47
  %v285 = vunpack.c.l.b16 %v48
  %v286 = vunpack.c.h.b16 %v48
  %v287 = vunpack.c.l.b16 %v49
  %v288 = vunpack.c.h.b16 %v49
  %v289 = vunpack.c.l.b16 %v50
  %v290 = vunpack.c.h.b16 %v50
  %v291 = vunpack.c.l.b16 %v51
  %v292 = vunpack.c.h.b16 %v51
  %v293 = vunpack.c.l.b16 %v52
  %v294 = vunpack.c.h.b16 %v52
  %v295 = vunpack.c.l.b16 %v53
  %v296 = vunpack.c.h.b16 %v53
  %v297 = vunpack.c.l.b16 %v54
  %v298 = vunpack.c.h.b16 %v54
  %v299 = vunpack.c.l.b16 %v55
  %v300 = vunpack.c.h.b16 %v55
  %v301 = vunpack.c.l.b16 %v56
  %v302 = vunpack.c.h.b16 %v56
  %v303 = vunpack.c.l.b16 %v57
  %v304 = vunpack.c.h.b16 %v57
  %v305 = vunpack.c.l.b16 %v58
  %v306 = vunpack.c.h.b16 %v58
  %v307 = vunpack.c.l.b16 %v59
  %v308 = vunpack.c.h.b16 %v59
  %v309 = vunpack.c.l.b16 %v60
  %v310 = vunpack.c.h.b16 %v60
  %v311 = vunpack.c.l.b16 %v61
  %v312 = vunpack.c.h.b16 %v61
  %v313 = vunpack.c.l.b16 %v62
  %v314 = vunpack.c.h.b16 %v62
  %v315 = vunpack.c.l.b16 %v63
  %v316 = vunpack.c.h.b16 %v63
  %v317 = vunpack.c.l.b16 %v64
  %v318 = vunpack.c.h.b16 %v64
  %v319 = vunpack.c.l.b16 %v65
  %v320 = vunpack.c.h.b16 %v65
  %v321 = vunpack.c.l.b16 %v66
  %v322 = vunpack.c.h.b16 %v66
  %v323 = vunpack.c.l.b16 %v67
  %v324 = vunpack.c.h.b16 %v67
  %v325 = vunpack.c.l.b16 %v68
  %v326 = vunpack.c.h.b16 %v68
  %v327 = vunpack.c.l.b16 %v69
  %v328 = vunpack.c.h.b16 %v69
  %v329 = vunpack.c.l.b16 %v70
  %v330 = vunpack.c.h.b16 %v70
  %v331 = vunpack.c.l.b16 %v71
  %v332 = vunpack.c.h.b16 %v71
  %v333 = vunpack.c.l.b16 %v72
  %v334 = vunpack.c.h.b16 %v72
  %v335 = vunpack.c.l.b16 %v73
  %v336 = vunpack.c.h.b16 %v73
  %v337 = vunpack.c.l.b16 %v74
  %v338 = vunpack.c.h.b16 %v74
  %v339 = vunpack.c.l.b16 %v75
  %v340 = vunpack.c.h.b16 %v75
  %v341 = vunpack.c.l.b16 %v76
  %v342 = vunpack.c.h.b16 %v76
  %v343 = vunpack.c.l.b16 %v77
  %v344 = vunpack.c.h.b16 %v77
  %v345 = vunpack.c.l.b16 %v78
  %v346 = vunpack.c.h.b16 %v78
  %v347 = vunpack.c.l.b16 %v79
  %v348 = vunpack.c.h.b16 %v79
  %v349 = vunpack.c.l.b16 %v80
  %v350 = vunpack.c.h.b16 %v80
  %v351 = vunpack.c.l.b16 %v81
  %v352 = vunpack.c.h.b16 %v81
  %v353 = vunpack.c.l.b16 %v82
  %v354 = vunpack.c.h.b16 %v82
  %v355 = vunpack.c.l.b16 %v83
  %v356 = vunpack.c.h.b16 %v83
  %v357 = vunpack.c.l.b16 %v84
  %v358 = vunpack.c.h.b16 %v84
  %v359 = vunpack.c.l.b16 %v85
  %v360 = vunpack.c.h.b16 %v85
  %v361 = vunpack.c.l.b16 %v86
  %v362 = vunpack.c.h.b16 %v86
  %v363 = vunpack.c.l.b16 %v87
  %v364 = vunpack.c.h.b16 %v87
  %v365 = vunpack.c.l.b16 %v88
  %v366 = vunpack.c.h.b16 %v88
  %v367 = vunpack.c.l.b16 %v89
  %v368 = vunpack.c.h.b16 %v89
  %v369 = vunpack.c.l.b16 %v90
  %v370 = vunpack.c.h.b16 %v90
  %v371 = vunpack.c.l.b16 %v91
  %v372 = vunpack.c.h.b16 %v91
  %v373 = vunpack.c.l.b16 %v92
  %v374 = vunpack.c.h.b16 %v92
  %v375 = vunpack.c.l.b16 %v93
  %v376 = vunpack.c.h.b16 %v93
  %v377 = vunpack.c.l.b16 %v94
  %v378 = vunpack.c.h.b16 %v94
  %v379 = vpack.c.b16 %v285, %v283
  %v380 = vpack.c.b16 %v286, %v284
  %v381 = vpack.c.b16 %v289, %v287
  %v382 = vpack.c.b16 %v290, %v288
  %v383 = vpack.c.b16 %v293, %v291
  %v384 = vpack.c.b16 %v294, %v292
  %v385 = vpack.c.b16 %v297, %v295
  %v386 = vpack.c.b16 %v298, %v296
  %v387 = vpack.c.b16 %v301, %v299
  %v388 = vpack.c.b16 %v302, %v300
  %v389 = vpack.c.b16 %v305, %v303
  %v390 = vpack.c.b16 %v306, %v304
  %v391 = vpack.c.b16 %v309, %v307
  %v392 = vpack.c.b16 %v310, %v308
  %v393 = vpack.c.b16 %v313, %v311
  %v394 = vpack.c.b16 %v314, %v312
  %v395 = vpack.c.b16 %v317, %v315
  %v396 = vpack.c.b16 %v318, %v316
  %v397 = vpack.c.b16 %v321, %v319
  %v398 = vpack.c.b16 %v322, %v320
  %v399 = vpack.c.b16 %v325, %v323
  %v400 = vpack.c.b16 %v326, %v324
  %v401 = vpack.c.b16 %v329, %v327
  %v402 = vpack.c.b16 %v330, %v328
  %v403 = vpack.c.b16 %v333, %v331
  %v404 = vpack.c.b16 %v334, %v332
  %v405 = vpack.c.b16 %v337, %v335
  %v406 = vpack.c.b16 %v338, %v336
  %v407 = vpack.c.b16 %v341, %v339
  %v408 = vpack.c.b16 %v342, %v340
  %v409 = vpack.c.b16 %v345, %v343
  %v410 = vpack.c.b16 %v346, %v344
  %v411 = vpack.c.b16 %v349, %v347
  %v412 = vpack.c.b16 %v350, %v348
  %v413 = vpack.c.b16 %v353, %v351
  %v414 = vpack.c.b16 %v354, %v352
  %v415 = vpack.c.b16 %v357, %v355
  %v416 = vpack.c.b16 %v358, %v356
  %v417 = vpack.c.b16 %v361, %v359
  %v418 = vpack.c.b16 %v362, %v360
  %v419 = vpack.c.b16 %v365, %v363
  %v420 = vpack.c.b16 %v366, %v364
  %v421 = vpack.c.b16 %v369, %v367
  %v422 = vpack.c.b16 %v370, %v368
  %v423 = vpack.c.b16 %v373, %v371
  %v424 = vpack.c.b16 %v374, %v372
  %v425 = vpack.c.b16 %v377, %v375
  %v426 = vpack.c.b16 %v378, %v376
  %475 = vmatprep.subr.bf16.mxu0 %v394
  %476 = vmatpush1.bf16.msra.mxu0 %v393
  %477 = vmatprep.subr.bf16.mxu0 %v392
  %478 = vmatpush1.bf16.msra.mxu0 %v391
  %479 = vmatprep.subr.bf16.mxu0 %v390
  %480 = vmatpush1.bf16.msra.mxu0 %v389
  %481 = vmatprep.subr.bf16.mxu0 %v388
  %482 = vmatpush1.bf16.msra.mxu0 %v387
  %483 = vmatprep.subr.bf16.mxu0 %v386
  %484 = vmatpush1.bf16.msra.mxu0 %v385
  %485 = vmatprep.subr.bf16.mxu0 %v384
  %486 = vmatpush1.bf16.msra.mxu0 %v383
  %487 = vmatprep.subr.bf16.mxu0 %v382
  %488 = vmatpush1.bf16.msra.mxu0 %v381
  %489 = vmatprep.subr.bf16.mxu0 %v380
  %490 = vmatpush1.bf16.msra.mxu0 %v379
  %491 = vmatprep.subr.bf16.mxu0 %v410
  %492 = vmatpush2.bf16.msra.mxu0 %v409
  %493 = vmatprep.subr.bf16.mxu0 %v408
  %494 = vmatpush2.bf16.msra.mxu0 %v407
  %495 = vmatprep.subr.bf16.mxu0 %v406
  %496 = vmatpush2.bf16.msra.mxu0 %v405
  %497 = vmatprep.subr.bf16.mxu0 %v404
  %498 = vmatpush2.bf16.msra.mxu0 %v403
  %499 = vmatprep.subr.bf16.mxu0 %v402
  %500 = vmatpush2.bf16.msra.mxu0 %v401
  %501 = vmatprep.subr.bf16.mxu0 %v400
  %502 = vmatpush2.bf16.msra.mxu0 %v399
  %503 = vmatprep.subr.bf16.mxu0 %v398
  %504 = vmatpush2.bf16.msra.mxu0 %v397
  %505 = vmatprep.subr.bf16.mxu0 %v396
  %506 = vmatpush2.bf16.msra.mxu0 %v395
  %507 = vmatprep.mubr.bf16.mxu0 %v188
  %508 = vmatmul.mubr.bf16.gmra.mxu0 %v187
  %v509 = vpop.f32.mrf.mxu0
  %v510 = vadd.f32 %v100, %v509
  %v511 = vpop.f32.mrf.mxu0
  %v512 = vadd.f32 %v104, %v511
  %v513 = vpop.f32.mrf.mxu0
  %v514 = vadd.f32 %v100, %v513
  %v515 = vpop.f32.mrf.mxu0
  %v516 = vadd.f32 %v104, %v515
  %517 = vmatprep.mubr.bf16.mxu0 %v191
  %518 = vmatmul.mubr.bf16.gmra.mxu0 %v190
  %v519 = vpop.f32.mrf.mxu0
  %v520 = vadd.f32 %v100, %v519
  %v521 = vpop.f32.mrf.mxu0
  %v522 = vadd.f32 %v104, %v521
  %v523 = vpop.f32.mrf.mxu0
  %v524 = vadd.f32 %v100, %v523
  %v525 = vpop.f32.mrf.mxu0
  %v526 = vadd.f32 %v104, %v525
  %527 = vmatprep.mubr.bf16.mxu0 %v194
  %528 = vmatmul.mubr.bf16.gmra.mxu0 %v193
  %v529 = vpop.f32.mrf.mxu0
  %v530 = vadd.f32 %v100, %v529
  %v531 = vpop.f32.mrf.mxu0
  %v532 = vadd.f32 %v104, %v531
  %v533 = vpop.f32.mrf.mxu0
  %v534 = vadd.f32 %v100, %v533
  %v535 = vpop.f32.mrf.mxu0
  %v536 = vadd.f32 %v104, %v535
  %537 = vmatprep.mubr.bf16.mxu0 %v197
  %538 = vmatmul.mubr.bf16.gmra.mxu0 %v196
  %v539 = vpop.f32.mrf.mxu0
  %v540 = vadd.f32 %v100, %v539
  %v541 = vpop.f32.mrf.mxu0
  %v542 = vadd.f32 %v104, %v541
  %v543 = vpop.f32.mrf.mxu0
  %v544 = vadd.f32 %v100, %v543
  %v545 = vpop.f32.mrf.mxu0
  %v546 = vadd.f32 %v104, %v545
  %547 = vmatprep.mubr.bf16.mxu0 %v200
  %548 = vmatmul.mubr.bf16.gmra.mxu0 %v199
  %v549 = vpop.f32.mrf.mxu0
  %v550 = vadd.f32 %v100, %v549
  %v551 = vpop.f32.mrf.mxu0
  %v552 = vadd.f32 %v104, %v551
  %v553 = vpop.f32.mrf.mxu0
  %v554 = vadd.f32 %v100, %v553
  %v555 = vpop.f32.mrf.mxu0
  %v556 = vadd.f32 %v104, %v555
  %557 = vmatprep.mubr.bf16.mxu0 %v203
  %558 = vmatmul.mubr.bf16.gmra.mxu0 %v202
  %v559 = vpop.f32.mrf.mxu0
  %v560 = vadd.f32 %v100, %v559
  %v561 = vpop.f32.mrf.mxu0
  %v562 = vadd.f32 %v104, %v561
  %v563 = vpop.f32.mrf.mxu0
  %v564 = vadd.f32 %v100, %v563
  %v565 = vpop.f32.mrf.mxu0
  %v566 = vadd.f32 %v104, %v565
  %567 = vmatprep.mubr.bf16.mxu0 %v206
  %568 = vmatmul.mubr.bf16.gmra.mxu0 %v205
  %v569 = vpop.f32.mrf.mxu0
  %v570 = vadd.f32 %v100, %v569
  %v571 = vpop.f32.mrf.mxu0
  %v572 = vadd.f32 %v104, %v571
  %v573 = vpop.f32.mrf.mxu0
  %v574 = vadd.f32 %v100, %v573
  %v575 = vpop.f32.mrf.mxu0
  %v576 = vadd.f32 %v104, %v575
  %577 = vmatprep.mubr.bf16.mxu0 %v209
  %578 = vmatmul.mubr.bf16.gmra.mxu0 %v208
  %v579 = vpop.f32.mrf.mxu0
  %v580 = vadd.f32 %v100, %v579
  %v581 = vpop.f32.mrf.mxu0
  %v582 = vadd.f32 %v104, %v581
  %v583 = vpop.f32.mrf.mxu0
  %v584 = vadd.f32 %v100, %v583
  %v585 = vpop.f32.mrf.mxu0
  %v586 = vadd.f32 %v104, %v585
  %587 = vdwg.mxu0
  %588 = vmatprep.subr.bf16.mxu0 %v426
  %589 = vmatpush1.bf16.msra.mxu0 %v425
  %590 = vmatprep.subr.bf16.mxu0 %v424
  %591 = vmatpush1.bf16.msra.mxu0 %v423
  %592 = vmatprep.subr.bf16.mxu0 %v422
  %593 = vmatpush1.bf16.msra.mxu0 %v421
  %594 = vmatprep.subr.bf16.mxu0 %v420
  %595 = vmatpush1.bf16.msra.mxu0 %v419
  %596 = vmatprep.subr.bf16.mxu0 %v418
  %597 = vmatpush1.bf16.msra.mxu0 %v417
  %598 = vmatprep.subr.bf16.mxu0 %v416
  %599 = vmatpush1.bf16.msra.mxu0 %v415
  %600 = vmatprep.subr.bf16.mxu0 %v414
  %601 = vmatpush1.bf16.msra.mxu0 %v413
  %602 = vmatprep.subr.bf16.mxu0 %v412
  %603 = vmatpush1.bf16.msra.mxu0 %v411
  %604 = vmatprep.subr.bf16.mxu0 0
  %605 = vmatpush2.bf16.msra.mxu0 0
  %606 = vmatprep.subr.bf16.mxu0 0
  %607 = vmatpush2.bf16.msra.mxu0 0
  %608 = vmatprep.subr.bf16.mxu0 0
  %609 = vmatpush2.bf16.msra.mxu0 0
  %610 = vmatprep.subr.bf16.mxu0 0
  %611 = vmatpush2.bf16.msra.mxu0 0
  %612 = vmatprep.subr.bf16.mxu0 0
  %613 = vmatpush2.bf16.msra.mxu0 0
  %614 = vmatprep.subr.bf16.mxu0 0
  %615 = vmatpush2.bf16.msra.mxu0 0
  %616 = vmatprep.subr.bf16.mxu0 0
  %617 = vmatpush2.bf16.msra.mxu0 0
  %618 = vmatprep.subr.bf16.mxu0 0
  %619 = vmatpush2.bf16.msra.mxu0 0
  %620 = vmatprep.mubr.bf16.mxu0 0
  %621 = vmatmul.mubr.bf16.gmra.mxu0 %v189
  %v622 = vpop.f32.mrf.mxu0
  %v623 = vadd.f32 %v510, %v622
  %v624 = vpop.f32.mrf.mxu0
  %v625 = vadd.f32 %v512, %v624
  %v626 = vpop.f32.mrf.mxu0
  %v627 = vadd.f32 %v514, %v626
  %v628 = vpop.f32.mrf.mxu0
  %v629 = vadd.f32 %v516, %v628
  %630 = vmatprep.mubr.bf16.mxu0 0
  %631 = vmatmul.mubr.bf16.gmra.mxu0 %v192
  %v632 = vpop.f32.mrf.mxu0
  %v633 = vadd.f32 %v520, %v632
  %v634 = vpop.f32.mrf.mxu0
  %v635 = vadd.f32 %v522, %v634
  %v636 = vpop.f32.mrf.mxu0
  %v637 = vadd.f32 %v524, %v636
  %v638 = vpop.f32.mrf.mxu0
  %v639 = vadd.f32 %v526, %v638
  %640 = vmatprep.mubr.bf16.mxu0 0
  %641 = vmatmul.mubr.bf16.gmra.mxu0 %v195
  %v642 = vpop.f32.mrf.mxu0
  %v643 = vadd.f32 %v530, %v642
  %v644 = vpop.f32.mrf.mxu0
  %v645 = vadd.f32 %v532, %v644
  %v646 = vpop.f32.mrf.mxu0
  %v647 = vadd.f32 %v534, %v646
  %v648 = vpop.f32.mrf.mxu0
  %v649 = vadd.f32 %v536, %v648
  %650 = vmatprep.mubr.bf16.mxu0 0
  %651 = vmatmul.mubr.bf16.gmra.mxu0 %v198
  %v652 = vpop.f32.mrf.mxu0
  %v653 = vadd.f32 %v540, %v652
  %v654 = vpop.f32.mrf.mxu0
  %v655 = vadd.f32 %v542, %v654
  %v656 = vpop.f32.mrf.mxu0
  %v657 = vadd.f32 %v544, %v656
  %v658 = vpop.f32.mrf.mxu0
  %v659 = vadd.f32 %v546, %v658
  %660 = vmatprep.mubr.bf16.mxu0 0
  %661 = vmatmul.mubr.bf16.gmra.mxu0 %v201
  %v662 = vpop.f32.mrf.mxu0
  %v663 = vadd.f32 %v550, %v662
  %v664 = vpop.f32.mrf.mxu0
  %v665 = vadd.f32 %v552, %v664
  %v666 = vpop.f32.mrf.mxu0
  %v667 = vadd.f32 %v554, %v666
  %v668 = vpop.f32.mrf.mxu0
  %v669 = vadd.f32 %v556, %v668
  %670 = vmatprep.mubr.bf16.mxu0 0
  %671 = vmatmul.mubr.bf16.gmra.mxu0 %v204
  %v672 = vpop.f32.mrf.mxu0
  %v673 = vadd.f32 %v560, %v672
  %v674 = vpop.f32.mrf.mxu0
  %v675 = vadd.f32 %v562, %v674
  %v676 = vpop.f32.mrf.mxu0
  %v677 = vadd.f32 %v564, %v676
  %v678 = vpop.f32.mrf.mxu0
  %v679 = vadd.f32 %v566, %v678
  %680 = vmatprep.mubr.bf16.mxu0 0
  %681 = vmatmul.mubr.bf16.gmra.mxu0 %v207
  %v682 = vpop.f32.mrf.mxu0
  %v683 = vadd.f32 %v570, %v682
  %v684 = vpop.f32.mrf.mxu0
  %v685 = vadd.f32 %v572, %v684
  %v686 = vpop.f32.mrf.mxu0
  %v687 = vadd.f32 %v574, %v686
  %v688 = vpop.f32.mrf.mxu0
  %v689 = vadd.f32 %v576, %v688
  %690 = vmatprep.mubr.bf16.mxu0 0
  %691 = vmatmul.mubr.bf16.gmra.mxu0 %v210
  %v692 = vpop.f32.mrf.mxu0
  %v693 = vadd.f32 %v580, %v692
  %v694 = vpop.f32.mrf.mxu0
  %v695 = vadd.f32 %v582, %v694
  %v696 = vpop.f32.mrf.mxu0
  %v697 = vadd.f32 %v584, %v696
  %v698 = vpop.f32.mrf.mxu0
  %v699 = vadd.f32 %v586, %v698
  %700 = vdwg.mxu0
  %v701 = vlaneseq
  %v702 = vand.u32 %v701, 127
  %v703 = vadd.s32 %v702, 128
  %vm704 = vcmp.lt.s32.totalorder %v702, 128
  %vm705 = vcmp.lt.s32.totalorder %v703, 128
  %v706 = vmax.f32 %v623, 0.0
  %v707 = vmax.f32 %v625, 0.0
  %v708 = vmax.f32 %v627, 0.0
  %v709 = vmax.f32 %v629, 0.0
  %v710 = vmax.f32 %v633, 0.0
  %v711 = vmax.f32 %v635, 0.0
  %v712 = vmax.f32 %v637, 0.0
  %v713 = vmax.f32 %v639, 0.0
  %v714 = vmax.f32 %v643, 0.0
  %v715 = vmax.f32 %v645, 0.0
  %v716 = vmax.f32 %v647, 0.0
  %v717 = vmax.f32 %v649, 0.0
  %v718 = vmax.f32 %v653, 0.0
  %v719 = vmax.f32 %v655, 0.0
  %v720 = vmax.f32 %v657, 0.0
  %v721 = vmax.f32 %v659, 0.0
  %v722 = vmax.f32 %v663, 0.0
  %v723 = vmax.f32 %v665, 0.0
  %v724 = vmax.f32 %v667, 0.0
  %v725 = vmax.f32 %v669, 0.0
  %v726 = vmax.f32 %v673, 0.0
  %v727 = vmax.f32 %v675, 0.0
  %v728 = vmax.f32 %v677, 0.0
  %v729 = vmax.f32 %v679, 0.0
  %v730 = vmax.f32 %v683, 0.0
  %v731 = vmax.f32 %v685, 0.0
  %v732 = vmax.f32 %v687, 0.0
  %v733 = vmax.f32 %v689, 0.0
  %v734 = vmax.f32 %v693, 0.0
  %v735 = vmax.f32 %v695, 0.0
  %v736 = vmax.f32 %v697, 0.0
  %v737 = vmax.f32 %v699, 0.0
  %v738 = vsel %vm704, %v706, %v623
  %v739 = vsel %vm705, %v707, %v625
  %v740 = vsel %vm704, %v708, %v627
  %v741 = vsel %vm705, %v709, %v629
  %v742 = vsel %vm704, %v710, %v633
  %v743 = vsel %vm705, %v711, %v635
  %v744 = vsel %vm704, %v712, %v637
  %v745 = vsel %vm705, %v713, %v639
  %v746 = vsel %vm704, %v714, %v643
  %v747 = vsel %vm705, %v715, %v645
  %v748 = vsel %vm704, %v716, %v647
  %v749 = vsel %vm705, %v717, %v649
  %v750 = vsel %vm704, %v718, %v653
  %v751 = vsel %vm705, %v719, %v655
  %v752 = vsel %vm704, %v720, %v657
  %v753 = vsel %vm705, %v721, %v659
  %v754 = vsel %vm704, %v722, %v663
  %v755 = vsel %vm705, %v723, %v665
  %v756 = vsel %vm704, %v724, %v667
  %v757 = vsel %vm705, %v725, %v669
  %v758 = vsel %vm704, %v726, %v673
  %v759 = vsel %vm705, %v727, %v675
  %v760 = vsel %vm704, %v728, %v677
  %v761 = vsel %vm705, %v729, %v679
  %v762 = vsel %vm704, %v730, %v683
  %v763 = vsel %vm705, %v731, %v685
  %v764 = vsel %vm704, %v732, %v687
  %v765 = vsel %vm705, %v733, %v689
  %v766 = vsel %vm704, %v734, %v693
  %v767 = vsel %vm705, %v735, %v695
  %v768 = vsel %vm704, %v736, %v697
  %v769 = vsel %vm705, %v737, %v699
  %v770 = vpack.c.bf16 %v740, %v738
  %v771 = vpack.c.bf16 %v741, %v739
  %v772 = vpack.c.bf16 %v744, %v742
  %v773 = vpack.c.bf16 %v745, %v743
  %v774 = vpack.c.bf16 %v748, %v746
  %v775 = vpack.c.bf16 %v749, %v747
  %v776 = vpack.c.bf16 %v752, %v750
  %v777 = vpack.c.bf16 %v753, %v751
  %v778 = vpack.c.bf16 %v756, %v754
  %v779 = vpack.c.bf16 %v757, %v755
  %v780 = vpack.c.bf16 %v760, %v758
  %v781 = vpack.c.bf16 %v761, %v759
  %v782 = vpack.c.bf16 %v764, %v762
  %v783 = vpack.c.bf16 %v765, %v763
  %v784 = vpack.c.bf16 %v768, %v766
  %v785 = vpack.c.bf16 %v769, %v767
  %v802 = vunpack.c.l.b16 %v770
  %v803 = vunpack.c.l.b16 %v771
  %v804 = vunpack.c.h.b16 %v770
  %v805 = vunpack.c.h.b16 %v771
  %v806 = vunpack.c.l.b16 %v772
  %v807 = vunpack.c.l.b16 %v773
  %v808 = vunpack.c.h.b16 %v772
  %v809 = vunpack.c.h.b16 %v773
  %v810 = vunpack.c.l.b16 %v774
  %v811 = vunpack.c.l.b16 %v775
  %v812 = vunpack.c.h.b16 %v774
  %v813 = vunpack.c.h.b16 %v775
  %v814 = vunpack.c.l.b16 %v776
  %v815 = vunpack.c.l.b16 %v777
  %v816 = vunpack.c.h.b16 %v776
  %v817 = vunpack.c.h.b16 %v777
  %v818 = vunpack.c.l.b16 %v778
  %v819 = vunpack.c.l.b16 %v779
  %v820 = vunpack.c.h.b16 %v778
  %v821 = vunpack.c.h.b16 %v779
  %v822 = vunpack.c.l.b16 %v780
  %v823 = vunpack.c.l.b16 %v781
  %v824 = vunpack.c.h.b16 %v780
  %v825 = vunpack.c.h.b16 %v781
  %v826 = vunpack.c.l.b16 %v782
  %v827 = vunpack.c.l.b16 %v783
  %v828 = vunpack.c.h.b16 %v782
  %v829 = vunpack.c.h.b16 %v783
  %v830 = vunpack.c.l.b16 %v784
  %v831 = vunpack.c.l.b16 %v785
  %v832 = vunpack.c.h.b16 %v784
  %v833 = vunpack.c.h.b16 %v785
  %v834 = vpack.c.b16 %v803, %v802
  %v835 = vpack.c.b16 %v805, %v804
  %v836 = vpack.c.b16 %v807, %v806
  %v837 = vpack.c.b16 %v809, %v808
  %v838 = vpack.c.b16 %v811, %v810
  %v839 = vpack.c.b16 %v813, %v812
  %v840 = vpack.c.b16 %v815, %v814
  %v841 = vpack.c.b16 %v817, %v816
  %v842 = vpack.c.b16 %v819, %v818
  %v843 = vpack.c.b16 %v821, %v820
  %v844 = vpack.c.b16 %v823, %v822
  %v845 = vpack.c.b16 %v825, %v824
  %v846 = vpack.c.b16 %v827, %v826
  %v847 = vpack.c.b16 %v829, %v828
  %v848 = vpack.c.b16 %v831, %v830
  %v849 = vpack.c.b16 %v833, %v832
  %866 = vst [vmem:[%s3] sm:$0xff] %v834
  %867 = vst [vmem:[%s3 + $0x8] sm:$0xff] %v835
  %868 = vst [vmem:[%s3 + $0x10] sm:$0xff] %v836
  %869 = vst [vmem:[%s3 + $0x18] sm:$0xff] %v837
  %870 = vst [vmem:[%s3 + $0x20] sm:$0xff] %v838
  %871 = vst [vmem:[%s3 + $0x28] sm:$0xff] %v839
  %872 = vst [vmem:[%s3 + $0x30] sm:$0xff] %v840
  %873 = vst [vmem:[%s3 + $0x38] sm:$0xff] %v841
  %874 = vst [vmem:[%s3 + $0x40] sm:$0xff] %v842
  %875 = vst [vmem:[%s3 + $0x48] sm:$0xff] %v843
  %876 = vst [vmem:[%s3 + $0x50] sm:$0xff] %v844
  %877 = vst [vmem:[%s3 + $0x58] sm:$0xff] %v845
  %878 = vst [vmem:[%s3 + $0x60] sm:$0xff] %v846
  %879 = vst [vmem:[%s3 + $0x68] sm:$0xff] %v847
  %880 = vst [vmem:[%s3 + $0x70] sm:$0xff] %v848
  %881 = vst [vmem:[%s3 + $0x78] sm:$0xff] %v849
  // Predicated region
  $region14: #{_lambda_.15} parent=0 // pred_check
    _
  $region15: #{_lambda_.15} parent=0 // pred_check_branch
    %883 = sbr.rel (0) target = $region17
  $region16: #{_lambda_.15} parent=0 // pred_region
    _
  $region17: #{_lambda_.15} parent=0 // pred_fallthru
    _
  // Predicated region
  $region18: #{_lambda_.15} parent=0 // pred_check
    _
  $region19: #{_lambda_.15} parent=0 // pred_check_branch
    %885 = sbr.rel (0) target = $region21
  $region20: #{_lambda_.15} parent=0 // pred_region
    _
  $region21: #{_lambda_.15} parent=0 // pred_fallthru
    _

// kernel: _lambda_.16
$region0: #{_lambda_.16}
  #allocation0 [shape = 'u32[]', space=smem, size = 0x4, offset = 0x4, fixed_abs, tag = 'smem constant byte address 0x4 - core index']
  #allocation1 [shape = 'u32[144,128]{1,0:T(1,128)}', space=vmem, size = 0x12000, scoped, tag = 'internal scratch']
  %s0 = inlined_call_operand.vmem [shape: bf16[128,384], index: 0, kind: input, shape index: {}]
  %s1 = inlined_call_operand.vmem [shape: bf16[384,128], index: 1, kind: input, shape index: {}]
  %s2 = inlined_call_operand.vmem [shape: f32[1,128], index: 2, kind: input, shape index: {}]
  %s3 = inlined_call_operand.vmem [shape: bf16[128,128], index: 3, kind: input, shape index: {}]
  %s4 = inlined_call_operand.vmem [shape: bf16[128,128], index: 4, kind: output, shape index: {}]
  %s5 = sld [smem:[#allocation0]]
  $region26: #{_lambda_.16} parent=0
    _
  %s7 = ssub.s32 1, %s5
  %s8 = scalar_select 0, %s7, %s5
  // Predicated region
  $region2: #{_lambda_.16} parent=0 // pred_check
    _
  $region3: #{_lambda_.16} parent=0 // pred_check_branch
    %10 = sbr.rel (0) target = $region5
  $region4: #{_lambda_.16} parent=0 // pred_region
    _
  $region5: #{_lambda_.16} parent=0 // pred_fallthru
    _
  // Predicated region
  $region6: #{_lambda_.16} parent=0 // pred_check
    _
  $region7: #{_lambda_.16} parent=0 // pred_check_branch
    %12 = sbr.rel (0) target = $region9
  $region8: #{_lambda_.16} parent=0 // pred_region
    _
  $region9: #{_lambda_.16} parent=0 // pred_fallthru
    _
  // Predicated region
  $region10: #{_lambda_.16} parent=0 // pred_check
    _
  $region11: #{_lambda_.16} parent=0 // pred_check_branch
    %14 = sbr.rel (0) target = $region13
  $region12: #{_lambda_.16} parent=0 // pred_region
    _
  $region13: #{_lambda_.16} parent=0 // pred_fallthru
    _
  // Predicated region
  $region14: #{_lambda_.16} parent=0 // pred_check
    _
  $region15: #{_lambda_.16} parent=0 // pred_check_branch
    %16 = sbr.rel (0) target = $region17
  $region16: #{_lambda_.16} parent=0 // pred_region
    _
  $region17: #{_lambda_.16} parent=0 // pred_fallthru
    _
  %v18 = vld [vmem:[%s0] sm:$0xff]
  %v19 = vld [vmem:[%s0 + $0x8] sm:$0xf]
  %v20 = vld [vmem:[%s0 + $0xc] sm:$0xff]
  %v21 = vld [vmem:[%s0 + $0x14] sm:$0xf]
  %v22 = vld [vmem:[%s0 + $0x18] sm:$0xff]
  %v23 = vld [vmem:[%s0 + $0x20] sm:$0xf]
  %v24 = vld [vmem:[%s0 + $0x24] sm:$0xff]
  %v25 = vld [vmem:[%s0 + $0x2c] sm:$0xf]
  %v26 = vld [vmem:[%s0 + $0x30] sm:$0xff]
  %v27 = vld [vmem:[%s0 + $0x38] sm:$0xf]
  %v28 = vld [vmem:[%s0 + $0x3c] sm:$0xff]
  %v29 = vld [vmem:[%s0 + $0x44] sm:$0xf]
  %v30 = vld [vmem:[%s0 + $0x48] sm:$0xff]
  %v31 = vld [vmem:[%s0 + $0x50] sm:$0xf]
  %v32 = vld [vmem:[%s0 + $0x54] sm:$0xff]
  %v33 = vld [vmem:[%s0 + $0x5c] sm:$0xf]
  %v34 = vld [vmem:[%s0 + $0x60] sm:$0xff]
  %v35 = vld [vmem:[%s0 + $0x68] sm:$0xf]
  %v36 = vld [vmem:[%s0 + $0x6c] sm:$0xff]
  %v37 = vld [vmem:[%s0 + $0x74] sm:$0xf]
  %v38 = vld [vmem:[%s0 + $0x78] sm:$0xff]
  %v39 = vld [vmem:[%s0 + $0x80] sm:$0xf]
  %v40 = vld [vmem:[%s0 + $0x84] sm:$0xff]
  %v41 = vld [vmem:[%s0 + $0x8c] sm:$0xf]
  %v42 = vld [vmem:[%s0 + $0x90] sm:$0xff]
  %v43 = vld [vmem:[%s0 + $0x98] sm:$0xf]
  %v44 = vld [vmem:[%s0 + $0x9c] sm:$0xff]
  %v45 = vld [vmem:[%s0 + $0xa4] sm:$0xf]
  %v46 = vld [vmem:[%s0 + $0xa8] sm:$0xff]
  %v47 = vld [vmem:[%s0 + $0xb0] sm:$0xf]
  %v48 = vld [vmem:[%s0 + $0xb4] sm:$0xff]
  %v49 = vld [vmem:[%s0 + $0xbc] sm:$0xf]
  %v50 = vld [vmem:[%s1] sm:$0xf]
  %v51 = vld [vmem:[%s1 + $0x4] sm:$0xf]
  %v52 = vld [vmem:[%s1 + $0x8] sm:$0xf]
  %v53 = vld [vmem:[%s1 + $0xc] sm:$0xf]
  %v54 = vld [vmem:[%s1 + $0x10] sm:$0xf]
  %v55 = vld [vmem:[%s1 + $0x14] sm:$0xf]
  %v56 = vld [vmem:[%s1 + $0x18] sm:$0xf]
  %v57 = vld [vmem:[%s1 + $0x1c] sm:$0xf]
  %v58 = vld [vmem:[%s1 + $0x20] sm:$0xf]
  %v59 = vld [vmem:[%s1 + $0x24] sm:$0xf]
  %v60 = vld [vmem:[%s1 + $0x28] sm:$0xf]
  %v61 = vld [vmem:[%s1 + $0x2c] sm:$0xf]
  %v62 = vld [vmem:[%s1 + $0x30] sm:$0xf]
  %v63 = vld [vmem:[%s1 + $0x34] sm:$0xf]
  %v64 = vld [vmem:[%s1 + $0x38] sm:$0xf]
  %v65 = vld [vmem:[%s1 + $0x3c] sm:$0xf]
  %v66 = vld [vmem:[%s1 + $0x40] sm:$0xf]
  %v67 = vld [vmem:[%s1 + $0x44] sm:$0xf]
  %v68 = vld [vmem:[%s1 + $0x48] sm:$0xf]
  %v69 = vld [vmem:[%s1 + $0x4c] sm:$0xf]
  %v70 = vld [vmem:[%s1 + $0x50] sm:$0xf]
  %v71 = vld [vmem:[%s1 + $0x54] sm:$0xf]
  %v72 = vld [vmem:[%s1 + $0x58] sm:$0xf]
  %v73 = vld [vmem:[%s1 + $0x5c] sm:$0xf]
  %v74 = vld [vmem:[%s1 + $0x60] sm:$0xf]
  %v75 = vld [vmem:[%s1 + $0x64] sm:$0xf]
  %v76 = vld [vmem:[%s1 + $0x68] sm:$0xf]
  %v77 = vld [vmem:[%s1 + $0x6c] sm:$0xf]
  %v78 = vld [vmem:[%s1 + $0x70] sm:$0xf]
  %v79 = vld [vmem:[%s1 + $0x74] sm:$0xf]
  %v80 = vld [vmem:[%s1 + $0x78] sm:$0xf]
  %v81 = vld [vmem:[%s1 + $0x7c] sm:$0xf]
  %v82 = vld [vmem:[%s1 + $0x80] sm:$0xf]
  %v83 = vld [vmem:[%s1 + $0x84] sm:$0xf]
  %v84 = vld [vmem:[%s1 + $0x88] sm:$0xf]
  %v85 = vld [vmem:[%s1 + $0x8c] sm:$0xf]
  %v86 = vld [vmem:[%s1 + $0x90] sm:$0xf]
  %v87 = vld [vmem:[%s1 + $0x94] sm:$0xf]
  %v88 = vld [vmem:[%s1 + $0x98] sm:$0xf]
  %v89 = vld [vmem:[%s1 + $0x9c] sm:$0xf]
  %v90 = vld [vmem:[%s1 + $0xa0] sm:$0xf]
  %v91 = vld [vmem:[%s1 + $0xa4] sm:$0xf]
  %v92 = vld [vmem:[%s1 + $0xa8] sm:$0xf]
  %v93 = vld [vmem:[%s1 + $0xac] sm:$0xf]
  %v94 = vld [vmem:[%s1 + $0xb0] sm:$0xf]
  %v95 = vld [vmem:[%s1 + $0xb4] sm:$0xf]
  %v96 = vld [vmem:[%s1 + $0xb8] sm:$0xf]
  %v97 = vld [vmem:[%s1 + $0xbc] sm:$0xf]
  %v98 = vld [vmem:[%s2] sm:$0x1]
  %v100 = vlaneseq
  %v101 = vshrl.u32 %v100, 7
  %v102 = vsub.s32 0, %v101
  %v103 = vrot.slane %v98, %v102
  %v137 = vunpack.c.l.b16 %v18
  %v138 = vunpack.c.h.b16 %v18
  %v139 = vunpack.c.l.b16 %v19
  %v140 = vunpack.c.l.b16 %v20
  %v141 = vunpack.c.h.b16 %v20
  %v142 = vunpack.c.l.b16 %v21
  %v143 = vunpack.c.l.b16 %v22
  %v144 = vunpack.c.h.b16 %v22
  %v145 = vunpack.c.l.b16 %v23
  %v146 = vunpack.c.l.b16 %v24
  %v147 = vunpack.c.h.b16 %v24
  %v148 = vunpack.c.l.b16 %v25
  %v149 = vunpack.c.l.b16 %v26
  %v150 = vunpack.c.h.b16 %v26
  %v151 = vunpack.c.l.b16 %v27
  %v152 = vunpack.c.l.b16 %v28
  %v153 = vunpack.c.h.b16 %v28
  %v154 = vunpack.c.l.b16 %v29
  %v155 = vunpack.c.l.b16 %v30
  %v156 = vunpack.c.h.b16 %v30
  %v157 = vunpack.c.l.b16 %v31
  %v158 = vunpack.c.l.b16 %v32
  %v159 = vunpack.c.h.b16 %v32
  %v160 = vunpack.c.l.b16 %v33
  %v161 = vunpack.c.l.b16 %v34
  %v162 = vunpack.c.h.b16 %v34
  %v163 = vunpack.c.l.b16 %v35
  %v164 = vunpack.c.l.b16 %v36
  %v165 = vunpack.c.h.b16 %v36
  %v166 = vunpack.c.l.b16 %v37
  %v167 = vunpack.c.l.b16 %v38
  %v168 = vunpack.c.h.b16 %v38
  %v169 = vunpack.c.l.b16 %v39
  %v170 = vunpack.c.l.b16 %v40
  %v171 = vunpack.c.h.b16 %v40
  %v172 = vunpack.c.l.b16 %v41
  %v173 = vunpack.c.l.b16 %v42
  %v174 = vunpack.c.h.b16 %v42
  %v175 = vunpack.c.l.b16 %v43
  %v176 = vunpack.c.l.b16 %v44
  %v177 = vunpack.c.h.b16 %v44
  %v178 = vunpack.c.l.b16 %v45
  %v179 = vunpack.c.l.b16 %v46
  %v180 = vunpack.c.h.b16 %v46
  %v181 = vunpack.c.l.b16 %v47
  %v182 = vunpack.c.l.b16 %v48
  %v183 = vunpack.c.h.b16 %v48
  %v184 = vunpack.c.l.b16 %v49
  %v185 = vpack.c.b16 %v140, %v137
  %v186 = vpack.c.b16 %v141, %v138
  %v187 = vpack.c.b16 %v142, %v139
  %v188 = vpack.c.b16 %v146, %v143
  %v189 = vpack.c.b16 %v147, %v144
  %v190 = vpack.c.b16 %v148, %v145
  %v191 = vpack.c.b16 %v152, %v149
  %v192 = vpack.c.b16 %v153, %v150
  %v193 = vpack.c.b16 %v154, %v151
  %v194 = vpack.c.b16 %v158, %v155
  %v195 = vpack.c.b16 %v159, %v156
  %v196 = vpack.c.b16 %v160, %v157
  %v197 = vpack.c.b16 %v164, %v161
  %v198 = vpack.c.b16 %v165, %v162
  %v199 = vpack.c.b16 %v166, %v163
  %v200 = vpack.c.b16 %v170, %v167
  %v201 = vpack.c.b16 %v171, %v168
  %v202 = vpack.c.b16 %v172, %v169
  %v203 = vpack.c.b16 %v176, %v173
  %v204 = vpack.c.b16 %v177, %v174
  %v205 = vpack.c.b16 %v178, %v175
  %v206 = vpack.c.b16 %v182, %v179
  %v207 = vpack.c.b16 %v183, %v180
  %v208 = vpack.c.b16 %v184, %v181
  %v281 = vunpack.c.l.b16 %v50
  %v282 = vunpack.c.l.b16 %v51
  %v283 = vunpack.c.l.b16 %v52
  %v284 = vunpack.c.l.b16 %v53
  %v285 = vunpack.c.l.b16 %v54
  %v286 = vunpack.c.l.b16 %v55
  %v287 = vunpack.c.l.b16 %v56
  %v288 = vunpack.c.l.b16 %v57
  %v289 = vunpack.c.l.b16 %v58
  %v290 = vunpack.c.l.b16 %v59
  %v291 = vunpack.c.l.b16 %v60
  %v292 = vunpack.c.l.b16 %v61
  %v293 = vunpack.c.l.b16 %v62
  %v294 = vunpack.c.l.b16 %v63
  %v295 = vunpack.c.l.b16 %v64
  %v296 = vunpack.c.l.b16 %v65
  %v297 = vunpack.c.l.b16 %v66
  %v298 = vunpack.c.l.b16 %v67
  %v299 = vunpack.c.l.b16 %v68
  %v300 = vunpack.c.l.b16 %v69
  %v301 = vunpack.c.l.b16 %v70
  %v302 = vunpack.c.l.b16 %v71
  %v303 = vunpack.c.l.b16 %v72
  %v304 = vunpack.c.l.b16 %v73
  %v305 = vunpack.c.l.b16 %v74
  %v306 = vunpack.c.l.b16 %v75
  %v307 = vunpack.c.l.b16 %v76
  %v308 = vunpack.c.l.b16 %v77
  %v309 = vunpack.c.l.b16 %v78
  %v310 = vunpack.c.l.b16 %v79
  %v311 = vunpack.c.l.b16 %v80
  %v312 = vunpack.c.l.b16 %v81
  %v313 = vunpack.c.l.b16 %v82
  %v314 = vunpack.c.l.b16 %v83
  %v315 = vunpack.c.l.b16 %v84
  %v316 = vunpack.c.l.b16 %v85
  %v317 = vunpack.c.l.b16 %v86
  %v318 = vunpack.c.l.b16 %v87
  %v319 = vunpack.c.l.b16 %v88
  %v320 = vunpack.c.l.b16 %v89
  %v321 = vunpack.c.l.b16 %v90
  %v322 = vunpack.c.l.b16 %v91
  %v323 = vunpack.c.l.b16 %v92
  %v324 = vunpack.c.l.b16 %v93
  %v325 = vunpack.c.l.b16 %v94
  %v326 = vunpack.c.l.b16 %v95
  %v327 = vunpack.c.l.b16 %v96
  %v328 = vunpack.c.l.b16 %v97
  %v329 = vpack.c.b16 %v282, %v281
  %v330 = vpack.c.b16 %v284, %v283
  %v331 = vpack.c.b16 %v286, %v285
  %v332 = vpack.c.b16 %v288, %v287
  %v333 = vpack.c.b16 %v290, %v289
  %v334 = vpack.c.b16 %v292, %v291
  %v335 = vpack.c.b16 %v294, %v293
  %v336 = vpack.c.b16 %v296, %v295
  %v337 = vpack.c.b16 %v298, %v297
  %v338 = vpack.c.b16 %v300, %v299
  %v339 = vpack.c.b16 %v302, %v301
  %v340 = vpack.c.b16 %v304, %v303
  %v341 = vpack.c.b16 %v306, %v305
  %v342 = vpack.c.b16 %v308, %v307
  %v343 = vpack.c.b16 %v310, %v309
  %v344 = vpack.c.b16 %v312, %v311
  %v345 = vpack.c.b16 %v314, %v313
  %v346 = vpack.c.b16 %v316, %v315
  %v347 = vpack.c.b16 %v318, %v317
  %v348 = vpack.c.b16 %v320, %v319
  %v349 = vpack.c.b16 %v322, %v321
  %v350 = vpack.c.b16 %v324, %v323
  %v351 = vpack.c.b16 %v326, %v325
  %v352 = vpack.c.b16 %v328, %v327
  %377 = vmatprep.subr.bf16.mxu0 0
  %378 = vmatpush1.bf16.msra.mxu0 %v336
  %379 = vmatprep.subr.bf16.mxu0 0
  %380 = vmatpush1.bf16.msra.mxu0 %v335
  %381 = vmatprep.subr.bf16.mxu0 0
  %382 = vmatpush1.bf16.msra.mxu0 %v334
  %383 = vmatprep.subr.bf16.mxu0 0
  %384 = vmatpush1.bf16.msra.mxu0 %v333
  %385 = vmatprep.subr.bf16.mxu0 0
  %386 = vmatpush1.bf16.msra.mxu0 %v332
  %387 = vmatprep.subr.bf16.mxu0 0
  %388 = vmatpush1.bf16.msra.mxu0 %v331
  %389 = vmatprep.subr.bf16.mxu0 0
  %390 = vmatpush1.bf16.msra.mxu0 %v330
  %391 = vmatprep.subr.bf16.mxu0 0
  %392 = vmatpush1.bf16.msra.mxu0 %v329
  %393 = vmatprep.subr.bf16.mxu0 0
  %394 = vmatpush2.bf16.msra.mxu0 %v344
  %395 = vmatprep.subr.bf16.mxu0 0
  %396 = vmatpush2.bf16.msra.mxu0 %v343
  %397 = vmatprep.subr.bf16.mxu0 0
  %398 = vmatpush2.bf16.msra.mxu0 %v342
  %399 = vmatprep.subr.bf16.mxu0 0
  %400 = vmatpush2.bf16.msra.mxu0 %v341
  %401 = vmatprep.subr.bf16.mxu0 0
  %402 = vmatpush2.bf16.msra.mxu0 %v340
  %403 = vmatprep.subr.bf16.mxu0 0
  %404 = vmatpush2.bf16.msra.mxu0 %v339
  %405 = vmatprep.subr.bf16.mxu0 0
  %406 = vmatpush2.bf16.msra.mxu0 %v338
  %407 = vmatprep.subr.bf16.mxu0 0
  %408 = vmatpush2.bf16.msra.mxu0 %v337
  %409 = vmatprep.mubr.bf16.mxu0 %v186
  %410 = vmatmul.mubr.bf16.gmra.mxu0 %v185
  %v411 = vpop.f32.mrf.mxu0
  %v412 = vadd.f32 %v103, %v411
  %v413 = vpop.f32.mrf.mxu0
  %v414 = vpop.f32.mrf.mxu0
  %v415 = vadd.f32 %v103, %v414
  %v416 = vpop.f32.mrf.mxu0
  %417 = vmatprep.mubr.bf16.mxu0 %v189
  %418 = vmatmul.mubr.bf16.gmra.mxu0 %v188
  %v419 = vpop.f32.mrf.mxu0
  %v420 = vadd.f32 %v103, %v419
  %v421 = vpop.f32.mrf.mxu0
  %v422 = vpop.f32.mrf.mxu0
  %v423 = vadd.f32 %v103, %v422
  %v424 = vpop.f32.mrf.mxu0
  %425 = vmatprep.mubr.bf16.mxu0 %v192
  %426 = vmatmul.mubr.bf16.gmra.mxu0 %v191
  %v427 = vpop.f32.mrf.mxu0
  %v428 = vadd.f32 %v103, %v427
  %v429 = vpop.f32.mrf.mxu0
  %v430 = vpop.f32.mrf.mxu0
  %v431 = vadd.f32 %v103, %v430
  %v432 = vpop.f32.mrf.mxu0
  %433 = vmatprep.mubr.bf16.mxu0 %v195
  %434 = vmatmul.mubr.bf16.gmra.mxu0 %v194
  %v435 = vpop.f32.mrf.mxu0
  %v436 = vadd.f32 %v103, %v435
  %v437 = vpop.f32.mrf.mxu0
  %v438 = vpop.f32.mrf.mxu0
  %v439 = vadd.f32 %v103, %v438
  %v440 = vpop.f32.mrf.mxu0
  %441 = vmatprep.mubr.bf16.mxu0 %v198
  %442 = vmatmul.mubr.bf16.gmra.mxu0 %v197
  %v443 = vpop.f32.mrf.mxu0
  %v444 = vadd.f32 %v103, %v443
  %v445 = vpop.f32.mrf.mxu0
  %v446 = vpop.f32.mrf.mxu0
  %v447 = vadd.f32 %v103, %v446
  %v448 = vpop.f32.mrf.mxu0
  %449 = vmatprep.mubr.bf16.mxu0 %v201
  %450 = vmatmul.mubr.bf16.gmra.mxu0 %v200
  %v451 = vpop.f32.mrf.mxu0
  %v452 = vadd.f32 %v103, %v451
  %v453 = vpop.f32.mrf.mxu0
  %v454 = vpop.f32.mrf.mxu0
  %v455 = vadd.f32 %v103, %v454
  %v456 = vpop.f32.mrf.mxu0
  %457 = vmatprep.mubr.bf16.mxu0 %v204
  %458 = vmatmul.mubr.bf16.gmra.mxu0 %v203
  %v459 = vpop.f32.mrf.mxu0
  %v460 = vadd.f32 %v103, %v459
  %v461 = vpop.f32.mrf.mxu0
  %v462 = vpop.f32.mrf.mxu0
  %v463 = vadd.f32 %v103, %v462
  %v464 = vpop.f32.mrf.mxu0
  %465 = vmatprep.mubr.bf16.mxu0 %v207
  %466 = vmatmul.mubr.bf16.gmra.mxu0 %v206
  %v467 = vpop.f32.mrf.mxu0
  %v468 = vadd.f32 %v103, %v467
  %v469 = vpop.f32.mrf.mxu0
  %v470 = vpop.f32.mrf.mxu0
  %v471 = vadd.f32 %v103, %v470
  %v472 = vpop.f32.mrf.mxu0
  %473 = vdwg.mxu0
  %474 = vmatprep.subr.bf16.mxu0 0
  %475 = vmatpush1.bf16.msra.mxu0 %v352
  %476 = vmatprep.subr.bf16.mxu0 0
  %477 = vmatpush1.bf16.msra.mxu0 %v351
  %478 = vmatprep.subr.bf16.mxu0 0
  %479 = vmatpush1.bf16.msra.mxu0 %v350
  %480 = vmatprep.subr.bf16.mxu0 0
  %481 = vmatpush1.bf16.msra.mxu0 %v349
  %482 = vmatprep.subr.bf16.mxu0 0
  %483 = vmatpush1.bf16.msra.mxu0 %v348
  %484 = vmatprep.subr.bf16.mxu0 0
  %485 = vmatpush1.bf16.msra.mxu0 %v347
  %486 = vmatprep.subr.bf16.mxu0 0
  %487 = vmatpush1.bf16.msra.mxu0 %v346
  %488 = vmatprep.subr.bf16.mxu0 0
  %489 = vmatpush1.bf16.msra.mxu0 %v345
  %490 = vmatprep.subr.bf16.mxu0 0
  %491 = vmatpush2.bf16.msra.mxu0 0
  %492 = vmatprep.subr.bf16.mxu0 0
  %493 = vmatpush2.bf16.msra.mxu0 0
  %494 = vmatprep.subr.bf16.mxu0 0
  %495 = vmatpush2.bf16.msra.mxu0 0
  %496 = vmatprep.subr.bf16.mxu0 0
  %497 = vmatpush2.bf16.msra.mxu0 0
  %498 = vmatprep.subr.bf16.mxu0 0
  %499 = vmatpush2.bf16.msra.mxu0 0
  %500 = vmatprep.subr.bf16.mxu0 0
  %501 = vmatpush2.bf16.msra.mxu0 0
  %502 = vmatprep.subr.bf16.mxu0 0
  %503 = vmatpush2.bf16.msra.mxu0 0
  %504 = vmatprep.subr.bf16.mxu0 0
  %505 = vmatpush2.bf16.msra.mxu0 0
  %506 = vmatprep.mubr.bf16.mxu0 0
  %507 = vmatmul.mubr.bf16.gmra.mxu0 %v187
  %v508 = vpop.f32.mrf.mxu0
  %v509 = vadd.f32 %v412, %v508
  %v510 = vpop.f32.mrf.mxu0
  %v511 = vpop.f32.mrf.mxu0
  %v512 = vadd.f32 %v415, %v511
  %v513 = vpop.f32.mrf.mxu0
  %514 = vmatprep.mubr.bf16.mxu0 0
  %515 = vmatmul.mubr.bf16.gmra.mxu0 %v190
  %v516 = vpop.f32.mrf.mxu0
  %v517 = vadd.f32 %v420, %v516
  %v518 = vpop.f32.mrf.mxu0
  %v519 = vpop.f32.mrf.mxu0
  %v520 = vadd.f32 %v423, %v519
  %v521 = vpop.f32.mrf.mxu0
  %522 = vmatprep.mubr.bf16.mxu0 0
  %523 = vmatmul.mubr.bf16.gmra.mxu0 %v193
  %v524 = vpop.f32.mrf.mxu0
  %v525 = vadd.f32 %v428, %v524
  %v526 = vpop.f32.mrf.mxu0
  %v527 = vpop.f32.mrf.mxu0
  %v528 = vadd.f32 %v431, %v527
  %v529 = vpop.f32.mrf.mxu0
  %530 = vmatprep.mubr.bf16.mxu0 0
  %531 = vmatmul.mubr.bf16.gmra.mxu0 %v196
  %v532 = vpop.f32.mrf.mxu0
  %v533 = vadd.f32 %v436, %v532
  %v534 = vpop.f32.mrf.mxu0
  %v535 = vpop.f32.mrf.mxu0
  %v536 = vadd.f32 %v439, %v535
  %v537 = vpop.f32.mrf.mxu0
  %538 = vmatprep.mubr.bf16.mxu0 0
  %539 = vmatmul.mubr.bf16.gmra.mxu0 %v199
  %v540 = vpop.f32.mrf.mxu0
  %v541 = vadd.f32 %v444, %v540
  %v542 = vpop.f32.mrf.mxu0
  %v543 = vpop.f32.mrf.mxu0
  %v544 = vadd.f32 %v447, %v543
  %v545 = vpop.f32.mrf.mxu0
  %546 = vmatprep.mubr.bf16.mxu0 0
  %547 = vmatmul.mubr.bf16.gmra.mxu0 %v202
  %v548 = vpop.f32.mrf.mxu0
  %v549 = vadd.f32 %v452, %v548
  %v550 = vpop.f32.mrf.mxu0
  %v551 = vpop.f32.mrf.mxu0
  %v552 = vadd.f32 %v455, %v551
  %v553 = vpop.f32.mrf.mxu0
  %554 = vmatprep.mubr.bf16.mxu0 0
  %555 = vmatmul.mubr.bf16.gmra.mxu0 %v205
  %v556 = vpop.f32.mrf.mxu0
  %v557 = vadd.f32 %v460, %v556
  %v558 = vpop.f32.mrf.mxu0
  %v559 = vpop.f32.mrf.mxu0
  %v560 = vadd.f32 %v463, %v559
  %v561 = vpop.f32.mrf.mxu0
  %562 = vmatprep.mubr.bf16.mxu0 0
  %563 = vmatmul.mubr.bf16.gmra.mxu0 %v208
  %v564 = vpop.f32.mrf.mxu0
  %v565 = vadd.f32 %v468, %v564
  %v566 = vpop.f32.mrf.mxu0
  %v567 = vpop.f32.mrf.mxu0
  %v568 = vadd.f32 %v471, %v567
  %v569 = vpop.f32.mrf.mxu0
  %570 = vdwg.mxu0
  %v571 = vld [vmem:[%s3] sm:$0xf]
  %v572 = vld [vmem:[%s3 + $0x4] sm:$0xf]
  %v573 = vld [vmem:[%s3 + $0x8] sm:$0xf]
  %v574 = vld [vmem:[%s3 + $0xc] sm:$0xf]
  %v575 = vld [vmem:[%s3 + $0x10] sm:$0xf]
  %v576 = vld [vmem:[%s3 + $0x14] sm:$0xf]
  %v577 = vld [vmem:[%s3 + $0x18] sm:$0xf]
  %v578 = vld [vmem:[%s3 + $0x1c] sm:$0xf]
  %v579 = vld [vmem:[%s3 + $0x20] sm:$0xf]
  %v580 = vld [vmem:[%s3 + $0x24] sm:$0xf]
  %v581 = vld [vmem:[%s3 + $0x28] sm:$0xf]
  %v582 = vld [vmem:[%s3 + $0x2c] sm:$0xf]
  %v583 = vld [vmem:[%s3 + $0x30] sm:$0xf]
  %v584 = vld [vmem:[%s3 + $0x34] sm:$0xf]
  %v585 = vld [vmem:[%s3 + $0x38] sm:$0xf]
  %v586 = vld [vmem:[%s3 + $0x3c] sm:$0xf]
  %v587 = vunpack.c.l.bf16 %v571
  %v588 = vunpack.c.l.bf16 %v572
  %v589 = vunpack.c.l.bf16 %v573
  %v590 = vunpack.c.l.bf16 %v574
  %v591 = vunpack.c.l.bf16 %v575
  %v592 = vunpack.c.l.bf16 %v576
  %v593 = vunpack.c.l.bf16 %v577
  %v594 = vunpack.c.l.bf16 %v578
  %v595 = vunpack.c.l.bf16 %v579
  %v596 = vunpack.c.l.bf16 %v580
  %v597 = vunpack.c.l.bf16 %v581
  %v598 = vunpack.c.l.bf16 %v582
  %v599 = vunpack.c.l.bf16 %v583
  %v600 = vunpack.c.l.bf16 %v584
  %v601 = vunpack.c.l.bf16 %v585
  %v602 = vunpack.c.l.bf16 %v586
  %v603 = vadd.f32 %v509, %v587
  %v604 = vadd.f32 %v512, %v588
  %v605 = vadd.f32 %v517, %v589
  %v606 = vadd.f32 %v520, %v590
  %v607 = vadd.f32 %v525, %v591
  %v608 = vadd.f32 %v528, %v592
  %v609 = vadd.f32 %v533, %v593
  %v610 = vadd.f32 %v536, %v594
  %v611 = vadd.f32 %v541, %v595
  %v612 = vadd.f32 %v544, %v596
  %v613 = vadd.f32 %v549, %v597
  %v614 = vadd.f32 %v552, %v598
  %v615 = vadd.f32 %v557, %v599
  %v616 = vadd.f32 %v560, %v600
  %v617 = vadd.f32 %v565, %v601
  %v618 = vadd.f32 %v568, %v602
  %v619 = vmax.f32 %v603, 0.0
  %v620 = vmax.f32 %v604, 0.0
  %v621 = vmax.f32 %v605, 0.0
  %v622 = vmax.f32 %v606, 0.0
  %v623 = vmax.f32 %v607, 0.0
  %v624 = vmax.f32 %v608, 0.0
  %v625 = vmax.f32 %v609, 0.0
  %v626 = vmax.f32 %v610, 0.0
  %v627 = vmax.f32 %v611, 0.0
  %v628 = vmax.f32 %v612, 0.0
  %v629 = vmax.f32 %v613, 0.0
  %v630 = vmax.f32 %v614, 0.0
  %v631 = vmax.f32 %v615, 0.0
  %v632 = vmax.f32 %v616, 0.0
  %v633 = vmax.f32 %v617, 0.0
  %v634 = vmax.f32 %v618, 0.0
  %v635 = vpack.c.bf16 %v620, %v619
  %v636 = vpack.c.bf16 %v622, %v621
  %v637 = vpack.c.bf16 %v624, %v623
  %v638 = vpack.c.bf16 %v626, %v625
  %v639 = vpack.c.bf16 %v628, %v627
  %v640 = vpack.c.bf16 %v630, %v629
  %v641 = vpack.c.bf16 %v632, %v631
  %v642 = vpack.c.bf16 %v634, %v633
  %v651 = vunpack.c.l.b16 %v635
  %v652 = vunpack.c.h.b16 %v635
  %v653 = vunpack.c.l.b16 %v636
  %v654 = vunpack.c.h.b16 %v636
  %v655 = vunpack.c.l.b16 %v637
  %v656 = vunpack.c.h.b16 %v637
  %v657 = vunpack.c.l.b16 %v638
  %v658 = vunpack.c.h.b16 %v638
  %v659 = vunpack.c.l.b16 %v639
  %v660 = vunpack.c.h.b16 %v639
  %v661 = vunpack.c.l.b16 %v640
  %v662 = vunpack.c.h.b16 %v640
  %v663 = vunpack.c.l.b16 %v641
  %v664 = vunpack.c.h.b16 %v641
  %v665 = vunpack.c.l.b16 %v642
  %v666 = vunpack.c.h.b16 %v642
  %v667 = vpack.c.b16 %v651, %v651
  %v668 = vpack.c.b16 %v652, %v652
  %v669 = vpack.c.b16 %v653, %v653
  %v670 = vpack.c.b16 %v654, %v654
  %v671 = vpack.c.b16 %v655, %v655
  %v672 = vpack.c.b16 %v656, %v656
  %v673 = vpack.c.b16 %v657, %v657
  %v674 = vpack.c.b16 %v658, %v658
  %v675 = vpack.c.b16 %v659, %v659
  %v676 = vpack.c.b16 %v660, %v660
  %v677 = vpack.c.b16 %v661, %v661
  %v678 = vpack.c.b16 %v662, %v662
  %v679 = vpack.c.b16 %v663, %v663
  %v680 = vpack.c.b16 %v664, %v664
  %v681 = vpack.c.b16 %v665, %v665
  %v682 = vpack.c.b16 %v666, %v666
  %699 = vst [vmem:[%s4] sm:$0xf] %v667
  %700 = vst [vmem:[%s4 + $0x4] sm:$0xf] %v668
  %701 = vst [vmem:[%s4 + $0x8] sm:$0xf] %v669
  %702 = vst [vmem:[%s4 + $0xc] sm:$0xf] %v670
  %703 = vst [vmem:[%s4 + $0x10] sm:$0xf] %v671
  %704 = vst [vmem:[%s4 + $0x14] sm:$0xf] %v672
  %705 = vst [vmem:[%s4 + $0x18] sm:$0xf] %v673
  %706 = vst [vmem:[%s4 + $0x1c] sm:$0xf] %v674
  %707 = vst [vmem:[%s4 + $0x20] sm:$0xf] %v675
  %708 = vst [vmem:[%s4 + $0x24] sm:$0xf] %v676
  %709 = vst [vmem:[%s4 + $0x28] sm:$0xf] %v677
  %710 = vst [vmem:[%s4 + $0x2c] sm:$0xf] %v678
  %711 = vst [vmem:[%s4 + $0x30] sm:$0xf] %v679
  %712 = vst [vmem:[%s4 + $0x34] sm:$0xf] %v680
  %713 = vst [vmem:[%s4 + $0x38] sm:$0xf] %v681
  %714 = vst [vmem:[%s4 + $0x3c] sm:$0xf] %v682
  // Predicated region
  $region18: #{_lambda_.16} parent=0 // pred_check
    _
  $region19: #{_lambda_.16} parent=0 // pred_check_branch
    %716 = sbr.rel (0) target = $region21
  $region20: #{_lambda_.16} parent=0 // pred_region
    _
  $region21: #{_lambda_.16} parent=0 // pred_fallthru
    _
  // Predicated region
  $region22: #{_lambda_.16} parent=0 // pred_check
    _
  $region23: #{_lambda_.16} parent=0 // pred_check_branch
    %718 = sbr.rel (0) target = $region25
  $region24: #{_lambda_.16} parent=0 // pred_region
    _
  $region25: #{_lambda_.16} parent=0 // pred_fallthru
    _

// kernel: _lambda_.17
$region0: #{_lambda_.17}
  #allocation0 [shape = 'u32[]', space=smem, size = 0x4, offset = 0x4, fixed_abs, tag = 'smem constant byte address 0x4 - core index']
  #allocation1 [shape = 'u32[144,128]{1,0:T(1,128)}', space=vmem, size = 0x12000, scoped, tag = 'internal scratch']
  %s0 = inlined_call_operand.vmem [shape: bf16[32,512], index: 0, kind: input, shape index: {}]
  %s1 = inlined_call_operand.vmem [shape: bf16[512,256], index: 1, kind: input, shape index: {}]
  %s2 = inlined_call_operand.vmem [shape: f32[1,256], index: 2, kind: input, shape index: {}]
  %s3 = inlined_call_operand.vmem [shape: bf16[32,256], index: 3, kind: output, shape index: {}]
  %s4 = sld [smem:[#allocation0]]
  $region22: #{_lambda_.17} parent=0
    _
  %s6 = ssub.s32 1, %s4
  %s7 = scalar_select 0, %s6, %s4
  // Predicated region
  $region2: #{_lambda_.17} parent=0 // pred_check
    _
  $region3: #{_lambda_.17} parent=0 // pred_check_branch
    %9 = sbr.rel (0) target = $region5
  $region4: #{_lambda_.17} parent=0 // pred_region
    _
  $region5: #{_lambda_.17} parent=0 // pred_fallthru
    _
  // Predicated region
  $region6: #{_lambda_.17} parent=0 // pred_check
    _
  $region7: #{_lambda_.17} parent=0 // pred_check_branch
    %11 = sbr.rel (0) target = $region9
  $region8: #{_lambda_.17} parent=0 // pred_region
    _
  $region9: #{_lambda_.17} parent=0 // pred_fallthru
    _
  // Predicated region
  $region10: #{_lambda_.17} parent=0 // pred_check
    _
  $region11: #{_lambda_.17} parent=0 // pred_check_branch
    %13 = sbr.rel (0) target = $region13
  $region12: #{_lambda_.17} parent=0 // pred_region
    _
  $region13: #{_lambda_.17} parent=0 // pred_fallthru
    _
  %v14 = vld [vmem:[%s0] sm:$0xff]
  %v15 = vld [vmem:[%s0 + $0x8] sm:$0xff]
  %v16 = vld [vmem:[%s0 + $0x10] sm:$0xff]
  %v17 = vld [vmem:[%s0 + $0x18] sm:$0xff]
  %v18 = vld [vmem:[%s0 + $0x20] sm:$0xff]
  %v19 = vld [vmem:[%s0 + $0x28] sm:$0xff]
  %v20 = vld [vmem:[%s0 + $0x30] sm:$0xff]
  %v21 = vld [vmem:[%s0 + $0x38] sm:$0xff]
  %v22 = vld [vmem:[%s1] sm:$0xff]
  %v23 = vld [vmem:[%s1 + $0x8] sm:$0xff]
  %v24 = vld [vmem:[%s1 + $0x10] sm:$0xff]
  %v25 = vld [vmem:[%s1 + $0x18] sm:$0xff]
  %v26 = vld [vmem:[%s1 + $0x20] sm:$0xff]
  %v27 = vld [vmem:[%s1 + $0x28] sm:$0xff]
  %v28 = vld [vmem:[%s1 + $0x30] sm:$0xff]
  %v29 = vld [vmem:[%s1 + $0x38] sm:$0xff]
  %v30 = vld [vmem:[%s1 + $0x40] sm:$0xff]
  %v31 = vld [vmem:[%s1 + $0x48] sm:$0xff]
  %v32 = vld [vmem:[%s1 + $0x50] sm:$0xff]
  %v33 = vld [vmem:[%s1 + $0x58] sm:$0xff]
  %v34 = vld [vmem:[%s1 + $0x60] sm:$0xff]
  %v35 = vld [vmem:[%s1 + $0x68] sm:$0xff]
  %v36 = vld [vmem:[%s1 + $0x70] sm:$0xff]
  %v37 = vld [vmem:[%s1 + $0x78] sm:$0xff]
  %v38 = vld [vmem:[%s1 + $0x80] sm:$0xff]
  %v39 = vld [vmem:[%s1 + $0x88] sm:$0xff]
  %v40 = vld [vmem:[%s1 + $0x90] sm:$0xff]
  %v41 = vld [vmem:[%s1 + $0x98] sm:$0xff]
  %v42 = vld [vmem:[%s1 + $0xa0] sm:$0xff]
  %v43 = vld [vmem:[%s1 + $0xa8] sm:$0xff]
  %v44 = vld [vmem:[%s1 + $0xb0] sm:$0xff]
  %v45 = vld [vmem:[%s1 + $0xb8] sm:$0xff]
  %v46 = vld [vmem:[%s1 + $0xc0] sm:$0xff]
  %v47 = vld [vmem:[%s1 + $0xc8] sm:$0xff]
  %v48 = vld [vmem:[%s1 + $0xd0] sm:$0xff]
  %v49 = vld [vmem:[%s1 + $0xd8] sm:$0xff]
  %v50 = vld [vmem:[%s1 + $0xe0] sm:$0xff]
  %v51 = vld [vmem:[%s1 + $0xe8] sm:$0xff]
  %v52 = vld [vmem:[%s1 + $0xf0] sm:$0xff]
  %v53 = vld [vmem:[%s1 + $0xf8] sm:$0xff]
  %v54 = vld [vmem:[%s1 + $0x100] sm:$0xff]
  %v55 = vld [vmem:[%s1 + $0x108] sm:$0xff]
  %v56 = vld [vmem:[%s1 + $0x110] sm:$0xff]
  %v57 = vld [vmem:[%s1 + $0x118] sm:$0xff]
  %v58 = vld [vmem:[%s1 + $0x120] sm:$0xff]
  %v59 = vld [vmem:[%s1 + $0x128] sm:$0xff]
  %v60 = vld [vmem:[%s1 + $0x130] sm:$0xff]
  %v61 = vld [vmem:[%s1 + $0x138] sm:$0xff]
  %v62 = vld [vmem:[%s1 + $0x140] sm:$0xff]
  %v63 = vld [vmem:[%s1 + $0x148] sm:$0xff]
  %v64 = vld [vmem:[%s1 + $0x150] sm:$0xff]
  %v65 = vld [vmem:[%s1 + $0x158] sm:$0xff]
  %v66 = vld [vmem:[%s1 + $0x160] sm:$0xff]
  %v67 = vld [vmem:[%s1 + $0x168] sm:$0xff]
  %v68 = vld [vmem:[%s1 + $0x170] sm:$0xff]
  %v69 = vld [vmem:[%s1 + $0x178] sm:$0xff]
  %v70 = vld [vmem:[%s1 + $0x180] sm:$0xff]
  %v71 = vld [vmem:[%s1 + $0x188] sm:$0xff]
  %v72 = vld [vmem:[%s1 + $0x190] sm:$0xff]
  %v73 = vld [vmem:[%s1 + $0x198] sm:$0xff]
  %v74 = vld [vmem:[%s1 + $0x1a0] sm:$0xff]
  %v75 = vld [vmem:[%s1 + $0x1a8] sm:$0xff]
  %v76 = vld [vmem:[%s1 + $0x1b0] sm:$0xff]
  %v77 = vld [vmem:[%s1 + $0x1b8] sm:$0xff]
  %v78 = vld [vmem:[%s1 + $0x1c0] sm:$0xff]
  %v79 = vld [vmem:[%s1 + $0x1c8] sm:$0xff]
  %v80 = vld [vmem:[%s1 + $0x1d0] sm:$0xff]
  %v81 = vld [vmem:[%s1 + $0x1d8] sm:$0xff]
  %v82 = vld [vmem:[%s1 + $0x1e0] sm:$0xff]
  %v83 = vld [vmem:[%s1 + $0x1e8] sm:$0xff]
  %v84 = vld [vmem:[%s1 + $0x1f0] sm:$0xff]
  %v85 = vld [vmem:[%s1 + $0x1f8] sm:$0xff]
  %v86 = vld [vmem:[%s2] sm:$0x3]
  %v88 = vlaneseq
  %v89 = vshrl.u32 %v88, 7
  %v90 = vsub.s32 0, %v89
  %v91 = vrot.slane %v86, %v90
  %v92 = vlaneseq
  %v93 = vshrl.u32 %v92, 7
  %v94 = vsub.s32 1, %v93
  %v95 = vrot.slane %v86, %v94
  %v106 = vunpack.c.l.b16 %v14
  %v107 = vunpack.c.h.b16 %v14
  %v108 = vunpack.c.l.b16 %v15
  %v109 = vunpack.c.h.b16 %v15
  %v110 = vunpack.c.l.b16 %v16
  %v111 = vunpack.c.h.b16 %v16
  %v112 = vunpack.c.l.b16 %v17
  %v113 = vunpack.c.h.b16 %v17
  %v114 = vunpack.c.l.b16 %v18
  %v115 = vunpack.c.h.b16 %v18
  %v116 = vunpack.c.l.b16 %v19
  %v117 = vunpack.c.h.b16 %v19
  %v118 = vunpack.c.l.b16 %v20
  %v119 = vunpack.c.h.b16 %v20
  %v120 = vunpack.c.l.b16 %v21
  %v121 = vunpack.c.h.b16 %v21
  %v122 = vpack.c.b16 %v110, %v106
  %v123 = vpack.c.b16 %v111, %v107
  %v124 = vpack.c.b16 %v112, %v108
  %v125 = vpack.c.b16 %v113, %v109
  %v126 = vpack.c.b16 %v118, %v114
  %v127 = vpack.c.b16 %v119, %v115
  %v128 = vpack.c.b16 %v120, %v116
  %v129 = vpack.c.b16 %v121, %v117
  %v202 = vunpack.c.l.b16 %v22
  %v203 = vunpack.c.h.b16 %v22
  %v204 = vunpack.c.l.b16 %v23
  %v205 = vunpack.c.h.b16 %v23
  %v206 = vunpack.c.l.b16 %v24
  %v207 = vunpack.c.h.b16 %v24
  %v208 = vunpack.c.l.b16 %v25
  %v209 = vunpack.c.h.b16 %v25
  %v210 = vunpack.c.l.b16 %v26
  %v211 = vunpack.c.h.b16 %v26
  %v212 = vunpack.c.l.b16 %v27
  %v213 = vunpack.c.h.b16 %v27
  %v214 = vunpack.c.l.b16 %v28
  %v215 = vunpack.c.h.b16 %v28
  %v216 = vunpack.c.l.b16 %v29
  %v217 = vunpack.c.h.b16 %v29
  %v218 = vunpack.c.l.b16 %v30
  %v219 = vunpack.c.h.b16 %v30
  %v220 = vunpack.c.l.b16 %v31
  %v221 = vunpack.c.h.b16 %v31
  %v222 = vunpack.c.l.b16 %v32
  %v223 = vunpack.c.h.b16 %v32
  %v224 = vunpack.c.l.b16 %v33
  %v225 = vunpack.c.h.b16 %v33
  %v226 = vunpack.c.l.b16 %v34
  %v227 = vunpack.c.h.b16 %v34
  %v228 = vunpack.c.l.b16 %v35
  %v229 = vunpack.c.h.b16 %v35
  %v230 = vunpack.c.l.b16 %v36
  %v231 = vunpack.c.h.b16 %v36
  %v232 = vunpack.c.l.b16 %v37
  %v233 = vunpack.c.h.b16 %v37
  %v234 = vunpack.c.l.b16 %v38
  %v235 = vunpack.c.h.b16 %v38
  %v236 = vunpack.c.l.b16 %v39
  %v237 = vunpack.c.h.b16 %v39
  %v238 = vunpack.c.l.b16 %v40
  %v239 = vunpack.c.h.b16 %v40
  %v240 = vunpack.c.l.b16 %v41
  %v241 = vunpack.c.h.b16 %v41
  %v242 = vunpack.c.l.b16 %v42
  %v243 = vunpack.c.h.b16 %v42
  %v244 = vunpack.c.l.b16 %v43
  %v245 = vunpack.c.h.b16 %v43
  %v246 = vunpack.c.l.b16 %v44
  %v247 = vunpack.c.h.b16 %v44
  %v248 = vunpack.c.l.b16 %v45
  %v249 = vunpack.c.h.b16 %v45
  %v250 = vunpack.c.l.b16 %v46
  %v251 = vunpack.c.h.b16 %v46
  %v252 = vunpack.c.l.b16 %v47
  %v253 = vunpack.c.h.b16 %v47
  %v254 = vunpack.c.l.b16 %v48
  %v255 = vunpack.c.h.b16 %v48
  %v256 = vunpack.c.l.b16 %v49
  %v257 = vunpack.c.h.b16 %v49
  %v258 = vunpack.c.l.b16 %v50
  %v259 = vunpack.c.h.b16 %v50
  %v260 = vunpack.c.l.b16 %v51
  %v261 = vunpack.c.h.b16 %v51
  %v262 = vunpack.c.l.b16 %v52
  %v263 = vunpack.c.h.b16 %v52
  %v264 = vunpack.c.l.b16 %v53
  %v265 = vunpack.c.h.b16 %v53
  %v266 = vunpack.c.l.b16 %v54
  %v267 = vunpack.c.h.b16 %v54
  %v268 = vunpack.c.l.b16 %v55
  %v269 = vunpack.c.h.b16 %v55
  %v270 = vunpack.c.l.b16 %v56
  %v271 = vunpack.c.h.b16 %v56
  %v272 = vunpack.c.l.b16 %v57
  %v273 = vunpack.c.h.b16 %v57
  %v274 = vunpack.c.l.b16 %v58
  %v275 = vunpack.c.h.b16 %v58
  %v276 = vunpack.c.l.b16 %v59
  %v277 = vunpack.c.h.b16 %v59
  %v278 = vunpack.c.l.b16 %v60
  %v279 = vunpack.c.h.b16 %v60
  %v280 = vunpack.c.l.b16 %v61
  %v281 = vunpack.c.h.b16 %v61
  %v282 = vunpack.c.l.b16 %v62
  %v283 = vunpack.c.h.b16 %v62
  %v284 = vunpack.c.l.b16 %v63
  %v285 = vunpack.c.h.b16 %v63
  %v286 = vunpack.c.l.b16 %v64
  %v287 = vunpack.c.h.b16 %v64
  %v288 = vunpack.c.l.b16 %v65
  %v289 = vunpack.c.h.b16 %v65
  %v290 = vunpack.c.l.b16 %v66
  %v291 = vunpack.c.h.b16 %v66
  %v292 = vunpack.c.l.b16 %v67
  %v293 = vunpack.c.h.b16 %v67
  %v294 = vunpack.c.l.b16 %v68
  %v295 = vunpack.c.h.b16 %v68
  %v296 = vunpack.c.l.b16 %v69
  %v297 = vunpack.c.h.b16 %v69
  %v298 = vunpack.c.l.b16 %v70
  %v299 = vunpack.c.h.b16 %v70
  %v300 = vunpack.c.l.b16 %v71
  %v301 = vunpack.c.h.b16 %v71
  %v302 = vunpack.c.l.b16 %v72
  %v303 = vunpack.c.h.b16 %v72
  %v304 = vunpack.c.l.b16 %v73
  %v305 = vunpack.c.h.b16 %v73
  %v306 = vunpack.c.l.b16 %v74
  %v307 = vunpack.c.h.b16 %v74
  %v308 = vunpack.c.l.b16 %v75
  %v309 = vunpack.c.h.b16 %v75
  %v310 = vunpack.c.l.b16 %v76
  %v311 = vunpack.c.h.b16 %v76
  %v312 = vunpack.c.l.b16 %v77
  %v313 = vunpack.c.h.b16 %v77
  %v314 = vunpack.c.l.b16 %v78
  %v315 = vunpack.c.h.b16 %v78
  %v316 = vunpack.c.l.b16 %v79
  %v317 = vunpack.c.h.b16 %v79
  %v318 = vunpack.c.l.b16 %v80
  %v319 = vunpack.c.h.b16 %v80
  %v320 = vunpack.c.l.b16 %v81
  %v321 = vunpack.c.h.b16 %v81
  %v322 = vunpack.c.l.b16 %v82
  %v323 = vunpack.c.h.b16 %v82
  %v324 = vunpack.c.l.b16 %v83
  %v325 = vunpack.c.h.b16 %v83
  %v326 = vunpack.c.l.b16 %v84
  %v327 = vunpack.c.h.b16 %v84
  %v328 = vunpack.c.l.b16 %v85
  %v329 = vunpack.c.h.b16 %v85
  %v330 = vpack.c.b16 %v204, %v202
  %v331 = vpack.c.b16 %v205, %v203
  %v332 = vpack.c.b16 %v208, %v206
  %v333 = vpack.c.b16 %v209, %v207
  %v334 = vpack.c.b16 %v212, %v210
  %v335 = vpack.c.b16 %v213, %v211
  %v336 = vpack.c.b16 %v216, %v214
  %v337 = vpack.c.b16 %v217, %v215
  %v338 = vpack.c.b16 %v220, %v218
  %v339 = vpack.c.b16 %v221, %v219
  %v340 = vpack.c.b16 %v224, %v222
  %v341 = vpack.c.b16 %v225, %v223
  %v342 = vpack.c.b16 %v228, %v226
  %v343 = vpack.c.b16 %v229, %v227
  %v344 = vpack.c.b16 %v232, %v230
  %v345 = vpack.c.b16 %v233, %v231
  %v346 = vpack.c.b16 %v236, %v234
  %v347 = vpack.c.b16 %v237, %v235
  %v348 = vpack.c.b16 %v240, %v238
  %v349 = vpack.c.b16 %v241, %v239
  %v350 = vpack.c.b16 %v244, %v242
  %v351 = vpack.c.b16 %v245, %v243
  %v352 = vpack.c.b16 %v248, %v246
  %v353 = vpack.c.b16 %v249, %v247
  %v354 = vpack.c.b16 %v252, %v250
  %v355 = vpack.c.b16 %v253, %v251
  %v356 = vpack.c.b16 %v256, %v254
  %v357 = vpack.c.b16 %v257, %v255
  %v358 = vpack.c.b16 %v260, %v258
  %v359 = vpack.c.b16 %v261, %v259
  %v360 = vpack.c.b16 %v264, %v262
  %v361 = vpack.c.b16 %v265, %v263
  %v362 = vpack.c.b16 %v268, %v266
  %v363 = vpack.c.b16 %v269, %v267
  %v364 = vpack.c.b16 %v272, %v270
  %v365 = vpack.c.b16 %v273, %v271
  %v366 = vpack.c.b16 %v276, %v274
  %v367 = vpack.c.b16 %v277, %v275
  %v368 = vpack.c.b16 %v280, %v278
  %v369 = vpack.c.b16 %v281, %v279
  %v370 = vpack.c.b16 %v284, %v282
  %v371 = vpack.c.b16 %v285, %v283
  %v372 = vpack.c.b16 %v288, %v286
  %v373 = vpack.c.b16 %v289, %v287
  %v374 = vpack.c.b16 %v292, %v290
  %v375 = vpack.c.b16 %v293, %v291
  %v376 = vpack.c.b16 %v296, %v294
  %v377 = vpack.c.b16 %v297, %v295
  %v378 = vpack.c.b16 %v300, %v298
  %v379 = vpack.c.b16 %v301, %v299
  %v380 = vpack.c.b16 %v304, %v302
  %v381 = vpack.c.b16 %v305, %v303
  %v382 = vpack.c.b16 %v308, %v306
  %v383 = vpack.c.b16 %v309, %v307
  %v384 = vpack.c.b16 %v312, %v310
  %v385 = vpack.c.b16 %v313, %v311
  %v386 = vpack.c.b16 %v316, %v314
  %v387 = vpack.c.b16 %v317, %v315
  %v388 = vpack.c.b16 %v320, %v318
  %v389 = vpack.c.b16 %v321, %v319
  %v390 = vpack.c.b16 %v324, %v322
  %v391 = vpack.c.b16 %v325, %v323
  %v392 = vpack.c.b16 %v328, %v326
  %v393 = vpack.c.b16 %v329, %v327
  %458 = vmatprep.subr.bf16.mxu0 %v345
  %459 = vmatpush1.bf16.msra.mxu0 %v344
  %460 = vmatprep.subr.bf16.mxu0 %v343
  %461 = vmatpush1.bf16.msra.mxu0 %v342
  %462 = vmatprep.subr.bf16.mxu0 %v341
  %463 = vmatpush1.bf16.msra.mxu0 %v340
  %464 = vmatprep.subr.bf16.mxu0 %v339
  %465 = vmatpush1.bf16.msra.mxu0 %v338
  %466 = vmatprep.subr.bf16.mxu0 %v337
  %467 = vmatpush1.bf16.msra.mxu0 %v336
  %468 = vmatprep.subr.bf16.mxu0 %v335
  %469 = vmatpush1.bf16.msra.mxu0 %v334
  %470 = vmatprep.subr.bf16.mxu0 %v333
  %471 = vmatpush1.bf16.msra.mxu0 %v332
  %472 = vmatprep.subr.bf16.mxu0 %v331
  %473 = vmatpush1.bf16.msra.mxu0 %v330
  %474 = vmatprep.subr.bf16.mxu0 %v361
  %475 = vmatpush2.bf16.msra.mxu0 %v360
  %476 = vmatprep.subr.bf16.mxu0 %v359
  %477 = vmatpush2.bf16.msra.mxu0 %v358
  %478 = vmatprep.subr.bf16.mxu0 %v357
  %479 = vmatpush2.bf16.msra.mxu0 %v356
  %480 = vmatprep.subr.bf16.mxu0 %v355
  %481 = vmatpush2.bf16.msra.mxu0 %v354
  %482 = vmatprep.subr.bf16.mxu0 %v353
  %483 = vmatpush2.bf16.msra.mxu0 %v352
  %484 = vmatprep.subr.bf16.mxu0 %v351
  %485 = vmatpush2.bf16.msra.mxu0 %v350
  %486 = vmatprep.subr.bf16.mxu0 %v349
  %487 = vmatpush2.bf16.msra.mxu0 %v348
  %488 = vmatprep.subr.bf16.mxu0 %v347
  %489 = vmatpush2.bf16.msra.mxu0 %v346
  %490 = vmatprep.mubr.bf16.mxu0 %v123
  %491 = vmatmul.mubr.bf16.gmra.mxu0 %v122
  %v492 = vpop.f32.mrf.mxu0
  %v493 = vadd.f32 %v91, %v492
  %v494 = vpop.f32.mrf.mxu0
  %v495 = vadd.f32 %v95, %v494
  %v496 = vpop.f32.mrf.mxu0
  %v497 = vadd.f32 %v91, %v496
  %v498 = vpop.f32.mrf.mxu0
  %v499 = vadd.f32 %v95, %v498
  %500 = vmatprep.mubr.bf16.mxu0 %v127
  %501 = vmatmul.mubr.bf16.gmra.mxu0 %v126
  %v502 = vpop.f32.mrf.mxu0
  %v503 = vadd.f32 %v91, %v502
  %v504 = vpop.f32.mrf.mxu0
  %v505 = vadd.f32 %v95, %v504
  %v506 = vpop.f32.mrf.mxu0
  %v507 = vadd.f32 %v91, %v506
  %v508 = vpop.f32.mrf.mxu0
  %v509 = vadd.f32 %v95, %v508
  %510 = vdwg.mxu0
  %511 = vmatprep.subr.bf16.mxu0 %v377
  %512 = vmatpush1.bf16.msra.mxu0 %v376
  %513 = vmatprep.subr.bf16.mxu0 %v375
  %514 = vmatpush1.bf16.msra.mxu0 %v374
  %515 = vmatprep.subr.bf16.mxu0 %v373
  %516 = vmatpush1.bf16.msra.mxu0 %v372
  %517 = vmatprep.subr.bf16.mxu0 %v371
  %518 = vmatpush1.bf16.msra.mxu0 %v370
  %519 = vmatprep.subr.bf16.mxu0 %v369
  %520 = vmatpush1.bf16.msra.mxu0 %v368
  %521 = vmatprep.subr.bf16.mxu0 %v367
  %522 = vmatpush1.bf16.msra.mxu0 %v366
  %523 = vmatprep.subr.bf16.mxu0 %v365
  %524 = vmatpush1.bf16.msra.mxu0 %v364
  %525 = vmatprep.subr.bf16.mxu0 %v363
  %526 = vmatpush1.bf16.msra.mxu0 %v362
  %527 = vmatprep.subr.bf16.mxu0 %v393
  %528 = vmatpush2.bf16.msra.mxu0 %v392
  %529 = vmatprep.subr.bf16.mxu0 %v391
  %530 = vmatpush2.bf16.msra.mxu0 %v390
  %531 = vmatprep.subr.bf16.mxu0 %v389
  %532 = vmatpush2.bf16.msra.mxu0 %v388
  %533 = vmatprep.subr.bf16.mxu0 %v387
  %534 = vmatpush2.bf16.msra.mxu0 %v386
  %535 = vmatprep.subr.bf16.mxu0 %v385
  %536 = vmatpush2.bf16.msra.mxu0 %v384
  %537 = vmatprep.subr.bf16.mxu0 %v383
  %538 = vmatpush2.bf16.msra.mxu0 %v382
  %539 = vmatprep.subr.bf16.mxu0 %v381
  %540 = vmatpush2.bf16.msra.mxu0 %v380
  %541 = vmatprep.subr.bf16.mxu0 %v379
  %542 = vmatpush2.bf16.msra.mxu0 %v378
  %543 = vmatprep.mubr.bf16.mxu0 %v125
  %544 = vmatmul.mubr.bf16.gmra.mxu0 %v124
  %v545 = vpop.f32.mrf.mxu0
  %v546 = vadd.f32 %v493, %v545
  %v547 = vpop.f32.mrf.mxu0
  %v548 = vadd.f32 %v495, %v547
  %v549 = vpop.f32.mrf.mxu0
  %v550 = vadd.f32 %v497, %v549
  %v551 = vpop.f32.mrf.mxu0
  %v552 = vadd.f32 %v499, %v551
  %553 = vmatprep.mubr.bf16.mxu0 %v129
  %554 = vmatmul.mubr.bf16.gmra.mxu0 %v128
  %v555 = vpop.f32.mrf.mxu0
  %v556 = vadd.f32 %v503, %v555
  %v557 = vpop.f32.mrf.mxu0
  %v558 = vadd.f32 %v505, %v557
  %v559 = vpop.f32.mrf.mxu0
  %v560 = vadd.f32 %v507, %v559
  %v561 = vpop.f32.mrf.mxu0
  %v562 = vadd.f32 %v509, %v561
  %563 = vdwg.mxu0
  %v564 = vlaneseq
  %v565 = vand.u32 %v564, 127
  %v566 = vadd.s32 %v565, 128
  %vm567 = vcmp.lt.s32.totalorder %v565, 128
  %vm568 = vcmp.lt.s32.totalorder %v566, 128
  %v569 = vmax.f32 %v546, 0.0
  %v570 = vmax.f32 %v548, 0.0
  %v571 = vmax.f32 %v550, 0.0
  %v572 = vmax.f32 %v552, 0.0
  %v573 = vmax.f32 %v556, 0.0
  %v574 = vmax.f32 %v558, 0.0
  %v575 = vmax.f32 %v560, 0.0
  %v576 = vmax.f32 %v562, 0.0
  %v577 = vsel %vm567, %v569, %v546
  %v578 = vsel %vm568, %v570, %v548
  %v579 = vsel %vm567, %v571, %v550
  %v580 = vsel %vm568, %v572, %v552
  %v581 = vsel %vm567, %v573, %v556
  %v582 = vsel %vm568, %v574, %v558
  %v583 = vsel %vm567, %v575, %v560
  %v584 = vsel %vm568, %v576, %v562
  %v585 = vpack.c.bf16 %v579, %v577
  %v586 = vpack.c.bf16 %v580, %v578
  %v587 = vpack.c.bf16 %v583, %v581
  %v588 = vpack.c.bf16 %v584, %v582
  %v593 = vunpack.c.l.b16 %v585
  %v594 = vunpack.c.l.b16 %v586
  %v595 = vunpack.c.h.b16 %v585
  %v596 = vunpack.c.h.b16 %v586
  %v597 = vunpack.c.l.b16 %v587
  %v598 = vunpack.c.l.b16 %v588
  %v599 = vunpack.c.h.b16 %v587
  %v600 = vunpack.c.h.b16 %v588
  %v601 = vpack.c.b16 %v594, %v593
  %v602 = vpack.c.b16 %v596, %v595
  %v603 = vpack.c.b16 %v598, %v597
  %v604 = vpack.c.b16 %v600, %v599
  %609 = vst [vmem:[%s3] sm:$0xff] %v601
  %610 = vst [vmem:[%s3 + $0x8] sm:$0xff] %v602
  %611 = vst [vmem:[%s3 + $0x10] sm:$0xff] %v603
  %612 = vst [vmem:[%s3 + $0x18] sm:$0xff] %v604
  // Predicated region
  $region14: #{_lambda_.17} parent=0 // pred_check
    _
  $region15: #{_lambda_.17} parent=0 // pred_check_branch
    %614 = sbr.rel (0) target = $region17
  $region16: #{_lambda_.17} parent=0 // pred_region
    _
  $region17: #{_lambda_.17} parent=0 // pred_fallthru
    _
  // Predicated region
  $region18: #{_lambda_.17} parent=0 // pred_check
    _
  $region19: #{_lambda_.17} parent=0 // pred_check_branch
    %616 = sbr.rel (0) target = $region21
  $region20: #{_lambda_.17} parent=0 // pred_region
    _
  $region21: #{_lambda_.17} parent=0 // pred_fallthru
    _

// kernel: _lambda_.18
$region0: #{_lambda_.18}
  #allocation0 [shape = 'u32[]', space=smem, size = 0x4, offset = 0x4, fixed_abs, tag = 'smem constant byte address 0x4 - core index']
  #allocation1 [shape = 'u32[144,128]{1,0:T(1,128)}', space=vmem, size = 0x12000, scoped, tag = 'internal scratch']
  %s0 = inlined_call_operand.vmem [shape: bf16[32,512], index: 0, kind: input, shape index: {}]
  %s1 = inlined_call_operand.vmem [shape: bf16[512,128], index: 1, kind: input, shape index: {}]
  %s2 = inlined_call_operand.vmem [shape: f32[1,128], index: 2, kind: input, shape index: {}]
  %s3 = inlined_call_operand.vmem [shape: bf16[32,128], index: 3, kind: input, shape index: {}]
  %s4 = inlined_call_operand.vmem [shape: bf16[32,128], index: 4, kind: output, shape index: {}]
  %s5 = sld [smem:[#allocation0]]
  $region26: #{_lambda_.18} parent=0
    _
  %s7 = ssub.s32 1, %s5
  %s8 = scalar_select 0, %s7, %s5
  // Predicated region
  $region2: #{_lambda_.18} parent=0 // pred_check
    _
  $region3: #{_lambda_.18} parent=0 // pred_check_branch
    %10 = sbr.rel (0) target = $region5
  $region4: #{_lambda_.18} parent=0 // pred_region
    _
  $region5: #{_lambda_.18} parent=0 // pred_fallthru
    _
  // Predicated region
  $region6: #{_lambda_.18} parent=0 // pred_check
    _
  $region7: #{_lambda_.18} parent=0 // pred_check_branch
    %12 = sbr.rel (0) target = $region9
  $region8: #{_lambda_.18} parent=0 // pred_region
    _
  $region9: #{_lambda_.18} parent=0 // pred_fallthru
    _
  // Predicated region
  $region10: #{_lambda_.18} parent=0 // pred_check
    _
  $region11: #{_lambda_.18} parent=0 // pred_check_branch
    %14 = sbr.rel (0) target = $region13
  $region12: #{_lambda_.18} parent=0 // pred_region
    _
  $region13: #{_lambda_.18} parent=0 // pred_fallthru
    _
  // Predicated region
  $region14: #{_lambda_.18} parent=0 // pred_check
    _
  $region15: #{_lambda_.18} parent=0 // pred_check_branch
    %16 = sbr.rel (0) target = $region17
  $region16: #{_lambda_.18} parent=0 // pred_region
    _
  $region17: #{_lambda_.18} parent=0 // pred_fallthru
    _
  %v18 = vld [vmem:[%s0] sm:$0xff]
  %v19 = vld [vmem:[%s0 + $0x8] sm:$0xff]
  %v20 = vld [vmem:[%s0 + $0x10] sm:$0xff]
  %v21 = vld [vmem:[%s0 + $0x18] sm:$0xff]
  %v22 = vld [vmem:[%s0 + $0x20] sm:$0xff]
  %v23 = vld [vmem:[%s0 + $0x28] sm:$0xff]
  %v24 = vld [vmem:[%s0 + $0x30] sm:$0xff]
  %v25 = vld [vmem:[%s0 + $0x38] sm:$0xff]
  %v26 = vld [vmem:[%s1] sm:$0xf]
  %v27 = vld [vmem:[%s1 + $0x4] sm:$0xf]
  %v28 = vld [vmem:[%s1 + $0x8] sm:$0xf]
  %v29 = vld [vmem:[%s1 + $0xc] sm:$0xf]
  %v30 = vld [vmem:[%s1 + $0x10] sm:$0xf]
  %v31 = vld [vmem:[%s1 + $0x14] sm:$0xf]
  %v32 = vld [vmem:[%s1 + $0x18] sm:$0xf]
  %v33 = vld [vmem:[%s1 + $0x1c] sm:$0xf]
  %v34 = vld [vmem:[%s1 + $0x20] sm:$0xf]
  %v35 = vld [vmem:[%s1 + $0x24] sm:$0xf]
  %v36 = vld [vmem:[%s1 + $0x28] sm:$0xf]
  %v37 = vld [vmem:[%s1 + $0x2c] sm:$0xf]
  %v38 = vld [vmem:[%s1 + $0x30] sm:$0xf]
  %v39 = vld [vmem:[%s1 + $0x34] sm:$0xf]
  %v40 = vld [vmem:[%s1 + $0x38] sm:$0xf]
  %v41 = vld [vmem:[%s1 + $0x3c] sm:$0xf]
  %v42 = vld [vmem:[%s1 + $0x40] sm:$0xf]
  %v43 = vld [vmem:[%s1 + $0x44] sm:$0xf]
  %v44 = vld [vmem:[%s1 + $0x48] sm:$0xf]
  %v45 = vld [vmem:[%s1 + $0x4c] sm:$0xf]
  %v46 = vld [vmem:[%s1 + $0x50] sm:$0xf]
  %v47 = vld [vmem:[%s1 + $0x54] sm:$0xf]
  %v48 = vld [vmem:[%s1 + $0x58] sm:$0xf]
  %v49 = vld [vmem:[%s1 + $0x5c] sm:$0xf]
  %v50 = vld [vmem:[%s1 + $0x60] sm:$0xf]
  %v51 = vld [vmem:[%s1 + $0x64] sm:$0xf]
  %v52 = vld [vmem:[%s1 + $0x68] sm:$0xf]
  %v53 = vld [vmem:[%s1 + $0x6c] sm:$0xf]
  %v54 = vld [vmem:[%s1 + $0x70] sm:$0xf]
  %v55 = vld [vmem:[%s1 + $0x74] sm:$0xf]
  %v56 = vld [vmem:[%s1 + $0x78] sm:$0xf]
  %v57 = vld [vmem:[%s1 + $0x7c] sm:$0xf]
  %v58 = vld [vmem:[%s1 + $0x80] sm:$0xf]
  %v59 = vld [vmem:[%s1 + $0x84] sm:$0xf]
  %v60 = vld [vmem:[%s1 + $0x88] sm:$0xf]
  %v61 = vld [vmem:[%s1 + $0x8c] sm:$0xf]
  %v62 = vld [vmem:[%s1 + $0x90] sm:$0xf]
  %v63 = vld [vmem:[%s1 + $0x94] sm:$0xf]
  %v64 = vld [vmem:[%s1 + $0x98] sm:$0xf]
  %v65 = vld [vmem:[%s1 + $0x9c] sm:$0xf]
  %v66 = vld [vmem:[%s1 + $0xa0] sm:$0xf]
  %v67 = vld [vmem:[%s1 + $0xa4] sm:$0xf]
  %v68 = vld [vmem:[%s1 + $0xa8] sm:$0xf]
  %v69 = vld [vmem:[%s1 + $0xac] sm:$0xf]
  %v70 = vld [vmem:[%s1 + $0xb0] sm:$0xf]
  %v71 = vld [vmem:[%s1 + $0xb4] sm:$0xf]
  %v72 = vld [vmem:[%s1 + $0xb8] sm:$0xf]
  %v73 = vld [vmem:[%s1 + $0xbc] sm:$0xf]
  %v74 = vld [vmem:[%s1 + $0xc0] sm:$0xf]
  %v75 = vld [vmem:[%s1 + $0xc4] sm:$0xf]
  %v76 = vld [vmem:[%s1 + $0xc8] sm:$0xf]
  %v77 = vld [vmem:[%s1 + $0xcc] sm:$0xf]
  %v78 = vld [vmem:[%s1 + $0xd0] sm:$0xf]
  %v79 = vld [vmem:[%s1 + $0xd4] sm:$0xf]
  %v80 = vld [vmem:[%s1 + $0xd8] sm:$0xf]
  %v81 = vld [vmem:[%s1 + $0xdc] sm:$0xf]
  %v82 = vld [vmem:[%s1 + $0xe0] sm:$0xf]
  %v83 = vld [vmem:[%s1 + $0xe4] sm:$0xf]
  %v84 = vld [vmem:[%s1 + $0xe8] sm:$0xf]
  %v85 = vld [vmem:[%s1 + $0xec] sm:$0xf]
  %v86 = vld [vmem:[%s1 + $0xf0] sm:$0xf]
  %v87 = vld [vmem:[%s1 + $0xf4] sm:$0xf]
  %v88 = vld [vmem:[%s1 + $0xf8] sm:$0xf]
  %v89 = vld [vmem:[%s1 + $0xfc] sm:$0xf]
  %v90 = vld [vmem:[%s2] sm:$0x1]
  %v92 = vlaneseq
  %v93 = vshrl.u32 %v92, 7
  %v94 = vsub.s32 0, %v93
  %v95 = vrot.slane %v90, %v94
  %v105 = vunpack.c.l.b16 %v18
  %v106 = vunpack.c.h.b16 %v18
  %v107 = vunpack.c.l.b16 %v19
  %v108 = vunpack.c.h.b16 %v19
  %v109 = vunpack.c.l.b16 %v20
  %v110 = vunpack.c.h.b16 %v20
  %v111 = vunpack.c.l.b16 %v21
  %v112 = vunpack.c.h.b16 %v21
  %v113 = vunpack.c.l.b16 %v22
  %v114 = vunpack.c.h.b16 %v22
  %v115 = vunpack.c.l.b16 %v23
  %v116 = vunpack.c.h.b16 %v23
  %v117 = vunpack.c.l.b16 %v24
  %v118 = vunpack.c.h.b16 %v24
  %v119 = vunpack.c.l.b16 %v25
  %v120 = vunpack.c.h.b16 %v25
  %v121 = vpack.c.b16 %v109, %v105
  %v122 = vpack.c.b16 %v110, %v106
  %v123 = vpack.c.b16 %v111, %v107
  %v124 = vpack.c.b16 %v112, %v108
  %v125 = vpack.c.b16 %v117, %v113
  %v126 = vpack.c.b16 %v118, %v114
  %v127 = vpack.c.b16 %v119, %v115
  %v128 = vpack.c.b16 %v120, %v116
  %v201 = vunpack.c.l.b16 %v26
  %v202 = vunpack.c.l.b16 %v27
  %v203 = vunpack.c.l.b16 %v28
  %v204 = vunpack.c.l.b16 %v29
  %v205 = vunpack.c.l.b16 %v30
  %v206 = vunpack.c.l.b16 %v31
  %v207 = vunpack.c.l.b16 %v32
  %v208 = vunpack.c.l.b16 %v33
  %v209 = vunpack.c.l.b16 %v34
  %v210 = vunpack.c.l.b16 %v35
  %v211 = vunpack.c.l.b16 %v36
  %v212 = vunpack.c.l.b16 %v37
  %v213 = vunpack.c.l.b16 %v38
  %v214 = vunpack.c.l.b16 %v39
  %v215 = vunpack.c.l.b16 %v40
  %v216 = vunpack.c.l.b16 %v41
  %v217 = vunpack.c.l.b16 %v42
  %v218 = vunpack.c.l.b16 %v43
  %v219 = vunpack.c.l.b16 %v44
  %v220 = vunpack.c.l.b16 %v45
  %v221 = vunpack.c.l.b16 %v46
  %v222 = vunpack.c.l.b16 %v47
  %v223 = vunpack.c.l.b16 %v48
  %v224 = vunpack.c.l.b16 %v49
  %v225 = vunpack.c.l.b16 %v50
  %v226 = vunpack.c.l.b16 %v51
  %v227 = vunpack.c.l.b16 %v52
  %v228 = vunpack.c.l.b16 %v53
  %v229 = vunpack.c.l.b16 %v54
  %v230 = vunpack.c.l.b16 %v55
  %v231 = vunpack.c.l.b16 %v56
  %v232 = vunpack.c.l.b16 %v57
  %v233 = vunpack.c.l.b16 %v58
  %v234 = vunpack.c.l.b16 %v59
  %v235 = vunpack.c.l.b16 %v60
  %v236 = vunpack.c.l.b16 %v61
  %v237 = vunpack.c.l.b16 %v62
  %v238 = vunpack.c.l.b16 %v63
  %v239 = vunpack.c.l.b16 %v64
  %v240 = vunpack.c.l.b16 %v65
  %v241 = vunpack.c.l.b16 %v66
  %v242 = vunpack.c.l.b16 %v67
  %v243 = vunpack.c.l.b16 %v68
  %v244 = vunpack.c.l.b16 %v69
  %v245 = vunpack.c.l.b16 %v70
  %v246 = vunpack.c.l.b16 %v71
  %v247 = vunpack.c.l.b16 %v72
  %v248 = vunpack.c.l.b16 %v73
  %v249 = vunpack.c.l.b16 %v74
  %v250 = vunpack.c.l.b16 %v75
  %v251 = vunpack.c.l.b16 %v76
  %v252 = vunpack.c.l.b16 %v77
  %v253 = vunpack.c.l.b16 %v78
  %v254 = vunpack.c.l.b16 %v79
  %v255 = vunpack.c.l.b16 %v80
  %v256 = vunpack.c.l.b16 %v81
  %v257 = vunpack.c.l.b16 %v82
  %v258 = vunpack.c.l.b16 %v83
  %v259 = vunpack.c.l.b16 %v84
  %v260 = vunpack.c.l.b16 %v85
  %v261 = vunpack.c.l.b16 %v86
  %v262 = vunpack.c.l.b16 %v87
  %v263 = vunpack.c.l.b16 %v88
  %v264 = vunpack.c.l.b16 %v89
  %v265 = vpack.c.b16 %v202, %v201
  %v266 = vpack.c.b16 %v204, %v203
  %v267 = vpack.c.b16 %v206, %v205
  %v268 = vpack.c.b16 %v208, %v207
  %v269 = vpack.c.b16 %v210, %v209
  %v270 = vpack.c.b16 %v212, %v211
  %v271 = vpack.c.b16 %v214, %v213
  %v272 = vpack.c.b16 %v216, %v215
  %v273 = vpack.c.b16 %v218, %v217
  %v274 = vpack.c.b16 %v220, %v219
  %v275 = vpack.c.b16 %v222, %v221
  %v276 = vpack.c.b16 %v224, %v223
  %v277 = vpack.c.b16 %v226, %v225
  %v278 = vpack.c.b16 %v228, %v227
  %v279 = vpack.c.b16 %v230, %v229
  %v280 = vpack.c.b16 %v232, %v231
  %v281 = vpack.c.b16 %v234, %v233
  %v282 = vpack.c.b16 %v236, %v235
  %v283 = vpack.c.b16 %v238, %v237
  %v284 = vpack.c.b16 %v240, %v239
  %v285 = vpack.c.b16 %v242, %v241
  %v286 = vpack.c.b16 %v244, %v243
  %v287 = vpack.c.b16 %v246, %v245
  %v288 = vpack.c.b16 %v248, %v247
  %v289 = vpack.c.b16 %v250, %v249
  %v290 = vpack.c.b16 %v252, %v251
  %v291 = vpack.c.b16 %v254, %v253
  %v292 = vpack.c.b16 %v256, %v255
  %v293 = vpack.c.b16 %v258, %v257
  %v294 = vpack.c.b16 %v260, %v259
  %v295 = vpack.c.b16 %v262, %v261
  %v296 = vpack.c.b16 %v264, %v263
  %329 = vmatprep.subr.bf16.mxu0 0
  %330 = vmatpush1.bf16.msra.mxu0 %v272
  %331 = vmatprep.subr.bf16.mxu0 0
  %332 = vmatpush1.bf16.msra.mxu0 %v271
  %333 = vmatprep.subr.bf16.mxu0 0
  %334 = vmatpush1.bf16.msra.mxu0 %v270
  %335 = vmatprep.subr.bf16.mxu0 0
  %336 = vmatpush1.bf16.msra.mxu0 %v269
  %337 = vmatprep.subr.bf16.mxu0 0
  %338 = vmatpush1.bf16.msra.mxu0 %v268
  %339 = vmatprep.subr.bf16.mxu0 0
  %340 = vmatpush1.bf16.msra.mxu0 %v267
  %341 = vmatprep.subr.bf16.mxu0 0
  %342 = vmatpush1.bf16.msra.mxu0 %v266
  %343 = vmatprep.subr.bf16.mxu0 0
  %344 = vmatpush1.bf16.msra.mxu0 %v265
  %345 = vmatprep.subr.bf16.mxu0 0
  %346 = vmatpush2.bf16.msra.mxu0 %v280
  %347 = vmatprep.subr.bf16.mxu0 0
  %348 = vmatpush2.bf16.msra.mxu0 %v279
  %349 = vmatprep.subr.bf16.mxu0 0
  %350 = vmatpush2.bf16.msra.mxu0 %v278
  %351 = vmatprep.subr.bf16.mxu0 0
  %352 = vmatpush2.bf16.msra.mxu0 %v277
  %353 = vmatprep.subr.bf16.mxu0 0
  %354 = vmatpush2.bf16.msra.mxu0 %v276
  %355 = vmatprep.subr.bf16.mxu0 0
  %356 = vmatpush2.bf16.msra.mxu0 %v275
  %357 = vmatprep.subr.bf16.mxu0 0
  %358 = vmatpush2.bf16.msra.mxu0 %v274
  %359 = vmatprep.subr.bf16.mxu0 0
  %360 = vmatpush2.bf16.msra.mxu0 %v273
  %361 = vmatprep.mubr.bf16.mxu0 %v122
  %362 = vmatmul.mubr.bf16.gmra.mxu0 %v121
  %v363 = vpop.f32.mrf.mxu0
  %v364 = vadd.f32 %v95, %v363
  %v365 = vpop.f32.mrf.mxu0
  %v366 = vpop.f32.mrf.mxu0
  %v367 = vadd.f32 %v95, %v366
  %v368 = vpop.f32.mrf.mxu0
  %369 = vmatprep.mubr.bf16.mxu0 %v126
  %370 = vmatmul.mubr.bf16.gmra.mxu0 %v125
  %v371 = vpop.f32.mrf.mxu0
  %v372 = vadd.f32 %v95, %v371
  %v373 = vpop.f32.mrf.mxu0
  %v374 = vpop.f32.mrf.mxu0
  %v375 = vadd.f32 %v95, %v374
  %v376 = vpop.f32.mrf.mxu0
  %377 = vdwg.mxu0
  %378 = vmatprep.subr.bf16.mxu0 0
  %379 = vmatpush1.bf16.msra.mxu0 %v288
  %380 = vmatprep.subr.bf16.mxu0 0
  %381 = vmatpush1.bf16.msra.mxu0 %v287
  %382 = vmatprep.subr.bf16.mxu0 0
  %383 = vmatpush1.bf16.msra.mxu0 %v286
  %384 = vmatprep.subr.bf16.mxu0 0
  %385 = vmatpush1.bf16.msra.mxu0 %v285
  %386 = vmatprep.subr.bf16.mxu0 0
  %387 = vmatpush1.bf16.msra.mxu0 %v284
  %388 = vmatprep.subr.bf16.mxu0 0
  %389 = vmatpush1.bf16.msra.mxu0 %v283
  %390 = vmatprep.subr.bf16.mxu0 0
  %391 = vmatpush1.bf16.msra.mxu0 %v282
  %392 = vmatprep.subr.bf16.mxu0 0
  %393 = vmatpush1.bf16.msra.mxu0 %v281
  %394 = vmatprep.subr.bf16.mxu0 0
  %395 = vmatpush2.bf16.msra.mxu0 %v296
  %396 = vmatprep.subr.bf16.mxu0 0
  %397 = vmatpush2.bf16.msra.mxu0 %v295
  %398 = vmatprep.subr.bf16.mxu0 0
  %399 = vmatpush2.bf16.msra.mxu0 %v294
  %400 = vmatprep.subr.bf16.mxu0 0
  %401 = vmatpush2.bf16.msra.mxu0 %v293
  %402 = vmatprep.subr.bf16.mxu0 0
  %403 = vmatpush2.bf16.msra.mxu0 %v292
  %404 = vmatprep.subr.bf16.mxu0 0
  %405 = vmatpush2.bf16.msra.mxu0 %v291
  %406 = vmatprep.subr.bf16.mxu0 0
  %407 = vmatpush2.bf16.msra.mxu0 %v290
  %408 = vmatprep.subr.bf16.mxu0 0
  %409 = vmatpush2.bf16.msra.mxu0 %v289
  %410 = vmatprep.mubr.bf16.mxu0 %v124
  %411 = vmatmul.mubr.bf16.gmra.mxu0 %v123
  %v412 = vpop.f32.mrf.mxu0
  %v413 = vadd.f32 %v364, %v412
  %v414 = vpop.f32.mrf.mxu0
  %v415 = vpop.f32.mrf.mxu0
  %v416 = vadd.f32 %v367, %v415
  %v417 = vpop.f32.mrf.mxu0
  %418 = vmatprep.mubr.bf16.mxu0 %v128
  %419 = vmatmul.mubr.bf16.gmra.mxu0 %v127
  %v420 = vpop.f32.mrf.mxu0
  %v421 = vadd.f32 %v372, %v420
  %v422 = vpop.f32.mrf.mxu0
  %v423 = vpop.f32.mrf.mxu0
  %v424 = vadd.f32 %v375, %v423
  %v425 = vpop.f32.mrf.mxu0
  %426 = vdwg.mxu0
  %v427 = vld [vmem:[%s3] sm:$0xf]
  %v428 = vld [vmem:[%s3 + $0x4] sm:$0xf]
  %v429 = vld [vmem:[%s3 + $0x8] sm:$0xf]
  %v430 = vld [vmem:[%s3 + $0xc] sm:$0xf]
  %v431 = vunpack.c.l.bf16 %v427
  %v432 = vunpack.c.l.bf16 %v428
  %v433 = vunpack.c.l.bf16 %v429
  %v434 = vunpack.c.l.bf16 %v430
  %v435 = vadd.f32 %v413, %v431
  %v436 = vadd.f32 %v416, %v432
  %v437 = vadd.f32 %v421, %v433
  %v438 = vadd.f32 %v424, %v434
  %v439 = vmax.f32 %v435, 0.0
  %v440 = vmax.f32 %v436, 0.0
  %v441 = vmax.f32 %v437, 0.0
  %v442 = vmax.f32 %v438, 0.0
  %v443 = vpack.c.bf16 %v440, %v439
  %v444 = vpack.c.bf16 %v442, %v441
  %v447 = vunpack.c.l.b16 %v443
  %v448 = vunpack.c.h.b16 %v443
  %v449 = vunpack.c.l.b16 %v444
  %v450 = vunpack.c.h.b16 %v444
  %v451 = vpack.c.b16 %v447, %v447
  %v452 = vpack.c.b16 %v448, %v448
  %v453 = vpack.c.b16 %v449, %v449
  %v454 = vpack.c.b16 %v450, %v450
  %459 = vst [vmem:[%s4] sm:$0xf] %v451
  %460 = vst [vmem:[%s4 + $0x4] sm:$0xf] %v452
  %461 = vst [vmem:[%s4 + $0x8] sm:$0xf] %v453
  %462 = vst [vmem:[%s4 + $0xc] sm:$0xf] %v454
  // Predicated region
  $region18: #{_lambda_.18} parent=0 // pred_check
    _
  $region19: #{_lambda_.18} parent=0 // pred_check_branch
    %464 = sbr.rel (0) target = $region21
  $region20: #{_lambda_.18} parent=0 // pred_region
    _
  $region21: #{_lambda_.18} parent=0 // pred_fallthru
    _
  // Predicated region
  $region22: #{_lambda_.18} parent=0 // pred_check
    _
  $region23: #{_lambda_.18} parent=0 // pred_check_branch
    %466 = sbr.rel (0) target = $region25
  $region24: #{_lambda_.18} parent=0 // pred_region
    _
  $region25: #{_lambda_.18} parent=0 // pred_fallthru
    _

// kernel: _lambda_.19
$region0: #{_lambda_.19}
  #allocation0 [shape = 'u32[]', space=smem, size = 0x4, offset = 0x4, fixed_abs, tag = 'smem constant byte address 0x4 - core index']
  #allocation1 [shape = 'u32[144,128]{1,0:T(1,128)}', space=vmem, size = 0x12000, scoped, tag = 'internal scratch']
  %s0 = inlined_call_operand.vmem [shape: bf16[16,640], index: 0, kind: input, shape index: {}]
  %s1 = inlined_call_operand.vmem [shape: bf16[640,256], index: 1, kind: input, shape index: {}]
  %s2 = inlined_call_operand.vmem [shape: f32[1,256], index: 2, kind: input, shape index: {}]
  %s3 = inlined_call_operand.vmem [shape: bf16[16,256], index: 3, kind: output, shape index: {}]
  %s4 = sld [smem:[#allocation0]]
  $region22: #{_lambda_.19} parent=0
    _
  %s6 = ssub.s32 1, %s4
  %s7 = scalar_select 0, %s6, %s4
  // Predicated region
  $region2: #{_lambda_.19} parent=0 // pred_check
    _
  $region3: #{_lambda_.19} parent=0 // pred_check_branch
    %9 = sbr.rel (0) target = $region5
  $region4: #{_lambda_.19} parent=0 // pred_region
    _
  $region5: #{_lambda_.19} parent=0 // pred_fallthru
    _
  // Predicated region
  $region6: #{_lambda_.19} parent=0 // pred_check
    _
  $region7: #{_lambda_.19} parent=0 // pred_check_branch
    %11 = sbr.rel (0) target = $region9
  $region8: #{_lambda_.19} parent=0 // pred_region
    _
  $region9: #{_lambda_.19} parent=0 // pred_fallthru
    _
  // Predicated region
  $region10: #{_lambda_.19} parent=0 // pred_check
    _
  $region11: #{_lambda_.19} parent=0 // pred_check_branch
    %13 = sbr.rel (0) target = $region13
  $region12: #{_lambda_.19} parent=0 // pred_region
    _
  $region13: #{_lambda_.19} parent=0 // pred_fallthru
    _
  %v15 = vld [vmem:[%s0] sm:$0xff]
  %v16 = vld [vmem:[%s0 + $0x8] sm:$0xff]
  %v17 = vld [vmem:[%s0 + $0x10] sm:$0xf]
  %v18 = vld [vmem:[%s0 + $0x14] sm:$0xff]
  %v19 = vld [vmem:[%s0 + $0x1c] sm:$0xff]
  %v20 = vld [vmem:[%s0 + $0x24] sm:$0xf]
  %v21 = vld [vmem:[%s1] sm:$0xff]
  %v22 = vld [vmem:[%s1 + $0x8] sm:$0xff]
  %v23 = vld [vmem:[%s1 + $0x10] sm:$0xff]
  %v24 = vld [vmem:[%s1 + $0x18] sm:$0xff]
  %v25 = vld [vmem:[%s1 + $0x20] sm:$0xff]
  %v26 = vld [vmem:[%s1 + $0x28] sm:$0xff]
  %v27 = vld [vmem:[%s1 + $0x30] sm:$0xff]
  %v28 = vld [vmem:[%s1 + $0x38] sm:$0xff]
  %v29 = vld [vmem:[%s1 + $0x40] sm:$0xff]
  %v30 = vld [vmem:[%s1 + $0x48] sm:$0xff]
  %v31 = vld [vmem:[%s1 + $0x50] sm:$0xff]
  %v32 = vld [vmem:[%s1 + $0x58] sm:$0xff]
  %v33 = vld [vmem:[%s1 + $0x60] sm:$0xff]
  %v34 = vld [vmem:[%s1 + $0x68] sm:$0xff]
  %v35 = vld [vmem:[%s1 + $0x70] sm:$0xff]
  %v36 = vld [vmem:[%s1 + $0x78] sm:$0xff]
  %v37 = vld [vmem:[%s1 + $0x80] sm:$0xff]
  %v38 = vld [vmem:[%s1 + $0x88] sm:$0xff]
  %v39 = vld [vmem:[%s1 + $0x90] sm:$0xff]
  %v40 = vld [vmem:[%s1 + $0x98] sm:$0xff]
  %v41 = vld [vmem:[%s1 + $0xa0] sm:$0xff]
  %v42 = vld [vmem:[%s1 + $0xa8] sm:$0xff]
  %v43 = vld [vmem:[%s1 + $0xb0] sm:$0xff]
  %v44 = vld [vmem:[%s1 + $0xb8] sm:$0xff]
  %v45 = vld [vmem:[%s1 + $0xc0] sm:$0xff]
  %v46 = vld [vmem:[%s1 + $0xc8] sm:$0xff]
  %v47 = vld [vmem:[%s1 + $0xd0] sm:$0xff]
  %v48 = vld [vmem:[%s1 + $0xd8] sm:$0xff]
  %v49 = vld [vmem:[%s1 + $0xe0] sm:$0xff]
  %v50 = vld [vmem:[%s1 + $0xe8] sm:$0xff]
  %v51 = vld [vmem:[%s1 + $0xf0] sm:$0xff]
  %v52 = vld [vmem:[%s1 + $0xf8] sm:$0xff]
  %v53 = vld [vmem:[%s1 + $0x100] sm:$0xff]
  %v54 = vld [vmem:[%s1 + $0x108] sm:$0xff]
  %v55 = vld [vmem:[%s1 + $0x110] sm:$0xff]
  %v56 = vld [vmem:[%s1 + $0x118] sm:$0xff]
  %v57 = vld [vmem:[%s1 + $0x120] sm:$0xff]
  %v58 = vld [vmem:[%s1 + $0x128] sm:$0xff]
  %v59 = vld [vmem:[%s1 + $0x130] sm:$0xff]
  %v60 = vld [vmem:[%s1 + $0x138] sm:$0xff]
  %v61 = vld [vmem:[%s1 + $0x140] sm:$0xff]
  %v62 = vld [vmem:[%s1 + $0x148] sm:$0xff]
  %v63 = vld [vmem:[%s1 + $0x150] sm:$0xff]
  %v64 = vld [vmem:[%s1 + $0x158] sm:$0xff]
  %v65 = vld [vmem:[%s1 + $0x160] sm:$0xff]
  %v66 = vld [vmem:[%s1 + $0x168] sm:$0xff]
  %v67 = vld [vmem:[%s1 + $0x170] sm:$0xff]
  %v68 = vld [vmem:[%s1 + $0x178] sm:$0xff]
  %v69 = vld [vmem:[%s1 + $0x180] sm:$0xff]
  %v70 = vld [vmem:[%s1 + $0x188] sm:$0xff]
  %v71 = vld [vmem:[%s1 + $0x190] sm:$0xff]
  %v72 = vld [vmem:[%s1 + $0x198] sm:$0xff]
  %v73 = vld [vmem:[%s1 + $0x1a0] sm:$0xff]
  %v74 = vld [vmem:[%s1 + $0x1a8] sm:$0xff]
  %v75 = vld [vmem:[%s1 + $0x1b0] sm:$0xff]
  %v76 = vld [vmem:[%s1 + $0x1b8] sm:$0xff]
  %v77 = vld [vmem:[%s1 + $0x1c0] sm:$0xff]
  %v78 = vld [vmem:[%s1 + $0x1c8] sm:$0xff]
  %v79 = vld [vmem:[%s1 + $0x1d0] sm:$0xff]
  %v80 = vld [vmem:[%s1 + $0x1d8] sm:$0xff]
  %v81 = vld [vmem:[%s1 + $0x1e0] sm:$0xff]
  %v82 = vld [vmem:[%s1 + $0x1e8] sm:$0xff]
  %v83 = vld [vmem:[%s1 + $0x1f0] sm:$0xff]
  %v84 = vld [vmem:[%s1 + $0x1f8] sm:$0xff]
  %v85 = vld [vmem:[%s1 + $0x200] sm:$0xff]
  %v86 = vld [vmem:[%s1 + $0x208] sm:$0xff]
  %v87 = vld [vmem:[%s1 + $0x210] sm:$0xff]
  %v88 = vld [vmem:[%s1 + $0x218] sm:$0xff]
  %v89 = vld [vmem:[%s1 + $0x220] sm:$0xff]
  %v90 = vld [vmem:[%s1 + $0x228] sm:$0xff]
  %v91 = vld [vmem:[%s1 + $0x230] sm:$0xff]
  %v92 = vld [vmem:[%s1 + $0x238] sm:$0xff]
  %v93 = vld [vmem:[%s1 + $0x240] sm:$0xff]
  %v94 = vld [vmem:[%s1 + $0x248] sm:$0xff]
  %v95 = vld [vmem:[%s1 + $0x250] sm:$0xff]
  %v96 = vld [vmem:[%s1 + $0x258] sm:$0xff]
  %v97 = vld [vmem:[%s1 + $0x260] sm:$0xff]
  %v98 = vld [vmem:[%s1 + $0x268] sm:$0xff]
  %v99 = vld [vmem:[%s1 + $0x270] sm:$0xff]
  %v100 = vld [vmem:[%s1 + $0x278] sm:$0xff]
  %v101 = vld [vmem:[%s2] sm:$0x3]
  %v103 = vlaneseq
  %v104 = vshrl.u32 %v103, 7
  %v105 = vsub.s32 0, %v104
  %v106 = vrot.slane %v101, %v105
  %v107 = vlaneseq
  %v108 = vshrl.u32 %v107, 7
  %v109 = vsub.s32 1, %v108
  %v110 = vrot.slane %v101, %v109
  %v119 = vunpack.c.l.b16 %v15
  %v120 = vunpack.c.h.b16 %v15
  %v121 = vunpack.c.l.b16 %v16
  %v122 = vunpack.c.h.b16 %v16
  %v123 = vunpack.c.l.b16 %v17
  %v124 = vunpack.c.l.b16 %v18
  %v125 = vunpack.c.h.b16 %v18
  %v126 = vunpack.c.l.b16 %v19
  %v127 = vunpack.c.h.b16 %v19
  %v128 = vunpack.c.l.b16 %v20
  %v129 = vpack.c.b16 %v124, %v119
  %v130 = vpack.c.b16 %v125, %v120
  %v131 = vpack.c.b16 %v126, %v121
  %v132 = vpack.c.b16 %v127, %v122
  %v133 = vpack.c.b16 %v128, %v123
  %v219 = vunpack.c.l.b16 %v21
  %v220 = vunpack.c.h.b16 %v21
  %v221 = vunpack.c.l.b16 %v22
  %v222 = vunpack.c.h.b16 %v22
  %v223 = vunpack.c.l.b16 %v23
  %v224 = vunpack.c.h.b16 %v23
  %v225 = vunpack.c.l.b16 %v24
  %v226 = vunpack.c.h.b16 %v24
  %v227 = vunpack.c.l.b16 %v25
  %v228 = vunpack.c.h.b16 %v25
  %v229 = vunpack.c.l.b16 %v26
  %v230 = vunpack.c.h.b16 %v26
  %v231 = vunpack.c.l.b16 %v27
  %v232 = vunpack.c.h.b16 %v27
  %v233 = vunpack.c.l.b16 %v28
  %v234 = vunpack.c.h.b16 %v28
  %v235 = vunpack.c.l.b16 %v29
  %v236 = vunpack.c.h.b16 %v29
  %v237 = vunpack.c.l.b16 %v30
  %v238 = vunpack.c.h.b16 %v30
  %v239 = vunpack.c.l.b16 %v31
  %v240 = vunpack.c.h.b16 %v31
  %v241 = vunpack.c.l.b16 %v32
  %v242 = vunpack.c.h.b16 %v32
  %v243 = vunpack.c.l.b16 %v33
  %v244 = vunpack.c.h.b16 %v33
  %v245 = vunpack.c.l.b16 %v34
  %v246 = vunpack.c.h.b16 %v34
  %v247 = vunpack.c.l.b16 %v35
  %v248 = vunpack.c.h.b16 %v35
  %v249 = vunpack.c.l.b16 %v36
  %v250 = vunpack.c.h.b16 %v36
  %v251 = vunpack.c.l.b16 %v37
  %v252 = vunpack.c.h.b16 %v37
  %v253 = vunpack.c.l.b16 %v38
  %v254 = vunpack.c.h.b16 %v38
  %v255 = vunpack.c.l.b16 %v39
  %v256 = vunpack.c.h.b16 %v39
  %v257 = vunpack.c.l.b16 %v40
  %v258 = vunpack.c.h.b16 %v40
  %v259 = vunpack.c.l.b16 %v41
  %v260 = vunpack.c.h.b16 %v41
  %v261 = vunpack.c.l.b16 %v42
  %v262 = vunpack.c.h.b16 %v42
  %v263 = vunpack.c.l.b16 %v43
  %v264 = vunpack.c.h.b16 %v43
  %v265 = vunpack.c.l.b16 %v44
  %v266 = vunpack.c.h.b16 %v44
  %v267 = vunpack.c.l.b16 %v45
  %v268 = vunpack.c.h.b16 %v45
  %v269 = vunpack.c.l.b16 %v46
  %v270 = vunpack.c.h.b16 %v46
  %v271 = vunpack.c.l.b16 %v47
  %v272 = vunpack.c.h.b16 %v47
  %v273 = vunpack.c.l.b16 %v48
  %v274 = vunpack.c.h.b16 %v48
  %v275 = vunpack.c.l.b16 %v49
  %v276 = vunpack.c.h.b16 %v49
  %v277 = vunpack.c.l.b16 %v50
  %v278 = vunpack.c.h.b16 %v50
  %v279 = vunpack.c.l.b16 %v51
  %v280 = vunpack.c.h.b16 %v51
  %v281 = vunpack.c.l.b16 %v52
  %v282 = vunpack.c.h.b16 %v52
  %v283 = vunpack.c.l.b16 %v53
  %v284 = vunpack.c.h.b16 %v53
  %v285 = vunpack.c.l.b16 %v54
  %v286 = vunpack.c.h.b16 %v54
  %v287 = vunpack.c.l.b16 %v55
  %v288 = vunpack.c.h.b16 %v55
  %v289 = vunpack.c.l.b16 %v56
  %v290 = vunpack.c.h.b16 %v56
  %v291 = vunpack.c.l.b16 %v57
  %v292 = vunpack.c.h.b16 %v57
  %v293 = vunpack.c.l.b16 %v58
  %v294 = vunpack.c.h.b16 %v58
  %v295 = vunpack.c.l.b16 %v59
  %v296 = vunpack.c.h.b16 %v59
  %v297 = vunpack.c.l.b16 %v60
  %v298 = vunpack.c.h.b16 %v60
  %v299 = vunpack.c.l.b16 %v61
  %v300 = vunpack.c.h.b16 %v61
  %v301 = vunpack.c.l.b16 %v62
  %v302 = vunpack.c.h.b16 %v62
  %v303 = vunpack.c.l.b16 %v63
  %v304 = vunpack.c.h.b16 %v63
  %v305 = vunpack.c.l.b16 %v64
  %v306 = vunpack.c.h.b16 %v64
  %v307 = vunpack.c.l.b16 %v65
  %v308 = vunpack.c.h.b16 %v65
  %v309 = vunpack.c.l.b16 %v66
  %v310 = vunpack.c.h.b16 %v66
  %v311 = vunpack.c.l.b16 %v67
  %v312 = vunpack.c.h.b16 %v67
  %v313 = vunpack.c.l.b16 %v68
  %v314 = vunpack.c.h.b16 %v68
  %v315 = vunpack.c.l.b16 %v69
  %v316 = vunpack.c.h.b16 %v69
  %v317 = vunpack.c.l.b16 %v70
  %v318 = vunpack.c.h.b16 %v70
  %v319 = vunpack.c.l.b16 %v71
  %v320 = vunpack.c.h.b16 %v71
  %v321 = vunpack.c.l.b16 %v72
  %v322 = vunpack.c.h.b16 %v72
  %v323 = vunpack.c.l.b16 %v73
  %v324 = vunpack.c.h.b16 %v73
  %v325 = vunpack.c.l.b16 %v74
  %v326 = vunpack.c.h.b16 %v74
  %v327 = vunpack.c.l.b16 %v75
  %v328 = vunpack.c.h.b16 %v75
  %v329 = vunpack.c.l.b16 %v76
  %v330 = vunpack.c.h.b16 %v76
  %v331 = vunpack.c.l.b16 %v77
  %v332 = vunpack.c.h.b16 %v77
  %v333 = vunpack.c.l.b16 %v78
  %v334 = vunpack.c.h.b16 %v78
  %v335 = vunpack.c.l.b16 %v79
  %v336 = vunpack.c.h.b16 %v79
  %v337 = vunpack.c.l.b16 %v80
  %v338 = vunpack.c.h.b16 %v80
  %v339 = vunpack.c.l.b16 %v81
  %v340 = vunpack.c.h.b16 %v81
  %v341 = vunpack.c.l.b16 %v82
  %v342 = vunpack.c.h.b16 %v82
  %v343 = vunpack.c.l.b16 %v83
  %v344 = vunpack.c.h.b16 %v83
  %v345 = vunpack.c.l.b16 %v84
  %v346 = vunpack.c.h.b16 %v84
  %v347 = vunpack.c.l.b16 %v85
  %v348 = vunpack.c.h.b16 %v85
  %v349 = vunpack.c.l.b16 %v86
  %v350 = vunpack.c.h.b16 %v86
  %v351 = vunpack.c.l.b16 %v87
  %v352 = vunpack.c.h.b16 %v87
  %v353 = vunpack.c.l.b16 %v88
  %v354 = vunpack.c.h.b16 %v88
  %v355 = vunpack.c.l.b16 %v89
  %v356 = vunpack.c.h.b16 %v89
  %v357 = vunpack.c.l.b16 %v90
  %v358 = vunpack.c.h.b16 %v90
  %v359 = vunpack.c.l.b16 %v91
  %v360 = vunpack.c.h.b16 %v91
  %v361 = vunpack.c.l.b16 %v92
  %v362 = vunpack.c.h.b16 %v92
  %v363 = vunpack.c.l.b16 %v93
  %v364 = vunpack.c.h.b16 %v93
  %v365 = vunpack.c.l.b16 %v94
  %v366 = vunpack.c.h.b16 %v94
  %v367 = vunpack.c.l.b16 %v95
  %v368 = vunpack.c.h.b16 %v95
  %v369 = vunpack.c.l.b16 %v96
  %v370 = vunpack.c.h.b16 %v96
  %v371 = vunpack.c.l.b16 %v97
  %v372 = vunpack.c.h.b16 %v97
  %v373 = vunpack.c.l.b16 %v98
  %v374 = vunpack.c.h.b16 %v98
  %v375 = vunpack.c.l.b16 %v99
  %v376 = vunpack.c.h.b16 %v99
  %v377 = vunpack.c.l.b16 %v100
  %v378 = vunpack.c.h.b16 %v100
  %v379 = vpack.c.b16 %v221, %v219
  %v380 = vpack.c.b16 %v222, %v220
  %v381 = vpack.c.b16 %v225, %v223
  %v382 = vpack.c.b16 %v226, %v224
  %v383 = vpack.c.b16 %v229, %v227
  %v384 = vpack.c.b16 %v230, %v228
  %v385 = vpack.c.b16 %v233, %v231
  %v386 = vpack.c.b16 %v234, %v232
  %v387 = vpack.c.b16 %v237, %v235
  %v388 = vpack.c.b16 %v238, %v236
  %v389 = vpack.c.b16 %v241, %v239
  %v390 = vpack.c.b16 %v242, %v240
  %v391 = vpack.c.b16 %v245, %v243
  %v392 = vpack.c.b16 %v246, %v244
  %v393 = vpack.c.b16 %v249, %v247
  %v394 = vpack.c.b16 %v250, %v248
  %v395 = vpack.c.b16 %v253, %v251
  %v396 = vpack.c.b16 %v254, %v252
  %v397 = vpack.c.b16 %v257, %v255
  %v398 = vpack.c.b16 %v258, %v256
  %v399 = vpack.c.b16 %v261, %v259
  %v400 = vpack.c.b16 %v262, %v260
  %v401 = vpack.c.b16 %v265, %v263
  %v402 = vpack.c.b16 %v266, %v264
  %v403 = vpack.c.b16 %v269, %v267
  %v404 = vpack.c.b16 %v270, %v268
  %v405 = vpack.c.b16 %v273, %v271
  %v406 = vpack.c.b16 %v274, %v272
  %v407 = vpack.c.b16 %v277, %v275
  %v408 = vpack.c.b16 %v278, %v276
  %v409 = vpack.c.b16 %v281, %v279
  %v410 = vpack.c.b16 %v282, %v280
  %v411 = vpack.c.b16 %v285, %v283
  %v412 = vpack.c.b16 %v286, %v284
  %v413 = vpack.c.b16 %v289, %v287
  %v414 = vpack.c.b16 %v290, %v288
  %v415 = vpack.c.b16 %v293, %v291
  %v416 = vpack.c.b16 %v294, %v292
  %v417 = vpack.c.b16 %v297, %v295
  %v418 = vpack.c.b16 %v298, %v296
  %v419 = vpack.c.b16 %v301, %v299
  %v420 = vpack.c.b16 %v302, %v300
  %v421 = vpack.c.b16 %v305, %v303
  %v422 = vpack.c.b16 %v306, %v304
  %v423 = vpack.c.b16 %v309, %v307
  %v424 = vpack.c.b16 %v310, %v308
  %v425 = vpack.c.b16 %v313, %v311
  %v426 = vpack.c.b16 %v314, %v312
  %v427 = vpack.c.b16 %v317, %v315
  %v428 = vpack.c.b16 %v318, %v316
  %v429 = vpack.c.b16 %v321, %v319
  %v430 = vpack.c.b16 %v322, %v320
  %v431 = vpack.c.b16 %v325, %v323
  %v432 = vpack.c.b16 %v326, %v324
  %v433 = vpack.c.b16 %v329, %v327
  %v434 = vpack.c.b16 %v330, %v328
  %v435 = vpack.c.b16 %v333, %v331
  %v436 = vpack.c.b16 %v334, %v332
  %v437 = vpack.c.b16 %v337, %v335
  %v438 = vpack.c.b16 %v338, %v336
  %v439 = vpack.c.b16 %v341, %v339
  %v440 = vpack.c.b16 %v342, %v340
  %v441 = vpack.c.b16 %v345, %v343
  %v442 = vpack.c.b16 %v346, %v344
  %v443 = vpack.c.b16 %v349, %v347
  %v444 = vpack.c.b16 %v350, %v348
  %v445 = vpack.c.b16 %v353, %v351
  %v446 = vpack.c.b16 %v354, %v352
  %v447 = vpack.c.b16 %v357, %v355
  %v448 = vpack.c.b16 %v358, %v356
  %v449 = vpack.c.b16 %v361, %v359
  %v450 = vpack.c.b16 %v362, %v360
  %v451 = vpack.c.b16 %v365, %v363
  %v452 = vpack.c.b16 %v366, %v364
  %v453 = vpack.c.b16 %v369, %v367
  %v454 = vpack.c.b16 %v370, %v368
  %v455 = vpack.c.b16 %v373, %v371
  %v456 = vpack.c.b16 %v374, %v372
  %v457 = vpack.c.b16 %v377, %v375
  %v458 = vpack.c.b16 %v378, %v376
  %539 = vmatprep.subr.bf16.mxu0 %v394
  %540 = vmatpush1.bf16.msra.mxu0 %v393
  %541 = vmatprep.subr.bf16.mxu0 %v392
  %542 = vmatpush1.bf16.msra.mxu0 %v391
  %543 = vmatprep.subr.bf16.mxu0 %v390
  %544 = vmatpush1.bf16.msra.mxu0 %v389
  %545 = vmatprep.subr.bf16.mxu0 %v388
  %546 = vmatpush1.bf16.msra.mxu0 %v387
  %547 = vmatprep.subr.bf16.mxu0 %v386
  %548 = vmatpush1.bf16.msra.mxu0 %v385
  %549 = vmatprep.subr.bf16.mxu0 %v384
  %550 = vmatpush1.bf16.msra.mxu0 %v383
  %551 = vmatprep.subr.bf16.mxu0 %v382
  %552 = vmatpush1.bf16.msra.mxu0 %v381
  %553 = vmatprep.subr.bf16.mxu0 %v380
  %554 = vmatpush1.bf16.msra.mxu0 %v379
  %555 = vmatprep.subr.bf16.mxu0 %v410
  %556 = vmatpush2.bf16.msra.mxu0 %v409
  %557 = vmatprep.subr.bf16.mxu0 %v408
  %558 = vmatpush2.bf16.msra.mxu0 %v407
  %559 = vmatprep.subr.bf16.mxu0 %v406
  %560 = vmatpush2.bf16.msra.mxu0 %v405
  %561 = vmatprep.subr.bf16.mxu0 %v404
  %562 = vmatpush2.bf16.msra.mxu0 %v403
  %563 = vmatprep.subr.bf16.mxu0 %v402
  %564 = vmatpush2.bf16.msra.mxu0 %v401
  %565 = vmatprep.subr.bf16.mxu0 %v400
  %566 = vmatpush2.bf16.msra.mxu0 %v399
  %567 = vmatprep.subr.bf16.mxu0 %v398
  %568 = vmatpush2.bf16.msra.mxu0 %v397
  %569 = vmatprep.subr.bf16.mxu0 %v396
  %570 = vmatpush2.bf16.msra.mxu0 %v395
  %571 = vmatprep.mubr.bf16.mxu0 %v130
  %572 = vmatmul.mubr.bf16.gmra.mxu0 %v129
  %v573 = vpop.f32.mrf.mxu0
  %v574 = vadd.f32 %v106, %v573
  %v575 = vpop.f32.mrf.mxu0
  %v576 = vadd.f32 %v110, %v575
  %v577 = vpop.f32.mrf.mxu0
  %v578 = vadd.f32 %v106, %v577
  %v579 = vpop.f32.mrf.mxu0
  %v580 = vadd.f32 %v110, %v579
  %581 = vdwg.mxu0
  %582 = vmatprep.subr.bf16.mxu0 %v426
  %583 = vmatpush1.bf16.msra.mxu0 %v425
  %584 = vmatprep.subr.bf16.mxu0 %v424
  %585 = vmatpush1.bf16.msra.mxu0 %v423
  %586 = vmatprep.subr.bf16.mxu0 %v422
  %587 = vmatpush1.bf16.msra.mxu0 %v421
  %588 = vmatprep.subr.bf16.mxu0 %v420
  %589 = vmatpush1.bf16.msra.mxu0 %v419
  %590 = vmatprep.subr.bf16.mxu0 %v418
  %591 = vmatpush1.bf16.msra.mxu0 %v417
  %592 = vmatprep.subr.bf16.mxu0 %v416
  %593 = vmatpush1.bf16.msra.mxu0 %v415
  %594 = vmatprep.subr.bf16.mxu0 %v414
  %595 = vmatpush1.bf16.msra.mxu0 %v413
  %596 = vmatprep.subr.bf16.mxu0 %v412
  %597 = vmatpush1.bf16.msra.mxu0 %v411
  %598 = vmatprep.subr.bf16.mxu0 %v442
  %599 = vmatpush2.bf16.msra.mxu0 %v441
  %600 = vmatprep.subr.bf16.mxu0 %v440
  %601 = vmatpush2.bf16.msra.mxu0 %v439
  %602 = vmatprep.subr.bf16.mxu0 %v438
  %603 = vmatpush2.bf16.msra.mxu0 %v437
  %604 = vmatprep.subr.bf16.mxu0 %v436
  %605 = vmatpush2.bf16.msra.mxu0 %v435
  %606 = vmatprep.subr.bf16.mxu0 %v434
  %607 = vmatpush2.bf16.msra.mxu0 %v433
  %608 = vmatprep.subr.bf16.mxu0 %v432
  %609 = vmatpush2.bf16.msra.mxu0 %v431
  %610 = vmatprep.subr.bf16.mxu0 %v430
  %611 = vmatpush2.bf16.msra.mxu0 %v429
  %612 = vmatprep.subr.bf16.mxu0 %v428
  %613 = vmatpush2.bf16.msra.mxu0 %v427
  %614 = vmatprep.mubr.bf16.mxu0 %v132
  %615 = vmatmul.mubr.bf16.gmra.mxu0 %v131
  %v616 = vpop.f32.mrf.mxu0
  %v617 = vadd.f32 %v574, %v616
  %v618 = vpop.f32.mrf.mxu0
  %v619 = vadd.f32 %v576, %v618
  %v620 = vpop.f32.mrf.mxu0
  %v621 = vadd.f32 %v578, %v620
  %v622 = vpop.f32.mrf.mxu0
  %v623 = vadd.f32 %v580, %v622
  %624 = vdwg.mxu0
  %625 = vmatprep.subr.bf16.mxu0 %v458
  %626 = vmatpush1.bf16.msra.mxu0 %v457
  %627 = vmatprep.subr.bf16.mxu0 %v456
  %628 = vmatpush1.bf16.msra.mxu0 %v455
  %629 = vmatprep.subr.bf16.mxu0 %v454
  %630 = vmatpush1.bf16.msra.mxu0 %v453
  %631 = vmatprep.subr.bf16.mxu0 %v452
  %632 = vmatpush1.bf16.msra.mxu0 %v451
  %633 = vmatprep.subr.bf16.mxu0 %v450
  %634 = vmatpush1.bf16.msra.mxu0 %v449
  %635 = vmatprep.subr.bf16.mxu0 %v448
  %636 = vmatpush1.bf16.msra.mxu0 %v447
  %637 = vmatprep.subr.bf16.mxu0 %v446
  %638 = vmatpush1.bf16.msra.mxu0 %v445
  %639 = vmatprep.subr.bf16.mxu0 %v444
  %640 = vmatpush1.bf16.msra.mxu0 %v443
  %641 = vmatprep.subr.bf16.mxu0 0
  %642 = vmatpush2.bf16.msra.mxu0 0
  %643 = vmatprep.subr.bf16.mxu0 0
  %644 = vmatpush2.bf16.msra.mxu0 0
  %645 = vmatprep.subr.bf16.mxu0 0
  %646 = vmatpush2.bf16.msra.mxu0 0
  %647 = vmatprep.subr.bf16.mxu0 0
  %648 = vmatpush2.bf16.msra.mxu0 0
  %649 = vmatprep.subr.bf16.mxu0 0
  %650 = vmatpush2.bf16.msra.mxu0 0
  %651 = vmatprep.subr.bf16.mxu0 0
  %652 = vmatpush2.bf16.msra.mxu0 0
  %653 = vmatprep.subr.bf16.mxu0 0
  %654 = vmatpush2.bf16.msra.mxu0 0
  %655 = vmatprep.subr.bf16.mxu0 0
  %656 = vmatpush2.bf16.msra.mxu0 0
  %657 = vmatprep.mubr.bf16.mxu0 0
  %658 = vmatmul.mubr.bf16.gmra.mxu0 %v133
  %v659 = vpop.f32.mrf.mxu0
  %v660 = vadd.f32 %v617, %v659
  %v661 = vpop.f32.mrf.mxu0
  %v662 = vadd.f32 %v619, %v661
  %v663 = vpop.f32.mrf.mxu0
  %v664 = vadd.f32 %v621, %v663
  %v665 = vpop.f32.mrf.mxu0
  %v666 = vadd.f32 %v623, %v665
  %667 = vdwg.mxu0
  %v668 = vlaneseq
  %v669 = vand.u32 %v668, 127
  %v670 = vadd.s32 %v669, 128
  %vm671 = vcmp.lt.s32.totalorder %v669, 128
  %vm672 = vcmp.lt.s32.totalorder %v670, 128
  %v673 = vmax.f32 %v660, 0.0
  %v674 = vmax.f32 %v662, 0.0
  %v675 = vmax.f32 %v664, 0.0
  %v676 = vmax.f32 %v666, 0.0
  %v677 = vsel %vm671, %v673, %v660
  %v678 = vsel %vm672, %v674, %v662
  %v679 = vsel %vm671, %v675, %v664
  %v680 = vsel %vm672, %v676, %v666
  %v681 = vpack.c.bf16 %v679, %v677
  %v682 = vpack.c.bf16 %v680, %v678
  %v685 = vunpack.c.l.b16 %v681
  %v686 = vunpack.c.l.b16 %v682
  %v687 = vunpack.c.h.b16 %v681
  %v688 = vunpack.c.h.b16 %v682
  %v689 = vpack.c.b16 %v686, %v685
  %v690 = vpack.c.b16 %v688, %v687
  %693 = vst [vmem:[%s3] sm:$0xff] %v689
  %694 = vst [vmem:[%s3 + $0x8] sm:$0xff] %v690
  // Predicated region
  $region14: #{_lambda_.19} parent=0 // pred_check
    _
  $region15: #{_lambda_.19} parent=0 // pred_check_branch
    %696 = sbr.rel (0) target = $region17
  $region16: #{_lambda_.19} parent=0 // pred_region
    _
  $region17: #{_lambda_.19} parent=0 // pred_fallthru
    _
  // Predicated region
  $region18: #{_lambda_.19} parent=0 // pred_check
    _
  $region19: #{_lambda_.19} parent=0 // pred_check_branch
    %698 = sbr.rel (0) target = $region21
  $region20: #{_lambda_.19} parent=0 // pred_region
    _
  $region21: #{_lambda_.19} parent=0 // pred_fallthru
    _

// kernel: _lambda_.21
$region0: #{_lambda_.21}
  #allocation0 [shape = 'u32[]', space=smem, size = 0x4, offset = 0x4, fixed_abs, tag = 'smem constant byte address 0x4 - core index']
  #allocation1 [shape = 'u32[144,128]{1,0:T(1,128)}', space=vmem, size = 0x12000, scoped, tag = 'internal scratch']
  %s0 = inlined_call_operand.vmem [shape: bf16[8,4,128], index: 0, kind: input, shape index: {}]
  %s1 = inlined_call_operand.vmem [shape: bf16[128,128], index: 1, kind: input, shape index: {}]
  %s2 = inlined_call_operand.vmem [shape: f32[1,128], index: 2, kind: input, shape index: {}]
  %s3 = inlined_call_operand.vmem [shape: f32[8,128], index: 3, kind: output, shape index: {}]
  %s4 = sld [smem:[#allocation0]]
  $region22: #{_lambda_.21} parent=0
    _
  %s6 = ssub.s32 1, %s4
  %s7 = scalar_select 0, %s6, %s4
  // Predicated region
  $region2: #{_lambda_.21} parent=0 // pred_check
    _
  $region3: #{_lambda_.21} parent=0 // pred_check_branch
    %9 = sbr.rel (0) target = $region5
  $region4: #{_lambda_.21} parent=0 // pred_region
    _
  $region5: #{_lambda_.21} parent=0 // pred_fallthru
    _
  // Predicated region
  $region6: #{_lambda_.21} parent=0 // pred_check
    _
  $region7: #{_lambda_.21} parent=0 // pred_check_branch
    %11 = sbr.rel (0) target = $region9
  $region8: #{_lambda_.21} parent=0 // pred_region
    _
  $region9: #{_lambda_.21} parent=0 // pred_fallthru
    _
  // Predicated region
  $region10: #{_lambda_.21} parent=0 // pred_check
    _
  $region11: #{_lambda_.21} parent=0 // pred_check_branch
    %13 = sbr.rel (0) target = $region13
  $region12: #{_lambda_.21} parent=0 // pred_region
    _
  $region13: #{_lambda_.21} parent=0 // pred_fallthru
    _
  %v15 = vld [vmem:[%s0] sm:$0x3]
  %v16 = vld [vmem:[%s0 + $0x2] sm:$0x3]
  %v17 = vld [vmem:[%s0 + $0x4] sm:$0x3]
  %v18 = vld [vmem:[%s0 + $0x6] sm:$0x3]
  %v19 = vld [vmem:[%s0 + $0x8] sm:$0x3]
  %v20 = vld [vmem:[%s0 + $0xa] sm:$0x3]
  %v21 = vld [vmem:[%s0 + $0xc] sm:$0x3]
  %v22 = vld [vmem:[%s0 + $0xe] sm:$0x3]
  %v23 = vunpack.c.l.bf16 %v15
  %v24 = vunpack.c.l.bf16 %v16
  %v25 = vunpack.c.l.bf16 %v17
  %v26 = vunpack.c.l.bf16 %v18
  %v27 = vunpack.c.l.bf16 %v19
  %v28 = vunpack.c.l.bf16 %v20
  %v29 = vunpack.c.l.bf16 %v21
  %v30 = vunpack.c.l.bf16 %v22
  %vm31 = vcmask 1043456
  %v32 = vsel %vm31, %v23, 0.0
  %v33 = vrot.slane %v32, 4
  %v34 = vadd.f32 %v32, %v33
  %v35 = vrot.slane %v34, 2
  %v36 = vadd.f32 %v34, %v35
  %v37 = vrot.slane %v36, 1
  %v38 = vadd.f32 %v36, %v37
  %v39 = vsel %vm31, %v24, 0.0
  %v40 = vrot.slane %v39, 4
  %v41 = vadd.f32 %v39, %v40
  %v42 = vrot.slane %v41, 2
  %v43 = vadd.f32 %v41, %v42
  %v44 = vrot.slane %v43, 1
  %v45 = vadd.f32 %v43, %v44
  %v46 = vsel %vm31, %v25, 0.0
  %v47 = vrot.slane %v46, 4
  %v48 = vadd.f32 %v46, %v47
  %v49 = vrot.slane %v48, 2
  %v50 = vadd.f32 %v48, %v49
  %v51 = vrot.slane %v50, 1
  %v52 = vadd.f32 %v50, %v51
  %v53 = vsel %vm31, %v26, 0.0
  %v54 = vrot.slane %v53, 4
  %v55 = vadd.f32 %v53, %v54
  %v56 = vrot.slane %v55, 2
  %v57 = vadd.f32 %v55, %v56
  %v58 = vrot.slane %v57, 1
  %v59 = vadd.f32 %v57, %v58
  %v60 = vsel %vm31, %v27, 0.0
  %v61 = vrot.slane %v60, 4
  %v62 = vadd.f32 %v60, %v61
  %v63 = vrot.slane %v62, 2
  %v64 = vadd.f32 %v62, %v63
  %v65 = vrot.slane %v64, 1
  %v66 = vadd.f32 %v64, %v65
  %v67 = vsel %vm31, %v28, 0.0
  %v68 = vrot.slane %v67, 4
  %v69 = vadd.f32 %v67, %v68
  %v70 = vrot.slane %v69, 2
  %v71 = vadd.f32 %v69, %v70
  %v72 = vrot.slane %v71, 1
  %v73 = vadd.f32 %v71, %v72
  %v74 = vsel %vm31, %v29, 0.0
  %v75 = vrot.slane %v74, 4
  %v76 = vadd.f32 %v74, %v75
  %v77 = vrot.slane %v76, 2
  %v78 = vadd.f32 %v76, %v77
  %v79 = vrot.slane %v78, 1
  %v80 = vadd.f32 %v78, %v79
  %v81 = vsel %vm31, %v30, 0.0
  %v82 = vrot.slane %v81, 4
  %v83 = vadd.f32 %v81, %v82
  %v84 = vrot.slane %v83, 2
  %v85 = vadd.f32 %v83, %v84
  %v86 = vrot.slane %v85, 1
  %v87 = vadd.f32 %v85, %v86
  %v88 = vrcp.pop 4.0
  %v89 = vmul.f32 %v38, %v88
  %v90 = vmul.f32 %v45, %v88
  %v91 = vmul.f32 %v52, %v88
  %v92 = vmul.f32 %v59, %v88
  %v93 = vmul.f32 %v66, %v88
  %v94 = vmul.f32 %v73, %v88
  %v95 = vmul.f32 %v80, %v88
  %v96 = vmul.f32 %v87, %v88
  %v97 = vpack.c.bf16 %v89, %v89
  %v98 = vpack.c.bf16 %v90, %v90
  %v99 = vpack.c.bf16 %v91, %v91
  %v100 = vpack.c.bf16 %v92, %v92
  %v101 = vpack.c.bf16 %v93, %v93
  %v102 = vpack.c.bf16 %v94, %v94
  %v103 = vpack.c.bf16 %v95, %v95
  %v104 = vpack.c.bf16 %v96, %v96
  %v105 = vld [vmem:[%s1] sm:$0xf]
  %v106 = vld [vmem:[%s1 + $0x4] sm:$0xf]
  %v107 = vld [vmem:[%s1 + $0x8] sm:$0xf]
  %v108 = vld [vmem:[%s1 + $0xc] sm:$0xf]
  %v109 = vld [vmem:[%s1 + $0x10] sm:$0xf]
  %v110 = vld [vmem:[%s1 + $0x14] sm:$0xf]
  %v111 = vld [vmem:[%s1 + $0x18] sm:$0xf]
  %v112 = vld [vmem:[%s1 + $0x1c] sm:$0xf]
  %v113 = vld [vmem:[%s1 + $0x20] sm:$0xf]
  %v114 = vld [vmem:[%s1 + $0x24] sm:$0xf]
  %v115 = vld [vmem:[%s1 + $0x28] sm:$0xf]
  %v116 = vld [vmem:[%s1 + $0x2c] sm:$0xf]
  %v117 = vld [vmem:[%s1 + $0x30] sm:$0xf]
  %v118 = vld [vmem:[%s1 + $0x34] sm:$0xf]
  %v119 = vld [vmem:[%s1 + $0x38] sm:$0xf]
  %v120 = vld [vmem:[%s1 + $0x3c] sm:$0xf]
  %v121 = vld [vmem:[%s2] sm:$0x1]
  %v123 = vlaneseq
  %v124 = vshrl.u32 %v123, 7
  %v125 = vsub.s32 0, %v124
  %v126 = vrot.slane %v121, %v125
  %v136 = vunpack.c.l.b16 %v97
  %v137 = vunpack.c.l.b16 %v98
  %v138 = vunpack.c.l.b16 %v99
  %v139 = vunpack.c.l.b16 %v100
  %v140 = vunpack.c.l.b16 %v101
  %v141 = vunpack.c.l.b16 %v102
  %v142 = vunpack.c.l.b16 %v103
  %v143 = vunpack.c.l.b16 %v104
  %vm144 = vcmask 1041409
  %v145 = vsel %vm144, %v137, %v136
  %vm146 = vcmask 1042434
  %v147 = vsel %vm146, %v138, %v145
  %vm148 = vcmask 1043459
  %v149 = vsel %vm148, %v139, %v147
  %vm150 = vcmask 1044484
  %v151 = vsel %vm150, %v140, %v149
  %vm152 = vcmask 1045509
  %v153 = vsel %vm152, %v141, %v151
  %vm154 = vcmask 1046534
  %v155 = vsel %vm154, %v142, %v153
  %vm156 = vcmask 1047559
  %v157 = vsel %vm156, %v143, %v155
  %v158 = vpack.c.b16 %v157, %v157
  %v176 = vunpack.c.l.b16 %v105
  %v177 = vunpack.c.l.b16 %v106
  %v178 = vunpack.c.l.b16 %v107
  %v179 = vunpack.c.l.b16 %v108
  %v180 = vunpack.c.l.b16 %v109
  %v181 = vunpack.c.l.b16 %v110
  %v182 = vunpack.c.l.b16 %v111
  %v183 = vunpack.c.l.b16 %v112
  %v184 = vunpack.c.l.b16 %v113
  %v185 = vunpack.c.l.b16 %v114
  %v186 = vunpack.c.l.b16 %v115
  %v187 = vunpack.c.l.b16 %v116
  %v188 = vunpack.c.l.b16 %v117
  %v189 = vunpack.c.l.b16 %v118
  %v190 = vunpack.c.l.b16 %v119
  %v191 = vunpack.c.l.b16 %v120
  %v192 = vpack.c.b16 %v177, %v176
  %v193 = vpack.c.b16 %v179, %v178
  %v194 = vpack.c.b16 %v181, %v180
  %v195 = vpack.c.b16 %v183, %v182
  %v196 = vpack.c.b16 %v185, %v184
  %v197 = vpack.c.b16 %v187, %v186
  %v198 = vpack.c.b16 %v189, %v188
  %v199 = vpack.c.b16 %v191, %v190
  %208 = vmatprep.subr.bf16.mxu0 0
  %209 = vmatpush1.bf16.msra.mxu0 %v199
  %210 = vmatprep.subr.bf16.mxu0 0
  %211 = vmatpush1.bf16.msra.mxu0 %v198
  %212 = vmatprep.subr.bf16.mxu0 0
  %213 = vmatpush1.bf16.msra.mxu0 %v197
  %214 = vmatprep.subr.bf16.mxu0 0
  %215 = vmatpush1.bf16.msra.mxu0 %v196
  %216 = vmatprep.subr.bf16.mxu0 0
  %217 = vmatpush1.bf16.msra.mxu0 %v195
  %218 = vmatprep.subr.bf16.mxu0 0
  %219 = vmatpush1.bf16.msra.mxu0 %v194
  %220 = vmatprep.subr.bf16.mxu0 0
  %221 = vmatpush1.bf16.msra.mxu0 %v193
  %222 = vmatprep.subr.bf16.mxu0 0
  %223 = vmatpush1.bf16.msra.mxu0 %v192
  %224 = vmatprep.subr.bf16.mxu0 0
  %225 = vmatpush2.bf16.msra.mxu0 0
  %226 = vmatprep.subr.bf16.mxu0 0
  %227 = vmatpush2.bf16.msra.mxu0 0
  %228 = vmatprep.subr.bf16.mxu0 0
  %229 = vmatpush2.bf16.msra.mxu0 0
  %230 = vmatprep.subr.bf16.mxu0 0
  %231 = vmatpush2.bf16.msra.mxu0 0
  %232 = vmatprep.subr.bf16.mxu0 0
  %233 = vmatpush2.bf16.msra.mxu0 0
  %234 = vmatprep.subr.bf16.mxu0 0
  %235 = vmatpush2.bf16.msra.mxu0 0
  %236 = vmatprep.subr.bf16.mxu0 0
  %237 = vmatpush2.bf16.msra.mxu0 0
  %238 = vmatprep.subr.bf16.mxu0 0
  %239 = vmatpush2.bf16.msra.mxu0 0
  %240 = vmatprep.mubr.bf16.mxu0 0
  %241 = vmatmul.mubr.bf16.gmra.mxu0 %v158
  %v242 = vpop.f32.mrf.mxu0
  %v243 = vadd.f32 %v126, %v242
  %v244 = vpop.f32.mrf.mxu0
  %v245 = vpop.f32.mrf.mxu0
  %v246 = vpop.f32.mrf.mxu0
  %247 = vdwg.mxu0
  %248 = vst [vmem:[%s3] sm:$0xff] %v243
  // Predicated region
  $region14: #{_lambda_.21} parent=0 // pred_check
    _
  $region15: #{_lambda_.21} parent=0 // pred_check_branch
    %250 = sbr.rel (0) target = $region17
  $region16: #{_lambda_.21} parent=0 // pred_region
    _
  $region17: #{_lambda_.21} parent=0 // pred_fallthru
    _
  // Predicated region
  $region18: #{_lambda_.21} parent=0 // pred_check
    _
  $region19: #{_lambda_.21} parent=0 // pred_check_branch
    %252 = sbr.rel (0) target = $region21
  $region20: #{_lambda_.21} parent=0 // pred_region
    _
  $region21: #{_lambda_.21} parent=0 // pred_fallthru
    _

// kernel: _lambda_.20
$region0: #{_lambda_.20}
  #allocation0 [shape = 'u32[]', space=smem, size = 0x4, offset = 0x4, fixed_abs, tag = 'smem constant byte address 0x4 - core index']
  #allocation1 [shape = 'u32[144,128]{1,0:T(1,128)}', space=vmem, size = 0x12000, scoped, tag = 'internal scratch']
  %s0 = inlined_call_operand.vmem [shape: bf16[16,768], index: 0, kind: input, shape index: {}]
  %s1 = inlined_call_operand.vmem [shape: bf16[768,128], index: 1, kind: input, shape index: {}]
  %s2 = inlined_call_operand.vmem [shape: f32[1,128], index: 2, kind: input, shape index: {}]
  %s3 = inlined_call_operand.vmem [shape: bf16[16,128], index: 3, kind: input, shape index: {}]
  %s4 = inlined_call_operand.vmem [shape: bf16[16,128], index: 4, kind: output, shape index: {}]
  %s5 = sld [smem:[#allocation0]]
  $region26: #{_lambda_.20} parent=0
    _
  %s7 = ssub.s32 1, %s5
  %s8 = scalar_select 0, %s7, %s5
  // Predicated region
  $region2: #{_lambda_.20} parent=0 // pred_check
    _
  $region3: #{_lambda_.20} parent=0 // pred_check_branch
    %10 = sbr.rel (0) target = $region5
  $region4: #{_lambda_.20} parent=0 // pred_region
    _
  $region5: #{_lambda_.20} parent=0 // pred_fallthru
    _
  // Predicated region
  $region6: #{_lambda_.20} parent=0 // pred_check
    _
  $region7: #{_lambda_.20} parent=0 // pred_check_branch
    %12 = sbr.rel (0) target = $region9
  $region8: #{_lambda_.20} parent=0 // pred_region
    _
  $region9: #{_lambda_.20} parent=0 // pred_fallthru
    _
  // Predicated region
  $region10: #{_lambda_.20} parent=0 // pred_check
    _
  $region11: #{_lambda_.20} parent=0 // pred_check_branch
    %14 = sbr.rel (0) target = $region13
  $region12: #{_lambda_.20} parent=0 // pred_region
    _
  $region13: #{_lambda_.20} parent=0 // pred_fallthru
    _
  // Predicated region
  $region14: #{_lambda_.20} parent=0 // pred_check
    _
  $region15: #{_lambda_.20} parent=0 // pred_check_branch
    %16 = sbr.rel (0) target = $region17
  $region16: #{_lambda_.20} parent=0 // pred_region
    _
  $region17: #{_lambda_.20} parent=0 // pred_fallthru
    _
  %v18 = vld [vmem:[%s0] sm:$0xff]
  %v19 = vld [vmem:[%s0 + $0x8] sm:$0xff]
  %v20 = vld [vmem:[%s0 + $0x10] sm:$0xff]
  %v21 = vld [vmem:[%s0 + $0x18] sm:$0xff]
  %v22 = vld [vmem:[%s0 + $0x20] sm:$0xff]
  %v23 = vld [vmem:[%s0 + $0x28] sm:$0xff]
  %v24 = vld [vmem:[%s1] sm:$0xf]
  %v25 = vld [vmem:[%s1 + $0x4] sm:$0xf]
  %v26 = vld [vmem:[%s1 + $0x8] sm:$0xf]
  %v27 = vld [vmem:[%s1 + $0xc] sm:$0xf]
  %v28 = vld [vmem:[%s1 + $0x10] sm:$0xf]
  %v29 = vld [vmem:[%s1 + $0x14] sm:$0xf]
  %v30 = vld [vmem:[%s1 + $0x18] sm:$0xf]
  %v31 = vld [vmem:[%s1 + $0x1c] sm:$0xf]
  %v32 = vld [vmem:[%s1 + $0x20] sm:$0xf]
  %v33 = vld [vmem:[%s1 + $0x24] sm:$0xf]
  %v34 = vld [vmem:[%s1 + $0x28] sm:$0xf]
  %v35 = vld [vmem:[%s1 + $0x2c] sm:$0xf]
  %v36 = vld [vmem:[%s1 + $0x30] sm:$0xf]
  %v37 = vld [vmem:[%s1 + $0x34] sm:$0xf]
  %v38 = vld [vmem:[%s1 + $0x38] sm:$0xf]
  %v39 = vld [vmem:[%s1 + $0x3c] sm:$0xf]
  %v40 = vld [vmem:[%s1 + $0x40] sm:$0xf]
  %v41 = vld [vmem:[%s1 + $0x44] sm:$0xf]
  %v42 = vld [vmem:[%s1 + $0x48] sm:$0xf]
  %v43 = vld [vmem:[%s1 + $0x4c] sm:$0xf]
  %v44 = vld [vmem:[%s1 + $0x50] sm:$0xf]
  %v45 = vld [vmem:[%s1 + $0x54] sm:$0xf]
  %v46 = vld [vmem:[%s1 + $0x58] sm:$0xf]
  %v47 = vld [vmem:[%s1 + $0x5c] sm:$0xf]
  %v48 = vld [vmem:[%s1 + $0x60] sm:$0xf]
  %v49 = vld [vmem:[%s1 + $0x64] sm:$0xf]
  %v50 = vld [vmem:[%s1 + $0x68] sm:$0xf]
  %v51 = vld [vmem:[%s1 + $0x6c] sm:$0xf]
  %v52 = vld [vmem:[%s1 + $0x70] sm:$0xf]
  %v53 = vld [vmem:[%s1 + $0x74] sm:$0xf]
  %v54 = vld [vmem:[%s1 + $0x78] sm:$0xf]
  %v55 = vld [vmem:[%s1 + $0x7c] sm:$0xf]
  %v56 = vld [vmem:[%s1 + $0x80] sm:$0xf]
  %v57 = vld [vmem:[%s1 + $0x84] sm:$0xf]
  %v58 = vld [vmem:[%s1 + $0x88] sm:$0xf]
  %v59 = vld [vmem:[%s1 + $0x8c] sm:$0xf]
  %v60 = vld [vmem:[%s1 + $0x90] sm:$0xf]
  %v61 = vld [vmem:[%s1 + $0x94] sm:$0xf]
  %v62 = vld [vmem:[%s1 + $0x98] sm:$0xf]
  %v63 = vld [vmem:[%s1 + $0x9c] sm:$0xf]
  %v64 = vld [vmem:[%s1 + $0xa0] sm:$0xf]
  %v65 = vld [vmem:[%s1 + $0xa4] sm:$0xf]
  %v66 = vld [vmem:[%s1 + $0xa8] sm:$0xf]
  %v67 = vld [vmem:[%s1 + $0xac] sm:$0xf]
  %v68 = vld [vmem:[%s1 + $0xb0] sm:$0xf]
  %v69 = vld [vmem:[%s1 + $0xb4] sm:$0xf]
  %v70 = vld [vmem:[%s1 + $0xb8] sm:$0xf]
  %v71 = vld [vmem:[%s1 + $0xbc] sm:$0xf]
  %v72 = vld [vmem:[%s1 + $0xc0] sm:$0xf]
  %v73 = vld [vmem:[%s1 + $0xc4] sm:$0xf]
  %v74 = vld [vmem:[%s1 + $0xc8] sm:$0xf]
  %v75 = vld [vmem:[%s1 + $0xcc] sm:$0xf]
  %v76 = vld [vmem:[%s1 + $0xd0] sm:$0xf]
  %v77 = vld [vmem:[%s1 + $0xd4] sm:$0xf]
  %v78 = vld [vmem:[%s1 + $0xd8] sm:$0xf]
  %v79 = vld [vmem:[%s1 + $0xdc] sm:$0xf]
  %v80 = vld [vmem:[%s1 + $0xe0] sm:$0xf]
  %v81 = vld [vmem:[%s1 + $0xe4] sm:$0xf]
  %v82 = vld [vmem:[%s1 + $0xe8] sm:$0xf]
  %v83 = vld [vmem:[%s1 + $0xec] sm:$0xf]
  %v84 = vld [vmem:[%s1 + $0xf0] sm:$0xf]
  %v85 = vld [vmem:[%s1 + $0xf4] sm:$0xf]
  %v86 = vld [vmem:[%s1 + $0xf8] sm:$0xf]
  %v87 = vld [vmem:[%s1 + $0xfc] sm:$0xf]
  %v88 = vld [vmem:[%s1 + $0x100] sm:$0xf]
  %v89 = vld [vmem:[%s1 + $0x104] sm:$0xf]
  %v90 = vld [vmem:[%s1 + $0x108] sm:$0xf]
  %v91 = vld [vmem:[%s1 + $0x10c] sm:$0xf]
  %v92 = vld [vmem:[%s1 + $0x110] sm:$0xf]
  %v93 = vld [vmem:[%s1 + $0x114] sm:$0xf]
  %v94 = vld [vmem:[%s1 + $0x118] sm:$0xf]
  %v95 = vld [vmem:[%s1 + $0x11c] sm:$0xf]
  %v96 = vld [vmem:[%s1 + $0x120] sm:$0xf]
  %v97 = vld [vmem:[%s1 + $0x124] sm:$0xf]
  %v98 = vld [vmem:[%s1 + $0x128] sm:$0xf]
  %v99 = vld [vmem:[%s1 + $0x12c] sm:$0xf]
  %v100 = vld [vmem:[%s1 + $0x130] sm:$0xf]
  %v101 = vld [vmem:[%s1 + $0x134] sm:$0xf]
  %v102 = vld [vmem:[%s1 + $0x138] sm:$0xf]
  %v103 = vld [vmem:[%s1 + $0x13c] sm:$0xf]
  %v104 = vld [vmem:[%s1 + $0x140] sm:$0xf]
  %v105 = vld [vmem:[%s1 + $0x144] sm:$0xf]
  %v106 = vld [vmem:[%s1 + $0x148] sm:$0xf]
  %v107 = vld [vmem:[%s1 + $0x14c] sm:$0xf]
  %v108 = vld [vmem:[%s1 + $0x150] sm:$0xf]
  %v109 = vld [vmem:[%s1 + $0x154] sm:$0xf]
  %v110 = vld [vmem:[%s1 + $0x158] sm:$0xf]
  %v111 = vld [vmem:[%s1 + $0x15c] sm:$0xf]
  %v112 = vld [vmem:[%s1 + $0x160] sm:$0xf]
  %v113 = vld [vmem:[%s1 + $0x164] sm:$0xf]
  %v114 = vld [vmem:[%s1 + $0x168] sm:$0xf]
  %v115 = vld [vmem:[%s1 + $0x16c] sm:$0xf]
  %v116 = vld [vmem:[%s1 + $0x170] sm:$0xf]
  %v117 = vld [vmem:[%s1 + $0x174] sm:$0xf]
  %v118 = vld [vmem:[%s1 + $0x178] sm:$0xf]
  %v119 = vld [vmem:[%s1 + $0x17c] sm:$0xf]
  %v120 = vld [vmem:[%s2] sm:$0x1]
  %v122 = vlaneseq
  %v123 = vshrl.u32 %v122, 7
  %v124 = vsub.s32 0, %v123
  %v125 = vrot.slane %v120, %v124
  %v133 = vunpack.c.l.b16 %v18
  %v134 = vunpack.c.h.b16 %v18
  %v135 = vunpack.c.l.b16 %v19
  %v136 = vunpack.c.h.b16 %v19
  %v137 = vunpack.c.l.b16 %v20
  %v138 = vunpack.c.h.b16 %v20
  %v139 = vunpack.c.l.b16 %v21
  %v140 = vunpack.c.h.b16 %v21
  %v141 = vunpack.c.l.b16 %v22
  %v142 = vunpack.c.h.b16 %v22
  %v143 = vunpack.c.l.b16 %v23
  %v144 = vunpack.c.h.b16 %v23
  %v145 = vpack.c.b16 %v139, %v133
  %v146 = vpack.c.b16 %v140, %v134
  %v147 = vpack.c.b16 %v141, %v135
  %v148 = vpack.c.b16 %v142, %v136
  %v149 = vpack.c.b16 %v143, %v137
  %v150 = vpack.c.b16 %v144, %v138
  %v253 = vunpack.c.l.b16 %v24
  %v254 = vunpack.c.l.b16 %v25
  %v255 = vunpack.c.l.b16 %v26
  %v256 = vunpack.c.l.b16 %v27
  %v257 = vunpack.c.l.b16 %v28
  %v258 = vunpack.c.l.b16 %v29
  %v259 = vunpack.c.l.b16 %v30
  %v260 = vunpack.c.l.b16 %v31
  %v261 = vunpack.c.l.b16 %v32
  %v262 = vunpack.c.l.b16 %v33
  %v263 = vunpack.c.l.b16 %v34
  %v264 = vunpack.c.l.b16 %v35
  %v265 = vunpack.c.l.b16 %v36
  %v266 = vunpack.c.l.b16 %v37
  %v267 = vunpack.c.l.b16 %v38
  %v268 = vunpack.c.l.b16 %v39
  %v269 = vunpack.c.l.b16 %v40
  %v270 = vunpack.c.l.b16 %v41
  %v271 = vunpack.c.l.b16 %v42
  %v272 = vunpack.c.l.b16 %v43
  %v273 = vunpack.c.l.b16 %v44
  %v274 = vunpack.c.l.b16 %v45
  %v275 = vunpack.c.l.b16 %v46
  %v276 = vunpack.c.l.b16 %v47
  %v277 = vunpack.c.l.b16 %v48
  %v278 = vunpack.c.l.b16 %v49
  %v279 = vunpack.c.l.b16 %v50
  %v280 = vunpack.c.l.b16 %v51
  %v281 = vunpack.c.l.b16 %v52
  %v282 = vunpack.c.l.b16 %v53
  %v283 = vunpack.c.l.b16 %v54
  %v284 = vunpack.c.l.b16 %v55
  %v285 = vunpack.c.l.b16 %v56
  %v286 = vunpack.c.l.b16 %v57
  %v287 = vunpack.c.l.b16 %v58
  %v288 = vunpack.c.l.b16 %v59
  %v289 = vunpack.c.l.b16 %v60
  %v290 = vunpack.c.l.b16 %v61
  %v291 = vunpack.c.l.b16 %v62
  %v292 = vunpack.c.l.b16 %v63
  %v293 = vunpack.c.l.b16 %v64
  %v294 = vunpack.c.l.b16 %v65
  %v295 = vunpack.c.l.b16 %v66
  %v296 = vunpack.c.l.b16 %v67
  %v297 = vunpack.c.l.b16 %v68
  %v298 = vunpack.c.l.b16 %v69
  %v299 = vunpack.c.l.b16 %v70
  %v300 = vunpack.c.l.b16 %v71
  %v301 = vunpack.c.l.b16 %v72
  %v302 = vunpack.c.l.b16 %v73
  %v303 = vunpack.c.l.b16 %v74
  %v304 = vunpack.c.l.b16 %v75
  %v305 = vunpack.c.l.b16 %v76
  %v306 = vunpack.c.l.b16 %v77
  %v307 = vunpack.c.l.b16 %v78
  %v308 = vunpack.c.l.b16 %v79
  %v309 = vunpack.c.l.b16 %v80
  %v310 = vunpack.c.l.b16 %v81
  %v311 = vunpack.c.l.b16 %v82
  %v312 = vunpack.c.l.b16 %v83
  %v313 = vunpack.c.l.b16 %v84
  %v314 = vunpack.c.l.b16 %v85
  %v315 = vunpack.c.l.b16 %v86
  %v316 = vunpack.c.l.b16 %v87
  %v317 = vunpack.c.l.b16 %v88
  %v318 = vunpack.c.l.b16 %v89
  %v319 = vunpack.c.l.b16 %v90
  %v320 = vunpack.c.l.b16 %v91
  %v321 = vunpack.c.l.b16 %v92
  %v322 = vunpack.c.l.b16 %v93
  %v323 = vunpack.c.l.b16 %v94
  %v324 = vunpack.c.l.b16 %v95
  %v325 = vunpack.c.l.b16 %v96
  %v326 = vunpack.c.l.b16 %v97
  %v327 = vunpack.c.l.b16 %v98
  %v328 = vunpack.c.l.b16 %v99
  %v329 = vunpack.c.l.b16 %v100
  %v330 = vunpack.c.l.b16 %v101
  %v331 = vunpack.c.l.b16 %v102
  %v332 = vunpack.c.l.b16 %v103
  %v333 = vunpack.c.l.b16 %v104
  %v334 = vunpack.c.l.b16 %v105
  %v335 = vunpack.c.l.b16 %v106
  %v336 = vunpack.c.l.b16 %v107
  %v337 = vunpack.c.l.b16 %v108
  %v338 = vunpack.c.l.b16 %v109
  %v339 = vunpack.c.l.b16 %v110
  %v340 = vunpack.c.l.b16 %v111
  %v341 = vunpack.c.l.b16 %v112
  %v342 = vunpack.c.l.b16 %v113
  %v343 = vunpack.c.l.b16 %v114
  %v344 = vunpack.c.l.b16 %v115
  %v345 = vunpack.c.l.b16 %v116
  %v346 = vunpack.c.l.b16 %v117
  %v347 = vunpack.c.l.b16 %v118
  %v348 = vunpack.c.l.b16 %v119
  %v349 = vpack.c.b16 %v254, %v253
  %v350 = vpack.c.b16 %v256, %v255
  %v351 = vpack.c.b16 %v258, %v257
  %v352 = vpack.c.b16 %v260, %v259
  %v353 = vpack.c.b16 %v262, %v261
  %v354 = vpack.c.b16 %v264, %v263
  %v355 = vpack.c.b16 %v266, %v265
  %v356 = vpack.c.b16 %v268, %v267
  %v357 = vpack.c.b16 %v270, %v269
  %v358 = vpack.c.b16 %v272, %v271
  %v359 = vpack.c.b16 %v274, %v273
  %v360 = vpack.c.b16 %v276, %v275
  %v361 = vpack.c.b16 %v278, %v277
  %v362 = vpack.c.b16 %v280, %v279
  %v363 = vpack.c.b16 %v282, %v281
  %v364 = vpack.c.b16 %v284, %v283
  %v365 = vpack.c.b16 %v286, %v285
  %v366 = vpack.c.b16 %v288, %v287
  %v367 = vpack.c.b16 %v290, %v289
  %v368 = vpack.c.b16 %v292, %v291
  %v369 = vpack.c.b16 %v294, %v293
  %v370 = vpack.c.b16 %v296, %v295
  %v371 = vpack.c.b16 %v298, %v297
  %v372 = vpack.c.b16 %v300, %v299
  %v373 = vpack.c.b16 %v302, %v301
  %v374 = vpack.c.b16 %v304, %v303
  %v375 = vpack.c.b16 %v306, %v305
  %v376 = vpack.c.b16 %v308, %v307
  %v377 = vpack.c.b16 %v310, %v309
  %v378 = vpack.c.b16 %v312, %v311
  %v379 = vpack.c.b16 %v314, %v313
  %v380 = vpack.c.b16 %v316, %v315
  %v381 = vpack.c.b16 %v318, %v317
  %v382 = vpack.c.b16 %v320, %v319
  %v383 = vpack.c.b16 %v322, %v321
  %v384 = vpack.c.b16 %v324, %v323
  %v385 = vpack.c.b16 %v326, %v325
  %v386 = vpack.c.b16 %v328, %v327
  %v387 = vpack.c.b16 %v330, %v329
  %v388 = vpack.c.b16 %v332, %v331
  %v389 = vpack.c.b16 %v334, %v333
  %v390 = vpack.c.b16 %v336, %v335
  %v391 = vpack.c.b16 %v338, %v337
  %v392 = vpack.c.b16 %v340, %v339
  %v393 = vpack.c.b16 %v342, %v341
  %v394 = vpack.c.b16 %v344, %v343
  %v395 = vpack.c.b16 %v346, %v345
  %v396 = vpack.c.b16 %v348, %v347
  %445 = vmatprep.subr.bf16.mxu0 0
  %446 = vmatpush1.bf16.msra.mxu0 %v356
  %447 = vmatprep.subr.bf16.mxu0 0
  %448 = vmatpush1.bf16.msra.mxu0 %v355
  %449 = vmatprep.subr.bf16.mxu0 0
  %450 = vmatpush1.bf16.msra.mxu0 %v354
  %451 = vmatprep.subr.bf16.mxu0 0
  %452 = vmatpush1.bf16.msra.mxu0 %v353
  %453 = vmatprep.subr.bf16.mxu0 0
  %454 = vmatpush1.bf16.msra.mxu0 %v352
  %455 = vmatprep.subr.bf16.mxu0 0
  %456 = vmatpush1.bf16.msra.mxu0 %v351
  %457 = vmatprep.subr.bf16.mxu0 0
  %458 = vmatpush1.bf16.msra.mxu0 %v350
  %459 = vmatprep.subr.bf16.mxu0 0
  %460 = vmatpush1.bf16.msra.mxu0 %v349
  %461 = vmatprep.subr.bf16.mxu0 0
  %462 = vmatpush2.bf16.msra.mxu0 %v364
  %463 = vmatprep.subr.bf16.mxu0 0
  %464 = vmatpush2.bf16.msra.mxu0 %v363
  %465 = vmatprep.subr.bf16.mxu0 0
  %466 = vmatpush2.bf16.msra.mxu0 %v362
  %467 = vmatprep.subr.bf16.mxu0 0
  %468 = vmatpush2.bf16.msra.mxu0 %v361
  %469 = vmatprep.subr.bf16.mxu0 0
  %470 = vmatpush2.bf16.msra.mxu0 %v360
  %471 = vmatprep.subr.bf16.mxu0 0
  %472 = vmatpush2.bf16.msra.mxu0 %v359
  %473 = vmatprep.subr.bf16.mxu0 0
  %474 = vmatpush2.bf16.msra.mxu0 %v358
  %475 = vmatprep.subr.bf16.mxu0 0
  %476 = vmatpush2.bf16.msra.mxu0 %v357
  %477 = vmatprep.mubr.bf16.mxu0 %v146
  %478 = vmatmul.mubr.bf16.gmra.mxu0 %v145
  %v479 = vpop.f32.mrf.mxu0
  %v480 = vadd.f32 %v125, %v479
  %v481 = vpop.f32.mrf.mxu0
  %v482 = vpop.f32.mrf.mxu0
  %v483 = vadd.f32 %v125, %v482
  %v484 = vpop.f32.mrf.mxu0
  %485 = vdwg.mxu0
  %486 = vmatprep.subr.bf16.mxu0 0
  %487 = vmatpush1.bf16.msra.mxu0 %v372
  %488 = vmatprep.subr.bf16.mxu0 0
  %489 = vmatpush1.bf16.msra.mxu0 %v371
  %490 = vmatprep.subr.bf16.mxu0 0
  %491 = vmatpush1.bf16.msra.mxu0 %v370
  %492 = vmatprep.subr.bf16.mxu0 0
  %493 = vmatpush1.bf16.msra.mxu0 %v369
  %494 = vmatprep.subr.bf16.mxu0 0
  %495 = vmatpush1.bf16.msra.mxu0 %v368
  %496 = vmatprep.subr.bf16.mxu0 0
  %497 = vmatpush1.bf16.msra.mxu0 %v367
  %498 = vmatprep.subr.bf16.mxu0 0
  %499 = vmatpush1.bf16.msra.mxu0 %v366
  %500 = vmatprep.subr.bf16.mxu0 0
  %501 = vmatpush1.bf16.msra.mxu0 %v365
  %502 = vmatprep.subr.bf16.mxu0 0
  %503 = vmatpush2.bf16.msra.mxu0 %v380
  %504 = vmatprep.subr.bf16.mxu0 0
  %505 = vmatpush2.bf16.msra.mxu0 %v379
  %506 = vmatprep.subr.bf16.mxu0 0
  %507 = vmatpush2.bf16.msra.mxu0 %v378
  %508 = vmatprep.subr.bf16.mxu0 0
  %509 = vmatpush2.bf16.msra.mxu0 %v377
  %510 = vmatprep.subr.bf16.mxu0 0
  %511 = vmatpush2.bf16.msra.mxu0 %v376
  %512 = vmatprep.subr.bf16.mxu0 0
  %513 = vmatpush2.bf16.msra.mxu0 %v375
  %514 = vmatprep.subr.bf16.mxu0 0
  %515 = vmatpush2.bf16.msra.mxu0 %v374
  %516 = vmatprep.subr.bf16.mxu0 0
  %517 = vmatpush2.bf16.msra.mxu0 %v373
  %518 = vmatprep.mubr.bf16.mxu0 %v148
  %519 = vmatmul.mubr.bf16.gmra.mxu0 %v147
  %v520 = vpop.f32.mrf.mxu0
  %v521 = vadd.f32 %v480, %v520
  %v522 = vpop.f32.mrf.mxu0
  %v523 = vpop.f32.mrf.mxu0
  %v524 = vadd.f32 %v483, %v523
  %v525 = vpop.f32.mrf.mxu0
  %526 = vdwg.mxu0
  %527 = vmatprep.subr.bf16.mxu0 0
  %528 = vmatpush1.bf16.msra.mxu0 %v388
  %529 = vmatprep.subr.bf16.mxu0 0
  %530 = vmatpush1.bf16.msra.mxu0 %v387
  %531 = vmatprep.subr.bf16.mxu0 0
  %532 = vmatpush1.bf16.msra.mxu0 %v386
  %533 = vmatprep.subr.bf16.mxu0 0
  %534 = vmatpush1.bf16.msra.mxu0 %v385
  %535 = vmatprep.subr.bf16.mxu0 0
  %536 = vmatpush1.bf16.msra.mxu0 %v384
  %537 = vmatprep.subr.bf16.mxu0 0
  %538 = vmatpush1.bf16.msra.mxu0 %v383
  %539 = vmatprep.subr.bf16.mxu0 0
  %540 = vmatpush1.bf16.msra.mxu0 %v382
  %541 = vmatprep.subr.bf16.mxu0 0
  %542 = vmatpush1.bf16.msra.mxu0 %v381
  %543 = vmatprep.subr.bf16.mxu0 0
  %544 = vmatpush2.bf16.msra.mxu0 %v396
  %545 = vmatprep.subr.bf16.mxu0 0
  %546 = vmatpush2.bf16.msra.mxu0 %v395
  %547 = vmatprep.subr.bf16.mxu0 0
  %548 = vmatpush2.bf16.msra.mxu0 %v394
  %549 = vmatprep.subr.bf16.mxu0 0
  %550 = vmatpush2.bf16.msra.mxu0 %v393
  %551 = vmatprep.subr.bf16.mxu0 0
  %552 = vmatpush2.bf16.msra.mxu0 %v392
  %553 = vmatprep.subr.bf16.mxu0 0
  %554 = vmatpush2.bf16.msra.mxu0 %v391
  %555 = vmatprep.subr.bf16.mxu0 0
  %556 = vmatpush2.bf16.msra.mxu0 %v390
  %557 = vmatprep.subr.bf16.mxu0 0
  %558 = vmatpush2.bf16.msra.mxu0 %v389
  %559 = vmatprep.mubr.bf16.mxu0 %v150
  %560 = vmatmul.mubr.bf16.gmra.mxu0 %v149
  %v561 = vpop.f32.mrf.mxu0
  %v562 = vadd.f32 %v521, %v561
  %v563 = vpop.f32.mrf.mxu0
  %v564 = vpop.f32.mrf.mxu0
  %v565 = vadd.f32 %v524, %v564
  %v566 = vpop.f32.mrf.mxu0
  %567 = vdwg.mxu0
  %v568 = vld [vmem:[%s3] sm:$0xf]
  %v569 = vld [vmem:[%s3 + $0x4] sm:$0xf]
  %v570 = vunpack.c.l.bf16 %v568
  %v571 = vunpack.c.l.bf16 %v569
  %v572 = vadd.f32 %v562, %v570
  %v573 = vadd.f32 %v565, %v571
  %v574 = vmax.f32 %v572, 0.0
  %v575 = vmax.f32 %v573, 0.0
  %v576 = vpack.c.bf16 %v575, %v574
  %v578 = vunpack.c.l.b16 %v576
  %v579 = vunpack.c.h.b16 %v576
  %v580 = vpack.c.b16 %v578, %v578
  %v581 = vpack.c.b16 %v579, %v579
  %584 = vst [vmem:[%s4] sm:$0xf] %v580
  %585 = vst [vmem:[%s4 + $0x4] sm:$0xf] %v581
  // Predicated region
  $region18: #{_lambda_.20} parent=0 // pred_check
    _
  $region19: #{_lambda_.20} parent=0 // pred_check_branch
    %587 = sbr.rel (0) target = $region21
  $region20: #{_lambda_.20} parent=0 // pred_region
    _
  $region21: #{_lambda_.20} parent=0 // pred_fallthru
    _
  // Predicated region
  $region22: #{_lambda_.20} parent=0 // pred_check
    _
  $region23: #{_lambda_.20} parent=0 // pred_check_branch
    %589 = sbr.rel (0) target = $region25
  $region24: #{_lambda_.20} parent=0 // pred_region
    _
  $region25: #{_lambda_.20} parent=0 // pred_fallthru
    _

</llo_original>
